<compile_context>
chip_gen: v6e
topology: v6e:2x2x1
jax: 0.10.0
libtpu: 0.0.40
codegen_flags: <defaults>
</compile_context>

<pallas_src>
import functools

import jax
import jax.numpy as jnp
from jax.experimental import pallas as pl
from jax.experimental.pallas import tpu as pltpu

EPS = 1e-5                   # nn.BatchNorm2d default eps
LANES = 128                  # TPU lane width
MXU_DTYPE = jnp.bfloat16     # matmul operand dtype (BN stats stay f32)


def _round_up(a, b):
    return (a + b - 1) // b * b


# ----------------------------------------------------------------------------
# Kernel
# ----------------------------------------------------------------------------
def _conv_bn_relu_stage(src_ref, w_ref, bn_ref, H, W, cin, packed):
    """conv3x3(+bias) -> BatchNorm2d (batch stats) -> ReLU.

    src_ref: (N, H+2, Wp, CP) VMEM ref; real data at [:, 1:H+1, 1:W+1, :cin],
             zeros in the one-pixel halo and in lanes >= cin.
    w_ref:   packed=True : (CP, CP)   bf16, row t*cin + c = w[t//3, t%3, c, :]
             packed=False: (9*CP, CP) bf16, tap t occupies rows [t*CP : t*CP+cin]
    bn_ref:  (3, CP) f32 rows = conv bias, BN gamma, BN beta (zero padded).
    Returns the activation as an (N*H*W, CP) f32 value, rows ordered (n, h, w).
    Lanes >= cout stay exactly zero (zero weight cols / bias / gamma / beta).
    """
    N, CP = src_ref.shape[0], src_ref.shape[-1]
    M = N * H * W

    if packed:
        # Lane-pack the 9 taps into one K<=128 contraction group: tap t's real
        # channels are rotated to lanes [t*cin, t*cin+cin) (XLU work in slots
        # the matmul-bound kernel leaves idle) and summed; all other lanes of
        # every tap are zero so the adds only place data, never mix it.
        acc = None
        t = 0
        for dy in range(3):
            for dx in range(3):
                tap = src_ref[:, dy:dy + H, dx:dx + W, :]          # (N, H, W, CP)
                if t:
                    tap = pltpu.roll(tap, t * cin, axis=3)
                acc = tap if acc is None else acc + tap
                t += 1
        patches = acc.reshape(M, CP).astype(MXU_DTYPE)
        y = jnp.dot(patches, w_ref[...], preferred_element_type=jnp.float32)
    else:
        # General path: accumulate per-tap dots (K = CP each); the (M, 9*CP)
        # im2col matrix is never materialized.
        # TODO(synk): pair taps (K = 2*CP per dot) to fill the 256-deep MXU on
        # v6e/v7x.
        y = jnp.zeros((M, CP), jnp.float32)
        for t in range(9):
            dy, dx = t // 3, t % 3
            tap = src_ref[:, dy:dy + H, dx:dx + W, :].reshape(M, CP)
            y = y + jnp.dot(tap.astype(MXU_DTYPE),
                            w_ref[t * CP:(t + 1) * CP, :],
                            preferred_element_type=jnp.float32)

    y = y + bn_ref[0:1, :]                                          # conv bias

    # Training-mode BatchNorm2d: per-channel batch mean and *centered* biased
    # variance (two-pass; avoids E[y^2]-E[y]^2 cancellation), all in f32.
    # TODO(synk): for large M, accumulate these sums per M-tile across a grid
    # axis (or as a ones-row matmul) instead of full-height reductions.
    inv_m = 1.0 / M
    mean = jnp.sum(y, axis=0, keepdims=True) * inv_m
    yc = y - mean
    var = jnp.sum(yc * yc, axis=0, keepdims=True) * inv_m
    scale = jax.lax.rsqrt(var + EPS) * bn_ref[1:2, :]
    return jnp.maximum(yc * scale + bn_ref[2:3, :], 0.0)            # ReLU


def convblock_kernel(x_ref, w1_ref, bn1_ref, w2_ref, bn2_ref, o_ref, *scratch,
                     num_of_blocks, H, W, cin1, cin2, packed1, packed2):
    """Fused ConvBlock forward: conv/BN/ReLU (x1 or x2) + MaxPool2d(2, 2)."""
    N, CP = x_ref.shape[0], x_ref.shape[-1]
    if num_of_blocks == 2:
        pad_ref, hm_ref = scratch
    else:
        (hm_ref,) = scratch

    y = _conv_bn_relu_stage(x_ref, w1_ref, bn1_ref, H, W, cin1, packed1)

    if num_of_blocks == 2:                                          # static branch
        # Stage-2 input staged in VMEM.  Only the read halo is zeroed (top and
        # bottom rows, column 0 and column W+1); no full-buffer zero fill --
        # stage-1 output lanes >= cout are already exactly zero.
        Wp = pad_ref.shape[2]
        zrow = jnp.zeros((N, 1, Wp, CP), jnp.float32)
        zcol = jnp.zeros((N, H, 1, CP), jnp.float32)
        pad_ref[:, 0:1, :, :] = zrow
        pad_ref[:, H + 1:H + 2, :, :] = zrow
        pad_ref[:, 1:H + 1, 0:1, :] = zcol
        pad_ref[:, 1:H + 1, W + 1:W + 2, :] = zcol
        pad_ref[:, 1:H + 1, 1:W + 1, :] = y.reshape(N, H, W, CP)
        y = _conv_bn_relu_stage(pad_ref, w2_ref, bn2_ref, H, W, cin2, packed2)

    # Fused MaxPool2d(2, 2).
    # H direction: rows are (n, h, w)-ordered, so viewing them as
    # (N, H//2, 2*W, CP) puts even-h / odd-h rows in two contiguous slabs ->
    # pure VPU max on values, no scratch.
    a = y.reshape(N, H // 2, 2 * W, CP)
    hm = jnp.maximum(a[:, :, :W, :], a[:, :, W:, :])                # (N, H//2, W, CP)
    # W direction: even/odd compaction needs strided sublane access; stage the
    # H-pooled slab once and use stride-2 ref loads (the supported Mosaic path).
    # TODO(synk): drop this staging buffer once value-level strided slicing /
    # sublane-split reshapes lower cleanly in Mosaic.
    hm_ref[...] = hm.reshape(N * (H // 2), W, CP)
    p = jnp.maximum(hm_ref[:, pl.ds(0, W // 2, stride=2), :],
                    hm_ref[:, pl.ds(1, W // 2, stride=2), :])
    o_ref[...] = p.reshape(N, H // 2, W // 2, CP).astype(o_ref.dtype)


# ----------------------------------------------------------------------------
# Wrapper (layout / padding plumbing stays in plain JAX)
# ----------------------------------------------------------------------------
def _pack_weight_packed(w, cp):
    """(3, 3, Cin, Cout) HWIO -> (cp, cp) bf16; row t*Cin + c = w[t//3, t%3, c, :]."""
    cin, cout = w.shape[2], w.shape[3]
    wk = w.reshape(9 * cin, cout)
    wp = jnp.zeros((cp, cp), jnp.float32).at[:9 * cin, :cout].set(wk)
    return wp.astype(MXU_DTYPE)


def _pack_weight_taps(w, cp):
    """(3, 3, Cin, Cout) HWIO -> (9*cp, cp) bf16; tap t in rows [t*cp : t*cp+Cin]."""
    cin, cout = w.shape[2], w.shape[3]
    wp = jnp.zeros((9, cp, cp), jnp.float32).at[:, :cin, :cout].set(
        w.reshape(9, cin, cout))
    return wp.reshape(9 * cp, cp).astype(MXU_DTYPE)


def _pack_bn(bias, gamma, beta, cp):
    """Pack conv bias / BN gamma / BN beta into one (3, cp) f32 array."""
    c = bias.shape[0]
    bn = jnp.zeros((3, cp), jnp.float32)
    return bn.at[0, :c].set(bias).at[1, :c].set(gamma).at[2, :c].set(beta)


def conv_block_forward(x_nchw, p, num_of_blocks):
    """Pallas implementation of ConvBlock.forward; input/output are NCHW."""
    N, C, H, W = x_nchw.shape
    assert H % 2 == 0 and W % 2 == 0, "MaxPool2d(2, 2) path assumes even H, W"
    cout1 = p["w1"].shape[-1]
    if num_of_blocks == 2:
        assert p["w2"].shape[2] == cout1, "conv2 requires input_size == output_size"
        cout = p["w2"].shape[-1]
    else:
        cout = cout1
    cp = _round_up(max(C, cout1, cout), LANES)        # lane-dense channel width
    wp_cols = _round_up(W + 2, 8)                     # conv halo + sublane round-up

    # NCHW -> NHWC; 1-pixel spatial halo (conv padding=1), W rounded up to a
    # sublane multiple, channels zero-padded to cp lanes.
    x = jnp.transpose(x_nchw, (0, 2, 3, 1))
    x = jnp.pad(x, ((0, 0), (1, 1), (1, wp_cols - (W + 1)), (0, cp - C)))
    # TODO(synk): on v5e the 128-lane channel pad makes this input DMA ~32x the
    # real bytes at C=4; pass the unpadded-channel array (pl.ANY + in-kernel
    # relayout) once HBM bandwidth matters at scale.

    packed1 = 9 * C <= LANES
    packed2 = 9 * cout1 <= LANES
    w1 = (_pack_weight_packed if packed1 else _pack_weight_taps)(p["w1"], cp)
    bn1 = _pack_bn(p["b1"], p["g1"], p["be1"], cp)
    if num_of_blocks == 2:
        w2 = (_pack_weight_packed if packed2 else _pack_weight_taps)(p["w2"], cp)
        bn2 = _pack_bn(p["b2"], p["g2"], p["be2"], cp)
    else:                                             # dummies, never read
        w2 = jnp.zeros((cp, cp), MXU_DTYPE)
        bn2 = jnp.zeros((3, cp), jnp.float32)

    scratch = []
    if num_of_blocks == 2:
        scratch.append(pltpu.VMEM((N, H + 2, wp_cols, cp), jnp.float32))  # stage-2 input
    scratch.append(pltpu.VMEM((N * (H // 2), W, cp), jnp.float32))        # W-pool staging

    vmem = pl.BlockSpec(memory_space=pltpu.MemorySpace.VMEM)
    # TODO(synk): at larger N*H*W / channel counts, add a grid (128-lane Cout
    # blocks marked "parallel" so v7x's two TensorCores split the work, and/or
    # M tiles marked "arbitrary" with cross-step BN-stat accumulation), use
    # double-buffered BlockSpecs, and set pltpu.CompilerParams(vmem_limit_bytes=...)
    # re-derived for v7x's 64 MiB VMEM.  At this toy shape the whole working
    # set (<2 MiB) fits VMEM in a single invocation, so no grid is used.
    out = pl.pallas_call(
        functools.partial(convblock_kernel, num_of_blocks=num_of_blocks,
                          H=H, W=W, cin1=C, cin2=cout1,
                          packed1=packed1, packed2=packed2),
        out_shape=jax.ShapeDtypeStruct((N, H // 2, W // 2, cp), jnp.float32),
        in_specs=[vmem] * 5,
        out_specs=vmem,
        scratch_shapes=scratch,
    )(x, w1, bn1, w2, bn2)

    out = out[..., :cout]                             # drop channel padding
    return jnp.transpose(out, (0, 3, 1, 2))           # NHWC -> NCHW


# ----------------------------------------------------------------------------
# Pure-JAX reference (sanity check only)
# ----------------------------------------------------------------------------
def _reference(x_nchw, p, num_of_blocks):
    def cbr(x, w, b, g, be):
        y = jax.lax.conv_general_dilated(
            x, w, (1, 1), "SAME",
            dimension_numbers=("NHWC", "HWIO", "NHWC")) + b
        mean = jnp.mean(y, axis=(0, 1, 2), keepdims=True)
        var = jnp.mean((y - mean) ** 2, axis=(0, 1, 2), keepdims=True)
        y = (y - mean) * jax.lax.rsqrt(var + EPS) * g + be
        return jnp.maximum(y, 0.0)

    x = jnp.transpose(x_nchw, (0, 2, 3, 1))
    x = cbr(x, p["w1"], p["b1"], p["g1"], p["be1"])
    if num_of_blocks == 2:
        x = cbr(x, p["w2"], p["b2"], p["g2"], p["be2"])
    N, H, W, C = x.shape
    x = x.reshape(N, H // 2, 2, W // 2, 2, C).max(axis=(2, 4))
    return jnp.transpose(x, (0, 3, 1, 2))


# ----------------------------------------------------------------------------
if __name__ == "__main__":
    key = jax.random.PRNGKey(0)
    kx, kw1, kb1, kw2, kb2 = jax.random.split(key, 5)

    N, C, H, W = 2, 4, 16, 16
    num_of_blocks = 2  # input_size == output_size == C, so conv2 applies

    # Deterministic synthetic parameters (BN: gamma=1, beta=0 like PyTorch init).
    params = dict(
        w1=0.1 * jax.random.normal(kw1, (3, 3, C, C), jnp.float32),
        b1=0.1 * jax.random.normal(kb1, (C,), jnp.float32),
        g1=jnp.ones((C,), jnp.float32),
        be1=jnp.zeros((C,), jnp.float32),
        w2=0.1 * jax.random.normal(kw2, (3, 3, C, C), jnp.float32),
        b2=0.1 * jax.random.normal(kb2, (C,), jnp.float32),
        g2=jnp.ones((C,), jnp.float32),
        be2=jnp.zeros((C,), jnp.float32),
    )

    x = jax.random.normal(kx, (N, C, H, W), jnp.float32)  # NCHW, like PyTorch

    out = jax.block_until_ready(conv_block_forward(x, params, num_of_blocks))
    ref = jax.block_until_ready(_reference(x, params, num_of_blocks))

    assert out.shape == (N, C, H // 2, W // 2), out.shape
    err = float(jnp.max(jnp.abs(out - ref)))
    # bf16 MXU operands (BN stats stay f32) -> looser tolerance than pure f32.
    assert jnp.allclose(out, ref, atol=5e-2, rtol=5e-2), f"max abs err {err}"

    print("KERNEL_OK")
</pallas_src>

<mosaic_0001>
module attributes {stable_mosaic.version = 11 : i64} {
  func.func @convblock_kernel(%arg0: memref<2x18x24x128xf32, #tpu.memory_space<vmem>>, %arg1: memref<128x128xbf16, #tpu.memory_space<vmem>>, %arg2: memref<3x128xf32, #tpu.memory_space<vmem>>, %arg3: memref<128x128xbf16, #tpu.memory_space<vmem>>, %arg4: memref<3x128xf32, #tpu.memory_space<vmem>>, %arg5: memref<2x8x8x128xf32, #tpu.memory_space<vmem>>, %arg6: memref<2x18x24x128xf32, #tpu.memory_space<vmem>>, %arg7: memref<16x16x128xf32, #tpu.memory_space<vmem>>) attributes {dimension_semantics = [], scalar_prefetch = 0 : i64, scratch_operands = 2 : i64, tpu.core_type = #tpu.core_type<tc>} {
    %c0 = arith.constant 0 : index
    %c0_0 = arith.constant 0 : index
    %c0_1 = arith.constant 0 : index
    %c0_2 = arith.constant 0 : index
    %0 = vector.load %arg0[%c0, %c0_0, %c0_1, %c0_2] : memref<2x18x24x128xf32, #tpu.memory_space<vmem>>, vector<2x16x16x128xf32>
    %c0_3 = arith.constant 0 : index
    %c0_4 = arith.constant 0 : index
    %c1 = arith.constant 1 : index
    %c0_5 = arith.constant 0 : index
    %1 = vector.load %arg0[%c0_3, %c0_4, %c1, %c0_5] : memref<2x18x24x128xf32, #tpu.memory_space<vmem>>, vector<2x16x16x128xf32>
    %c4_i32 = arith.constant 4 : i32
    %2 = tpu.dynamic_rotate %1 by %c4_i32 dim 3 : vector<2x16x16x128xf32>, i32 -> vector<2x16x16x128xf32>
    %3 = arith.addf %0, %2 : vector<2x16x16x128xf32>
    %c0_6 = arith.constant 0 : index
    %c0_7 = arith.constant 0 : index
    %c2 = arith.constant 2 : index
    %c0_8 = arith.constant 0 : index
    %4 = vector.load %arg0[%c0_6, %c0_7, %c2, %c0_8] : memref<2x18x24x128xf32, #tpu.memory_space<vmem>>, vector<2x16x16x128xf32>
    %c8_i32 = arith.constant 8 : i32
    %5 = tpu.dynamic_rotate %4 by %c8_i32 dim 3 : vector<2x16x16x128xf32>, i32 -> vector<2x16x16x128xf32>
    %6 = arith.addf %3, %5 : vector<2x16x16x128xf32>
    %c0_9 = arith.constant 0 : index
    %c1_10 = arith.constant 1 : index
    %c0_11 = arith.constant 0 : index
    %c0_12 = arith.constant 0 : index
    %7 = vector.load %arg0[%c0_9, %c1_10, %c0_11, %c0_12] : memref<2x18x24x128xf32, #tpu.memory_space<vmem>>, vector<2x16x16x128xf32>
    %c12_i32 = arith.constant 12 : i32
    %8 = tpu.dynamic_rotate %7 by %c12_i32 dim 3 : vector<2x16x16x128xf32>, i32 -> vector<2x16x16x128xf32>
    %9 = arith.addf %6, %8 : vector<2x16x16x128xf32>
    %c0_13 = arith.constant 0 : index
    %c1_14 = arith.constant 1 : index
    %c1_15 = arith.constant 1 : index
    %c0_16 = arith.constant 0 : index
    %10 = vector.load %arg0[%c0_13, %c1_14, %c1_15, %c0_16] : memref<2x18x24x128xf32, #tpu.memory_space<vmem>>, vector<2x16x16x128xf32>
    %c16_i32 = arith.constant 16 : i32
    %11 = tpu.dynamic_rotate %10 by %c16_i32 dim 3 : vector<2x16x16x128xf32>, i32 -> vector<2x16x16x128xf32>
    %12 = arith.addf %9, %11 : vector<2x16x16x128xf32>
    %c0_17 = arith.constant 0 : index
    %c1_18 = arith.constant 1 : index
    %c2_19 = arith.constant 2 : index
    %c0_20 = arith.constant 0 : index
    %13 = vector.load %arg0[%c0_17, %c1_18, %c2_19, %c0_20] : memref<2x18x24x128xf32, #tpu.memory_space<vmem>>, vector<2x16x16x128xf32>
    %c20_i32 = arith.constant 20 : i32
    %14 = tpu.dynamic_rotate %13 by %c20_i32 dim 3 : vector<2x16x16x128xf32>, i32 -> vector<2x16x16x128xf32>
    %15 = arith.addf %12, %14 : vector<2x16x16x128xf32>
    %c0_21 = arith.constant 0 : index
    %c2_22 = arith.constant 2 : index
    %c0_23 = arith.constant 0 : index
    %c0_24 = arith.constant 0 : index
    %16 = vector.load %arg0[%c0_21, %c2_22, %c0_23, %c0_24] : memref<2x18x24x128xf32, #tpu.memory_space<vmem>>, vector<2x16x16x128xf32>
    %c24_i32 = arith.constant 24 : i32
    %17 = tpu.dynamic_rotate %16 by %c24_i32 dim 3 : vector<2x16x16x128xf32>, i32 -> vector<2x16x16x128xf32>
    %18 = arith.addf %15, %17 : vector<2x16x16x128xf32>
    %c0_25 = arith.constant 0 : index
    %c2_26 = arith.constant 2 : index
    %c1_27 = arith.constant 1 : index
    %c0_28 = arith.constant 0 : index
    %19 = vector.load %arg0[%c0_25, %c2_26, %c1_27, %c0_28] : memref<2x18x24x128xf32, #tpu.memory_space<vmem>>, vector<2x16x16x128xf32>
    %c28_i32 = arith.constant 28 : i32
    %20 = tpu.dynamic_rotate %19 by %c28_i32 dim 3 : vector<2x16x16x128xf32>, i32 -> vector<2x16x16x128xf32>
    %21 = arith.addf %18, %20 : vector<2x16x16x128xf32>
    %c0_29 = arith.constant 0 : index
    %c2_30 = arith.constant 2 : index
    %c2_31 = arith.constant 2 : index
    %c0_32 = arith.constant 0 : index
    %22 = vector.load %arg0[%c0_29, %c2_30, %c2_31, %c0_32] : memref<2x18x24x128xf32, #tpu.memory_space<vmem>>, vector<2x16x16x128xf32>
    %c32_i32 = arith.constant 32 : i32
    %23 = tpu.dynamic_rotate %22 by %c32_i32 dim 3 : vector<2x16x16x128xf32>, i32 -> vector<2x16x16x128xf32>
    %24 = arith.addf %21, %23 : vector<2x16x16x128xf32>
    %25 = vector.shape_cast %24 : vector<2x16x16x128xf32> to vector<512x128xf32>
    %26 = arith.truncf %25 : vector<512x128xf32> to vector<512x128xbf16>
    %c0_33 = arith.constant 0 : index
    %c0_34 = arith.constant 0 : index
    %27 = vector.load %arg1[%c0_33, %c0_34] : memref<128x128xbf16, #tpu.memory_space<vmem>>, vector<128x128xbf16>
    %cst = arith.constant dense<0.000000e+00> : vector<512x128xf32>
    %28 = tpu.matmul %26, %27, %cst {dimension_numbers = #tpu.dot_dimension_numbers<[1], [0], [0], [1], [0, 0, 1, 1], [], []>} : vector<512x128xbf16>, vector<128x128xbf16>, vector<512x128xf32> -> vector<512x128xf32>
    %c0_35 = arith.constant 0 : index
    %c0_36 = arith.constant 0 : index
    %29 = vector.load %arg2[%c0_35, %c0_36] : memref<3x128xf32, #tpu.memory_space<vmem>>, vector<1x128xf32>
    %30 = vector.broadcast %29 : vector<1x128xf32> to vector<512x128xf32>
    %31 = arith.addf %28, %30 : vector<512x128xf32>
    %cst_37 = arith.constant dense<0.000000e+00> : vector<128xf32>
    %32 = vector.multi_reduction <add>, %31, %cst_37 [0] : vector<512x128xf32> to vector<128xf32>
    %33 = vector.shape_cast %32 : vector<128xf32> to vector<1x128xf32>
    %cst_38 = arith.constant 0.001953125 : f32
    %34 = vector.broadcast %cst_38 : f32 to vector<1x128xf32>
    %35 = arith.mulf %33, %34 : vector<1x128xf32>
    %36 = vector.broadcast %35 : vector<1x128xf32> to vector<512x128xf32>
    %37 = arith.subf %31, %36 : vector<512x128xf32>
    %38 = arith.mulf %37, %37 : vector<512x128xf32>
    %cst_39 = arith.constant dense<0.000000e+00> : vector<128xf32>
    %39 = vector.multi_reduction <add>, %38, %cst_39 [0] : vector<512x128xf32> to vector<128xf32>
    %40 = vector.shape_cast %39 : vector<128xf32> to vector<1x128xf32>
    %cst_40 = arith.constant 0.001953125 : f32
    %41 = vector.broadcast %cst_40 : f32 to vector<1x128xf32>
    %42 = arith.mulf %40, %41 : vector<1x128xf32>
    %cst_41 = arith.constant 9.99999974E-6 : f32
    %43 = vector.broadcast %cst_41 : f32 to vector<1x128xf32>
    %44 = arith.addf %42, %43 : vector<1x128xf32>
    %45 = math.rsqrt %44 : vector<1x128xf32>
    %c1_42 = arith.constant 1 : index
    %c0_43 = arith.constant 0 : index
    %46 = vector.load %arg2[%c1_42, %c0_43] : memref<3x128xf32, #tpu.memory_space<vmem>>, vector<1x128xf32>
    %47 = arith.mulf %45, %46 : vector<1x128xf32>
    %48 = vector.broadcast %47 : vector<1x128xf32> to vector<512x128xf32>
    %49 = arith.mulf %37, %48 : vector<512x128xf32>
    %c2_44 = arith.constant 2 : index
    %c0_45 = arith.constant 0 : index
    %50 = vector.load %arg2[%c2_44, %c0_45] : memref<3x128xf32, #tpu.memory_space<vmem>>, vector<1x128xf32>
    %51 = vector.broadcast %50 : vector<1x128xf32> to vector<512x128xf32>
    %52 = arith.addf %49, %51 : vector<512x128xf32>
    %cst_46 = arith.constant 0.000000e+00 : f32
    %53 = vector.broadcast %cst_46 : f32 to vector<512x128xf32>
    %54 = arith.maximumf %52, %53 : vector<512x128xf32>
    %cst_47 = arith.constant 0.000000e+00 : f32
    %55 = vector.broadcast %cst_47 : f32 to vector<2x1x24x128xf32>
    %cst_48 = arith.constant 0.000000e+00 : f32
    %56 = vector.broadcast %cst_48 : f32 to vector<2x16x1x128xf32>
    %c0_49 = arith.constant 0 : index
    %c0_50 = arith.constant 0 : index
    %c0_51 = arith.constant 0 : index
    %c0_52 = arith.constant 0 : index
    %57 = vector.load %arg6[%c0_49, %c0_50, %c0_51, %c0_52] : memref<2x18x24x128xf32, #tpu.memory_space<vmem>>, vector<2x1x24x128xf32>
    tpu.vector_store %arg6[%c0_49, %c0_50, %c0_51, %c0_52], %55 {strides = array<i32>} : memref<2x18x24x128xf32, #tpu.memory_space<vmem>>, vector<2x1x24x128xf32>,
    %c0_53 = arith.constant 0 : index
    %c17 = arith.constant 17 : index
    %c0_54 = arith.constant 0 : index
    %c0_55 = arith.constant 0 : index
    %58 = vector.load %arg6[%c0_53, %c17, %c0_54, %c0_55] : memref<2x18x24x128xf32, #tpu.memory_space<vmem>>, vector<2x1x24x128xf32>
    tpu.vector_store %arg6[%c0_53, %c17, %c0_54, %c0_55], %55 {strides = array<i32>} : memref<2x18x24x128xf32, #tpu.memory_space<vmem>>, vector<2x1x24x128xf32>,
    %c0_56 = arith.constant 0 : index
    %c1_57 = arith.constant 1 : index
    %c0_58 = arith.constant 0 : index
    %c0_59 = arith.constant 0 : index
    %59 = vector.load %arg6[%c0_56, %c1_57, %c0_58, %c0_59] : memref<2x18x24x128xf32, #tpu.memory_space<vmem>>, vector<2x16x1x128xf32>
    tpu.vector_store %arg6[%c0_56, %c1_57, %c0_58, %c0_59], %56 {strides = array<i32>} : memref<2x18x24x128xf32, #tpu.memory_space<vmem>>, vector<2x16x1x128xf32>,
    %c0_60 = arith.constant 0 : index
    %c1_61 = arith.constant 1 : index
    %c17_62 = arith.constant 17 : index
    %c0_63 = arith.constant 0 : index
    %60 = vector.load %arg6[%c0_60, %c1_61, %c17_62, %c0_63] : memref<2x18x24x128xf32, #tpu.memory_space<vmem>>, vector<2x16x1x128xf32>
    tpu.vector_store %arg6[%c0_60, %c1_61, %c17_62, %c0_63], %56 {strides = array<i32>} : memref<2x18x24x128xf32, #tpu.memory_space<vmem>>, vector<2x16x1x128xf32>,
    %61 = vector.shape_cast %54 : vector<512x128xf32> to vector<2x16x16x128xf32>
    %c0_64 = arith.constant 0 : index
    %c1_65 = arith.constant 1 : index
    %c1_66 = arith.constant 1 : index
    %c0_67 = arith.constant 0 : index
    %62 = vector.load %arg6[%c0_64, %c1_65, %c1_66, %c0_67] : memref<2x18x24x128xf32, #tpu.memory_space<vmem>>, vector<2x16x16x128xf32>
    tpu.vector_store %arg6[%c0_64, %c1_65, %c1_66, %c0_67], %61 {strides = array<i32>} : memref<2x18x24x128xf32, #tpu.memory_space<vmem>>, vector<2x16x16x128xf32>,
    %c0_68 = arith.constant 0 : index
    %c0_69 = arith.constant 0 : index
    %c0_70 = arith.constant 0 : index
    %c0_71 = arith.constant 0 : index
    %63 = vector.load %arg6[%c0_68, %c0_69, %c0_70, %c0_71] : memref<2x18x24x128xf32, #tpu.memory_space<vmem>>, vector<2x16x16x128xf32>
    %c0_72 = arith.constant 0 : index
    %c0_73 = arith.constant 0 : index
    %c1_74 = arith.constant 1 : index
    %c0_75 = arith.constant 0 : index
    %64 = vector.load %arg6[%c0_72, %c0_73, %c1_74, %c0_75] : memref<2x18x24x128xf32, #tpu.memory_space<vmem>>, vector<2x16x16x128xf32>
    %c4_i32_76 = arith.constant 4 : i32
    %65 = tpu.dynamic_rotate %64 by %c4_i32_76 dim 3 : vector<2x16x16x128xf32>, i32 -> vector<2x16x16x128xf32>
    %66 = arith.addf %63, %65 : vector<2x16x16x128xf32>
    %c0_77 = arith.constant 0 : index
    %c0_78 = arith.constant 0 : index
    %c2_79 = arith.constant 2 : index
    %c0_80 = arith.constant 0 : index
    %67 = vector.load %arg6[%c0_77, %c0_78, %c2_79, %c0_80] : memref<2x18x24x128xf32, #tpu.memory_space<vmem>>, vector<2x16x16x128xf32>
    %c8_i32_81 = arith.constant 8 : i32
    %68 = tpu.dynamic_rotate %67 by %c8_i32_81 dim 3 : vector<2x16x16x128xf32>, i32 -> vector<2x16x16x128xf32>
    %69 = arith.addf %66, %68 : vector<2x16x16x128xf32>
    %c0_82 = arith.constant 0 : index
    %c1_83 = arith.constant 1 : index
    %c0_84 = arith.constant 0 : index
    %c0_85 = arith.constant 0 : index
    %70 = vector.load %arg6[%c0_82, %c1_83, %c0_84, %c0_85] : memref<2x18x24x128xf32, #tpu.memory_space<vmem>>, vector<2x16x16x128xf32>
    %c12_i32_86 = arith.constant 12 : i32
    %71 = tpu.dynamic_rotate %70 by %c12_i32_86 dim 3 : vector<2x16x16x128xf32>, i32 -> vector<2x16x16x128xf32>
    %72 = arith.addf %69, %71 : vector<2x16x16x128xf32>
    %c0_87 = arith.constant 0 : index
    %c1_88 = arith.constant 1 : index
    %c1_89 = arith.constant 1 : index
    %c0_90 = arith.constant 0 : index
    %73 = vector.load %arg6[%c0_87, %c1_88, %c1_89, %c0_90] : memref<2x18x24x128xf32, #tpu.memory_space<vmem>>, vector<2x16x16x128xf32>
    %c16_i32_91 = arith.constant 16 : i32
    %74 = tpu.dynamic_rotate %73 by %c16_i32_91 dim 3 : vector<2x16x16x128xf32>, i32 -> vector<2x16x16x128xf32>
    %75 = arith.addf %72, %74 : vector<2x16x16x128xf32>
    %c0_92 = arith.constant 0 : index
    %c1_93 = arith.constant 1 : index
    %c2_94 = arith.constant 2 : index
    %c0_95 = arith.constant 0 : index
    %76 = vector.load %arg6[%c0_92, %c1_93, %c2_94, %c0_95] : memref<2x18x24x128xf32, #tpu.memory_space<vmem>>, vector<2x16x16x128xf32>
    %c20_i32_96 = arith.constant 20 : i32
    %77 = tpu.dynamic_rotate %76 by %c20_i32_96 dim 3 : vector<2x16x16x128xf32>, i32 -> vector<2x16x16x128xf32>
    %78 = arith.addf %75, %77 : vector<2x16x16x128xf32>
    %c0_97 = arith.constant 0 : index
    %c2_98 = arith.constant 2 : index
    %c0_99 = arith.constant 0 : index
    %c0_100 = arith.constant 0 : index
    %79 = vector.load %arg6[%c0_97, %c2_98, %c0_99, %c0_100] : memref<2x18x24x128xf32, #tpu.memory_space<vmem>>, vector<2x16x16x128xf32>
    %c24_i32_101 = arith.constant 24 : i32
    %80 = tpu.dynamic_rotate %79 by %c24_i32_101 dim 3 : vector<2x16x16x128xf32>, i32 -> vector<2x16x16x128xf32>
    %81 = arith.addf %78, %80 : vector<2x16x16x128xf32>
    %c0_102 = arith.constant 0 : index
    %c2_103 = arith.constant 2 : index
    %c1_104 = arith.constant 1 : index
    %c0_105 = arith.constant 0 : index
    %82 = vector.load %arg6[%c0_102, %c2_103, %c1_104, %c0_105] : memref<2x18x24x128xf32, #tpu.memory_space<vmem>>, vector<2x16x16x128xf32>
    %c28_i32_106 = arith.constant 28 : i32
    %83 = tpu.dynamic_rotate %82 by %c28_i32_106 dim 3 : vector<2x16x16x128xf32>, i32 -> vector<2x16x16x128xf32>
    %84 = arith.addf %81, %83 : vector<2x16x16x128xf32>
    %c0_107 = arith.constant 0 : index
    %c2_108 = arith.constant 2 : index
    %c2_109 = arith.constant 2 : index
    %c0_110 = arith.constant 0 : index
    %85 = vector.load %arg6[%c0_107, %c2_108, %c2_109, %c0_110] : memref<2x18x24x128xf32, #tpu.memory_space<vmem>>, vector<2x16x16x128xf32>
    %c32_i32_111 = arith.constant 32 : i32
    %86 = tpu.dynamic_rotate %85 by %c32_i32_111 dim 3 : vector<2x16x16x128xf32>, i32 -> vector<2x16x16x128xf32>
    %87 = arith.addf %84, %86 : vector<2x16x16x128xf32>
    %88 = vector.shape_cast %87 : vector<2x16x16x128xf32> to vector<512x128xf32>
    %89 = arith.truncf %88 : vector<512x128xf32> to vector<512x128xbf16>
    %c0_112 = arith.constant 0 : index
    %c0_113 = arith.constant 0 : index
    %90 = vector.load %arg3[%c0_112, %c0_113] : memref<128x128xbf16, #tpu.memory_space<vmem>>, vector<128x128xbf16>
    %cst_114 = arith.constant dense<0.000000e+00> : vector<512x128xf32>
    %91 = tpu.matmul %89, %90, %cst_114 {dimension_numbers = #tpu.dot_dimension_numbers<[1], [0], [0], [1], [0, 0, 1, 1], [], []>} : vector<512x128xbf16>, vector<128x128xbf16>, vector<512x128xf32> -> vector<512x128xf32>
    %c0_115 = arith.constant 0 : index
    %c0_116 = arith.constant 0 : index
    %92 = vector.load %arg4[%c0_115, %c0_116] : memref<3x128xf32, #tpu.memory_space<vmem>>, vector<1x128xf32>
    %93 = vector.broadcast %92 : vector<1x128xf32> to vector<512x128xf32>
    %94 = arith.addf %91, %93 : vector<512x128xf32>
    %cst_117 = arith.constant dense<0.000000e+00> : vector<128xf32>
    %95 = vector.multi_reduction <add>, %94, %cst_117 [0] : vector<512x128xf32> to vector<128xf32>
    %96 = vector.shape_cast %95 : vector<128xf32> to vector<1x128xf32>
    %cst_118 = arith.constant 0.001953125 : f32
    %97 = vector.broadcast %cst_118 : f32 to vector<1x128xf32>
    %98 = arith.mulf %96, %97 : vector<1x128xf32>
    %99 = vector.broadcast %98 : vector<1x128xf32> to vector<512x128xf32>
    %100 = arith.subf %94, %99 : vector<512x128xf32>
    %101 = arith.mulf %100, %100 : vector<512x128xf32>
    %cst_119 = arith.constant dense<0.000000e+00> : vector<128xf32>
    %102 = vector.multi_reduction <add>, %101, %cst_119 [0] : vector<512x128xf32> to vector<128xf32>
    %103 = vector.shape_cast %102 : vector<128xf32> to vector<1x128xf32>
    %cst_120 = arith.constant 0.001953125 : f32
    %104 = vector.broadcast %cst_120 : f32 to vector<1x128xf32>
    %105 = arith.mulf %103, %104 : vector<1x128xf32>
    %cst_121 = arith.constant 9.99999974E-6 : f32
    %106 = vector.broadcast %cst_121 : f32 to vector<1x128xf32>
    %107 = arith.addf %105, %106 : vector<1x128xf32>
    %108 = math.rsqrt %107 : vector<1x128xf32>
    %c1_122 = arith.constant 1 : index
    %c0_123 = arith.constant 0 : index
    %109 = vector.load %arg4[%c1_122, %c0_123] : memref<3x128xf32, #tpu.memory_space<vmem>>, vector<1x128xf32>
    %110 = arith.mulf %108, %109 : vector<1x128xf32>
    %111 = vector.broadcast %110 : vector<1x128xf32> to vector<512x128xf32>
    %112 = arith.mulf %100, %111 : vector<512x128xf32>
    %c2_124 = arith.constant 2 : index
    %c0_125 = arith.constant 0 : index
    %113 = vector.load %arg4[%c2_124, %c0_125] : memref<3x128xf32, #tpu.memory_space<vmem>>, vector<1x128xf32>
    %114 = vector.broadcast %113 : vector<1x128xf32> to vector<512x128xf32>
    %115 = arith.addf %112, %114 : vector<512x128xf32>
    %cst_126 = arith.constant 0.000000e+00 : f32
    %116 = vector.broadcast %cst_126 : f32 to vector<512x128xf32>
    %117 = arith.maximumf %115, %116 : vector<512x128xf32>
    %118 = vector.shape_cast %117 : vector<512x128xf32> to vector<2x8x32x128xf32>
    %119 = vector.extract_strided_slice %118 {offsets = [0, 0, 0, 0], sizes = [2, 8, 16, 128], strides = [1, 1, 1, 1]} : vector<2x8x32x128xf32> to vector<2x8x16x128xf32>
    %120 = vector.extract_strided_slice %118 {offsets = [0, 0, 16, 0], sizes = [2, 8, 16, 128], strides = [1, 1, 1, 1]} : vector<2x8x32x128xf32> to vector<2x8x16x128xf32>
    %121 = arith.maximumf %119, %120 : vector<2x8x16x128xf32>
    %122 = vector.shape_cast %121 : vector<2x8x16x128xf32> to vector<16x16x128xf32>
    %c0_127 = arith.constant 0 : index
    %c0_128 = arith.constant 0 : index
    %c0_129 = arith.constant 0 : index
    %123 = vector.load %arg7[%c0_127, %c0_128, %c0_129] : memref<16x16x128xf32, #tpu.memory_space<vmem>>, vector<16x16x128xf32>
    tpu.vector_store %arg7[%c0_127, %c0_128, %c0_129], %122 {strides = array<i32>} : memref<16x16x128xf32, #tpu.memory_space<vmem>>, vector<16x16x128xf32>,
    %c0_130 = arith.constant 0 : index
    %c0_131 = arith.constant 0 : index
    %c0_132 = arith.constant 0 : index
    %124 = tpu.strided_load %arg7[%c0_130, %c0_131, %c0_132] {strides = array<i32: 1, 2, 1>} : memref<16x16x128xf32, #tpu.memory_space<vmem>>, vector<16x8x128xf32>
    %c0_133 = arith.constant 0 : index
    %c1_134 = arith.constant 1 : index
    %c0_135 = arith.constant 0 : index
    %125 = tpu.strided_load %arg7[%c0_133, %c1_134, %c0_135] {strides = array<i32: 1, 2, 1>} : memref<16x16x128xf32, #tpu.memory_space<vmem>>, vector<16x8x128xf32>
    %126 = arith.maximumf %124, %125 : vector<16x8x128xf32>
    %127 = vector.shape_cast %126 : vector<16x8x128xf32> to vector<2x8x8x128xf32>
    %c0_136 = arith.constant 0 : index
    %c0_137 = arith.constant 0 : index
    %c0_138 = arith.constant 0 : index
    %c0_139 = arith.constant 0 : index
    %128 = vector.load %arg5[%c0_136, %c0_137, %c0_138, %c0_139] : memref<2x8x8x128xf32, #tpu.memory_space<vmem>>, vector<2x8x8x128xf32>
    tpu.vector_store %arg5[%c0_136, %c0_137, %c0_138, %c0_139], %127 {strides = array<i32>} : memref<2x8x8x128xf32, #tpu.memory_space<vmem>>, vector<2x8x8x128xf32>,
    return
  }
}

</mosaic_0001>

<llo_original>
// kernel: tpu_custom_call.1
$region0: #{tpu_custom_call.1}
  #allocation0 [shape = 'u32[]', space=smem, size = 0x4, offset = 0x4, fixed_abs, tag = 'smem constant byte address 0x4 - core index']
  #allocation1 [shape = 'u32[144,128]{1,0:T(1,128)}', space=vmem, size = 0x12000, scoped, tag = 'internal scratch']
  #allocation2 [shape = 'f32[2,18,24,128]{3,2,1,0:T(8,128)}', space=vmem, size = 0x6c000, scoped, tag = 'scratch operand']
  #allocation3 [shape = 'f32[16,16,128]{2,1,0:T(8,128)}', space=vmem, size = 0x20000, scoped, tag = 'scratch operand']
  %s0 = inlined_call_operand.hbm [shape: f32[2,18,24,128], index: 0, kind: input, shape index: {}]
  %s1 = inlined_call_operand.hbm [shape: bf16[128,128], index: 1, kind: input, shape index: {}]
  %s2 = inlined_call_operand.hbm [shape: f32[3,128], index: 2, kind: input, shape index: {}]
  %s3 = inlined_call_operand.hbm [shape: bf16[128,128], index: 3, kind: input, shape index: {}]
  %s4 = inlined_call_operand.vmem [shape: f32[3,128], index: 4, kind: input, shape index: {}]
  %s5 = inlined_call_operand.hbm [shape: f32[2,8,8,128], index: 5, kind: output, shape index: {}]
  %s6 = sld [smem:[#allocation0]]
  $region46: #{tpu_custom_call.1} parent=0
    _
  %s8 = ssub.s32 1, %s6
  %s9 = scalar_select 0, %s8, %s6
  $region1: #{tpu_custom_call.1} parent=0
    #allocation4 [shape = 'u8[442368]{0}', space=vmem, size = 0x6c000, scoped, tag = 'input window, operand 0, single buffered']
    #allocation5 [shape = 's32[1]{0}', space=sflag, size = 0x4, scoped, tag = 'scoped memory for tpu_custom_call.1']
    #allocation6 [shape = 's32[1]{0}', space=sflag, size = 0x4, scoped, tag = 'scoped memory for tpu_custom_call.1']
    #allocation7 [shape = 'u8[32768]{0}', space=vmem, size = 0x8000, scoped, tag = 'input window, operand 1, single buffered']
    #allocation8 [shape = 's32[1]{0}', space=sflag, size = 0x4, scoped, tag = 'scoped memory for tpu_custom_call.1']
    #allocation9 [shape = 'u8[2048]{0}', space=vmem, size = 0x800, scoped, tag = 'input window, operand 2, single buffered']
    #allocation10 [shape = 'u8[32768]{0}', space=vmem, size = 0x8000, scoped, tag = 'input window, operand 3, single buffered']
    #allocation11 [shape = 's32[1]{0}', space=sflag, size = 0x4, scoped, tag = 'scoped memory for tpu_custom_call.1']
    #allocation12 [shape = 'u8[65536]{0}', space=vmem, size = 0x10000, scoped, tag = 'output window, operand 0, single buffered']
    %10 = vsyncpa [#allocation5], 0
    %11 = vsyncpa [#allocation8], 0
    %12 = vsyncpa [#allocation11], 0
    %13 = vsyncpa [#allocation6], 0
    // Predicated region
    $region2: #{tpu_custom_call.1} parent=1 // pred_check
      _
    $region3: #{tpu_custom_call.1} parent=1 // pred_check_branch
      %15 = sbr.rel (0) target = $region5
    $region4: #{tpu_custom_call.1} parent=1 // pred_region
      %s17 = ssub.s32 13824, 13824
      %18 = vsyncadd [#allocation5], %s17
      %s19 = sshll.u32 [#allocation4], 4
      %s20 = int_to_ptr.vmem [resolvable:$true] %s19
      %25 = dma.hbm_to_vmem [thread:$0]  %s0, 13824, %s20, [#allocation5], 128, 128, 8
    $region5: #{tpu_custom_call.1} parent=1 // pred_fallthru
      _
    // Predicated region
    $region6: #{tpu_custom_call.1} parent=1 // pred_check
      _
    $region7: #{tpu_custom_call.1} parent=1 // pred_check_branch
      %27 = sbr.rel (0) target = $region9
    $region8: #{tpu_custom_call.1} parent=1 // pred_region
      %s29 = ssub.s32 1024, 1024
      %30 = vsyncadd [#allocation8], %s29
      %s31 = sshll.u32 [#allocation7], 4
      %s32 = int_to_ptr.vmem [resolvable:$true] %s31
      %37 = dma.hbm_to_vmem [thread:$0]  %s1, 1024, %s32, [#allocation8], 64, 64, 4
    $region9: #{tpu_custom_call.1} parent=1 // pred_fallthru
      _
    // Predicated region
    $region10: #{tpu_custom_call.1} parent=1 // pred_check
      _
    $region11: #{tpu_custom_call.1} parent=1 // pred_check_branch
      %39 = sbr.rel (0) target = $region13
    $region12: #{tpu_custom_call.1} parent=1 // pred_region
      %s41 = ssub.s32 64, 64
      %42 = vsyncadd [#allocation8], %s41
      %s44 = sshll.u32 [#allocation9], 4
      %s45 = int_to_ptr.vmem [resolvable:$true] %s44
      %47 = dma.hbm_to_vmem [thread:$0]  %s2, 64, %s45, [#allocation8]
    $region13: #{tpu_custom_call.1} parent=1 // pred_fallthru
      _
    // Predicated region
    $region14: #{tpu_custom_call.1} parent=1 // pred_check
      _
    $region15: #{tpu_custom_call.1} parent=1 // pred_check_branch
      %49 = sbr.rel (0) target = $region17
    $region16: #{tpu_custom_call.1} parent=1 // pred_region
      %s51 = ssub.s32 1024, 1024
      %52 = vsyncadd [#allocation11], %s51
      %s53 = sshll.u32 [#allocation10], 4
      %s54 = int_to_ptr.vmem [resolvable:$true] %s53
      %59 = dma.hbm_to_vmem [thread:$0]  %s3, 1024, %s54, [#allocation11], 64, 64, 4
    $region17: #{tpu_custom_call.1} parent=1 // pred_fallthru
      _
    // Predicated region
    $region18: #{tpu_custom_call.1} parent=1 // pred_check
      _
    $region19: #{tpu_custom_call.1} parent=1 // pred_check_branch
      %61 = sbr.rel (0) target = $region21
    $region20: #{tpu_custom_call.1} parent=1 // pred_region
      _
    $region21: #{tpu_custom_call.1} parent=1 // pred_fallthru
      _
    // Predicated region
    $region22: #{tpu_custom_call.1} parent=1 // pred_check
      _
    $region23: #{tpu_custom_call.1} parent=1 // pred_check_branch
      %63 = sbr.rel (0) target = $region25
    $region24: #{tpu_custom_call.1} parent=1 // pred_region
      %64 = dma.done [#allocation5], 13824
    $region25: #{tpu_custom_call.1} parent=1 // pred_fallthru
      _
    // Predicated region
    $region26: #{tpu_custom_call.1} parent=1 // pred_check
      _
    $region27: #{tpu_custom_call.1} parent=1 // pred_check_branch
      %66 = sbr.rel (0) target = $region29
    $region28: #{tpu_custom_call.1} parent=1 // pred_region
      %67 = dma.done [#allocation8], 1024
    $region29: #{tpu_custom_call.1} parent=1 // pred_fallthru
      _
    // Predicated region
    $region30: #{tpu_custom_call.1} parent=1 // pred_check
      _
    $region31: #{tpu_custom_call.1} parent=1 // pred_check_branch
      %69 = sbr.rel (0) target = $region33
    $region32: #{tpu_custom_call.1} parent=1 // pred_region
      %70 = dma.done [#allocation8], 64
    $region33: #{tpu_custom_call.1} parent=1 // pred_fallthru
      _
    // Predicated region
    $region34: #{tpu_custom_call.1} parent=1 // pred_check
      _
    $region35: #{tpu_custom_call.1} parent=1 // pred_check_branch
      %72 = sbr.rel (0) target = $region37
    $region36: #{tpu_custom_call.1} parent=1 // pred_region
      %73 = dma.done [#allocation11], 1024
    $region37: #{tpu_custom_call.1} parent=1 // pred_fallthru
      _
    %v75 = vld [vmem:[#allocation4] sm:$0xff]
    %v76 = vld [vmem:[#allocation4 + $0x8] sm:$0xff]
    %v77 = vld [vmem:[#allocation4 + $0x18] sm:$0xff]
    %v78 = vld [vmem:[#allocation4 + $0x20] sm:$0xff]
    %v79 = vld [vmem:[#allocation4 + $0x30] sm:$0xff]
    %v80 = vld [vmem:[#allocation4 + $0x38] sm:$0xff]
    %v81 = vld [vmem:[#allocation4 + $0x48] sm:$0xff]
    %v82 = vld [vmem:[#allocation4 + $0x50] sm:$0xff]
    %v83 = vld [vmem:[#allocation4 + $0x60] sm:$0xff]
    %v84 = vld [vmem:[#allocation4 + $0x68] sm:$0xff]
    %v85 = vld [vmem:[#allocation4 + $0x78] sm:$0xff]
    %v86 = vld [vmem:[#allocation4 + $0x80] sm:$0xff]
    %v87 = vld [vmem:[#allocation4 + $0x90] sm:$0xff]
    %v88 = vld [vmem:[#allocation4 + $0x98] sm:$0xff]
    %v89 = vld [vmem:[#allocation4 + $0xa8] sm:$0xff]
    %v90 = vld [vmem:[#allocation4 + $0xb0] sm:$0xff]
    %v91 = vld [vmem:[#allocation4 + $0xc0] sm:$0xff]
    %v92 = vld [vmem:[#allocation4 + $0xc8] sm:$0xff]
    %v93 = vld [vmem:[#allocation4 + $0xd8] sm:$0xff]
    %v94 = vld [vmem:[#allocation4 + $0xe0] sm:$0xff]
    %v95 = vld [vmem:[#allocation4 + $0xf0] sm:$0xff]
    %v96 = vld [vmem:[#allocation4 + $0xf8] sm:$0xff]
    %v97 = vld [vmem:[#allocation4 + $0x108] sm:$0xff]
    %v98 = vld [vmem:[#allocation4 + $0x110] sm:$0xff]
    %v99 = vld [vmem:[#allocation4 + $0x120] sm:$0xff]
    %v100 = vld [vmem:[#allocation4 + $0x128] sm:$0xff]
    %v101 = vld [vmem:[#allocation4 + $0x138] sm:$0xff]
    %v102 = vld [vmem:[#allocation4 + $0x140] sm:$0xff]
    %v103 = vld [vmem:[#allocation4 + $0x150] sm:$0xff]
    %v104 = vld [vmem:[#allocation4 + $0x158] sm:$0xff]
    %v105 = vld [vmem:[#allocation4 + $0x168] sm:$0xff]
    %v106 = vld [vmem:[#allocation4 + $0x170] sm:$0xff]
    %v107 = vld [vmem:[#allocation4 + $0x1b0] sm:$0xff]
    %v108 = vld [vmem:[#allocation4 + $0x1b8] sm:$0xff]
    %v109 = vld [vmem:[#allocation4 + $0x1c8] sm:$0xff]
    %v110 = vld [vmem:[#allocation4 + $0x1d0] sm:$0xff]
    %v111 = vld [vmem:[#allocation4 + $0x1e0] sm:$0xff]
    %v112 = vld [vmem:[#allocation4 + $0x1e8] sm:$0xff]
    %v113 = vld [vmem:[#allocation4 + $0x1f8] sm:$0xff]
    %v114 = vld [vmem:[#allocation4 + $0x200] sm:$0xff]
    %v115 = vld [vmem:[#allocation4 + $0x210] sm:$0xff]
    %v116 = vld [vmem:[#allocation4 + $0x218] sm:$0xff]
    %v117 = vld [vmem:[#allocation4 + $0x228] sm:$0xff]
    %v118 = vld [vmem:[#allocation4 + $0x230] sm:$0xff]
    %v119 = vld [vmem:[#allocation4 + $0x240] sm:$0xff]
    %v120 = vld [vmem:[#allocation4 + $0x248] sm:$0xff]
    %v121 = vld [vmem:[#allocation4 + $0x258] sm:$0xff]
    %v122 = vld [vmem:[#allocation4 + $0x260] sm:$0xff]
    %v123 = vld [vmem:[#allocation4 + $0x270] sm:$0xff]
    %v124 = vld [vmem:[#allocation4 + $0x278] sm:$0xff]
    %v125 = vld [vmem:[#allocation4 + $0x288] sm:$0xff]
    %v126 = vld [vmem:[#allocation4 + $0x290] sm:$0xff]
    %v127 = vld [vmem:[#allocation4 + $0x2a0] sm:$0xff]
    %v128 = vld [vmem:[#allocation4 + $0x2a8] sm:$0xff]
    %v129 = vld [vmem:[#allocation4 + $0x2b8] sm:$0xff]
    %v130 = vld [vmem:[#allocation4 + $0x2c0] sm:$0xff]
    %v131 = vld [vmem:[#allocation4 + $0x2d0] sm:$0xff]
    %v132 = vld [vmem:[#allocation4 + $0x2d8] sm:$0xff]
    %v133 = vld [vmem:[#allocation4 + $0x2e8] sm:$0xff]
    %v134 = vld [vmem:[#allocation4 + $0x2f0] sm:$0xff]
    %v135 = vld [vmem:[#allocation4 + $0x300] sm:$0xff]
    %v136 = vld [vmem:[#allocation4 + $0x308] sm:$0xff]
    %v137 = vld [vmem:[#allocation4 + $0x318] sm:$0xff]
    %v138 = vld [vmem:[#allocation4 + $0x320] sm:$0xff]
    %v139 = vld [vmem:[#allocation4 + $0x1] sm:$0xff]
    %v140 = vld [vmem:[#allocation4 + $0x9] sm:$0xff]
    %v141 = vld [vmem:[#allocation4 + $0x19] sm:$0xff]
    %v142 = vld [vmem:[#allocation4 + $0x21] sm:$0xff]
    %v143 = vld [vmem:[#allocation4 + $0x31] sm:$0xff]
    %v144 = vld [vmem:[#allocation4 + $0x39] sm:$0xff]
    %v145 = vld [vmem:[#allocation4 + $0x49] sm:$0xff]
    %v146 = vld [vmem:[#allocation4 + $0x51] sm:$0xff]
    %v147 = vld [vmem:[#allocation4 + $0x61] sm:$0xff]
    %v148 = vld [vmem:[#allocation4 + $0x69] sm:$0xff]
    %v149 = vld [vmem:[#allocation4 + $0x79] sm:$0xff]
    %v150 = vld [vmem:[#allocation4 + $0x81] sm:$0xff]
    %v151 = vld [vmem:[#allocation4 + $0x91] sm:$0xff]
    %v152 = vld [vmem:[#allocation4 + $0x99] sm:$0xff]
    %v153 = vld [vmem:[#allocation4 + $0xa9] sm:$0xff]
    %v154 = vld [vmem:[#allocation4 + $0xb1] sm:$0xff]
    %v155 = vld [vmem:[#allocation4 + $0xc1] sm:$0xff]
    %v156 = vld [vmem:[#allocation4 + $0xc9] sm:$0xff]
    %v157 = vld [vmem:[#allocation4 + $0xd9] sm:$0xff]
    %v158 = vld [vmem:[#allocation4 + $0xe1] sm:$0xff]
    %v159 = vld [vmem:[#allocation4 + $0xf1] sm:$0xff]
    %v160 = vld [vmem:[#allocation4 + $0xf9] sm:$0xff]
    %v161 = vld [vmem:[#allocation4 + $0x109] sm:$0xff]
    %v162 = vld [vmem:[#allocation4 + $0x111] sm:$0xff]
    %v163 = vld [vmem:[#allocation4 + $0x121] sm:$0xff]
    %v164 = vld [vmem:[#allocation4 + $0x129] sm:$0xff]
    %v165 = vld [vmem:[#allocation4 + $0x139] sm:$0xff]
    %v166 = vld [vmem:[#allocation4 + $0x141] sm:$0xff]
    %v167 = vld [vmem:[#allocation4 + $0x151] sm:$0xff]
    %v168 = vld [vmem:[#allocation4 + $0x159] sm:$0xff]
    %v169 = vld [vmem:[#allocation4 + $0x169] sm:$0xff]
    %v170 = vld [vmem:[#allocation4 + $0x171] sm:$0xff]
    %v171 = vld [vmem:[#allocation4 + $0x1b1] sm:$0xff]
    %v172 = vld [vmem:[#allocation4 + $0x1b9] sm:$0xff]
    %v173 = vld [vmem:[#allocation4 + $0x1c9] sm:$0xff]
    %v174 = vld [vmem:[#allocation4 + $0x1d1] sm:$0xff]
    %v175 = vld [vmem:[#allocation4 + $0x1e1] sm:$0xff]
    %v176 = vld [vmem:[#allocation4 + $0x1e9] sm:$0xff]
    %v177 = vld [vmem:[#allocation4 + $0x1f9] sm:$0xff]
    %v178 = vld [vmem:[#allocation4 + $0x201] sm:$0xff]
    %v179 = vld [vmem:[#allocation4 + $0x211] sm:$0xff]
    %v180 = vld [vmem:[#allocation4 + $0x219] sm:$0xff]
    %v181 = vld [vmem:[#allocation4 + $0x229] sm:$0xff]
    %v182 = vld [vmem:[#allocation4 + $0x231] sm:$0xff]
    %v183 = vld [vmem:[#allocation4 + $0x241] sm:$0xff]
    %v184 = vld [vmem:[#allocation4 + $0x249] sm:$0xff]
    %v185 = vld [vmem:[#allocation4 + $0x259] sm:$0xff]
    %v186 = vld [vmem:[#allocation4 + $0x261] sm:$0xff]
    %v187 = vld [vmem:[#allocation4 + $0x271] sm:$0xff]
    %v188 = vld [vmem:[#allocation4 + $0x279] sm:$0xff]
    %v189 = vld [vmem:[#allocation4 + $0x289] sm:$0xff]
    %v190 = vld [vmem:[#allocation4 + $0x291] sm:$0xff]
    %v191 = vld [vmem:[#allocation4 + $0x2a1] sm:$0xff]
    %v192 = vld [vmem:[#allocation4 + $0x2a9] sm:$0xff]
    %v193 = vld [vmem:[#allocation4 + $0x2b9] sm:$0xff]
    %v194 = vld [vmem:[#allocation4 + $0x2c1] sm:$0xff]
    %v195 = vld [vmem:[#allocation4 + $0x2d1] sm:$0xff]
    %v196 = vld [vmem:[#allocation4 + $0x2d9] sm:$0xff]
    %v197 = vld [vmem:[#allocation4 + $0x2e9] sm:$0xff]
    %v198 = vld [vmem:[#allocation4 + $0x2f1] sm:$0xff]
    %v199 = vld [vmem:[#allocation4 + $0x301] sm:$0xff]
    %v200 = vld [vmem:[#allocation4 + $0x309] sm:$0xff]
    %v201 = vld [vmem:[#allocation4 + $0x319] sm:$0xff]
    %v202 = vld [vmem:[#allocation4 + $0x321] sm:$0xff]
    %203 = vrot.lane.b32.xlu0 %v139, 4
    %v204 = vpop.permute.xlu0 %203
    %205 = vrot.lane.b32.xlu0 %v140, 4
    %v206 = vpop.permute.xlu0 %205
    %207 = vrot.lane.b32.xlu0 %v141, 4
    %v208 = vpop.permute.xlu0 %207
    %209 = vrot.lane.b32.xlu0 %v142, 4
    %v210 = vpop.permute.xlu0 %209
    %211 = vrot.lane.b32.xlu0 %v143, 4
    %v212 = vpop.permute.xlu0 %211
    %213 = vrot.lane.b32.xlu0 %v144, 4
    %v214 = vpop.permute.xlu0 %213
    %215 = vrot.lane.b32.xlu0 %v145, 4
    %v216 = vpop.permute.xlu0 %215
    %217 = vrot.lane.b32.xlu0 %v146, 4
    %v218 = vpop.permute.xlu0 %217
    %219 = vrot.lane.b32.xlu0 %v147, 4
    %v220 = vpop.permute.xlu0 %219
    %221 = vrot.lane.b32.xlu0 %v148, 4
    %v222 = vpop.permute.xlu0 %221
    %223 = vrot.lane.b32.xlu0 %v149, 4
    %v224 = vpop.permute.xlu0 %223
    %225 = vrot.lane.b32.xlu0 %v150, 4
    %v226 = vpop.permute.xlu0 %225
    %227 = vrot.lane.b32.xlu0 %v151, 4
    %v228 = vpop.permute.xlu0 %227
    %229 = vrot.lane.b32.xlu0 %v152, 4
    %v230 = vpop.permute.xlu0 %229
    %231 = vrot.lane.b32.xlu0 %v153, 4
    %v232 = vpop.permute.xlu0 %231
    %233 = vrot.lane.b32.xlu0 %v154, 4
    %v234 = vpop.permute.xlu0 %233
    %235 = vrot.lane.b32.xlu0 %v155, 4
    %v236 = vpop.permute.xlu0 %235
    %237 = vrot.lane.b32.xlu0 %v156, 4
    %v238 = vpop.permute.xlu0 %237
    %239 = vrot.lane.b32.xlu0 %v157, 4
    %v240 = vpop.permute.xlu0 %239
    %241 = vrot.lane.b32.xlu0 %v158, 4
    %v242 = vpop.permute.xlu0 %241
    %243 = vrot.lane.b32.xlu0 %v159, 4
    %v244 = vpop.permute.xlu0 %243
    %245 = vrot.lane.b32.xlu0 %v160, 4
    %v246 = vpop.permute.xlu0 %245
    %247 = vrot.lane.b32.xlu0 %v161, 4
    %v248 = vpop.permute.xlu0 %247
    %249 = vrot.lane.b32.xlu0 %v162, 4
    %v250 = vpop.permute.xlu0 %249
    %251 = vrot.lane.b32.xlu0 %v163, 4
    %v252 = vpop.permute.xlu0 %251
    %253 = vrot.lane.b32.xlu0 %v164, 4
    %v254 = vpop.permute.xlu0 %253
    %255 = vrot.lane.b32.xlu0 %v165, 4
    %v256 = vpop.permute.xlu0 %255
    %257 = vrot.lane.b32.xlu0 %v166, 4
    %v258 = vpop.permute.xlu0 %257
    %259 = vrot.lane.b32.xlu0 %v167, 4
    %v260 = vpop.permute.xlu0 %259
    %261 = vrot.lane.b32.xlu0 %v168, 4
    %v262 = vpop.permute.xlu0 %261
    %263 = vrot.lane.b32.xlu0 %v169, 4
    %v264 = vpop.permute.xlu0 %263
    %265 = vrot.lane.b32.xlu0 %v170, 4
    %v266 = vpop.permute.xlu0 %265
    %267 = vrot.lane.b32.xlu0 %v171, 4
    %v268 = vpop.permute.xlu0 %267
    %269 = vrot.lane.b32.xlu0 %v172, 4
    %v270 = vpop.permute.xlu0 %269
    %271 = vrot.lane.b32.xlu0 %v173, 4
    %v272 = vpop.permute.xlu0 %271
    %273 = vrot.lane.b32.xlu0 %v174, 4
    %v274 = vpop.permute.xlu0 %273
    %275 = vrot.lane.b32.xlu0 %v175, 4
    %v276 = vpop.permute.xlu0 %275
    %277 = vrot.lane.b32.xlu0 %v176, 4
    %v278 = vpop.permute.xlu0 %277
    %279 = vrot.lane.b32.xlu0 %v177, 4
    %v280 = vpop.permute.xlu0 %279
    %281 = vrot.lane.b32.xlu0 %v178, 4
    %v282 = vpop.permute.xlu0 %281
    %283 = vrot.lane.b32.xlu0 %v179, 4
    %v284 = vpop.permute.xlu0 %283
    %285 = vrot.lane.b32.xlu0 %v180, 4
    %v286 = vpop.permute.xlu0 %285
    %287 = vrot.lane.b32.xlu0 %v181, 4
    %v288 = vpop.permute.xlu0 %287
    %289 = vrot.lane.b32.xlu0 %v182, 4
    %v290 = vpop.permute.xlu0 %289
    %291 = vrot.lane.b32.xlu0 %v183, 4
    %v292 = vpop.permute.xlu0 %291
    %293 = vrot.lane.b32.xlu0 %v184, 4
    %v294 = vpop.permute.xlu0 %293
    %295 = vrot.lane.b32.xlu0 %v185, 4
    %v296 = vpop.permute.xlu0 %295
    %297 = vrot.lane.b32.xlu0 %v186, 4
    %v298 = vpop.permute.xlu0 %297
    %299 = vrot.lane.b32.xlu0 %v187, 4
    %v300 = vpop.permute.xlu0 %299
    %301 = vrot.lane.b32.xlu0 %v188, 4
    %v302 = vpop.permute.xlu0 %301
    %303 = vrot.lane.b32.xlu0 %v189, 4
    %v304 = vpop.permute.xlu0 %303
    %305 = vrot.lane.b32.xlu0 %v190, 4
    %v306 = vpop.permute.xlu0 %305
    %307 = vrot.lane.b32.xlu0 %v191, 4
    %v308 = vpop.permute.xlu0 %307
    %309 = vrot.lane.b32.xlu0 %v192, 4
    %v310 = vpop.permute.xlu0 %309
    %311 = vrot.lane.b32.xlu0 %v193, 4
    %v312 = vpop.permute.xlu0 %311
    %313 = vrot.lane.b32.xlu0 %v194, 4
    %v314 = vpop.permute.xlu0 %313
    %315 = vrot.lane.b32.xlu0 %v195, 4
    %v316 = vpop.permute.xlu0 %315
    %317 = vrot.lane.b32.xlu0 %v196, 4
    %v318 = vpop.permute.xlu0 %317
    %319 = vrot.lane.b32.xlu0 %v197, 4
    %v320 = vpop.permute.xlu0 %319
    %321 = vrot.lane.b32.xlu0 %v198, 4
    %v322 = vpop.permute.xlu0 %321
    %323 = vrot.lane.b32.xlu0 %v199, 4
    %v324 = vpop.permute.xlu0 %323
    %325 = vrot.lane.b32.xlu0 %v200, 4
    %v326 = vpop.permute.xlu0 %325
    %327 = vrot.lane.b32.xlu0 %v201, 4
    %v328 = vpop.permute.xlu0 %327
    %329 = vrot.lane.b32.xlu0 %v202, 4
    %v330 = vpop.permute.xlu0 %329
    %v331 = vadd.f32 %v75, %v204
    %v332 = vadd.f32 %v76, %v206
    %v333 = vadd.f32 %v77, %v208
    %v334 = vadd.f32 %v78, %v210
    %v335 = vadd.f32 %v79, %v212
    %v336 = vadd.f32 %v80, %v214
    %v337 = vadd.f32 %v81, %v216
    %v338 = vadd.f32 %v82, %v218
    %v339 = vadd.f32 %v83, %v220
    %v340 = vadd.f32 %v84, %v222
    %v341 = vadd.f32 %v85, %v224
    %v342 = vadd.f32 %v86, %v226
    %v343 = vadd.f32 %v87, %v228
    %v344 = vadd.f32 %v88, %v230
    %v345 = vadd.f32 %v89, %v232
    %v346 = vadd.f32 %v90, %v234
    %v347 = vadd.f32 %v91, %v236
    %v348 = vadd.f32 %v92, %v238
    %v349 = vadd.f32 %v93, %v240
    %v350 = vadd.f32 %v94, %v242
    %v351 = vadd.f32 %v95, %v244
    %v352 = vadd.f32 %v96, %v246
    %v353 = vadd.f32 %v97, %v248
    %v354 = vadd.f32 %v98, %v250
    %v355 = vadd.f32 %v99, %v252
    %v356 = vadd.f32 %v100, %v254
    %v357 = vadd.f32 %v101, %v256
    %v358 = vadd.f32 %v102, %v258
    %v359 = vadd.f32 %v103, %v260
    %v360 = vadd.f32 %v104, %v262
    %v361 = vadd.f32 %v105, %v264
    %v362 = vadd.f32 %v106, %v266
    %v363 = vadd.f32 %v107, %v268
    %v364 = vadd.f32 %v108, %v270
    %v365 = vadd.f32 %v109, %v272
    %v366 = vadd.f32 %v110, %v274
    %v367 = vadd.f32 %v111, %v276
    %v368 = vadd.f32 %v112, %v278
    %v369 = vadd.f32 %v113, %v280
    %v370 = vadd.f32 %v114, %v282
    %v371 = vadd.f32 %v115, %v284
    %v372 = vadd.f32 %v116, %v286
    %v373 = vadd.f32 %v117, %v288
    %v374 = vadd.f32 %v118, %v290
    %v375 = vadd.f32 %v119, %v292
    %v376 = vadd.f32 %v120, %v294
    %v377 = vadd.f32 %v121, %v296
    %v378 = vadd.f32 %v122, %v298
    %v379 = vadd.f32 %v123, %v300
    %v380 = vadd.f32 %v124, %v302
    %v381 = vadd.f32 %v125, %v304
    %v382 = vadd.f32 %v126, %v306
    %v383 = vadd.f32 %v127, %v308
    %v384 = vadd.f32 %v128, %v310
    %v385 = vadd.f32 %v129, %v312
    %v386 = vadd.f32 %v130, %v314
    %v387 = vadd.f32 %v131, %v316
    %v388 = vadd.f32 %v132, %v318
    %v389 = vadd.f32 %v133, %v320
    %v390 = vadd.f32 %v134, %v322
    %v391 = vadd.f32 %v135, %v324
    %v392 = vadd.f32 %v136, %v326
    %v393 = vadd.f32 %v137, %v328
    %v394 = vadd.f32 %v138, %v330
    %v395 = vld [vmem:[#allocation4 + $0x2] sm:$0xff]
    %v396 = vld [vmem:[#allocation4 + $0xa] sm:$0xff]
    %v397 = vld [vmem:[#allocation4 + $0x1a] sm:$0xff]
    %v398 = vld [vmem:[#allocation4 + $0x22] sm:$0xff]
    %v399 = vld [vmem:[#allocation4 + $0x32] sm:$0xff]
    %v400 = vld [vmem:[#allocation4 + $0x3a] sm:$0xff]
    %v401 = vld [vmem:[#allocation4 + $0x4a] sm:$0xff]
    %v402 = vld [vmem:[#allocation4 + $0x52] sm:$0xff]
    %v403 = vld [vmem:[#allocation4 + $0x62] sm:$0xff]
    %v404 = vld [vmem:[#allocation4 + $0x6a] sm:$0xff]
    %v405 = vld [vmem:[#allocation4 + $0x7a] sm:$0xff]
    %v406 = vld [vmem:[#allocation4 + $0x82] sm:$0xff]
    %v407 = vld [vmem:[#allocation4 + $0x92] sm:$0xff]
    %v408 = vld [vmem:[#allocation4 + $0x9a] sm:$0xff]
    %v409 = vld [vmem:[#allocation4 + $0xaa] sm:$0xff]
    %v410 = vld [vmem:[#allocation4 + $0xb2] sm:$0xff]
    %v411 = vld [vmem:[#allocation4 + $0xc2] sm:$0xff]
    %v412 = vld [vmem:[#allocation4 + $0xca] sm:$0xff]
    %v413 = vld [vmem:[#allocation4 + $0xda] sm:$0xff]
    %v414 = vld [vmem:[#allocation4 + $0xe2] sm:$0xff]
    %v415 = vld [vmem:[#allocation4 + $0xf2] sm:$0xff]
    %v416 = vld [vmem:[#allocation4 + $0xfa] sm:$0xff]
    %v417 = vld [vmem:[#allocation4 + $0x10a] sm:$0xff]
    %v418 = vld [vmem:[#allocation4 + $0x112] sm:$0xff]
    %v419 = vld [vmem:[#allocation4 + $0x122] sm:$0xff]
    %v420 = vld [vmem:[#allocation4 + $0x12a] sm:$0xff]
    %v421 = vld [vmem:[#allocation4 + $0x13a] sm:$0xff]
    %v422 = vld [vmem:[#allocation4 + $0x142] sm:$0xff]
    %v423 = vld [vmem:[#allocation4 + $0x152] sm:$0xff]
    %v424 = vld [vmem:[#allocation4 + $0x15a] sm:$0xff]
    %v425 = vld [vmem:[#allocation4 + $0x16a] sm:$0xff]
    %v426 = vld [vmem:[#allocation4 + $0x172] sm:$0xff]
    %v427 = vld [vmem:[#allocation4 + $0x1b2] sm:$0xff]
    %v428 = vld [vmem:[#allocation4 + $0x1ba] sm:$0xff]
    %v429 = vld [vmem:[#allocation4 + $0x1ca] sm:$0xff]
    %v430 = vld [vmem:[#allocation4 + $0x1d2] sm:$0xff]
    %v431 = vld [vmem:[#allocation4 + $0x1e2] sm:$0xff]
    %v432 = vld [vmem:[#allocation4 + $0x1ea] sm:$0xff]
    %v433 = vld [vmem:[#allocation4 + $0x1fa] sm:$0xff]
    %v434 = vld [vmem:[#allocation4 + $0x202] sm:$0xff]
    %v435 = vld [vmem:[#allocation4 + $0x212] sm:$0xff]
    %v436 = vld [vmem:[#allocation4 + $0x21a] sm:$0xff]
    %v437 = vld [vmem:[#allocation4 + $0x22a] sm:$0xff]
    %v438 = vld [vmem:[#allocation4 + $0x232] sm:$0xff]
    %v439 = vld [vmem:[#allocation4 + $0x242] sm:$0xff]
    %v440 = vld [vmem:[#allocation4 + $0x24a] sm:$0xff]
    %v441 = vld [vmem:[#allocation4 + $0x25a] sm:$0xff]
    %v442 = vld [vmem:[#allocation4 + $0x262] sm:$0xff]
    %v443 = vld [vmem:[#allocation4 + $0x272] sm:$0xff]
    %v444 = vld [vmem:[#allocation4 + $0x27a] sm:$0xff]
    %v445 = vld [vmem:[#allocation4 + $0x28a] sm:$0xff]
    %v446 = vld [vmem:[#allocation4 + $0x292] sm:$0xff]
    %v447 = vld [vmem:[#allocation4 + $0x2a2] sm:$0xff]
    %v448 = vld [vmem:[#allocation4 + $0x2aa] sm:$0xff]
    %v449 = vld [vmem:[#allocation4 + $0x2ba] sm:$0xff]
    %v450 = vld [vmem:[#allocation4 + $0x2c2] sm:$0xff]
    %v451 = vld [vmem:[#allocation4 + $0x2d2] sm:$0xff]
    %v452 = vld [vmem:[#allocation4 + $0x2da] sm:$0xff]
    %v453 = vld [vmem:[#allocation4 + $0x2ea] sm:$0xff]
    %v454 = vld [vmem:[#allocation4 + $0x2f2] sm:$0xff]
    %v455 = vld [vmem:[#allocation4 + $0x302] sm:$0xff]
    %v456 = vld [vmem:[#allocation4 + $0x30a] sm:$0xff]
    %v457 = vld [vmem:[#allocation4 + $0x31a] sm:$0xff]
    %v458 = vld [vmem:[#allocation4 + $0x322] sm:$0xff]
    %459 = vrot.lane.b32.xlu0 %v395, 8
    %v460 = vpop.permute.xlu0 %459
    %461 = vrot.lane.b32.xlu0 %v396, 8
    %v462 = vpop.permute.xlu0 %461
    %463 = vrot.lane.b32.xlu0 %v397, 8
    %v464 = vpop.permute.xlu0 %463
    %465 = vrot.lane.b32.xlu0 %v398, 8
    %v466 = vpop.permute.xlu0 %465
    %467 = vrot.lane.b32.xlu0 %v399, 8
    %v468 = vpop.permute.xlu0 %467
    %469 = vrot.lane.b32.xlu0 %v400, 8
    %v470 = vpop.permute.xlu0 %469
    %471 = vrot.lane.b32.xlu0 %v401, 8
    %v472 = vpop.permute.xlu0 %471
    %473 = vrot.lane.b32.xlu0 %v402, 8
    %v474 = vpop.permute.xlu0 %473
    %475 = vrot.lane.b32.xlu0 %v403, 8
    %v476 = vpop.permute.xlu0 %475
    %477 = vrot.lane.b32.xlu0 %v404, 8
    %v478 = vpop.permute.xlu0 %477
    %479 = vrot.lane.b32.xlu0 %v405, 8
    %v480 = vpop.permute.xlu0 %479
    %481 = vrot.lane.b32.xlu0 %v406, 8
    %v482 = vpop.permute.xlu0 %481
    %483 = vrot.lane.b32.xlu0 %v407, 8
    %v484 = vpop.permute.xlu0 %483
    %485 = vrot.lane.b32.xlu0 %v408, 8
    %v486 = vpop.permute.xlu0 %485
    %487 = vrot.lane.b32.xlu0 %v409, 8
    %v488 = vpop.permute.xlu0 %487
    %489 = vrot.lane.b32.xlu0 %v410, 8
    %v490 = vpop.permute.xlu0 %489
    %491 = vrot.lane.b32.xlu0 %v411, 8
    %v492 = vpop.permute.xlu0 %491
    %493 = vrot.lane.b32.xlu0 %v412, 8
    %v494 = vpop.permute.xlu0 %493
    %495 = vrot.lane.b32.xlu0 %v413, 8
    %v496 = vpop.permute.xlu0 %495
    %497 = vrot.lane.b32.xlu0 %v414, 8
    %v498 = vpop.permute.xlu0 %497
    %499 = vrot.lane.b32.xlu0 %v415, 8
    %v500 = vpop.permute.xlu0 %499
    %501 = vrot.lane.b32.xlu0 %v416, 8
    %v502 = vpop.permute.xlu0 %501
    %503 = vrot.lane.b32.xlu0 %v417, 8
    %v504 = vpop.permute.xlu0 %503
    %505 = vrot.lane.b32.xlu0 %v418, 8
    %v506 = vpop.permute.xlu0 %505
    %507 = vrot.lane.b32.xlu0 %v419, 8
    %v508 = vpop.permute.xlu0 %507
    %509 = vrot.lane.b32.xlu0 %v420, 8
    %v510 = vpop.permute.xlu0 %509
    %511 = vrot.lane.b32.xlu0 %v421, 8
    %v512 = vpop.permute.xlu0 %511
    %513 = vrot.lane.b32.xlu0 %v422, 8
    %v514 = vpop.permute.xlu0 %513
    %515 = vrot.lane.b32.xlu0 %v423, 8
    %v516 = vpop.permute.xlu0 %515
    %517 = vrot.lane.b32.xlu0 %v424, 8
    %v518 = vpop.permute.xlu0 %517
    %519 = vrot.lane.b32.xlu0 %v425, 8
    %v520 = vpop.permute.xlu0 %519
    %521 = vrot.lane.b32.xlu0 %v426, 8
    %v522 = vpop.permute.xlu0 %521
    %523 = vrot.lane.b32.xlu0 %v427, 8
    %v524 = vpop.permute.xlu0 %523
    %525 = vrot.lane.b32.xlu0 %v428, 8
    %v526 = vpop.permute.xlu0 %525
    %527 = vrot.lane.b32.xlu0 %v429, 8
    %v528 = vpop.permute.xlu0 %527
    %529 = vrot.lane.b32.xlu0 %v430, 8
    %v530 = vpop.permute.xlu0 %529
    %531 = vrot.lane.b32.xlu0 %v431, 8
    %v532 = vpop.permute.xlu0 %531
    %533 = vrot.lane.b32.xlu0 %v432, 8
    %v534 = vpop.permute.xlu0 %533
    %535 = vrot.lane.b32.xlu0 %v433, 8
    %v536 = vpop.permute.xlu0 %535
    %537 = vrot.lane.b32.xlu0 %v434, 8
    %v538 = vpop.permute.xlu0 %537
    %539 = vrot.lane.b32.xlu0 %v435, 8
    %v540 = vpop.permute.xlu0 %539
    %541 = vrot.lane.b32.xlu0 %v436, 8
    %v542 = vpop.permute.xlu0 %541
    %543 = vrot.lane.b32.xlu0 %v437, 8
    %v544 = vpop.permute.xlu0 %543
    %545 = vrot.lane.b32.xlu0 %v438, 8
    %v546 = vpop.permute.xlu0 %545
    %547 = vrot.lane.b32.xlu0 %v439, 8
    %v548 = vpop.permute.xlu0 %547
    %549 = vrot.lane.b32.xlu0 %v440, 8
    %v550 = vpop.permute.xlu0 %549
    %551 = vrot.lane.b32.xlu0 %v441, 8
    %v552 = vpop.permute.xlu0 %551
    %553 = vrot.lane.b32.xlu0 %v442, 8
    %v554 = vpop.permute.xlu0 %553
    %555 = vrot.lane.b32.xlu0 %v443, 8
    %v556 = vpop.permute.xlu0 %555
    %557 = vrot.lane.b32.xlu0 %v444, 8
    %v558 = vpop.permute.xlu0 %557
    %559 = vrot.lane.b32.xlu0 %v445, 8
    %v560 = vpop.permute.xlu0 %559
    %561 = vrot.lane.b32.xlu0 %v446, 8
    %v562 = vpop.permute.xlu0 %561
    %563 = vrot.lane.b32.xlu0 %v447, 8
    %v564 = vpop.permute.xlu0 %563
    %565 = vrot.lane.b32.xlu0 %v448, 8
    %v566 = vpop.permute.xlu0 %565
    %567 = vrot.lane.b32.xlu0 %v449, 8
    %v568 = vpop.permute.xlu0 %567
    %569 = vrot.lane.b32.xlu0 %v450, 8
    %v570 = vpop.permute.xlu0 %569
    %571 = vrot.lane.b32.xlu0 %v451, 8
    %v572 = vpop.permute.xlu0 %571
    %573 = vrot.lane.b32.xlu0 %v452, 8
    %v574 = vpop.permute.xlu0 %573
    %575 = vrot.lane.b32.xlu0 %v453, 8
    %v576 = vpop.permute.xlu0 %575
    %577 = vrot.lane.b32.xlu0 %v454, 8
    %v578 = vpop.permute.xlu0 %577
    %579 = vrot.lane.b32.xlu0 %v455, 8
    %v580 = vpop.permute.xlu0 %579
    %581 = vrot.lane.b32.xlu0 %v456, 8
    %v582 = vpop.permute.xlu0 %581
    %583 = vrot.lane.b32.xlu0 %v457, 8
    %v584 = vpop.permute.xlu0 %583
    %585 = vrot.lane.b32.xlu0 %v458, 8
    %v586 = vpop.permute.xlu0 %585
    %v587 = vadd.f32 %v331, %v460
    %v588 = vadd.f32 %v332, %v462
    %v589 = vadd.f32 %v333, %v464
    %v590 = vadd.f32 %v334, %v466
    %v591 = vadd.f32 %v335, %v468
    %v592 = vadd.f32 %v336, %v470
    %v593 = vadd.f32 %v337, %v472
    %v594 = vadd.f32 %v338, %v474
    %v595 = vadd.f32 %v339, %v476
    %v596 = vadd.f32 %v340, %v478
    %v597 = vadd.f32 %v341, %v480
    %v598 = vadd.f32 %v342, %v482
    %v599 = vadd.f32 %v343, %v484
    %v600 = vadd.f32 %v344, %v486
    %v601 = vadd.f32 %v345, %v488
    %v602 = vadd.f32 %v346, %v490
    %v603 = vadd.f32 %v347, %v492
    %v604 = vadd.f32 %v348, %v494
    %v605 = vadd.f32 %v349, %v496
    %v606 = vadd.f32 %v350, %v498
    %v607 = vadd.f32 %v351, %v500
    %v608 = vadd.f32 %v352, %v502
    %v609 = vadd.f32 %v353, %v504
    %v610 = vadd.f32 %v354, %v506
    %v611 = vadd.f32 %v355, %v508
    %v612 = vadd.f32 %v356, %v510
    %v613 = vadd.f32 %v357, %v512
    %v614 = vadd.f32 %v358, %v514
    %v615 = vadd.f32 %v359, %v516
    %v616 = vadd.f32 %v360, %v518
    %v617 = vadd.f32 %v361, %v520
    %v618 = vadd.f32 %v362, %v522
    %v619 = vadd.f32 %v363, %v524
    %v620 = vadd.f32 %v364, %v526
    %v621 = vadd.f32 %v365, %v528
    %v622 = vadd.f32 %v366, %v530
    %v623 = vadd.f32 %v367, %v532
    %v624 = vadd.f32 %v368, %v534
    %v625 = vadd.f32 %v369, %v536
    %v626 = vadd.f32 %v370, %v538
    %v627 = vadd.f32 %v371, %v540
    %v628 = vadd.f32 %v372, %v542
    %v629 = vadd.f32 %v373, %v544
    %v630 = vadd.f32 %v374, %v546
    %v631 = vadd.f32 %v375, %v548
    %v632 = vadd.f32 %v376, %v550
    %v633 = vadd.f32 %v377, %v552
    %v634 = vadd.f32 %v378, %v554
    %v635 = vadd.f32 %v379, %v556
    %v636 = vadd.f32 %v380, %v558
    %v637 = vadd.f32 %v381, %v560
    %v638 = vadd.f32 %v382, %v562
    %v639 = vadd.f32 %v383, %v564
    %v640 = vadd.f32 %v384, %v566
    %v641 = vadd.f32 %v385, %v568
    %v642 = vadd.f32 %v386, %v570
    %v643 = vadd.f32 %v387, %v572
    %v644 = vadd.f32 %v388, %v574
    %v645 = vadd.f32 %v389, %v576
    %v646 = vadd.f32 %v390, %v578
    %v647 = vadd.f32 %v391, %v580
    %v648 = vadd.f32 %v392, %v582
    %v649 = vadd.f32 %v393, %v584
    %v650 = vadd.f32 %v394, %v586
    %s651 = scalar_lea.vmem [#allocation4], 24
    %v652 = vld [vmem:[%s651] sm:$0xff]
    %v653 = vld [vmem:[%s651 + $0x8] sm:$0xff]
    %v654 = vld [vmem:[%s651 + $0x18] sm:$0xff]
    %v655 = vld [vmem:[%s651 + $0x20] sm:$0xff]
    %v656 = vld [vmem:[%s651 + $0x30] sm:$0xff]
    %v657 = vld [vmem:[%s651 + $0x38] sm:$0xff]
    %v658 = vld [vmem:[%s651 + $0x48] sm:$0xff]
    %v659 = vld [vmem:[%s651 + $0x50] sm:$0xff]
    %v660 = vld [vmem:[%s651 + $0x60] sm:$0xff]
    %v661 = vld [vmem:[%s651 + $0x68] sm:$0xff]
    %v662 = vld [vmem:[%s651 + $0x78] sm:$0xff]
    %v663 = vld [vmem:[%s651 + $0x80] sm:$0xff]
    %v664 = vld [vmem:[%s651 + $0x90] sm:$0xff]
    %v665 = vld [vmem:[%s651 + $0x98] sm:$0xff]
    %v666 = vld [vmem:[%s651 + $0xa8] sm:$0xff]
    %v667 = vld [vmem:[%s651 + $0xb0] sm:$0xff]
    %v668 = vld [vmem:[%s651 + $0xc0] sm:$0xff]
    %v669 = vld [vmem:[%s651 + $0xc8] sm:$0xff]
    %v670 = vld [vmem:[%s651 + $0xd8] sm:$0xff]
    %v671 = vld [vmem:[%s651 + $0xe0] sm:$0xff]
    %v672 = vld [vmem:[%s651 + $0xf0] sm:$0xff]
    %v673 = vld [vmem:[%s651 + $0xf8] sm:$0xff]
    %v674 = vld [vmem:[%s651 + $0x108] sm:$0xff]
    %v675 = vld [vmem:[%s651 + $0x110] sm:$0xff]
    %v676 = vld [vmem:[%s651 + $0x120] sm:$0xff]
    %v677 = vld [vmem:[%s651 + $0x128] sm:$0xff]
    %v678 = vld [vmem:[%s651 + $0x138] sm:$0xff]
    %v679 = vld [vmem:[%s651 + $0x140] sm:$0xff]
    %v680 = vld [vmem:[%s651 + $0x150] sm:$0xff]
    %v681 = vld [vmem:[%s651 + $0x158] sm:$0xff]
    %v682 = vld [vmem:[%s651 + $0x168] sm:$0xff]
    %v683 = vld [vmem:[%s651 + $0x170] sm:$0xff]
    %v684 = vld [vmem:[%s651 + $0x1b0] sm:$0xff]
    %v685 = vld [vmem:[%s651 + $0x1b8] sm:$0xff]
    %v686 = vld [vmem:[%s651 + $0x1c8] sm:$0xff]
    %v687 = vld [vmem:[%s651 + $0x1d0] sm:$0xff]
    %v688 = vld [vmem:[%s651 + $0x1e0] sm:$0xff]
    %v689 = vld [vmem:[%s651 + $0x1e8] sm:$0xff]
    %v690 = vld [vmem:[%s651 + $0x1f8] sm:$0xff]
    %v691 = vld [vmem:[%s651 + $0x200] sm:$0xff]
    %v692 = vld [vmem:[%s651 + $0x210] sm:$0xff]
    %v693 = vld [vmem:[%s651 + $0x218] sm:$0xff]
    %v694 = vld [vmem:[%s651 + $0x228] sm:$0xff]
    %v695 = vld [vmem:[%s651 + $0x230] sm:$0xff]
    %v696 = vld [vmem:[%s651 + $0x240] sm:$0xff]
    %v697 = vld [vmem:[%s651 + $0x248] sm:$0xff]
    %v698 = vld [vmem:[%s651 + $0x258] sm:$0xff]
    %v699 = vld [vmem:[%s651 + $0x260] sm:$0xff]
    %v700 = vld [vmem:[%s651 + $0x270] sm:$0xff]
    %v701 = vld [vmem:[%s651 + $0x278] sm:$0xff]
    %v702 = vld [vmem:[%s651 + $0x288] sm:$0xff]
    %v703 = vld [vmem:[%s651 + $0x290] sm:$0xff]
    %v704 = vld [vmem:[%s651 + $0x2a0] sm:$0xff]
    %v705 = vld [vmem:[%s651 + $0x2a8] sm:$0xff]
    %v706 = vld [vmem:[%s651 + $0x2b8] sm:$0xff]
    %v707 = vld [vmem:[%s651 + $0x2c0] sm:$0xff]
    %v708 = vld [vmem:[%s651 + $0x2d0] sm:$0xff]
    %v709 = vld [vmem:[%s651 + $0x2d8] sm:$0xff]
    %v710 = vld [vmem:[%s651 + $0x2e8] sm:$0xff]
    %v711 = vld [vmem:[%s651 + $0x2f0] sm:$0xff]
    %v712 = vld [vmem:[%s651 + $0x300] sm:$0xff]
    %v713 = vld [vmem:[%s651 + $0x308] sm:$0xff]
    %v714 = vld [vmem:[%s651 + $0x318] sm:$0xff]
    %v715 = vld [vmem:[%s651 + $0x320] sm:$0xff]
    %716 = vrot.lane.b32.xlu0 %v652, 12
    %v717 = vpop.permute.xlu0 %716
    %718 = vrot.lane.b32.xlu0 %v653, 12
    %v719 = vpop.permute.xlu0 %718
    %720 = vrot.lane.b32.xlu0 %v654, 12
    %v721 = vpop.permute.xlu0 %720
    %722 = vrot.lane.b32.xlu0 %v655, 12
    %v723 = vpop.permute.xlu0 %722
    %724 = vrot.lane.b32.xlu0 %v656, 12
    %v725 = vpop.permute.xlu0 %724
    %726 = vrot.lane.b32.xlu0 %v657, 12
    %v727 = vpop.permute.xlu0 %726
    %728 = vrot.lane.b32.xlu0 %v658, 12
    %v729 = vpop.permute.xlu0 %728
    %730 = vrot.lane.b32.xlu0 %v659, 12
    %v731 = vpop.permute.xlu0 %730
    %732 = vrot.lane.b32.xlu0 %v660, 12
    %v733 = vpop.permute.xlu0 %732
    %734 = vrot.lane.b32.xlu0 %v661, 12
    %v735 = vpop.permute.xlu0 %734
    %736 = vrot.lane.b32.xlu0 %v662, 12
    %v737 = vpop.permute.xlu0 %736
    %738 = vrot.lane.b32.xlu0 %v663, 12
    %v739 = vpop.permute.xlu0 %738
    %740 = vrot.lane.b32.xlu0 %v664, 12
    %v741 = vpop.permute.xlu0 %740
    %742 = vrot.lane.b32.xlu0 %v665, 12
    %v743 = vpop.permute.xlu0 %742
    %744 = vrot.lane.b32.xlu0 %v666, 12
    %v745 = vpop.permute.xlu0 %744
    %746 = vrot.lane.b32.xlu0 %v667, 12
    %v747 = vpop.permute.xlu0 %746
    %748 = vrot.lane.b32.xlu0 %v668, 12
    %v749 = vpop.permute.xlu0 %748
    %750 = vrot.lane.b32.xlu0 %v669, 12
    %v751 = vpop.permute.xlu0 %750
    %752 = vrot.lane.b32.xlu0 %v670, 12
    %v753 = vpop.permute.xlu0 %752
    %754 = vrot.lane.b32.xlu0 %v671, 12
    %v755 = vpop.permute.xlu0 %754
    %756 = vrot.lane.b32.xlu0 %v672, 12
    %v757 = vpop.permute.xlu0 %756
    %758 = vrot.lane.b32.xlu0 %v673, 12
    %v759 = vpop.permute.xlu0 %758
    %760 = vrot.lane.b32.xlu0 %v674, 12
    %v761 = vpop.permute.xlu0 %760
    %762 = vrot.lane.b32.xlu0 %v675, 12
    %v763 = vpop.permute.xlu0 %762
    %764 = vrot.lane.b32.xlu0 %v676, 12
    %v765 = vpop.permute.xlu0 %764
    %766 = vrot.lane.b32.xlu0 %v677, 12
    %v767 = vpop.permute.xlu0 %766
    %768 = vrot.lane.b32.xlu0 %v678, 12
    %v769 = vpop.permute.xlu0 %768
    %770 = vrot.lane.b32.xlu0 %v679, 12
    %v771 = vpop.permute.xlu0 %770
    %772 = vrot.lane.b32.xlu0 %v680, 12
    %v773 = vpop.permute.xlu0 %772
    %774 = vrot.lane.b32.xlu0 %v681, 12
    %v775 = vpop.permute.xlu0 %774
    %776 = vrot.lane.b32.xlu0 %v682, 12
    %v777 = vpop.permute.xlu0 %776
    %778 = vrot.lane.b32.xlu0 %v683, 12
    %v779 = vpop.permute.xlu0 %778
    %780 = vrot.lane.b32.xlu0 %v684, 12
    %v781 = vpop.permute.xlu0 %780
    %782 = vrot.lane.b32.xlu0 %v685, 12
    %v783 = vpop.permute.xlu0 %782
    %784 = vrot.lane.b32.xlu0 %v686, 12
    %v785 = vpop.permute.xlu0 %784
    %786 = vrot.lane.b32.xlu0 %v687, 12
    %v787 = vpop.permute.xlu0 %786
    %788 = vrot.lane.b32.xlu0 %v688, 12
    %v789 = vpop.permute.xlu0 %788
    %790 = vrot.lane.b32.xlu0 %v689, 12
    %v791 = vpop.permute.xlu0 %790
    %792 = vrot.lane.b32.xlu0 %v690, 12
    %v793 = vpop.permute.xlu0 %792
    %794 = vrot.lane.b32.xlu0 %v691, 12
    %v795 = vpop.permute.xlu0 %794
    %796 = vrot.lane.b32.xlu0 %v692, 12
    %v797 = vpop.permute.xlu0 %796
    %798 = vrot.lane.b32.xlu0 %v693, 12
    %v799 = vpop.permute.xlu0 %798
    %800 = vrot.lane.b32.xlu0 %v694, 12
    %v801 = vpop.permute.xlu0 %800
    %802 = vrot.lane.b32.xlu0 %v695, 12
    %v803 = vpop.permute.xlu0 %802
    %804 = vrot.lane.b32.xlu0 %v696, 12
    %v805 = vpop.permute.xlu0 %804
    %806 = vrot.lane.b32.xlu0 %v697, 12
    %v807 = vpop.permute.xlu0 %806
    %808 = vrot.lane.b32.xlu0 %v698, 12
    %v809 = vpop.permute.xlu0 %808
    %810 = vrot.lane.b32.xlu0 %v699, 12
    %v811 = vpop.permute.xlu0 %810
    %812 = vrot.lane.b32.xlu0 %v700, 12
    %v813 = vpop.permute.xlu0 %812
    %814 = vrot.lane.b32.xlu0 %v701, 12
    %v815 = vpop.permute.xlu0 %814
    %816 = vrot.lane.b32.xlu0 %v702, 12
    %v817 = vpop.permute.xlu0 %816
    %818 = vrot.lane.b32.xlu0 %v703, 12
    %v819 = vpop.permute.xlu0 %818
    %820 = vrot.lane.b32.xlu0 %v704, 12
    %v821 = vpop.permute.xlu0 %820
    %822 = vrot.lane.b32.xlu0 %v705, 12
    %v823 = vpop.permute.xlu0 %822
    %824 = vrot.lane.b32.xlu0 %v706, 12
    %v825 = vpop.permute.xlu0 %824
    %826 = vrot.lane.b32.xlu0 %v707, 12
    %v827 = vpop.permute.xlu0 %826
    %828 = vrot.lane.b32.xlu0 %v708, 12
    %v829 = vpop.permute.xlu0 %828
    %830 = vrot.lane.b32.xlu0 %v709, 12
    %v831 = vpop.permute.xlu0 %830
    %832 = vrot.lane.b32.xlu0 %v710, 12
    %v833 = vpop.permute.xlu0 %832
    %834 = vrot.lane.b32.xlu0 %v711, 12
    %v835 = vpop.permute.xlu0 %834
    %836 = vrot.lane.b32.xlu0 %v712, 12
    %v837 = vpop.permute.xlu0 %836
    %838 = vrot.lane.b32.xlu0 %v713, 12
    %v839 = vpop.permute.xlu0 %838
    %840 = vrot.lane.b32.xlu0 %v714, 12
    %v841 = vpop.permute.xlu0 %840
    %842 = vrot.lane.b32.xlu0 %v715, 12
    %v843 = vpop.permute.xlu0 %842
    %v844 = vadd.f32 %v587, %v717
    %v845 = vadd.f32 %v588, %v719
    %v846 = vadd.f32 %v589, %v721
    %v847 = vadd.f32 %v590, %v723
    %v848 = vadd.f32 %v591, %v725
    %v849 = vadd.f32 %v592, %v727
    %v850 = vadd.f32 %v593, %v729
    %v851 = vadd.f32 %v594, %v731
    %v852 = vadd.f32 %v595, %v733
    %v853 = vadd.f32 %v596, %v735
    %v854 = vadd.f32 %v597, %v737
    %v855 = vadd.f32 %v598, %v739
    %v856 = vadd.f32 %v599, %v741
    %v857 = vadd.f32 %v600, %v743
    %v858 = vadd.f32 %v601, %v745
    %v859 = vadd.f32 %v602, %v747
    %v860 = vadd.f32 %v603, %v749
    %v861 = vadd.f32 %v604, %v751
    %v862 = vadd.f32 %v605, %v753
    %v863 = vadd.f32 %v606, %v755
    %v864 = vadd.f32 %v607, %v757
    %v865 = vadd.f32 %v608, %v759
    %v866 = vadd.f32 %v609, %v761
    %v867 = vadd.f32 %v610, %v763
    %v868 = vadd.f32 %v611, %v765
    %v869 = vadd.f32 %v612, %v767
    %v870 = vadd.f32 %v613, %v769
    %v871 = vadd.f32 %v614, %v771
    %v872 = vadd.f32 %v615, %v773
    %v873 = vadd.f32 %v616, %v775
    %v874 = vadd.f32 %v617, %v777
    %v875 = vadd.f32 %v618, %v779
    %v876 = vadd.f32 %v619, %v781
    %v877 = vadd.f32 %v620, %v783
    %v878 = vadd.f32 %v621, %v785
    %v879 = vadd.f32 %v622, %v787
    %v880 = vadd.f32 %v623, %v789
    %v881 = vadd.f32 %v624, %v791
    %v882 = vadd.f32 %v625, %v793
    %v883 = vadd.f32 %v626, %v795
    %v884 = vadd.f32 %v627, %v797
    %v885 = vadd.f32 %v628, %v799
    %v886 = vadd.f32 %v629, %v801
    %v887 = vadd.f32 %v630, %v803
    %v888 = vadd.f32 %v631, %v805
    %v889 = vadd.f32 %v632, %v807
    %v890 = vadd.f32 %v633, %v809
    %v891 = vadd.f32 %v634, %v811
    %v892 = vadd.f32 %v635, %v813
    %v893 = vadd.f32 %v636, %v815
    %v894 = vadd.f32 %v637, %v817
    %v895 = vadd.f32 %v638, %v819
    %v896 = vadd.f32 %v639, %v821
    %v897 = vadd.f32 %v640, %v823
    %v898 = vadd.f32 %v641, %v825
    %v899 = vadd.f32 %v642, %v827
    %v900 = vadd.f32 %v643, %v829
    %v901 = vadd.f32 %v644, %v831
    %v902 = vadd.f32 %v645, %v833
    %v903 = vadd.f32 %v646, %v835
    %v904 = vadd.f32 %v647, %v837
    %v905 = vadd.f32 %v648, %v839
    %v906 = vadd.f32 %v649, %v841
    %v907 = vadd.f32 %v650, %v843
    %v908 = vld [vmem:[%s651 + $0x1] sm:$0xff]
    %v909 = vld [vmem:[%s651 + $0x9] sm:$0xff]
    %v910 = vld [vmem:[%s651 + $0x19] sm:$0xff]
    %v911 = vld [vmem:[%s651 + $0x21] sm:$0xff]
    %v912 = vld [vmem:[%s651 + $0x31] sm:$0xff]
    %v913 = vld [vmem:[%s651 + $0x39] sm:$0xff]
    %v914 = vld [vmem:[%s651 + $0x49] sm:$0xff]
    %v915 = vld [vmem:[%s651 + $0x51] sm:$0xff]
    %v916 = vld [vmem:[%s651 + $0x61] sm:$0xff]
    %v917 = vld [vmem:[%s651 + $0x69] sm:$0xff]
    %v918 = vld [vmem:[%s651 + $0x79] sm:$0xff]
    %v919 = vld [vmem:[%s651 + $0x81] sm:$0xff]
    %v920 = vld [vmem:[%s651 + $0x91] sm:$0xff]
    %v921 = vld [vmem:[%s651 + $0x99] sm:$0xff]
    %v922 = vld [vmem:[%s651 + $0xa9] sm:$0xff]
    %v923 = vld [vmem:[%s651 + $0xb1] sm:$0xff]
    %v924 = vld [vmem:[%s651 + $0xc1] sm:$0xff]
    %v925 = vld [vmem:[%s651 + $0xc9] sm:$0xff]
    %v926 = vld [vmem:[%s651 + $0xd9] sm:$0xff]
    %v927 = vld [vmem:[%s651 + $0xe1] sm:$0xff]
    %v928 = vld [vmem:[%s651 + $0xf1] sm:$0xff]
    %v929 = vld [vmem:[%s651 + $0xf9] sm:$0xff]
    %v930 = vld [vmem:[%s651 + $0x109] sm:$0xff]
    %v931 = vld [vmem:[%s651 + $0x111] sm:$0xff]
    %v932 = vld [vmem:[%s651 + $0x121] sm:$0xff]
    %v933 = vld [vmem:[%s651 + $0x129] sm:$0xff]
    %v934 = vld [vmem:[%s651 + $0x139] sm:$0xff]
    %v935 = vld [vmem:[%s651 + $0x141] sm:$0xff]
    %v936 = vld [vmem:[%s651 + $0x151] sm:$0xff]
    %v937 = vld [vmem:[%s651 + $0x159] sm:$0xff]
    %v938 = vld [vmem:[%s651 + $0x169] sm:$0xff]
    %v939 = vld [vmem:[%s651 + $0x171] sm:$0xff]
    %v940 = vld [vmem:[%s651 + $0x1b1] sm:$0xff]
    %v941 = vld [vmem:[%s651 + $0x1b9] sm:$0xff]
    %v942 = vld [vmem:[%s651 + $0x1c9] sm:$0xff]
    %v943 = vld [vmem:[%s651 + $0x1d1] sm:$0xff]
    %v944 = vld [vmem:[%s651 + $0x1e1] sm:$0xff]
    %v945 = vld [vmem:[%s651 + $0x1e9] sm:$0xff]
    %v946 = vld [vmem:[%s651 + $0x1f9] sm:$0xff]
    %v947 = vld [vmem:[%s651 + $0x201] sm:$0xff]
    %v948 = vld [vmem:[%s651 + $0x211] sm:$0xff]
    %v949 = vld [vmem:[%s651 + $0x219] sm:$0xff]
    %v950 = vld [vmem:[%s651 + $0x229] sm:$0xff]
    %v951 = vld [vmem:[%s651 + $0x231] sm:$0xff]
    %v952 = vld [vmem:[%s651 + $0x241] sm:$0xff]
    %v953 = vld [vmem:[%s651 + $0x249] sm:$0xff]
    %v954 = vld [vmem:[%s651 + $0x259] sm:$0xff]
    %v955 = vld [vmem:[%s651 + $0x261] sm:$0xff]
    %v956 = vld [vmem:[%s651 + $0x271] sm:$0xff]
    %v957 = vld [vmem:[%s651 + $0x279] sm:$0xff]
    %v958 = vld [vmem:[%s651 + $0x289] sm:$0xff]
    %v959 = vld [vmem:[%s651 + $0x291] sm:$0xff]
    %v960 = vld [vmem:[%s651 + $0x2a1] sm:$0xff]
    %v961 = vld [vmem:[%s651 + $0x2a9] sm:$0xff]
    %v962 = vld [vmem:[%s651 + $0x2b9] sm:$0xff]
    %v963 = vld [vmem:[%s651 + $0x2c1] sm:$0xff]
    %v964 = vld [vmem:[%s651 + $0x2d1] sm:$0xff]
    %v965 = vld [vmem:[%s651 + $0x2d9] sm:$0xff]
    %v966 = vld [vmem:[%s651 + $0x2e9] sm:$0xff]
    %v967 = vld [vmem:[%s651 + $0x2f1] sm:$0xff]
    %v968 = vld [vmem:[%s651 + $0x301] sm:$0xff]
    %v969 = vld [vmem:[%s651 + $0x309] sm:$0xff]
    %v970 = vld [vmem:[%s651 + $0x319] sm:$0xff]
    %v971 = vld [vmem:[%s651 + $0x321] sm:$0xff]
    %972 = vrot.lane.b32.xlu0 %v908, 16
    %v973 = vpop.permute.xlu0 %972
    %974 = vrot.lane.b32.xlu0 %v909, 16
    %v975 = vpop.permute.xlu0 %974
    %976 = vrot.lane.b32.xlu0 %v910, 16
    %v977 = vpop.permute.xlu0 %976
    %978 = vrot.lane.b32.xlu0 %v911, 16
    %v979 = vpop.permute.xlu0 %978
    %980 = vrot.lane.b32.xlu0 %v912, 16
    %v981 = vpop.permute.xlu0 %980
    %982 = vrot.lane.b32.xlu0 %v913, 16
    %v983 = vpop.permute.xlu0 %982
    %984 = vrot.lane.b32.xlu0 %v914, 16
    %v985 = vpop.permute.xlu0 %984
    %986 = vrot.lane.b32.xlu0 %v915, 16
    %v987 = vpop.permute.xlu0 %986
    %988 = vrot.lane.b32.xlu0 %v916, 16
    %v989 = vpop.permute.xlu0 %988
    %990 = vrot.lane.b32.xlu0 %v917, 16
    %v991 = vpop.permute.xlu0 %990
    %992 = vrot.lane.b32.xlu0 %v918, 16
    %v993 = vpop.permute.xlu0 %992
    %994 = vrot.lane.b32.xlu0 %v919, 16
    %v995 = vpop.permute.xlu0 %994
    %996 = vrot.lane.b32.xlu0 %v920, 16
    %v997 = vpop.permute.xlu0 %996
    %998 = vrot.lane.b32.xlu0 %v921, 16
    %v999 = vpop.permute.xlu0 %998
    %1000 = vrot.lane.b32.xlu0 %v922, 16
    %v1001 = vpop.permute.xlu0 %1000
    %1002 = vrot.lane.b32.xlu0 %v923, 16
    %v1003 = vpop.permute.xlu0 %1002
    %1004 = vrot.lane.b32.xlu0 %v924, 16
    %v1005 = vpop.permute.xlu0 %1004
    %1006 = vrot.lane.b32.xlu0 %v925, 16
    %v1007 = vpop.permute.xlu0 %1006
    %1008 = vrot.lane.b32.xlu0 %v926, 16
    %v1009 = vpop.permute.xlu0 %1008
    %1010 = vrot.lane.b32.xlu0 %v927, 16
    %v1011 = vpop.permute.xlu0 %1010
    %1012 = vrot.lane.b32.xlu0 %v928, 16
    %v1013 = vpop.permute.xlu0 %1012
    %1014 = vrot.lane.b32.xlu0 %v929, 16
    %v1015 = vpop.permute.xlu0 %1014
    %1016 = vrot.lane.b32.xlu0 %v930, 16
    %v1017 = vpop.permute.xlu0 %1016
    %1018 = vrot.lane.b32.xlu0 %v931, 16
    %v1019 = vpop.permute.xlu0 %1018
    %1020 = vrot.lane.b32.xlu0 %v932, 16
    %v1021 = vpop.permute.xlu0 %1020
    %1022 = vrot.lane.b32.xlu0 %v933, 16
    %v1023 = vpop.permute.xlu0 %1022
    %1024 = vrot.lane.b32.xlu0 %v934, 16
    %v1025 = vpop.permute.xlu0 %1024
    %1026 = vrot.lane.b32.xlu0 %v935, 16
    %v1027 = vpop.permute.xlu0 %1026
    %1028 = vrot.lane.b32.xlu0 %v936, 16
    %v1029 = vpop.permute.xlu0 %1028
    %1030 = vrot.lane.b32.xlu0 %v937, 16
    %v1031 = vpop.permute.xlu0 %1030
    %1032 = vrot.lane.b32.xlu0 %v938, 16
    %v1033 = vpop.permute.xlu0 %1032
    %1034 = vrot.lane.b32.xlu0 %v939, 16
    %v1035 = vpop.permute.xlu0 %1034
    %1036 = vrot.lane.b32.xlu0 %v940, 16
    %v1037 = vpop.permute.xlu0 %1036
    %1038 = vrot.lane.b32.xlu0 %v941, 16
    %v1039 = vpop.permute.xlu0 %1038
    %1040 = vrot.lane.b32.xlu0 %v942, 16
    %v1041 = vpop.permute.xlu0 %1040
    %1042 = vrot.lane.b32.xlu0 %v943, 16
    %v1043 = vpop.permute.xlu0 %1042
    %1044 = vrot.lane.b32.xlu0 %v944, 16
    %v1045 = vpop.permute.xlu0 %1044
    %1046 = vrot.lane.b32.xlu0 %v945, 16
    %v1047 = vpop.permute.xlu0 %1046
    %1048 = vrot.lane.b32.xlu0 %v946, 16
    %v1049 = vpop.permute.xlu0 %1048
    %1050 = vrot.lane.b32.xlu0 %v947, 16
    %v1051 = vpop.permute.xlu0 %1050
    %1052 = vrot.lane.b32.xlu0 %v948, 16
    %v1053 = vpop.permute.xlu0 %1052
    %1054 = vrot.lane.b32.xlu0 %v949, 16
    %v1055 = vpop.permute.xlu0 %1054
    %1056 = vrot.lane.b32.xlu0 %v950, 16
    %v1057 = vpop.permute.xlu0 %1056
    %1058 = vrot.lane.b32.xlu0 %v951, 16
    %v1059 = vpop.permute.xlu0 %1058
    %1060 = vrot.lane.b32.xlu0 %v952, 16
    %v1061 = vpop.permute.xlu0 %1060
    %1062 = vrot.lane.b32.xlu0 %v953, 16
    %v1063 = vpop.permute.xlu0 %1062
    %1064 = vrot.lane.b32.xlu0 %v954, 16
    %v1065 = vpop.permute.xlu0 %1064
    %1066 = vrot.lane.b32.xlu0 %v955, 16
    %v1067 = vpop.permute.xlu0 %1066
    %1068 = vrot.lane.b32.xlu0 %v956, 16
    %v1069 = vpop.permute.xlu0 %1068
    %1070 = vrot.lane.b32.xlu0 %v957, 16
    %v1071 = vpop.permute.xlu0 %1070
    %1072 = vrot.lane.b32.xlu0 %v958, 16
    %v1073 = vpop.permute.xlu0 %1072
    %1074 = vrot.lane.b32.xlu0 %v959, 16
    %v1075 = vpop.permute.xlu0 %1074
    %1076 = vrot.lane.b32.xlu0 %v960, 16
    %v1077 = vpop.permute.xlu0 %1076
    %1078 = vrot.lane.b32.xlu0 %v961, 16
    %v1079 = vpop.permute.xlu0 %1078
    %1080 = vrot.lane.b32.xlu0 %v962, 16
    %v1081 = vpop.permute.xlu0 %1080
    %1082 = vrot.lane.b32.xlu0 %v963, 16
    %v1083 = vpop.permute.xlu0 %1082
    %1084 = vrot.lane.b32.xlu0 %v964, 16
    %v1085 = vpop.permute.xlu0 %1084
    %1086 = vrot.lane.b32.xlu0 %v965, 16
    %v1087 = vpop.permute.xlu0 %1086
    %1088 = vrot.lane.b32.xlu0 %v966, 16
    %v1089 = vpop.permute.xlu0 %1088
    %1090 = vrot.lane.b32.xlu0 %v967, 16
    %v1091 = vpop.permute.xlu0 %1090
    %1092 = vrot.lane.b32.xlu0 %v968, 16
    %v1093 = vpop.permute.xlu0 %1092
    %1094 = vrot.lane.b32.xlu0 %v969, 16
    %v1095 = vpop.permute.xlu0 %1094
    %1096 = vrot.lane.b32.xlu0 %v970, 16
    %v1097 = vpop.permute.xlu0 %1096
    %1098 = vrot.lane.b32.xlu0 %v971, 16
    %v1099 = vpop.permute.xlu0 %1098
    %v1100 = vadd.f32 %v844, %v973
    %v1101 = vadd.f32 %v845, %v975
    %v1102 = vadd.f32 %v846, %v977
    %v1103 = vadd.f32 %v847, %v979
    %v1104 = vadd.f32 %v848, %v981
    %v1105 = vadd.f32 %v849, %v983
    %v1106 = vadd.f32 %v850, %v985
    %v1107 = vadd.f32 %v851, %v987
    %v1108 = vadd.f32 %v852, %v989
    %v1109 = vadd.f32 %v853, %v991
    %v1110 = vadd.f32 %v854, %v993
    %v1111 = vadd.f32 %v855, %v995
    %v1112 = vadd.f32 %v856, %v997
    %v1113 = vadd.f32 %v857, %v999
    %v1114 = vadd.f32 %v858, %v1001
    %v1115 = vadd.f32 %v859, %v1003
    %v1116 = vadd.f32 %v860, %v1005
    %v1117 = vadd.f32 %v861, %v1007
    %v1118 = vadd.f32 %v862, %v1009
    %v1119 = vadd.f32 %v863, %v1011
    %v1120 = vadd.f32 %v864, %v1013
    %v1121 = vadd.f32 %v865, %v1015
    %v1122 = vadd.f32 %v866, %v1017
    %v1123 = vadd.f32 %v867, %v1019
    %v1124 = vadd.f32 %v868, %v1021
    %v1125 = vadd.f32 %v869, %v1023
    %v1126 = vadd.f32 %v870, %v1025
    %v1127 = vadd.f32 %v871, %v1027
    %v1128 = vadd.f32 %v872, %v1029
    %v1129 = vadd.f32 %v873, %v1031
    %v1130 = vadd.f32 %v874, %v1033
    %v1131 = vadd.f32 %v875, %v1035
    %v1132 = vadd.f32 %v876, %v1037
    %v1133 = vadd.f32 %v877, %v1039
    %v1134 = vadd.f32 %v878, %v1041
    %v1135 = vadd.f32 %v879, %v1043
    %v1136 = vadd.f32 %v880, %v1045
    %v1137 = vadd.f32 %v881, %v1047
    %v1138 = vadd.f32 %v882, %v1049
    %v1139 = vadd.f32 %v883, %v1051
    %v1140 = vadd.f32 %v884, %v1053
    %v1141 = vadd.f32 %v885, %v1055
    %v1142 = vadd.f32 %v886, %v1057
    %v1143 = vadd.f32 %v887, %v1059
    %v1144 = vadd.f32 %v888, %v1061
    %v1145 = vadd.f32 %v889, %v1063
    %v1146 = vadd.f32 %v890, %v1065
    %v1147 = vadd.f32 %v891, %v1067
    %v1148 = vadd.f32 %v892, %v1069
    %v1149 = vadd.f32 %v893, %v1071
    %v1150 = vadd.f32 %v894, %v1073
    %v1151 = vadd.f32 %v895, %v1075
    %v1152 = vadd.f32 %v896, %v1077
    %v1153 = vadd.f32 %v897, %v1079
    %v1154 = vadd.f32 %v898, %v1081
    %v1155 = vadd.f32 %v899, %v1083
    %v1156 = vadd.f32 %v900, %v1085
    %v1157 = vadd.f32 %v901, %v1087
    %v1158 = vadd.f32 %v902, %v1089
    %v1159 = vadd.f32 %v903, %v1091
    %v1160 = vadd.f32 %v904, %v1093
    %v1161 = vadd.f32 %v905, %v1095
    %v1162 = vadd.f32 %v906, %v1097
    %v1163 = vadd.f32 %v907, %v1099
    %v1164 = vld [vmem:[%s651 + $0x2] sm:$0xff]
    %v1165 = vld [vmem:[%s651 + $0xa] sm:$0xff]
    %v1166 = vld [vmem:[%s651 + $0x1a] sm:$0xff]
    %v1167 = vld [vmem:[%s651 + $0x22] sm:$0xff]
    %v1168 = vld [vmem:[%s651 + $0x32] sm:$0xff]
    %v1169 = vld [vmem:[%s651 + $0x3a] sm:$0xff]
    %v1170 = vld [vmem:[%s651 + $0x4a] sm:$0xff]
    %v1171 = vld [vmem:[%s651 + $0x52] sm:$0xff]
    %v1172 = vld [vmem:[%s651 + $0x62] sm:$0xff]
    %v1173 = vld [vmem:[%s651 + $0x6a] sm:$0xff]
    %v1174 = vld [vmem:[%s651 + $0x7a] sm:$0xff]
    %v1175 = vld [vmem:[%s651 + $0x82] sm:$0xff]
    %v1176 = vld [vmem:[%s651 + $0x92] sm:$0xff]
    %v1177 = vld [vmem:[%s651 + $0x9a] sm:$0xff]
    %v1178 = vld [vmem:[%s651 + $0xaa] sm:$0xff]
    %v1179 = vld [vmem:[%s651 + $0xb2] sm:$0xff]
    %v1180 = vld [vmem:[%s651 + $0xc2] sm:$0xff]
    %v1181 = vld [vmem:[%s651 + $0xca] sm:$0xff]
    %v1182 = vld [vmem:[%s651 + $0xda] sm:$0xff]
    %v1183 = vld [vmem:[%s651 + $0xe2] sm:$0xff]
    %v1184 = vld [vmem:[%s651 + $0xf2] sm:$0xff]
    %v1185 = vld [vmem:[%s651 + $0xfa] sm:$0xff]
    %v1186 = vld [vmem:[%s651 + $0x10a] sm:$0xff]
    %v1187 = vld [vmem:[%s651 + $0x112] sm:$0xff]
    %v1188 = vld [vmem:[%s651 + $0x122] sm:$0xff]
    %v1189 = vld [vmem:[%s651 + $0x12a] sm:$0xff]
    %v1190 = vld [vmem:[%s651 + $0x13a] sm:$0xff]
    %v1191 = vld [vmem:[%s651 + $0x142] sm:$0xff]
    %v1192 = vld [vmem:[%s651 + $0x152] sm:$0xff]
    %v1193 = vld [vmem:[%s651 + $0x15a] sm:$0xff]
    %v1194 = vld [vmem:[%s651 + $0x16a] sm:$0xff]
    %v1195 = vld [vmem:[%s651 + $0x172] sm:$0xff]
    %v1196 = vld [vmem:[%s651 + $0x1b2] sm:$0xff]
    %v1197 = vld [vmem:[%s651 + $0x1ba] sm:$0xff]
    %v1198 = vld [vmem:[%s651 + $0x1ca] sm:$0xff]
    %v1199 = vld [vmem:[%s651 + $0x1d2] sm:$0xff]
    %v1200 = vld [vmem:[%s651 + $0x1e2] sm:$0xff]
    %v1201 = vld [vmem:[%s651 + $0x1ea] sm:$0xff]
    %v1202 = vld [vmem:[%s651 + $0x1fa] sm:$0xff]
    %v1203 = vld [vmem:[%s651 + $0x202] sm:$0xff]
    %v1204 = vld [vmem:[%s651 + $0x212] sm:$0xff]
    %v1205 = vld [vmem:[%s651 + $0x21a] sm:$0xff]
    %v1206 = vld [vmem:[%s651 + $0x22a] sm:$0xff]
    %v1207 = vld [vmem:[%s651 + $0x232] sm:$0xff]
    %v1208 = vld [vmem:[%s651 + $0x242] sm:$0xff]
    %v1209 = vld [vmem:[%s651 + $0x24a] sm:$0xff]
    %v1210 = vld [vmem:[%s651 + $0x25a] sm:$0xff]
    %v1211 = vld [vmem:[%s651 + $0x262] sm:$0xff]
    %v1212 = vld [vmem:[%s651 + $0x272] sm:$0xff]
    %v1213 = vld [vmem:[%s651 + $0x27a] sm:$0xff]
    %v1214 = vld [vmem:[%s651 + $0x28a] sm:$0xff]
    %v1215 = vld [vmem:[%s651 + $0x292] sm:$0xff]
    %v1216 = vld [vmem:[%s651 + $0x2a2] sm:$0xff]
    %v1217 = vld [vmem:[%s651 + $0x2aa] sm:$0xff]
    %v1218 = vld [vmem:[%s651 + $0x2ba] sm:$0xff]
    %v1219 = vld [vmem:[%s651 + $0x2c2] sm:$0xff]
    %v1220 = vld [vmem:[%s651 + $0x2d2] sm:$0xff]
    %v1221 = vld [vmem:[%s651 + $0x2da] sm:$0xff]
    %v1222 = vld [vmem:[%s651 + $0x2ea] sm:$0xff]
    %v1223 = vld [vmem:[%s651 + $0x2f2] sm:$0xff]
    %v1224 = vld [vmem:[%s651 + $0x302] sm:$0xff]
    %v1225 = vld [vmem:[%s651 + $0x30a] sm:$0xff]
    %v1226 = vld [vmem:[%s651 + $0x31a] sm:$0xff]
    %v1227 = vld [vmem:[%s651 + $0x322] sm:$0xff]
    %1228 = vrot.lane.b32.xlu0 %v1164, 20
    %v1229 = vpop.permute.xlu0 %1228
    %1230 = vrot.lane.b32.xlu0 %v1165, 20
    %v1231 = vpop.permute.xlu0 %1230
    %1232 = vrot.lane.b32.xlu0 %v1166, 20
    %v1233 = vpop.permute.xlu0 %1232
    %1234 = vrot.lane.b32.xlu0 %v1167, 20
    %v1235 = vpop.permute.xlu0 %1234
    %1236 = vrot.lane.b32.xlu0 %v1168, 20
    %v1237 = vpop.permute.xlu0 %1236
    %1238 = vrot.lane.b32.xlu0 %v1169, 20
    %v1239 = vpop.permute.xlu0 %1238
    %1240 = vrot.lane.b32.xlu0 %v1170, 20
    %v1241 = vpop.permute.xlu0 %1240
    %1242 = vrot.lane.b32.xlu0 %v1171, 20
    %v1243 = vpop.permute.xlu0 %1242
    %1244 = vrot.lane.b32.xlu0 %v1172, 20
    %v1245 = vpop.permute.xlu0 %1244
    %1246 = vrot.lane.b32.xlu0 %v1173, 20
    %v1247 = vpop.permute.xlu0 %1246
    %1248 = vrot.lane.b32.xlu0 %v1174, 20
    %v1249 = vpop.permute.xlu0 %1248
    %1250 = vrot.lane.b32.xlu0 %v1175, 20
    %v1251 = vpop.permute.xlu0 %1250
    %1252 = vrot.lane.b32.xlu0 %v1176, 20
    %v1253 = vpop.permute.xlu0 %1252
    %1254 = vrot.lane.b32.xlu0 %v1177, 20
    %v1255 = vpop.permute.xlu0 %1254
    %1256 = vrot.lane.b32.xlu0 %v1178, 20
    %v1257 = vpop.permute.xlu0 %1256
    %1258 = vrot.lane.b32.xlu0 %v1179, 20
    %v1259 = vpop.permute.xlu0 %1258
    %1260 = vrot.lane.b32.xlu0 %v1180, 20
    %v1261 = vpop.permute.xlu0 %1260
    %1262 = vrot.lane.b32.xlu0 %v1181, 20
    %v1263 = vpop.permute.xlu0 %1262
    %1264 = vrot.lane.b32.xlu0 %v1182, 20
    %v1265 = vpop.permute.xlu0 %1264
    %1266 = vrot.lane.b32.xlu0 %v1183, 20
    %v1267 = vpop.permute.xlu0 %1266
    %1268 = vrot.lane.b32.xlu0 %v1184, 20
    %v1269 = vpop.permute.xlu0 %1268
    %1270 = vrot.lane.b32.xlu0 %v1185, 20
    %v1271 = vpop.permute.xlu0 %1270
    %1272 = vrot.lane.b32.xlu0 %v1186, 20
    %v1273 = vpop.permute.xlu0 %1272
    %1274 = vrot.lane.b32.xlu0 %v1187, 20
    %v1275 = vpop.permute.xlu0 %1274
    %1276 = vrot.lane.b32.xlu0 %v1188, 20
    %v1277 = vpop.permute.xlu0 %1276
    %1278 = vrot.lane.b32.xlu0 %v1189, 20
    %v1279 = vpop.permute.xlu0 %1278
    %1280 = vrot.lane.b32.xlu0 %v1190, 20
    %v1281 = vpop.permute.xlu0 %1280
    %1282 = vrot.lane.b32.xlu0 %v1191, 20
    %v1283 = vpop.permute.xlu0 %1282
    %1284 = vrot.lane.b32.xlu0 %v1192, 20
    %v1285 = vpop.permute.xlu0 %1284
    %1286 = vrot.lane.b32.xlu0 %v1193, 20
    %v1287 = vpop.permute.xlu0 %1286
    %1288 = vrot.lane.b32.xlu0 %v1194, 20
    %v1289 = vpop.permute.xlu0 %1288
    %1290 = vrot.lane.b32.xlu0 %v1195, 20
    %v1291 = vpop.permute.xlu0 %1290
    %1292 = vrot.lane.b32.xlu0 %v1196, 20
    %v1293 = vpop.permute.xlu0 %1292
    %1294 = vrot.lane.b32.xlu0 %v1197, 20
    %v1295 = vpop.permute.xlu0 %1294
    %1296 = vrot.lane.b32.xlu0 %v1198, 20
    %v1297 = vpop.permute.xlu0 %1296
    %1298 = vrot.lane.b32.xlu0 %v1199, 20
    %v1299 = vpop.permute.xlu0 %1298
    %1300 = vrot.lane.b32.xlu0 %v1200, 20
    %v1301 = vpop.permute.xlu0 %1300
    %1302 = vrot.lane.b32.xlu0 %v1201, 20
    %v1303 = vpop.permute.xlu0 %1302
    %1304 = vrot.lane.b32.xlu0 %v1202, 20
    %v1305 = vpop.permute.xlu0 %1304
    %1306 = vrot.lane.b32.xlu0 %v1203, 20
    %v1307 = vpop.permute.xlu0 %1306
    %1308 = vrot.lane.b32.xlu0 %v1204, 20
    %v1309 = vpop.permute.xlu0 %1308
    %1310 = vrot.lane.b32.xlu0 %v1205, 20
    %v1311 = vpop.permute.xlu0 %1310
    %1312 = vrot.lane.b32.xlu0 %v1206, 20
    %v1313 = vpop.permute.xlu0 %1312
    %1314 = vrot.lane.b32.xlu0 %v1207, 20
    %v1315 = vpop.permute.xlu0 %1314
    %1316 = vrot.lane.b32.xlu0 %v1208, 20
    %v1317 = vpop.permute.xlu0 %1316
    %1318 = vrot.lane.b32.xlu0 %v1209, 20
    %v1319 = vpop.permute.xlu0 %1318
    %1320 = vrot.lane.b32.xlu0 %v1210, 20
    %v1321 = vpop.permute.xlu0 %1320
    %1322 = vrot.lane.b32.xlu0 %v1211, 20
    %v1323 = vpop.permute.xlu0 %1322
    %1324 = vrot.lane.b32.xlu0 %v1212, 20
    %v1325 = vpop.permute.xlu0 %1324
    %1326 = vrot.lane.b32.xlu0 %v1213, 20
    %v1327 = vpop.permute.xlu0 %1326
    %1328 = vrot.lane.b32.xlu0 %v1214, 20
    %v1329 = vpop.permute.xlu0 %1328
    %1330 = vrot.lane.b32.xlu0 %v1215, 20
    %v1331 = vpop.permute.xlu0 %1330
    %1332 = vrot.lane.b32.xlu0 %v1216, 20
    %v1333 = vpop.permute.xlu0 %1332
    %1334 = vrot.lane.b32.xlu0 %v1217, 20
    %v1335 = vpop.permute.xlu0 %1334
    %1336 = vrot.lane.b32.xlu0 %v1218, 20
    %v1337 = vpop.permute.xlu0 %1336
    %1338 = vrot.lane.b32.xlu0 %v1219, 20
    %v1339 = vpop.permute.xlu0 %1338
    %1340 = vrot.lane.b32.xlu0 %v1220, 20
    %v1341 = vpop.permute.xlu0 %1340
    %1342 = vrot.lane.b32.xlu0 %v1221, 20
    %v1343 = vpop.permute.xlu0 %1342
    %1344 = vrot.lane.b32.xlu0 %v1222, 20
    %v1345 = vpop.permute.xlu0 %1344
    %1346 = vrot.lane.b32.xlu0 %v1223, 20
    %v1347 = vpop.permute.xlu0 %1346
    %1348 = vrot.lane.b32.xlu0 %v1224, 20
    %v1349 = vpop.permute.xlu0 %1348
    %1350 = vrot.lane.b32.xlu0 %v1225, 20
    %v1351 = vpop.permute.xlu0 %1350
    %1352 = vrot.lane.b32.xlu0 %v1226, 20
    %v1353 = vpop.permute.xlu0 %1352
    %1354 = vrot.lane.b32.xlu0 %v1227, 20
    %v1355 = vpop.permute.xlu0 %1354
    %v1356 = vadd.f32 %v1100, %v1229
    %v1357 = vadd.f32 %v1101, %v1231
    %v1358 = vadd.f32 %v1102, %v1233
    %v1359 = vadd.f32 %v1103, %v1235
    %v1360 = vadd.f32 %v1104, %v1237
    %v1361 = vadd.f32 %v1105, %v1239
    %v1362 = vadd.f32 %v1106, %v1241
    %v1363 = vadd.f32 %v1107, %v1243
    %v1364 = vadd.f32 %v1108, %v1245
    %v1365 = vadd.f32 %v1109, %v1247
    %v1366 = vadd.f32 %v1110, %v1249
    %v1367 = vadd.f32 %v1111, %v1251
    %v1368 = vadd.f32 %v1112, %v1253
    %v1369 = vadd.f32 %v1113, %v1255
    %v1370 = vadd.f32 %v1114, %v1257
    %v1371 = vadd.f32 %v1115, %v1259
    %v1372 = vadd.f32 %v1116, %v1261
    %v1373 = vadd.f32 %v1117, %v1263
    %v1374 = vadd.f32 %v1118, %v1265
    %v1375 = vadd.f32 %v1119, %v1267
    %v1376 = vadd.f32 %v1120, %v1269
    %v1377 = vadd.f32 %v1121, %v1271
    %v1378 = vadd.f32 %v1122, %v1273
    %v1379 = vadd.f32 %v1123, %v1275
    %v1380 = vadd.f32 %v1124, %v1277
    %v1381 = vadd.f32 %v1125, %v1279
    %v1382 = vadd.f32 %v1126, %v1281
    %v1383 = vadd.f32 %v1127, %v1283
    %v1384 = vadd.f32 %v1128, %v1285
    %v1385 = vadd.f32 %v1129, %v1287
    %v1386 = vadd.f32 %v1130, %v1289
    %v1387 = vadd.f32 %v1131, %v1291
    %v1388 = vadd.f32 %v1132, %v1293
    %v1389 = vadd.f32 %v1133, %v1295
    %v1390 = vadd.f32 %v1134, %v1297
    %v1391 = vadd.f32 %v1135, %v1299
    %v1392 = vadd.f32 %v1136, %v1301
    %v1393 = vadd.f32 %v1137, %v1303
    %v1394 = vadd.f32 %v1138, %v1305
    %v1395 = vadd.f32 %v1139, %v1307
    %v1396 = vadd.f32 %v1140, %v1309
    %v1397 = vadd.f32 %v1141, %v1311
    %v1398 = vadd.f32 %v1142, %v1313
    %v1399 = vadd.f32 %v1143, %v1315
    %v1400 = vadd.f32 %v1144, %v1317
    %v1401 = vadd.f32 %v1145, %v1319
    %v1402 = vadd.f32 %v1146, %v1321
    %v1403 = vadd.f32 %v1147, %v1323
    %v1404 = vadd.f32 %v1148, %v1325
    %v1405 = vadd.f32 %v1149, %v1327
    %v1406 = vadd.f32 %v1150, %v1329
    %v1407 = vadd.f32 %v1151, %v1331
    %v1408 = vadd.f32 %v1152, %v1333
    %v1409 = vadd.f32 %v1153, %v1335
    %v1410 = vadd.f32 %v1154, %v1337
    %v1411 = vadd.f32 %v1155, %v1339
    %v1412 = vadd.f32 %v1156, %v1341
    %v1413 = vadd.f32 %v1157, %v1343
    %v1414 = vadd.f32 %v1158, %v1345
    %v1415 = vadd.f32 %v1159, %v1347
    %v1416 = vadd.f32 %v1160, %v1349
    %v1417 = vadd.f32 %v1161, %v1351
    %v1418 = vadd.f32 %v1162, %v1353
    %v1419 = vadd.f32 %v1163, %v1355
    %s1420 = scalar_lea.vmem [#allocation4], 48
    %v1421 = vld [vmem:[%s1420] sm:$0xff]
    %v1422 = vld [vmem:[%s1420 + $0x8] sm:$0xff]
    %v1423 = vld [vmem:[%s1420 + $0x18] sm:$0xff]
    %v1424 = vld [vmem:[%s1420 + $0x20] sm:$0xff]
    %v1425 = vld [vmem:[%s1420 + $0x30] sm:$0xff]
    %v1426 = vld [vmem:[%s1420 + $0x38] sm:$0xff]
    %v1427 = vld [vmem:[%s1420 + $0x48] sm:$0xff]
    %v1428 = vld [vmem:[%s1420 + $0x50] sm:$0xff]
    %v1429 = vld [vmem:[%s1420 + $0x60] sm:$0xff]
    %v1430 = vld [vmem:[%s1420 + $0x68] sm:$0xff]
    %v1431 = vld [vmem:[%s1420 + $0x78] sm:$0xff]
    %v1432 = vld [vmem:[%s1420 + $0x80] sm:$0xff]
    %v1433 = vld [vmem:[%s1420 + $0x90] sm:$0xff]
    %v1434 = vld [vmem:[%s1420 + $0x98] sm:$0xff]
    %v1435 = vld [vmem:[%s1420 + $0xa8] sm:$0xff]
    %v1436 = vld [vmem:[%s1420 + $0xb0] sm:$0xff]
    %v1437 = vld [vmem:[%s1420 + $0xc0] sm:$0xff]
    %v1438 = vld [vmem:[%s1420 + $0xc8] sm:$0xff]
    %v1439 = vld [vmem:[%s1420 + $0xd8] sm:$0xff]
    %v1440 = vld [vmem:[%s1420 + $0xe0] sm:$0xff]
    %v1441 = vld [vmem:[%s1420 + $0xf0] sm:$0xff]
    %v1442 = vld [vmem:[%s1420 + $0xf8] sm:$0xff]
    %v1443 = vld [vmem:[%s1420 + $0x108] sm:$0xff]
    %v1444 = vld [vmem:[%s1420 + $0x110] sm:$0xff]
    %v1445 = vld [vmem:[%s1420 + $0x120] sm:$0xff]
    %v1446 = vld [vmem:[%s1420 + $0x128] sm:$0xff]
    %v1447 = vld [vmem:[%s1420 + $0x138] sm:$0xff]
    %v1448 = vld [vmem:[%s1420 + $0x140] sm:$0xff]
    %v1449 = vld [vmem:[%s1420 + $0x150] sm:$0xff]
    %v1450 = vld [vmem:[%s1420 + $0x158] sm:$0xff]
    %v1451 = vld [vmem:[%s1420 + $0x168] sm:$0xff]
    %v1452 = vld [vmem:[%s1420 + $0x170] sm:$0xff]
    %v1453 = vld [vmem:[%s1420 + $0x1b0] sm:$0xff]
    %v1454 = vld [vmem:[%s1420 + $0x1b8] sm:$0xff]
    %v1455 = vld [vmem:[%s1420 + $0x1c8] sm:$0xff]
    %v1456 = vld [vmem:[%s1420 + $0x1d0] sm:$0xff]
    %v1457 = vld [vmem:[%s1420 + $0x1e0] sm:$0xff]
    %v1458 = vld [vmem:[%s1420 + $0x1e8] sm:$0xff]
    %v1459 = vld [vmem:[%s1420 + $0x1f8] sm:$0xff]
    %v1460 = vld [vmem:[%s1420 + $0x200] sm:$0xff]
    %v1461 = vld [vmem:[%s1420 + $0x210] sm:$0xff]
    %v1462 = vld [vmem:[%s1420 + $0x218] sm:$0xff]
    %v1463 = vld [vmem:[%s1420 + $0x228] sm:$0xff]
    %v1464 = vld [vmem:[%s1420 + $0x230] sm:$0xff]
    %v1465 = vld [vmem:[%s1420 + $0x240] sm:$0xff]
    %v1466 = vld [vmem:[%s1420 + $0x248] sm:$0xff]
    %v1467 = vld [vmem:[%s1420 + $0x258] sm:$0xff]
    %v1468 = vld [vmem:[%s1420 + $0x260] sm:$0xff]
    %v1469 = vld [vmem:[%s1420 + $0x270] sm:$0xff]
    %v1470 = vld [vmem:[%s1420 + $0x278] sm:$0xff]
    %v1471 = vld [vmem:[%s1420 + $0x288] sm:$0xff]
    %v1472 = vld [vmem:[%s1420 + $0x290] sm:$0xff]
    %v1473 = vld [vmem:[%s1420 + $0x2a0] sm:$0xff]
    %v1474 = vld [vmem:[%s1420 + $0x2a8] sm:$0xff]
    %v1475 = vld [vmem:[%s1420 + $0x2b8] sm:$0xff]
    %v1476 = vld [vmem:[%s1420 + $0x2c0] sm:$0xff]
    %v1477 = vld [vmem:[%s1420 + $0x2d0] sm:$0xff]
    %v1478 = vld [vmem:[%s1420 + $0x2d8] sm:$0xff]
    %v1479 = vld [vmem:[%s1420 + $0x2e8] sm:$0xff]
    %v1480 = vld [vmem:[%s1420 + $0x2f0] sm:$0xff]
    %v1481 = vld [vmem:[%s1420 + $0x300] sm:$0xff]
    %v1482 = vld [vmem:[%s1420 + $0x308] sm:$0xff]
    %v1483 = vld [vmem:[%s1420 + $0x318] sm:$0xff]
    %v1484 = vld [vmem:[%s1420 + $0x320] sm:$0xff]
    %1485 = vrot.lane.b32.xlu0 %v1421, 24
    %v1486 = vpop.permute.xlu0 %1485
    %1487 = vrot.lane.b32.xlu0 %v1422, 24
    %v1488 = vpop.permute.xlu0 %1487
    %1489 = vrot.lane.b32.xlu0 %v1423, 24
    %v1490 = vpop.permute.xlu0 %1489
    %1491 = vrot.lane.b32.xlu0 %v1424, 24
    %v1492 = vpop.permute.xlu0 %1491
    %1493 = vrot.lane.b32.xlu0 %v1425, 24
    %v1494 = vpop.permute.xlu0 %1493
    %1495 = vrot.lane.b32.xlu0 %v1426, 24
    %v1496 = vpop.permute.xlu0 %1495
    %1497 = vrot.lane.b32.xlu0 %v1427, 24
    %v1498 = vpop.permute.xlu0 %1497
    %1499 = vrot.lane.b32.xlu0 %v1428, 24
    %v1500 = vpop.permute.xlu0 %1499
    %1501 = vrot.lane.b32.xlu0 %v1429, 24
    %v1502 = vpop.permute.xlu0 %1501
    %1503 = vrot.lane.b32.xlu0 %v1430, 24
    %v1504 = vpop.permute.xlu0 %1503
    %1505 = vrot.lane.b32.xlu0 %v1431, 24
    %v1506 = vpop.permute.xlu0 %1505
    %1507 = vrot.lane.b32.xlu0 %v1432, 24
    %v1508 = vpop.permute.xlu0 %1507
    %1509 = vrot.lane.b32.xlu0 %v1433, 24
    %v1510 = vpop.permute.xlu0 %1509
    %1511 = vrot.lane.b32.xlu0 %v1434, 24
    %v1512 = vpop.permute.xlu0 %1511
    %1513 = vrot.lane.b32.xlu0 %v1435, 24
    %v1514 = vpop.permute.xlu0 %1513
    %1515 = vrot.lane.b32.xlu0 %v1436, 24
    %v1516 = vpop.permute.xlu0 %1515
    %1517 = vrot.lane.b32.xlu0 %v1437, 24
    %v1518 = vpop.permute.xlu0 %1517
    %1519 = vrot.lane.b32.xlu0 %v1438, 24
    %v1520 = vpop.permute.xlu0 %1519
    %1521 = vrot.lane.b32.xlu0 %v1439, 24
    %v1522 = vpop.permute.xlu0 %1521
    %1523 = vrot.lane.b32.xlu0 %v1440, 24
    %v1524 = vpop.permute.xlu0 %1523
    %1525 = vrot.lane.b32.xlu0 %v1441, 24
    %v1526 = vpop.permute.xlu0 %1525
    %1527 = vrot.lane.b32.xlu0 %v1442, 24
    %v1528 = vpop.permute.xlu0 %1527
    %1529 = vrot.lane.b32.xlu0 %v1443, 24
    %v1530 = vpop.permute.xlu0 %1529
    %1531 = vrot.lane.b32.xlu0 %v1444, 24
    %v1532 = vpop.permute.xlu0 %1531
    %1533 = vrot.lane.b32.xlu0 %v1445, 24
    %v1534 = vpop.permute.xlu0 %1533
    %1535 = vrot.lane.b32.xlu0 %v1446, 24
    %v1536 = vpop.permute.xlu0 %1535
    %1537 = vrot.lane.b32.xlu0 %v1447, 24
    %v1538 = vpop.permute.xlu0 %1537
    %1539 = vrot.lane.b32.xlu0 %v1448, 24
    %v1540 = vpop.permute.xlu0 %1539
    %1541 = vrot.lane.b32.xlu0 %v1449, 24
    %v1542 = vpop.permute.xlu0 %1541
    %1543 = vrot.lane.b32.xlu0 %v1450, 24
    %v1544 = vpop.permute.xlu0 %1543
    %1545 = vrot.lane.b32.xlu0 %v1451, 24
    %v1546 = vpop.permute.xlu0 %1545
    %1547 = vrot.lane.b32.xlu0 %v1452, 24
    %v1548 = vpop.permute.xlu0 %1547
    %1549 = vrot.lane.b32.xlu0 %v1453, 24
    %v1550 = vpop.permute.xlu0 %1549
    %1551 = vrot.lane.b32.xlu0 %v1454, 24
    %v1552 = vpop.permute.xlu0 %1551
    %1553 = vrot.lane.b32.xlu0 %v1455, 24
    %v1554 = vpop.permute.xlu0 %1553
    %1555 = vrot.lane.b32.xlu0 %v1456, 24
    %v1556 = vpop.permute.xlu0 %1555
    %1557 = vrot.lane.b32.xlu0 %v1457, 24
    %v1558 = vpop.permute.xlu0 %1557
    %1559 = vrot.lane.b32.xlu0 %v1458, 24
    %v1560 = vpop.permute.xlu0 %1559
    %1561 = vrot.lane.b32.xlu0 %v1459, 24
    %v1562 = vpop.permute.xlu0 %1561
    %1563 = vrot.lane.b32.xlu0 %v1460, 24
    %v1564 = vpop.permute.xlu0 %1563
    %1565 = vrot.lane.b32.xlu0 %v1461, 24
    %v1566 = vpop.permute.xlu0 %1565
    %1567 = vrot.lane.b32.xlu0 %v1462, 24
    %v1568 = vpop.permute.xlu0 %1567
    %1569 = vrot.lane.b32.xlu0 %v1463, 24
    %v1570 = vpop.permute.xlu0 %1569
    %1571 = vrot.lane.b32.xlu0 %v1464, 24
    %v1572 = vpop.permute.xlu0 %1571
    %1573 = vrot.lane.b32.xlu0 %v1465, 24
    %v1574 = vpop.permute.xlu0 %1573
    %1575 = vrot.lane.b32.xlu0 %v1466, 24
    %v1576 = vpop.permute.xlu0 %1575
    %1577 = vrot.lane.b32.xlu0 %v1467, 24
    %v1578 = vpop.permute.xlu0 %1577
    %1579 = vrot.lane.b32.xlu0 %v1468, 24
    %v1580 = vpop.permute.xlu0 %1579
    %1581 = vrot.lane.b32.xlu0 %v1469, 24
    %v1582 = vpop.permute.xlu0 %1581
    %1583 = vrot.lane.b32.xlu0 %v1470, 24
    %v1584 = vpop.permute.xlu0 %1583
    %1585 = vrot.lane.b32.xlu0 %v1471, 24
    %v1586 = vpop.permute.xlu0 %1585
    %1587 = vrot.lane.b32.xlu0 %v1472, 24
    %v1588 = vpop.permute.xlu0 %1587
    %1589 = vrot.lane.b32.xlu0 %v1473, 24
    %v1590 = vpop.permute.xlu0 %1589
    %1591 = vrot.lane.b32.xlu0 %v1474, 24
    %v1592 = vpop.permute.xlu0 %1591
    %1593 = vrot.lane.b32.xlu0 %v1475, 24
    %v1594 = vpop.permute.xlu0 %1593
    %1595 = vrot.lane.b32.xlu0 %v1476, 24
    %v1596 = vpop.permute.xlu0 %1595
    %1597 = vrot.lane.b32.xlu0 %v1477, 24
    %v1598 = vpop.permute.xlu0 %1597
    %1599 = vrot.lane.b32.xlu0 %v1478, 24
    %v1600 = vpop.permute.xlu0 %1599
    %1601 = vrot.lane.b32.xlu0 %v1479, 24
    %v1602 = vpop.permute.xlu0 %1601
    %1603 = vrot.lane.b32.xlu0 %v1480, 24
    %v1604 = vpop.permute.xlu0 %1603
    %1605 = vrot.lane.b32.xlu0 %v1481, 24
    %v1606 = vpop.permute.xlu0 %1605
    %1607 = vrot.lane.b32.xlu0 %v1482, 24
    %v1608 = vpop.permute.xlu0 %1607
    %1609 = vrot.lane.b32.xlu0 %v1483, 24
    %v1610 = vpop.permute.xlu0 %1609
    %1611 = vrot.lane.b32.xlu0 %v1484, 24
    %v1612 = vpop.permute.xlu0 %1611
    %v1613 = vadd.f32 %v1356, %v1486
    %v1614 = vadd.f32 %v1357, %v1488
    %v1615 = vadd.f32 %v1358, %v1490
    %v1616 = vadd.f32 %v1359, %v1492
    %v1617 = vadd.f32 %v1360, %v1494
    %v1618 = vadd.f32 %v1361, %v1496
    %v1619 = vadd.f32 %v1362, %v1498
    %v1620 = vadd.f32 %v1363, %v1500
    %v1621 = vadd.f32 %v1364, %v1502
    %v1622 = vadd.f32 %v1365, %v1504
    %v1623 = vadd.f32 %v1366, %v1506
    %v1624 = vadd.f32 %v1367, %v1508
    %v1625 = vadd.f32 %v1368, %v1510
    %v1626 = vadd.f32 %v1369, %v1512
    %v1627 = vadd.f32 %v1370, %v1514
    %v1628 = vadd.f32 %v1371, %v1516
    %v1629 = vadd.f32 %v1372, %v1518
    %v1630 = vadd.f32 %v1373, %v1520
    %v1631 = vadd.f32 %v1374, %v1522
    %v1632 = vadd.f32 %v1375, %v1524
    %v1633 = vadd.f32 %v1376, %v1526
    %v1634 = vadd.f32 %v1377, %v1528
    %v1635 = vadd.f32 %v1378, %v1530
    %v1636 = vadd.f32 %v1379, %v1532
    %v1637 = vadd.f32 %v1380, %v1534
    %v1638 = vadd.f32 %v1381, %v1536
    %v1639 = vadd.f32 %v1382, %v1538
    %v1640 = vadd.f32 %v1383, %v1540
    %v1641 = vadd.f32 %v1384, %v1542
    %v1642 = vadd.f32 %v1385, %v1544
    %v1643 = vadd.f32 %v1386, %v1546
    %v1644 = vadd.f32 %v1387, %v1548
    %v1645 = vadd.f32 %v1388, %v1550
    %v1646 = vadd.f32 %v1389, %v1552
    %v1647 = vadd.f32 %v1390, %v1554
    %v1648 = vadd.f32 %v1391, %v1556
    %v1649 = vadd.f32 %v1392, %v1558
    %v1650 = vadd.f32 %v1393, %v1560
    %v1651 = vadd.f32 %v1394, %v1562
    %v1652 = vadd.f32 %v1395, %v1564
    %v1653 = vadd.f32 %v1396, %v1566
    %v1654 = vadd.f32 %v1397, %v1568
    %v1655 = vadd.f32 %v1398, %v1570
    %v1656 = vadd.f32 %v1399, %v1572
    %v1657 = vadd.f32 %v1400, %v1574
    %v1658 = vadd.f32 %v1401, %v1576
    %v1659 = vadd.f32 %v1402, %v1578
    %v1660 = vadd.f32 %v1403, %v1580
    %v1661 = vadd.f32 %v1404, %v1582
    %v1662 = vadd.f32 %v1405, %v1584
    %v1663 = vadd.f32 %v1406, %v1586
    %v1664 = vadd.f32 %v1407, %v1588
    %v1665 = vadd.f32 %v1408, %v1590
    %v1666 = vadd.f32 %v1409, %v1592
    %v1667 = vadd.f32 %v1410, %v1594
    %v1668 = vadd.f32 %v1411, %v1596
    %v1669 = vadd.f32 %v1412, %v1598
    %v1670 = vadd.f32 %v1413, %v1600
    %v1671 = vadd.f32 %v1414, %v1602
    %v1672 = vadd.f32 %v1415, %v1604
    %v1673 = vadd.f32 %v1416, %v1606
    %v1674 = vadd.f32 %v1417, %v1608
    %v1675 = vadd.f32 %v1418, %v1610
    %v1676 = vadd.f32 %v1419, %v1612
    %v1677 = vld [vmem:[%s1420 + $0x1] sm:$0xff]
    %v1678 = vld [vmem:[%s1420 + $0x9] sm:$0xff]
    %v1679 = vld [vmem:[%s1420 + $0x19] sm:$0xff]
    %v1680 = vld [vmem:[%s1420 + $0x21] sm:$0xff]
    %v1681 = vld [vmem:[%s1420 + $0x31] sm:$0xff]
    %v1682 = vld [vmem:[%s1420 + $0x39] sm:$0xff]
    %v1683 = vld [vmem:[%s1420 + $0x49] sm:$0xff]
    %v1684 = vld [vmem:[%s1420 + $0x51] sm:$0xff]
    %v1685 = vld [vmem:[%s1420 + $0x61] sm:$0xff]
    %v1686 = vld [vmem:[%s1420 + $0x69] sm:$0xff]
    %v1687 = vld [vmem:[%s1420 + $0x79] sm:$0xff]
    %v1688 = vld [vmem:[%s1420 + $0x81] sm:$0xff]
    %v1689 = vld [vmem:[%s1420 + $0x91] sm:$0xff]
    %v1690 = vld [vmem:[%s1420 + $0x99] sm:$0xff]
    %v1691 = vld [vmem:[%s1420 + $0xa9] sm:$0xff]
    %v1692 = vld [vmem:[%s1420 + $0xb1] sm:$0xff]
    %v1693 = vld [vmem:[%s1420 + $0xc1] sm:$0xff]
    %v1694 = vld [vmem:[%s1420 + $0xc9] sm:$0xff]
    %v1695 = vld [vmem:[%s1420 + $0xd9] sm:$0xff]
    %v1696 = vld [vmem:[%s1420 + $0xe1] sm:$0xff]
    %v1697 = vld [vmem:[%s1420 + $0xf1] sm:$0xff]
    %v1698 = vld [vmem:[%s1420 + $0xf9] sm:$0xff]
    %v1699 = vld [vmem:[%s1420 + $0x109] sm:$0xff]
    %v1700 = vld [vmem:[%s1420 + $0x111] sm:$0xff]
    %v1701 = vld [vmem:[%s1420 + $0x121] sm:$0xff]
    %v1702 = vld [vmem:[%s1420 + $0x129] sm:$0xff]
    %v1703 = vld [vmem:[%s1420 + $0x139] sm:$0xff]
    %v1704 = vld [vmem:[%s1420 + $0x141] sm:$0xff]
    %v1705 = vld [vmem:[%s1420 + $0x151] sm:$0xff]
    %v1706 = vld [vmem:[%s1420 + $0x159] sm:$0xff]
    %v1707 = vld [vmem:[%s1420 + $0x169] sm:$0xff]
    %v1708 = vld [vmem:[%s1420 + $0x171] sm:$0xff]
    %v1709 = vld [vmem:[%s1420 + $0x1b1] sm:$0xff]
    %v1710 = vld [vmem:[%s1420 + $0x1b9] sm:$0xff]
    %v1711 = vld [vmem:[%s1420 + $0x1c9] sm:$0xff]
    %v1712 = vld [vmem:[%s1420 + $0x1d1] sm:$0xff]
    %v1713 = vld [vmem:[%s1420 + $0x1e1] sm:$0xff]
    %v1714 = vld [vmem:[%s1420 + $0x1e9] sm:$0xff]
    %v1715 = vld [vmem:[%s1420 + $0x1f9] sm:$0xff]
    %v1716 = vld [vmem:[%s1420 + $0x201] sm:$0xff]
    %v1717 = vld [vmem:[%s1420 + $0x211] sm:$0xff]
    %v1718 = vld [vmem:[%s1420 + $0x219] sm:$0xff]
    %v1719 = vld [vmem:[%s1420 + $0x229] sm:$0xff]
    %v1720 = vld [vmem:[%s1420 + $0x231] sm:$0xff]
    %v1721 = vld [vmem:[%s1420 + $0x241] sm:$0xff]
    %v1722 = vld [vmem:[%s1420 + $0x249] sm:$0xff]
    %v1723 = vld [vmem:[%s1420 + $0x259] sm:$0xff]
    %v1724 = vld [vmem:[%s1420 + $0x261] sm:$0xff]
    %v1725 = vld [vmem:[%s1420 + $0x271] sm:$0xff]
    %v1726 = vld [vmem:[%s1420 + $0x279] sm:$0xff]
    %v1727 = vld [vmem:[%s1420 + $0x289] sm:$0xff]
    %v1728 = vld [vmem:[%s1420 + $0x291] sm:$0xff]
    %v1729 = vld [vmem:[%s1420 + $0x2a1] sm:$0xff]
    %v1730 = vld [vmem:[%s1420 + $0x2a9] sm:$0xff]
    %v1731 = vld [vmem:[%s1420 + $0x2b9] sm:$0xff]
    %v1732 = vld [vmem:[%s1420 + $0x2c1] sm:$0xff]
    %v1733 = vld [vmem:[%s1420 + $0x2d1] sm:$0xff]
    %v1734 = vld [vmem:[%s1420 + $0x2d9] sm:$0xff]
    %v1735 = vld [vmem:[%s1420 + $0x2e9] sm:$0xff]
    %v1736 = vld [vmem:[%s1420 + $0x2f1] sm:$0xff]
    %v1737 = vld [vmem:[%s1420 + $0x301] sm:$0xff]
    %v1738 = vld [vmem:[%s1420 + $0x309] sm:$0xff]
    %v1739 = vld [vmem:[%s1420 + $0x319] sm:$0xff]
    %v1740 = vld [vmem:[%s1420 + $0x321] sm:$0xff]
    %1741 = vrot.lane.b32.xlu0 %v1677, 28
    %v1742 = vpop.permute.xlu0 %1741
    %1743 = vrot.lane.b32.xlu0 %v1678, 28
    %v1744 = vpop.permute.xlu0 %1743
    %1745 = vrot.lane.b32.xlu0 %v1679, 28
    %v1746 = vpop.permute.xlu0 %1745
    %1747 = vrot.lane.b32.xlu0 %v1680, 28
    %v1748 = vpop.permute.xlu0 %1747
    %1749 = vrot.lane.b32.xlu0 %v1681, 28
    %v1750 = vpop.permute.xlu0 %1749
    %1751 = vrot.lane.b32.xlu0 %v1682, 28
    %v1752 = vpop.permute.xlu0 %1751
    %1753 = vrot.lane.b32.xlu0 %v1683, 28
    %v1754 = vpop.permute.xlu0 %1753
    %1755 = vrot.lane.b32.xlu0 %v1684, 28
    %v1756 = vpop.permute.xlu0 %1755
    %1757 = vrot.lane.b32.xlu0 %v1685, 28
    %v1758 = vpop.permute.xlu0 %1757
    %1759 = vrot.lane.b32.xlu0 %v1686, 28
    %v1760 = vpop.permute.xlu0 %1759
    %1761 = vrot.lane.b32.xlu0 %v1687, 28
    %v1762 = vpop.permute.xlu0 %1761
    %1763 = vrot.lane.b32.xlu0 %v1688, 28
    %v1764 = vpop.permute.xlu0 %1763
    %1765 = vrot.lane.b32.xlu0 %v1689, 28
    %v1766 = vpop.permute.xlu0 %1765
    %1767 = vrot.lane.b32.xlu0 %v1690, 28
    %v1768 = vpop.permute.xlu0 %1767
    %1769 = vrot.lane.b32.xlu0 %v1691, 28
    %v1770 = vpop.permute.xlu0 %1769
    %1771 = vrot.lane.b32.xlu0 %v1692, 28
    %v1772 = vpop.permute.xlu0 %1771
    %1773 = vrot.lane.b32.xlu0 %v1693, 28
    %v1774 = vpop.permute.xlu0 %1773
    %1775 = vrot.lane.b32.xlu0 %v1694, 28
    %v1776 = vpop.permute.xlu0 %1775
    %1777 = vrot.lane.b32.xlu0 %v1695, 28
    %v1778 = vpop.permute.xlu0 %1777
    %1779 = vrot.lane.b32.xlu0 %v1696, 28
    %v1780 = vpop.permute.xlu0 %1779
    %1781 = vrot.lane.b32.xlu0 %v1697, 28
    %v1782 = vpop.permute.xlu0 %1781
    %1783 = vrot.lane.b32.xlu0 %v1698, 28
    %v1784 = vpop.permute.xlu0 %1783
    %1785 = vrot.lane.b32.xlu0 %v1699, 28
    %v1786 = vpop.permute.xlu0 %1785
    %1787 = vrot.lane.b32.xlu0 %v1700, 28
    %v1788 = vpop.permute.xlu0 %1787
    %1789 = vrot.lane.b32.xlu0 %v1701, 28
    %v1790 = vpop.permute.xlu0 %1789
    %1791 = vrot.lane.b32.xlu0 %v1702, 28
    %v1792 = vpop.permute.xlu0 %1791
    %1793 = vrot.lane.b32.xlu0 %v1703, 28
    %v1794 = vpop.permute.xlu0 %1793
    %1795 = vrot.lane.b32.xlu0 %v1704, 28
    %v1796 = vpop.permute.xlu0 %1795
    %1797 = vrot.lane.b32.xlu0 %v1705, 28
    %v1798 = vpop.permute.xlu0 %1797
    %1799 = vrot.lane.b32.xlu0 %v1706, 28
    %v1800 = vpop.permute.xlu0 %1799
    %1801 = vrot.lane.b32.xlu0 %v1707, 28
    %v1802 = vpop.permute.xlu0 %1801
    %1803 = vrot.lane.b32.xlu0 %v1708, 28
    %v1804 = vpop.permute.xlu0 %1803
    %1805 = vrot.lane.b32.xlu0 %v1709, 28
    %v1806 = vpop.permute.xlu0 %1805
    %1807 = vrot.lane.b32.xlu0 %v1710, 28
    %v1808 = vpop.permute.xlu0 %1807
    %1809 = vrot.lane.b32.xlu0 %v1711, 28
    %v1810 = vpop.permute.xlu0 %1809
    %1811 = vrot.lane.b32.xlu0 %v1712, 28
    %v1812 = vpop.permute.xlu0 %1811
    %1813 = vrot.lane.b32.xlu0 %v1713, 28
    %v1814 = vpop.permute.xlu0 %1813
    %1815 = vrot.lane.b32.xlu0 %v1714, 28
    %v1816 = vpop.permute.xlu0 %1815
    %1817 = vrot.lane.b32.xlu0 %v1715, 28
    %v1818 = vpop.permute.xlu0 %1817
    %1819 = vrot.lane.b32.xlu0 %v1716, 28
    %v1820 = vpop.permute.xlu0 %1819
    %1821 = vrot.lane.b32.xlu0 %v1717, 28
    %v1822 = vpop.permute.xlu0 %1821
    %1823 = vrot.lane.b32.xlu0 %v1718, 28
    %v1824 = vpop.permute.xlu0 %1823
    %1825 = vrot.lane.b32.xlu0 %v1719, 28
    %v1826 = vpop.permute.xlu0 %1825
    %1827 = vrot.lane.b32.xlu0 %v1720, 28
    %v1828 = vpop.permute.xlu0 %1827
    %1829 = vrot.lane.b32.xlu0 %v1721, 28
    %v1830 = vpop.permute.xlu0 %1829
    %1831 = vrot.lane.b32.xlu0 %v1722, 28
    %v1832 = vpop.permute.xlu0 %1831
    %1833 = vrot.lane.b32.xlu0 %v1723, 28
    %v1834 = vpop.permute.xlu0 %1833
    %1835 = vrot.lane.b32.xlu0 %v1724, 28
    %v1836 = vpop.permute.xlu0 %1835
    %1837 = vrot.lane.b32.xlu0 %v1725, 28
    %v1838 = vpop.permute.xlu0 %1837
    %1839 = vrot.lane.b32.xlu0 %v1726, 28
    %v1840 = vpop.permute.xlu0 %1839
    %1841 = vrot.lane.b32.xlu0 %v1727, 28
    %v1842 = vpop.permute.xlu0 %1841
    %1843 = vrot.lane.b32.xlu0 %v1728, 28
    %v1844 = vpop.permute.xlu0 %1843
    %1845 = vrot.lane.b32.xlu0 %v1729, 28
    %v1846 = vpop.permute.xlu0 %1845
    %1847 = vrot.lane.b32.xlu0 %v1730, 28
    %v1848 = vpop.permute.xlu0 %1847
    %1849 = vrot.lane.b32.xlu0 %v1731, 28
    %v1850 = vpop.permute.xlu0 %1849
    %1851 = vrot.lane.b32.xlu0 %v1732, 28
    %v1852 = vpop.permute.xlu0 %1851
    %1853 = vrot.lane.b32.xlu0 %v1733, 28
    %v1854 = vpop.permute.xlu0 %1853
    %1855 = vrot.lane.b32.xlu0 %v1734, 28
    %v1856 = vpop.permute.xlu0 %1855
    %1857 = vrot.lane.b32.xlu0 %v1735, 28
    %v1858 = vpop.permute.xlu0 %1857
    %1859 = vrot.lane.b32.xlu0 %v1736, 28
    %v1860 = vpop.permute.xlu0 %1859
    %1861 = vrot.lane.b32.xlu0 %v1737, 28
    %v1862 = vpop.permute.xlu0 %1861
    %1863 = vrot.lane.b32.xlu0 %v1738, 28
    %v1864 = vpop.permute.xlu0 %1863
    %1865 = vrot.lane.b32.xlu0 %v1739, 28
    %v1866 = vpop.permute.xlu0 %1865
    %1867 = vrot.lane.b32.xlu0 %v1740, 28
    %v1868 = vpop.permute.xlu0 %1867
    %v1869 = vadd.f32 %v1613, %v1742
    %v1870 = vadd.f32 %v1614, %v1744
    %v1871 = vadd.f32 %v1615, %v1746
    %v1872 = vadd.f32 %v1616, %v1748
    %v1873 = vadd.f32 %v1617, %v1750
    %v1874 = vadd.f32 %v1618, %v1752
    %v1875 = vadd.f32 %v1619, %v1754
    %v1876 = vadd.f32 %v1620, %v1756
    %v1877 = vadd.f32 %v1621, %v1758
    %v1878 = vadd.f32 %v1622, %v1760
    %v1879 = vadd.f32 %v1623, %v1762
    %v1880 = vadd.f32 %v1624, %v1764
    %v1881 = vadd.f32 %v1625, %v1766
    %v1882 = vadd.f32 %v1626, %v1768
    %v1883 = vadd.f32 %v1627, %v1770
    %v1884 = vadd.f32 %v1628, %v1772
    %v1885 = vadd.f32 %v1629, %v1774
    %v1886 = vadd.f32 %v1630, %v1776
    %v1887 = vadd.f32 %v1631, %v1778
    %v1888 = vadd.f32 %v1632, %v1780
    %v1889 = vadd.f32 %v1633, %v1782
    %v1890 = vadd.f32 %v1634, %v1784
    %v1891 = vadd.f32 %v1635, %v1786
    %v1892 = vadd.f32 %v1636, %v1788
    %v1893 = vadd.f32 %v1637, %v1790
    %v1894 = vadd.f32 %v1638, %v1792
    %v1895 = vadd.f32 %v1639, %v1794
    %v1896 = vadd.f32 %v1640, %v1796
    %v1897 = vadd.f32 %v1641, %v1798
    %v1898 = vadd.f32 %v1642, %v1800
    %v1899 = vadd.f32 %v1643, %v1802
    %v1900 = vadd.f32 %v1644, %v1804
    %v1901 = vadd.f32 %v1645, %v1806
    %v1902 = vadd.f32 %v1646, %v1808
    %v1903 = vadd.f32 %v1647, %v1810
    %v1904 = vadd.f32 %v1648, %v1812
    %v1905 = vadd.f32 %v1649, %v1814
    %v1906 = vadd.f32 %v1650, %v1816
    %v1907 = vadd.f32 %v1651, %v1818
    %v1908 = vadd.f32 %v1652, %v1820
    %v1909 = vadd.f32 %v1653, %v1822
    %v1910 = vadd.f32 %v1654, %v1824
    %v1911 = vadd.f32 %v1655, %v1826
    %v1912 = vadd.f32 %v1656, %v1828
    %v1913 = vadd.f32 %v1657, %v1830
    %v1914 = vadd.f32 %v1658, %v1832
    %v1915 = vadd.f32 %v1659, %v1834
    %v1916 = vadd.f32 %v1660, %v1836
    %v1917 = vadd.f32 %v1661, %v1838
    %v1918 = vadd.f32 %v1662, %v1840
    %v1919 = vadd.f32 %v1663, %v1842
    %v1920 = vadd.f32 %v1664, %v1844
    %v1921 = vadd.f32 %v1665, %v1846
    %v1922 = vadd.f32 %v1666, %v1848
    %v1923 = vadd.f32 %v1667, %v1850
    %v1924 = vadd.f32 %v1668, %v1852
    %v1925 = vadd.f32 %v1669, %v1854
    %v1926 = vadd.f32 %v1670, %v1856
    %v1927 = vadd.f32 %v1671, %v1858
    %v1928 = vadd.f32 %v1672, %v1860
    %v1929 = vadd.f32 %v1673, %v1862
    %v1930 = vadd.f32 %v1674, %v1864
    %v1931 = vadd.f32 %v1675, %v1866
    %v1932 = vadd.f32 %v1676, %v1868
    %v1933 = vld [vmem:[%s1420 + $0x2] sm:$0xff]
    %v1934 = vld [vmem:[%s1420 + $0xa] sm:$0xff]
    %v1935 = vld [vmem:[%s1420 + $0x1a] sm:$0xff]
    %v1936 = vld [vmem:[%s1420 + $0x22] sm:$0xff]
    %v1937 = vld [vmem:[%s1420 + $0x32] sm:$0xff]
    %v1938 = vld [vmem:[%s1420 + $0x3a] sm:$0xff]
    %v1939 = vld [vmem:[%s1420 + $0x4a] sm:$0xff]
    %v1940 = vld [vmem:[%s1420 + $0x52] sm:$0xff]
    %v1941 = vld [vmem:[%s1420 + $0x62] sm:$0xff]
    %v1942 = vld [vmem:[%s1420 + $0x6a] sm:$0xff]
    %v1943 = vld [vmem:[%s1420 + $0x7a] sm:$0xff]
    %v1944 = vld [vmem:[%s1420 + $0x82] sm:$0xff]
    %v1945 = vld [vmem:[%s1420 + $0x92] sm:$0xff]
    %v1946 = vld [vmem:[%s1420 + $0x9a] sm:$0xff]
    %v1947 = vld [vmem:[%s1420 + $0xaa] sm:$0xff]
    %v1948 = vld [vmem:[%s1420 + $0xb2] sm:$0xff]
    %v1949 = vld [vmem:[%s1420 + $0xc2] sm:$0xff]
    %v1950 = vld [vmem:[%s1420 + $0xca] sm:$0xff]
    %v1951 = vld [vmem:[%s1420 + $0xda] sm:$0xff]
    %v1952 = vld [vmem:[%s1420 + $0xe2] sm:$0xff]
    %v1953 = vld [vmem:[%s1420 + $0xf2] sm:$0xff]
    %v1954 = vld [vmem:[%s1420 + $0xfa] sm:$0xff]
    %v1955 = vld [vmem:[%s1420 + $0x10a] sm:$0xff]
    %v1956 = vld [vmem:[%s1420 + $0x112] sm:$0xff]
    %v1957 = vld [vmem:[%s1420 + $0x122] sm:$0xff]
    %v1958 = vld [vmem:[%s1420 + $0x12a] sm:$0xff]
    %v1959 = vld [vmem:[%s1420 + $0x13a] sm:$0xff]
    %v1960 = vld [vmem:[%s1420 + $0x142] sm:$0xff]
    %v1961 = vld [vmem:[%s1420 + $0x152] sm:$0xff]
    %v1962 = vld [vmem:[%s1420 + $0x15a] sm:$0xff]
    %v1963 = vld [vmem:[%s1420 + $0x16a] sm:$0xff]
    %v1964 = vld [vmem:[%s1420 + $0x172] sm:$0xff]
    %v1965 = vld [vmem:[%s1420 + $0x1b2] sm:$0xff]
    %v1966 = vld [vmem:[%s1420 + $0x1ba] sm:$0xff]
    %v1967 = vld [vmem:[%s1420 + $0x1ca] sm:$0xff]
    %v1968 = vld [vmem:[%s1420 + $0x1d2] sm:$0xff]
    %v1969 = vld [vmem:[%s1420 + $0x1e2] sm:$0xff]
    %v1970 = vld [vmem:[%s1420 + $0x1ea] sm:$0xff]
    %v1971 = vld [vmem:[%s1420 + $0x1fa] sm:$0xff]
    %v1972 = vld [vmem:[%s1420 + $0x202] sm:$0xff]
    %v1973 = vld [vmem:[%s1420 + $0x212] sm:$0xff]
    %v1974 = vld [vmem:[%s1420 + $0x21a] sm:$0xff]
    %v1975 = vld [vmem:[%s1420 + $0x22a] sm:$0xff]
    %v1976 = vld [vmem:[%s1420 + $0x232] sm:$0xff]
    %v1977 = vld [vmem:[%s1420 + $0x242] sm:$0xff]
    %v1978 = vld [vmem:[%s1420 + $0x24a] sm:$0xff]
    %v1979 = vld [vmem:[%s1420 + $0x25a] sm:$0xff]
    %v1980 = vld [vmem:[%s1420 + $0x262] sm:$0xff]
    %v1981 = vld [vmem:[%s1420 + $0x272] sm:$0xff]
    %v1982 = vld [vmem:[%s1420 + $0x27a] sm:$0xff]
    %v1983 = vld [vmem:[%s1420 + $0x28a] sm:$0xff]
    %v1984 = vld [vmem:[%s1420 + $0x292] sm:$0xff]
    %v1985 = vld [vmem:[%s1420 + $0x2a2] sm:$0xff]
    %v1986 = vld [vmem:[%s1420 + $0x2aa] sm:$0xff]
    %v1987 = vld [vmem:[%s1420 + $0x2ba] sm:$0xff]
    %v1988 = vld [vmem:[%s1420 + $0x2c2] sm:$0xff]
    %v1989 = vld [vmem:[%s1420 + $0x2d2] sm:$0xff]
    %v1990 = vld [vmem:[%s1420 + $0x2da] sm:$0xff]
    %v1991 = vld [vmem:[%s1420 + $0x2ea] sm:$0xff]
    %v1992 = vld [vmem:[%s1420 + $0x2f2] sm:$0xff]
    %v1993 = vld [vmem:[%s1420 + $0x302] sm:$0xff]
    %v1994 = vld [vmem:[%s1420 + $0x30a] sm:$0xff]
    %v1995 = vld [vmem:[%s1420 + $0x31a] sm:$0xff]
    %v1996 = vld [vmem:[%s1420 + $0x322] sm:$0xff]
    %1997 = vrot.lane.b32.xlu0 %v1933, 32
    %v1998 = vpop.permute.xlu0 %1997
    %1999 = vrot.lane.b32.xlu0 %v1934, 32
    %v2000 = vpop.permute.xlu0 %1999
    %2001 = vrot.lane.b32.xlu0 %v1935, 32
    %v2002 = vpop.permute.xlu0 %2001
    %2003 = vrot.lane.b32.xlu0 %v1936, 32
    %v2004 = vpop.permute.xlu0 %2003
    %2005 = vrot.lane.b32.xlu0 %v1937, 32
    %v2006 = vpop.permute.xlu0 %2005
    %2007 = vrot.lane.b32.xlu0 %v1938, 32
    %v2008 = vpop.permute.xlu0 %2007
    %2009 = vrot.lane.b32.xlu0 %v1939, 32
    %v2010 = vpop.permute.xlu0 %2009
    %2011 = vrot.lane.b32.xlu0 %v1940, 32
    %v2012 = vpop.permute.xlu0 %2011
    %2013 = vrot.lane.b32.xlu0 %v1941, 32
    %v2014 = vpop.permute.xlu0 %2013
    %2015 = vrot.lane.b32.xlu0 %v1942, 32
    %v2016 = vpop.permute.xlu0 %2015
    %2017 = vrot.lane.b32.xlu0 %v1943, 32
    %v2018 = vpop.permute.xlu0 %2017
    %2019 = vrot.lane.b32.xlu0 %v1944, 32
    %v2020 = vpop.permute.xlu0 %2019
    %2021 = vrot.lane.b32.xlu0 %v1945, 32
    %v2022 = vpop.permute.xlu0 %2021
    %2023 = vrot.lane.b32.xlu0 %v1946, 32
    %v2024 = vpop.permute.xlu0 %2023
    %2025 = vrot.lane.b32.xlu0 %v1947, 32
    %v2026 = vpop.permute.xlu0 %2025
    %2027 = vrot.lane.b32.xlu0 %v1948, 32
    %v2028 = vpop.permute.xlu0 %2027
    %2029 = vrot.lane.b32.xlu0 %v1949, 32
    %v2030 = vpop.permute.xlu0 %2029
    %2031 = vrot.lane.b32.xlu0 %v1950, 32
    %v2032 = vpop.permute.xlu0 %2031
    %2033 = vrot.lane.b32.xlu0 %v1951, 32
    %v2034 = vpop.permute.xlu0 %2033
    %2035 = vrot.lane.b32.xlu0 %v1952, 32
    %v2036 = vpop.permute.xlu0 %2035
    %2037 = vrot.lane.b32.xlu0 %v1953, 32
    %v2038 = vpop.permute.xlu0 %2037
    %2039 = vrot.lane.b32.xlu0 %v1954, 32
    %v2040 = vpop.permute.xlu0 %2039
    %2041 = vrot.lane.b32.xlu0 %v1955, 32
    %v2042 = vpop.permute.xlu0 %2041
    %2043 = vrot.lane.b32.xlu0 %v1956, 32
    %v2044 = vpop.permute.xlu0 %2043
    %2045 = vrot.lane.b32.xlu0 %v1957, 32
    %v2046 = vpop.permute.xlu0 %2045
    %2047 = vrot.lane.b32.xlu0 %v1958, 32
    %v2048 = vpop.permute.xlu0 %2047
    %2049 = vrot.lane.b32.xlu0 %v1959, 32
    %v2050 = vpop.permute.xlu0 %2049
    %2051 = vrot.lane.b32.xlu0 %v1960, 32
    %v2052 = vpop.permute.xlu0 %2051
    %2053 = vrot.lane.b32.xlu0 %v1961, 32
    %v2054 = vpop.permute.xlu0 %2053
    %2055 = vrot.lane.b32.xlu0 %v1962, 32
    %v2056 = vpop.permute.xlu0 %2055
    %2057 = vrot.lane.b32.xlu0 %v1963, 32
    %v2058 = vpop.permute.xlu0 %2057
    %2059 = vrot.lane.b32.xlu0 %v1964, 32
    %v2060 = vpop.permute.xlu0 %2059
    %2061 = vrot.lane.b32.xlu0 %v1965, 32
    %v2062 = vpop.permute.xlu0 %2061
    %2063 = vrot.lane.b32.xlu0 %v1966, 32
    %v2064 = vpop.permute.xlu0 %2063
    %2065 = vrot.lane.b32.xlu0 %v1967, 32
    %v2066 = vpop.permute.xlu0 %2065
    %2067 = vrot.lane.b32.xlu0 %v1968, 32
    %v2068 = vpop.permute.xlu0 %2067
    %2069 = vrot.lane.b32.xlu0 %v1969, 32
    %v2070 = vpop.permute.xlu0 %2069
    %2071 = vrot.lane.b32.xlu0 %v1970, 32
    %v2072 = vpop.permute.xlu0 %2071
    %2073 = vrot.lane.b32.xlu0 %v1971, 32
    %v2074 = vpop.permute.xlu0 %2073
    %2075 = vrot.lane.b32.xlu0 %v1972, 32
    %v2076 = vpop.permute.xlu0 %2075
    %2077 = vrot.lane.b32.xlu0 %v1973, 32
    %v2078 = vpop.permute.xlu0 %2077
    %2079 = vrot.lane.b32.xlu0 %v1974, 32
    %v2080 = vpop.permute.xlu0 %2079
    %2081 = vrot.lane.b32.xlu0 %v1975, 32
    %v2082 = vpop.permute.xlu0 %2081
    %2083 = vrot.lane.b32.xlu0 %v1976, 32
    %v2084 = vpop.permute.xlu0 %2083
    %2085 = vrot.lane.b32.xlu0 %v1977, 32
    %v2086 = vpop.permute.xlu0 %2085
    %2087 = vrot.lane.b32.xlu0 %v1978, 32
    %v2088 = vpop.permute.xlu0 %2087
    %2089 = vrot.lane.b32.xlu0 %v1979, 32
    %v2090 = vpop.permute.xlu0 %2089
    %2091 = vrot.lane.b32.xlu0 %v1980, 32
    %v2092 = vpop.permute.xlu0 %2091
    %2093 = vrot.lane.b32.xlu0 %v1981, 32
    %v2094 = vpop.permute.xlu0 %2093
    %2095 = vrot.lane.b32.xlu0 %v1982, 32
    %v2096 = vpop.permute.xlu0 %2095
    %2097 = vrot.lane.b32.xlu0 %v1983, 32
    %v2098 = vpop.permute.xlu0 %2097
    %2099 = vrot.lane.b32.xlu0 %v1984, 32
    %v2100 = vpop.permute.xlu0 %2099
    %2101 = vrot.lane.b32.xlu0 %v1985, 32
    %v2102 = vpop.permute.xlu0 %2101
    %2103 = vrot.lane.b32.xlu0 %v1986, 32
    %v2104 = vpop.permute.xlu0 %2103
    %2105 = vrot.lane.b32.xlu0 %v1987, 32
    %v2106 = vpop.permute.xlu0 %2105
    %2107 = vrot.lane.b32.xlu0 %v1988, 32
    %v2108 = vpop.permute.xlu0 %2107
    %2109 = vrot.lane.b32.xlu0 %v1989, 32
    %v2110 = vpop.permute.xlu0 %2109
    %2111 = vrot.lane.b32.xlu0 %v1990, 32
    %v2112 = vpop.permute.xlu0 %2111
    %2113 = vrot.lane.b32.xlu0 %v1991, 32
    %v2114 = vpop.permute.xlu0 %2113
    %2115 = vrot.lane.b32.xlu0 %v1992, 32
    %v2116 = vpop.permute.xlu0 %2115
    %2117 = vrot.lane.b32.xlu0 %v1993, 32
    %v2118 = vpop.permute.xlu0 %2117
    %2119 = vrot.lane.b32.xlu0 %v1994, 32
    %v2120 = vpop.permute.xlu0 %2119
    %2121 = vrot.lane.b32.xlu0 %v1995, 32
    %v2122 = vpop.permute.xlu0 %2121
    %2123 = vrot.lane.b32.xlu0 %v1996, 32
    %v2124 = vpop.permute.xlu0 %2123
    %v2125 = vadd.f32 %v1869, %v1998
    %v2126 = vadd.f32 %v1870, %v2000
    %v2127 = vadd.f32 %v1871, %v2002
    %v2128 = vadd.f32 %v1872, %v2004
    %v2129 = vadd.f32 %v1873, %v2006
    %v2130 = vadd.f32 %v1874, %v2008
    %v2131 = vadd.f32 %v1875, %v2010
    %v2132 = vadd.f32 %v1876, %v2012
    %v2133 = vadd.f32 %v1877, %v2014
    %v2134 = vadd.f32 %v1878, %v2016
    %v2135 = vadd.f32 %v1879, %v2018
    %v2136 = vadd.f32 %v1880, %v2020
    %v2137 = vadd.f32 %v1881, %v2022
    %v2138 = vadd.f32 %v1882, %v2024
    %v2139 = vadd.f32 %v1883, %v2026
    %v2140 = vadd.f32 %v1884, %v2028
    %v2141 = vadd.f32 %v1885, %v2030
    %v2142 = vadd.f32 %v1886, %v2032
    %v2143 = vadd.f32 %v1887, %v2034
    %v2144 = vadd.f32 %v1888, %v2036
    %v2145 = vadd.f32 %v1889, %v2038
    %v2146 = vadd.f32 %v1890, %v2040
    %v2147 = vadd.f32 %v1891, %v2042
    %v2148 = vadd.f32 %v1892, %v2044
    %v2149 = vadd.f32 %v1893, %v2046
    %v2150 = vadd.f32 %v1894, %v2048
    %v2151 = vadd.f32 %v1895, %v2050
    %v2152 = vadd.f32 %v1896, %v2052
    %v2153 = vadd.f32 %v1897, %v2054
    %v2154 = vadd.f32 %v1898, %v2056
    %v2155 = vadd.f32 %v1899, %v2058
    %v2156 = vadd.f32 %v1900, %v2060
    %v2157 = vadd.f32 %v1901, %v2062
    %v2158 = vadd.f32 %v1902, %v2064
    %v2159 = vadd.f32 %v1903, %v2066
    %v2160 = vadd.f32 %v1904, %v2068
    %v2161 = vadd.f32 %v1905, %v2070
    %v2162 = vadd.f32 %v1906, %v2072
    %v2163 = vadd.f32 %v1907, %v2074
    %v2164 = vadd.f32 %v1908, %v2076
    %v2165 = vadd.f32 %v1909, %v2078
    %v2166 = vadd.f32 %v1910, %v2080
    %v2167 = vadd.f32 %v1911, %v2082
    %v2168 = vadd.f32 %v1912, %v2084
    %v2169 = vadd.f32 %v1913, %v2086
    %v2170 = vadd.f32 %v1914, %v2088
    %v2171 = vadd.f32 %v1915, %v2090
    %v2172 = vadd.f32 %v1916, %v2092
    %v2173 = vadd.f32 %v1917, %v2094
    %v2174 = vadd.f32 %v1918, %v2096
    %v2175 = vadd.f32 %v1919, %v2098
    %v2176 = vadd.f32 %v1920, %v2100
    %v2177 = vadd.f32 %v1921, %v2102
    %v2178 = vadd.f32 %v1922, %v2104
    %v2179 = vadd.f32 %v1923, %v2106
    %v2180 = vadd.f32 %v1924, %v2108
    %v2181 = vadd.f32 %v1925, %v2110
    %v2182 = vadd.f32 %v1926, %v2112
    %v2183 = vadd.f32 %v1927, %v2114
    %v2184 = vadd.f32 %v1928, %v2116
    %v2185 = vadd.f32 %v1929, %v2118
    %v2186 = vadd.f32 %v1930, %v2120
    %v2187 = vadd.f32 %v1931, %v2122
    %v2188 = vadd.f32 %v1932, %v2124
    %v2189 = vpack.c.bf16 %v2126, %v2125
    %v2190 = vpack.c.bf16 %v2128, %v2127
    %v2191 = vpack.c.bf16 %v2130, %v2129
    %v2192 = vpack.c.bf16 %v2132, %v2131
    %v2193 = vpack.c.bf16 %v2134, %v2133
    %v2194 = vpack.c.bf16 %v2136, %v2135
    %v2195 = vpack.c.bf16 %v2138, %v2137
    %v2196 = vpack.c.bf16 %v2140, %v2139
    %v2197 = vpack.c.bf16 %v2142, %v2141
    %v2198 = vpack.c.bf16 %v2144, %v2143
    %v2199 = vpack.c.bf16 %v2146, %v2145
    %v2200 = vpack.c.bf16 %v2148, %v2147
    %v2201 = vpack.c.bf16 %v2150, %v2149
    %v2202 = vpack.c.bf16 %v2152, %v2151
    %v2203 = vpack.c.bf16 %v2154, %v2153
    %v2204 = vpack.c.bf16 %v2156, %v2155
    %v2205 = vpack.c.bf16 %v2158, %v2157
    %v2206 = vpack.c.bf16 %v2160, %v2159
    %v2207 = vpack.c.bf16 %v2162, %v2161
    %v2208 = vpack.c.bf16 %v2164, %v2163
    %v2209 = vpack.c.bf16 %v2166, %v2165
    %v2210 = vpack.c.bf16 %v2168, %v2167
    %v2211 = vpack.c.bf16 %v2170, %v2169
    %v2212 = vpack.c.bf16 %v2172, %v2171
    %v2213 = vpack.c.bf16 %v2174, %v2173
    %v2214 = vpack.c.bf16 %v2176, %v2175
    %v2215 = vpack.c.bf16 %v2178, %v2177
    %v2216 = vpack.c.bf16 %v2180, %v2179
    %v2217 = vpack.c.bf16 %v2182, %v2181
    %v2218 = vpack.c.bf16 %v2184, %v2183
    %v2219 = vpack.c.bf16 %v2186, %v2185
    %v2220 = vpack.c.bf16 %v2188, %v2187
    %v2221 = vld [vmem:[#allocation7] sm:$0xf]
    %v2222 = vld [vmem:[#allocation7 + $0x4] sm:$0xf]
    %v2223 = vld [vmem:[#allocation7 + $0x8] sm:$0xf]
    %v2224 = vld [vmem:[#allocation7 + $0xc] sm:$0xf]
    %v2225 = vld [vmem:[#allocation7 + $0x10] sm:$0xf]
    %v2226 = vld [vmem:[#allocation7 + $0x14] sm:$0xf]
    %v2227 = vld [vmem:[#allocation7 + $0x18] sm:$0xf]
    %v2228 = vld [vmem:[#allocation7 + $0x1c] sm:$0xf]
    %v2229 = vld [vmem:[#allocation7 + $0x20] sm:$0xf]
    %v2230 = vld [vmem:[#allocation7 + $0x24] sm:$0xf]
    %v2231 = vld [vmem:[#allocation7 + $0x28] sm:$0xf]
    %v2232 = vld [vmem:[#allocation7 + $0x2c] sm:$0xf]
    %v2233 = vld [vmem:[#allocation7 + $0x30] sm:$0xf]
    %v2234 = vld [vmem:[#allocation7 + $0x34] sm:$0xf]
    %v2235 = vld [vmem:[#allocation7 + $0x38] sm:$0xf]
    %v2236 = vld [vmem:[#allocation7 + $0x3c] sm:$0xf]
    %v2237 = vld [vmem:[#allocation9] sm:$0x1]
    %v2238 = vlaneseq
    %v2239 = vshrl.u32 %v2238, 7
    %v2240 = vsub.s32 0, %v2239
    %v2241 = vrot.slane %v2237, %v2240
    %v2258 = vunpack.c.l.b16 %v2221
    %v2259 = vunpack.c.l.b16 %v2222
    %v2260 = vunpack.c.l.b16 %v2223
    %v2261 = vunpack.c.l.b16 %v2224
    %v2262 = vunpack.c.l.b16 %v2225
    %v2263 = vunpack.c.l.b16 %v2226
    %v2264 = vunpack.c.l.b16 %v2227
    %v2265 = vunpack.c.l.b16 %v2228
    %v2266 = vunpack.c.l.b16 %v2229
    %v2267 = vunpack.c.l.b16 %v2230
    %v2268 = vunpack.c.l.b16 %v2231
    %v2269 = vunpack.c.l.b16 %v2232
    %v2270 = vunpack.c.l.b16 %v2233
    %v2271 = vunpack.c.l.b16 %v2234
    %v2272 = vunpack.c.l.b16 %v2235
    %v2273 = vunpack.c.l.b16 %v2236
    %v2274 = vpack.c.b16 %v2259, %v2258
    %v2275 = vpack.c.b16 %v2261, %v2260
    %v2276 = vpack.c.b16 %v2263, %v2262
    %v2277 = vpack.c.b16 %v2265, %v2264
    %v2278 = vpack.c.b16 %v2267, %v2266
    %v2279 = vpack.c.b16 %v2269, %v2268
    %v2280 = vpack.c.b16 %v2271, %v2270
    %v2281 = vpack.c.b16 %v2273, %v2272
    %2290 = vmatprep.subr.bf16.mxu0 0
    %2291 = vmatpush1.bf16.msra.mxu0 %v2281
    %2292 = vmatprep.subr.bf16.mxu0 0
    %2293 = vmatpush1.bf16.msra.mxu0 %v2280
    %2294 = vmatprep.subr.bf16.mxu0 0
    %2295 = vmatpush1.bf16.msra.mxu0 %v2279
    %2296 = vmatprep.subr.bf16.mxu0 0
    %2297 = vmatpush1.bf16.msra.mxu0 %v2278
    %2298 = vmatprep.subr.bf16.mxu0 0
    %2299 = vmatpush1.bf16.msra.mxu0 %v2277
    %2300 = vmatprep.subr.bf16.mxu0 0
    %2301 = vmatpush1.bf16.msra.mxu0 %v2276
    %2302 = vmatprep.subr.bf16.mxu0 0
    %2303 = vmatpush1.bf16.msra.mxu0 %v2275
    %2304 = vmatprep.subr.bf16.mxu0 0
    %2305 = vmatpush1.bf16.msra.mxu0 %v2274
    %2306 = vmatprep.subr.bf16.mxu0 0
    %2307 = vmatpush2.bf16.msra.mxu0 0
    %2308 = vmatprep.subr.bf16.mxu0 0
    %2309 = vmatpush2.bf16.msra.mxu0 0
    %2310 = vmatprep.subr.bf16.mxu0 0
    %2311 = vmatpush2.bf16.msra.mxu0 0
    %2312 = vmatprep.subr.bf16.mxu0 0
    %2313 = vmatpush2.bf16.msra.mxu0 0
    %2314 = vmatprep.subr.bf16.mxu0 0
    %2315 = vmatpush2.bf16.msra.mxu0 0
    %2316 = vmatprep.subr.bf16.mxu0 0
    %2317 = vmatpush2.bf16.msra.mxu0 0
    %2318 = vmatprep.subr.bf16.mxu0 0
    %2319 = vmatpush2.bf16.msra.mxu0 0
    %2320 = vmatprep.subr.bf16.mxu0 0
    %2321 = vmatpush2.bf16.msra.mxu0 0
    %2322 = vmatprep.mubr.bf16.mxu0 0
    %2323 = vmatmul.mubr.bf16.gmra.mxu0 %v2189
    %v2324 = vpop.f32.mrf.mxu0
    %v2325 = vadd.f32 %v2241, %v2324
    %v2326 = vpop.f32.mrf.mxu0
    %v2327 = vpop.f32.mrf.mxu0
    %v2328 = vadd.f32 %v2241, %v2327
    %v2329 = vpop.f32.mrf.mxu0
    %2330 = vmatprep.mubr.bf16.mxu0 0
    %2331 = vmatmul.mubr.bf16.gmra.mxu0 %v2190
    %v2332 = vpop.f32.mrf.mxu0
    %v2333 = vadd.f32 %v2241, %v2332
    %v2334 = vpop.f32.mrf.mxu0
    %v2335 = vpop.f32.mrf.mxu0
    %v2336 = vadd.f32 %v2241, %v2335
    %v2337 = vpop.f32.mrf.mxu0
    %2338 = vmatprep.mubr.bf16.mxu0 0
    %2339 = vmatmul.mubr.bf16.gmra.mxu0 %v2191
    %v2340 = vpop.f32.mrf.mxu0
    %v2341 = vadd.f32 %v2241, %v2340
    %v2342 = vpop.f32.mrf.mxu0
    %v2343 = vpop.f32.mrf.mxu0
    %v2344 = vadd.f32 %v2241, %v2343
    %v2345 = vpop.f32.mrf.mxu0
    %2346 = vmatprep.mubr.bf16.mxu0 0
    %2347 = vmatmul.mubr.bf16.gmra.mxu0 %v2192
    %v2348 = vpop.f32.mrf.mxu0
    %v2349 = vadd.f32 %v2241, %v2348
    %v2350 = vpop.f32.mrf.mxu0
    %v2351 = vpop.f32.mrf.mxu0
    %v2352 = vadd.f32 %v2241, %v2351
    %v2353 = vpop.f32.mrf.mxu0
    %2354 = vmatprep.mubr.bf16.mxu0 0
    %2355 = vmatmul.mubr.bf16.gmra.mxu0 %v2193
    %v2356 = vpop.f32.mrf.mxu0
    %v2357 = vadd.f32 %v2241, %v2356
    %v2358 = vpop.f32.mrf.mxu0
    %v2359 = vpop.f32.mrf.mxu0
    %v2360 = vadd.f32 %v2241, %v2359
    %v2361 = vpop.f32.mrf.mxu0
    %2362 = vmatprep.mubr.bf16.mxu0 0
    %2363 = vmatmul.mubr.bf16.gmra.mxu0 %v2194
    %v2364 = vpop.f32.mrf.mxu0
    %v2365 = vadd.f32 %v2241, %v2364
    %v2366 = vpop.f32.mrf.mxu0
    %v2367 = vpop.f32.mrf.mxu0
    %v2368 = vadd.f32 %v2241, %v2367
    %v2369 = vpop.f32.mrf.mxu0
    %2370 = vmatprep.mubr.bf16.mxu0 0
    %2371 = vmatmul.mubr.bf16.gmra.mxu0 %v2195
    %v2372 = vpop.f32.mrf.mxu0
    %v2373 = vadd.f32 %v2241, %v2372
    %v2374 = vpop.f32.mrf.mxu0
    %v2375 = vpop.f32.mrf.mxu0
    %v2376 = vadd.f32 %v2241, %v2375
    %v2377 = vpop.f32.mrf.mxu0
    %2378 = vmatprep.mubr.bf16.mxu0 0
    %2379 = vmatmul.mubr.bf16.gmra.mxu0 %v2196
    %v2380 = vpop.f32.mrf.mxu0
    %v2381 = vadd.f32 %v2241, %v2380
    %v2382 = vpop.f32.mrf.mxu0
    %v2383 = vpop.f32.mrf.mxu0
    %v2384 = vadd.f32 %v2241, %v2383
    %v2385 = vpop.f32.mrf.mxu0
    %2386 = vmatprep.mubr.bf16.mxu0 0
    %2387 = vmatmul.mubr.bf16.gmra.mxu0 %v2197
    %v2388 = vpop.f32.mrf.mxu0
    %v2389 = vadd.f32 %v2241, %v2388
    %v2390 = vpop.f32.mrf.mxu0
    %v2391 = vpop.f32.mrf.mxu0
    %v2392 = vadd.f32 %v2241, %v2391
    %v2393 = vpop.f32.mrf.mxu0
    %2394 = vmatprep.mubr.bf16.mxu0 0
    %2395 = vmatmul.mubr.bf16.gmra.mxu0 %v2198
    %v2396 = vpop.f32.mrf.mxu0
    %v2397 = vadd.f32 %v2241, %v2396
    %v2398 = vpop.f32.mrf.mxu0
    %v2399 = vpop.f32.mrf.mxu0
    %v2400 = vadd.f32 %v2241, %v2399
    %v2401 = vpop.f32.mrf.mxu0
    %2402 = vmatprep.mubr.bf16.mxu0 0
    %2403 = vmatmul.mubr.bf16.gmra.mxu0 %v2199
    %v2404 = vpop.f32.mrf.mxu0
    %v2405 = vadd.f32 %v2241, %v2404
    %v2406 = vpop.f32.mrf.mxu0
    %v2407 = vpop.f32.mrf.mxu0
    %v2408 = vadd.f32 %v2241, %v2407
    %v2409 = vpop.f32.mrf.mxu0
    %2410 = vmatprep.mubr.bf16.mxu0 0
    %2411 = vmatmul.mubr.bf16.gmra.mxu0 %v2200
    %v2412 = vpop.f32.mrf.mxu0
    %v2413 = vadd.f32 %v2241, %v2412
    %v2414 = vpop.f32.mrf.mxu0
    %v2415 = vpop.f32.mrf.mxu0
    %v2416 = vadd.f32 %v2241, %v2415
    %v2417 = vpop.f32.mrf.mxu0
    %2418 = vmatprep.mubr.bf16.mxu0 0
    %2419 = vmatmul.mubr.bf16.gmra.mxu0 %v2201
    %v2420 = vpop.f32.mrf.mxu0
    %v2421 = vadd.f32 %v2241, %v2420
    %v2422 = vpop.f32.mrf.mxu0
    %v2423 = vpop.f32.mrf.mxu0
    %v2424 = vadd.f32 %v2241, %v2423
    %v2425 = vpop.f32.mrf.mxu0
    %2426 = vmatprep.mubr.bf16.mxu0 0
    %2427 = vmatmul.mubr.bf16.gmra.mxu0 %v2202
    %v2428 = vpop.f32.mrf.mxu0
    %v2429 = vadd.f32 %v2241, %v2428
    %v2430 = vpop.f32.mrf.mxu0
    %v2431 = vpop.f32.mrf.mxu0
    %v2432 = vadd.f32 %v2241, %v2431
    %v2433 = vpop.f32.mrf.mxu0
    %2434 = vmatprep.mubr.bf16.mxu0 0
    %2435 = vmatmul.mubr.bf16.gmra.mxu0 %v2203
    %v2436 = vpop.f32.mrf.mxu0
    %v2437 = vadd.f32 %v2241, %v2436
    %v2438 = vpop.f32.mrf.mxu0
    %v2439 = vpop.f32.mrf.mxu0
    %v2440 = vadd.f32 %v2241, %v2439
    %v2441 = vpop.f32.mrf.mxu0
    %2442 = vmatprep.mubr.bf16.mxu0 0
    %2443 = vmatmul.mubr.bf16.gmra.mxu0 %v2204
    %v2444 = vpop.f32.mrf.mxu0
    %v2445 = vadd.f32 %v2241, %v2444
    %v2446 = vpop.f32.mrf.mxu0
    %v2447 = vpop.f32.mrf.mxu0
    %v2448 = vadd.f32 %v2241, %v2447
    %v2449 = vpop.f32.mrf.mxu0
    %2450 = vmatprep.mubr.bf16.mxu0 0
    %2451 = vmatmul.mubr.bf16.gmra.mxu0 %v2205
    %v2452 = vpop.f32.mrf.mxu0
    %v2453 = vadd.f32 %v2241, %v2452
    %v2454 = vpop.f32.mrf.mxu0
    %v2455 = vpop.f32.mrf.mxu0
    %v2456 = vadd.f32 %v2241, %v2455
    %v2457 = vpop.f32.mrf.mxu0
    %2458 = vmatprep.mubr.bf16.mxu0 0
    %2459 = vmatmul.mubr.bf16.gmra.mxu0 %v2206
    %v2460 = vpop.f32.mrf.mxu0
    %v2461 = vadd.f32 %v2241, %v2460
    %v2462 = vpop.f32.mrf.mxu0
    %v2463 = vpop.f32.mrf.mxu0
    %v2464 = vadd.f32 %v2241, %v2463
    %v2465 = vpop.f32.mrf.mxu0
    %2466 = vmatprep.mubr.bf16.mxu0 0
    %2467 = vmatmul.mubr.bf16.gmra.mxu0 %v2207
    %v2468 = vpop.f32.mrf.mxu0
    %v2469 = vadd.f32 %v2241, %v2468
    %v2470 = vpop.f32.mrf.mxu0
    %v2471 = vpop.f32.mrf.mxu0
    %v2472 = vadd.f32 %v2241, %v2471
    %v2473 = vpop.f32.mrf.mxu0
    %2474 = vmatprep.mubr.bf16.mxu0 0
    %2475 = vmatmul.mubr.bf16.gmra.mxu0 %v2208
    %v2476 = vpop.f32.mrf.mxu0
    %v2477 = vadd.f32 %v2241, %v2476
    %v2478 = vpop.f32.mrf.mxu0
    %v2479 = vpop.f32.mrf.mxu0
    %v2480 = vadd.f32 %v2241, %v2479
    %v2481 = vpop.f32.mrf.mxu0
    %2482 = vmatprep.mubr.bf16.mxu0 0
    %2483 = vmatmul.mubr.bf16.gmra.mxu0 %v2209
    %v2484 = vpop.f32.mrf.mxu0
    %v2485 = vadd.f32 %v2241, %v2484
    %v2486 = vpop.f32.mrf.mxu0
    %v2487 = vpop.f32.mrf.mxu0
    %v2488 = vadd.f32 %v2241, %v2487
    %v2489 = vpop.f32.mrf.mxu0
    %2490 = vmatprep.mubr.bf16.mxu0 0
    %2491 = vmatmul.mubr.bf16.gmra.mxu0 %v2210
    %v2492 = vpop.f32.mrf.mxu0
    %v2493 = vadd.f32 %v2241, %v2492
    %v2494 = vpop.f32.mrf.mxu0
    %v2495 = vpop.f32.mrf.mxu0
    %v2496 = vadd.f32 %v2241, %v2495
    %v2497 = vpop.f32.mrf.mxu0
    %2498 = vmatprep.mubr.bf16.mxu0 0
    %2499 = vmatmul.mubr.bf16.gmra.mxu0 %v2211
    %v2500 = vpop.f32.mrf.mxu0
    %v2501 = vadd.f32 %v2241, %v2500
    %v2502 = vpop.f32.mrf.mxu0
    %v2503 = vpop.f32.mrf.mxu0
    %v2504 = vadd.f32 %v2241, %v2503
    %v2505 = vpop.f32.mrf.mxu0
    %2506 = vmatprep.mubr.bf16.mxu0 0
    %2507 = vmatmul.mubr.bf16.gmra.mxu0 %v2212
    %v2508 = vpop.f32.mrf.mxu0
    %v2509 = vadd.f32 %v2241, %v2508
    %v2510 = vpop.f32.mrf.mxu0
    %v2511 = vpop.f32.mrf.mxu0
    %v2512 = vadd.f32 %v2241, %v2511
    %v2513 = vpop.f32.mrf.mxu0
    %2514 = vmatprep.mubr.bf16.mxu0 0
    %2515 = vmatmul.mubr.bf16.gmra.mxu0 %v2213
    %v2516 = vpop.f32.mrf.mxu0
    %v2517 = vadd.f32 %v2241, %v2516
    %v2518 = vpop.f32.mrf.mxu0
    %v2519 = vpop.f32.mrf.mxu0
    %v2520 = vadd.f32 %v2241, %v2519
    %v2521 = vpop.f32.mrf.mxu0
    %2522 = vmatprep.mubr.bf16.mxu0 0
    %2523 = vmatmul.mubr.bf16.gmra.mxu0 %v2214
    %v2524 = vpop.f32.mrf.mxu0
    %v2525 = vadd.f32 %v2241, %v2524
    %v2526 = vpop.f32.mrf.mxu0
    %v2527 = vpop.f32.mrf.mxu0
    %v2528 = vadd.f32 %v2241, %v2527
    %v2529 = vpop.f32.mrf.mxu0
    %2530 = vmatprep.mubr.bf16.mxu0 0
    %2531 = vmatmul.mubr.bf16.gmra.mxu0 %v2215
    %v2532 = vpop.f32.mrf.mxu0
    %v2533 = vadd.f32 %v2241, %v2532
    %v2534 = vpop.f32.mrf.mxu0
    %v2535 = vpop.f32.mrf.mxu0
    %v2536 = vadd.f32 %v2241, %v2535
    %v2537 = vpop.f32.mrf.mxu0
    %2538 = vmatprep.mubr.bf16.mxu0 0
    %2539 = vmatmul.mubr.bf16.gmra.mxu0 %v2216
    %v2540 = vpop.f32.mrf.mxu0
    %v2541 = vadd.f32 %v2241, %v2540
    %v2542 = vpop.f32.mrf.mxu0
    %v2543 = vpop.f32.mrf.mxu0
    %v2544 = vadd.f32 %v2241, %v2543
    %v2545 = vpop.f32.mrf.mxu0
    %2546 = vmatprep.mubr.bf16.mxu0 0
    %2547 = vmatmul.mubr.bf16.gmra.mxu0 %v2217
    %v2548 = vpop.f32.mrf.mxu0
    %v2549 = vadd.f32 %v2241, %v2548
    %v2550 = vpop.f32.mrf.mxu0
    %v2551 = vpop.f32.mrf.mxu0
    %v2552 = vadd.f32 %v2241, %v2551
    %v2553 = vpop.f32.mrf.mxu0
    %2554 = vmatprep.mubr.bf16.mxu0 0
    %2555 = vmatmul.mubr.bf16.gmra.mxu0 %v2218
    %v2556 = vpop.f32.mrf.mxu0
    %v2557 = vadd.f32 %v2241, %v2556
    %v2558 = vpop.f32.mrf.mxu0
    %v2559 = vpop.f32.mrf.mxu0
    %v2560 = vadd.f32 %v2241, %v2559
    %v2561 = vpop.f32.mrf.mxu0
    %2562 = vmatprep.mubr.bf16.mxu0 0
    %2563 = vmatmul.mubr.bf16.gmra.mxu0 %v2219
    %v2564 = vpop.f32.mrf.mxu0
    %v2565 = vadd.f32 %v2241, %v2564
    %v2566 = vpop.f32.mrf.mxu0
    %v2567 = vpop.f32.mrf.mxu0
    %v2568 = vadd.f32 %v2241, %v2567
    %v2569 = vpop.f32.mrf.mxu0
    %2570 = vmatprep.mubr.bf16.mxu0 0
    %2571 = vmatmul.mubr.bf16.gmra.mxu0 %v2220
    %v2572 = vpop.f32.mrf.mxu0
    %v2573 = vadd.f32 %v2241, %v2572
    %v2574 = vpop.f32.mrf.mxu0
    %v2575 = vpop.f32.mrf.mxu0
    %v2576 = vadd.f32 %v2241, %v2575
    %v2577 = vpop.f32.mrf.mxu0
    %2578 = vdwg.mxu0
    %v2579 = vadd.f32 %v2325, %v2328
    %v2580 = vadd.f32 %v2579, %v2333
    %v2581 = vadd.f32 %v2580, %v2336
    %v2582 = vadd.f32 %v2581, %v2341
    %v2583 = vadd.f32 %v2582, %v2344
    %v2584 = vadd.f32 %v2583, %v2349
    %v2585 = vadd.f32 %v2584, %v2352
    %v2586 = vadd.f32 %v2585, %v2357
    %v2587 = vadd.f32 %v2586, %v2360
    %v2588 = vadd.f32 %v2587, %v2365
    %v2589 = vadd.f32 %v2588, %v2368
    %v2590 = vadd.f32 %v2589, %v2373
    %v2591 = vadd.f32 %v2590, %v2376
    %v2592 = vadd.f32 %v2591, %v2381
    %v2593 = vadd.f32 %v2592, %v2384
    %v2594 = vadd.f32 %v2593, %v2389
    %v2595 = vadd.f32 %v2594, %v2392
    %v2596 = vadd.f32 %v2595, %v2397
    %v2597 = vadd.f32 %v2596, %v2400
    %v2598 = vadd.f32 %v2597, %v2405
    %v2599 = vadd.f32 %v2598, %v2408
    %v2600 = vadd.f32 %v2599, %v2413
    %v2601 = vadd.f32 %v2600, %v2416
    %v2602 = vadd.f32 %v2601, %v2421
    %v2603 = vadd.f32 %v2602, %v2424
    %v2604 = vadd.f32 %v2603, %v2429
    %v2605 = vadd.f32 %v2604, %v2432
    %v2606 = vadd.f32 %v2605, %v2437
    %v2607 = vadd.f32 %v2606, %v2440
    %v2608 = vadd.f32 %v2607, %v2445
    %v2609 = vadd.f32 %v2608, %v2448
    %v2610 = vadd.f32 %v2609, %v2453
    %v2611 = vadd.f32 %v2610, %v2456
    %v2612 = vadd.f32 %v2611, %v2461
    %v2613 = vadd.f32 %v2612, %v2464
    %v2614 = vadd.f32 %v2613, %v2469
    %v2615 = vadd.f32 %v2614, %v2472
    %v2616 = vadd.f32 %v2615, %v2477
    %v2617 = vadd.f32 %v2616, %v2480
    %v2618 = vadd.f32 %v2617, %v2485
    %v2619 = vadd.f32 %v2618, %v2488
    %v2620 = vadd.f32 %v2619, %v2493
    %v2621 = vadd.f32 %v2620, %v2496
    %v2622 = vadd.f32 %v2621, %v2501
    %v2623 = vadd.f32 %v2622, %v2504
    %v2624 = vadd.f32 %v2623, %v2509
    %v2625 = vadd.f32 %v2624, %v2512
    %v2626 = vadd.f32 %v2625, %v2517
    %v2627 = vadd.f32 %v2626, %v2520
    %v2628 = vadd.f32 %v2627, %v2525
    %v2629 = vadd.f32 %v2628, %v2528
    %v2630 = vadd.f32 %v2629, %v2533
    %v2631 = vadd.f32 %v2630, %v2536
    %v2632 = vadd.f32 %v2631, %v2541
    %v2633 = vadd.f32 %v2632, %v2544
    %v2634 = vadd.f32 %v2633, %v2549
    %v2635 = vadd.f32 %v2634, %v2552
    %v2636 = vadd.f32 %v2635, %v2557
    %v2637 = vadd.f32 %v2636, %v2560
    %v2638 = vadd.f32 %v2637, %v2565
    %v2639 = vadd.f32 %v2638, %v2568
    %v2640 = vadd.f32 %v2639, %v2573
    %v2641 = vadd.f32 %v2640, %v2576
    %v2642 = vrot.slane %v2641, 4
    %v2643 = vadd.f32 %v2641, %v2642
    %v2644 = vrot.slane %v2643, 2
    %v2645 = vadd.f32 %v2643, %v2644
    %v2646 = vrot.slane %v2645, 1
    %v2647 = vadd.f32 %v2645, %v2646
    %v2648 = vmul.f32 %v2647, 0.001953125
    %v2649 = vsub.f32 %v2325, %v2648
    %v2650 = vsub.f32 %v2328, %v2648
    %v2651 = vsub.f32 %v2333, %v2648
    %v2652 = vsub.f32 %v2336, %v2648
    %v2653 = vsub.f32 %v2341, %v2648
    %v2654 = vsub.f32 %v2344, %v2648
    %v2655 = vsub.f32 %v2349, %v2648
    %v2656 = vsub.f32 %v2352, %v2648
    %v2657 = vsub.f32 %v2357, %v2648
    %v2658 = vsub.f32 %v2360, %v2648
    %v2659 = vsub.f32 %v2365, %v2648
    %v2660 = vsub.f32 %v2368, %v2648
    %v2661 = vsub.f32 %v2373, %v2648
    %v2662 = vsub.f32 %v2376, %v2648
    %v2663 = vsub.f32 %v2381, %v2648
    %v2664 = vsub.f32 %v2384, %v2648
    %v2665 = vsub.f32 %v2389, %v2648
    %v2666 = vsub.f32 %v2392, %v2648
    %v2667 = vsub.f32 %v2397, %v2648
    %v2668 = vsub.f32 %v2400, %v2648
    %v2669 = vsub.f32 %v2405, %v2648
    %v2670 = vsub.f32 %v2408, %v2648
    %v2671 = vsub.f32 %v2413, %v2648
    %v2672 = vsub.f32 %v2416, %v2648
    %v2673 = vsub.f32 %v2421, %v2648
    %v2674 = vsub.f32 %v2424, %v2648
    %v2675 = vsub.f32 %v2429, %v2648
    %v2676 = vsub.f32 %v2432, %v2648
    %v2677 = vsub.f32 %v2437, %v2648
    %v2678 = vsub.f32 %v2440, %v2648
    %v2679 = vsub.f32 %v2445, %v2648
    %v2680 = vsub.f32 %v2448, %v2648
    %v2681 = vsub.f32 %v2453, %v2648
    %v2682 = vsub.f32 %v2456, %v2648
    %v2683 = vsub.f32 %v2461, %v2648
    %v2684 = vsub.f32 %v2464, %v2648
    %v2685 = vsub.f32 %v2469, %v2648
    %v2686 = vsub.f32 %v2472, %v2648
    %v2687 = vsub.f32 %v2477, %v2648
    %v2688 = vsub.f32 %v2480, %v2648
    %v2689 = vsub.f32 %v2485, %v2648
    %v2690 = vsub.f32 %v2488, %v2648
    %v2691 = vsub.f32 %v2493, %v2648
    %v2692 = vsub.f32 %v2496, %v2648
    %v2693 = vsub.f32 %v2501, %v2648
    %v2694 = vsub.f32 %v2504, %v2648
    %v2695 = vsub.f32 %v2509, %v2648
    %v2696 = vsub.f32 %v2512, %v2648
    %v2697 = vsub.f32 %v2517, %v2648
    %v2698 = vsub.f32 %v2520, %v2648
    %v2699 = vsub.f32 %v2525, %v2648
    %v2700 = vsub.f32 %v2528, %v2648
    %v2701 = vsub.f32 %v2533, %v2648
    %v2702 = vsub.f32 %v2536, %v2648
    %v2703 = vsub.f32 %v2541, %v2648
    %v2704 = vsub.f32 %v2544, %v2648
    %v2705 = vsub.f32 %v2549, %v2648
    %v2706 = vsub.f32 %v2552, %v2648
    %v2707 = vsub.f32 %v2557, %v2648
    %v2708 = vsub.f32 %v2560, %v2648
    %v2709 = vsub.f32 %v2565, %v2648
    %v2710 = vsub.f32 %v2568, %v2648
    %v2711 = vsub.f32 %v2573, %v2648
    %v2712 = vsub.f32 %v2576, %v2648
    %v2713 = vmul.f32 %v2649, %v2649
    %v2714 = vmul.f32 %v2650, %v2650
    %v2715 = vmul.f32 %v2651, %v2651
    %v2716 = vmul.f32 %v2652, %v2652
    %v2717 = vmul.f32 %v2653, %v2653
    %v2718 = vmul.f32 %v2654, %v2654
    %v2719 = vmul.f32 %v2655, %v2655
    %v2720 = vmul.f32 %v2656, %v2656
    %v2721 = vmul.f32 %v2657, %v2657
    %v2722 = vmul.f32 %v2658, %v2658
    %v2723 = vmul.f32 %v2659, %v2659
    %v2724 = vmul.f32 %v2660, %v2660
    %v2725 = vmul.f32 %v2661, %v2661
    %v2726 = vmul.f32 %v2662, %v2662
    %v2727 = vmul.f32 %v2663, %v2663
    %v2728 = vmul.f32 %v2664, %v2664
    %v2729 = vmul.f32 %v2665, %v2665
    %v2730 = vmul.f32 %v2666, %v2666
    %v2731 = vmul.f32 %v2667, %v2667
    %v2732 = vmul.f32 %v2668, %v2668
    %v2733 = vmul.f32 %v2669, %v2669
    %v2734 = vmul.f32 %v2670, %v2670
    %v2735 = vmul.f32 %v2671, %v2671
    %v2736 = vmul.f32 %v2672, %v2672
    %v2737 = vmul.f32 %v2673, %v2673
    %v2738 = vmul.f32 %v2674, %v2674
    %v2739 = vmul.f32 %v2675, %v2675
    %v2740 = vmul.f32 %v2676, %v2676
    %v2741 = vmul.f32 %v2677, %v2677
    %v2742 = vmul.f32 %v2678, %v2678
    %v2743 = vmul.f32 %v2679, %v2679
    %v2744 = vmul.f32 %v2680, %v2680
    %v2745 = vmul.f32 %v2681, %v2681
    %v2746 = vmul.f32 %v2682, %v2682
    %v2747 = vmul.f32 %v2683, %v2683
    %v2748 = vmul.f32 %v2684, %v2684
    %v2749 = vmul.f32 %v2685, %v2685
    %v2750 = vmul.f32 %v2686, %v2686
    %v2751 = vmul.f32 %v2687, %v2687
    %v2752 = vmul.f32 %v2688, %v2688
    %v2753 = vmul.f32 %v2689, %v2689
    %v2754 = vmul.f32 %v2690, %v2690
    %v2755 = vmul.f32 %v2691, %v2691
    %v2756 = vmul.f32 %v2692, %v2692
    %v2757 = vmul.f32 %v2693, %v2693
    %v2758 = vmul.f32 %v2694, %v2694
    %v2759 = vmul.f32 %v2695, %v2695
    %v2760 = vmul.f32 %v2696, %v2696
    %v2761 = vmul.f32 %v2697, %v2697
    %v2762 = vmul.f32 %v2698, %v2698
    %v2763 = vmul.f32 %v2699, %v2699
    %v2764 = vmul.f32 %v2700, %v2700
    %v2765 = vmul.f32 %v2701, %v2701
    %v2766 = vmul.f32 %v2702, %v2702
    %v2767 = vmul.f32 %v2703, %v2703
    %v2768 = vmul.f32 %v2704, %v2704
    %v2769 = vmul.f32 %v2705, %v2705
    %v2770 = vmul.f32 %v2706, %v2706
    %v2771 = vmul.f32 %v2707, %v2707
    %v2772 = vmul.f32 %v2708, %v2708
    %v2773 = vmul.f32 %v2709, %v2709
    %v2774 = vmul.f32 %v2710, %v2710
    %v2775 = vmul.f32 %v2711, %v2711
    %v2776 = vmul.f32 %v2712, %v2712
    %v2777 = vadd.f32 %v2713, %v2714
    %v2778 = vadd.f32 %v2777, %v2715
    %v2779 = vadd.f32 %v2778, %v2716
    %v2780 = vadd.f32 %v2779, %v2717
    %v2781 = vadd.f32 %v2780, %v2718
    %v2782 = vadd.f32 %v2781, %v2719
    %v2783 = vadd.f32 %v2782, %v2720
    %v2784 = vadd.f32 %v2783, %v2721
    %v2785 = vadd.f32 %v2784, %v2722
    %v2786 = vadd.f32 %v2785, %v2723
    %v2787 = vadd.f32 %v2786, %v2724
    %v2788 = vadd.f32 %v2787, %v2725
    %v2789 = vadd.f32 %v2788, %v2726
    %v2790 = vadd.f32 %v2789, %v2727
    %v2791 = vadd.f32 %v2790, %v2728
    %v2792 = vadd.f32 %v2791, %v2729
    %v2793 = vadd.f32 %v2792, %v2730
    %v2794 = vadd.f32 %v2793, %v2731
    %v2795 = vadd.f32 %v2794, %v2732
    %v2796 = vadd.f32 %v2795, %v2733
    %v2797 = vadd.f32 %v2796, %v2734
    %v2798 = vadd.f32 %v2797, %v2735
    %v2799 = vadd.f32 %v2798, %v2736
    %v2800 = vadd.f32 %v2799, %v2737
    %v2801 = vadd.f32 %v2800, %v2738
    %v2802 = vadd.f32 %v2801, %v2739
    %v2803 = vadd.f32 %v2802, %v2740
    %v2804 = vadd.f32 %v2803, %v2741
    %v2805 = vadd.f32 %v2804, %v2742
    %v2806 = vadd.f32 %v2805, %v2743
    %v2807 = vadd.f32 %v2806, %v2744
    %v2808 = vadd.f32 %v2807, %v2745
    %v2809 = vadd.f32 %v2808, %v2746
    %v2810 = vadd.f32 %v2809, %v2747
    %v2811 = vadd.f32 %v2810, %v2748
    %v2812 = vadd.f32 %v2811, %v2749
    %v2813 = vadd.f32 %v2812, %v2750
    %v2814 = vadd.f32 %v2813, %v2751
    %v2815 = vadd.f32 %v2814, %v2752
    %v2816 = vadd.f32 %v2815, %v2753
    %v2817 = vadd.f32 %v2816, %v2754
    %v2818 = vadd.f32 %v2817, %v2755
    %v2819 = vadd.f32 %v2818, %v2756
    %v2820 = vadd.f32 %v2819, %v2757
    %v2821 = vadd.f32 %v2820, %v2758
    %v2822 = vadd.f32 %v2821, %v2759
    %v2823 = vadd.f32 %v2822, %v2760
    %v2824 = vadd.f32 %v2823, %v2761
    %v2825 = vadd.f32 %v2824, %v2762
    %v2826 = vadd.f32 %v2825, %v2763
    %v2827 = vadd.f32 %v2826, %v2764
    %v2828 = vadd.f32 %v2827, %v2765
    %v2829 = vadd.f32 %v2828, %v2766
    %v2830 = vadd.f32 %v2829, %v2767
    %v2831 = vadd.f32 %v2830, %v2768
    %v2832 = vadd.f32 %v2831, %v2769
    %v2833 = vadd.f32 %v2832, %v2770
    %v2834 = vadd.f32 %v2833, %v2771
    %v2835 = vadd.f32 %v2834, %v2772
    %v2836 = vadd.f32 %v2835, %v2773
    %v2837 = vadd.f32 %v2836, %v2774
    %v2838 = vadd.f32 %v2837, %v2775
    %v2839 = vadd.f32 %v2838, %v2776
    %v2840 = vrot.slane %v2839, 4
    %v2841 = vadd.f32 %v2839, %v2840
    %v2842 = vrot.slane %v2841, 2
    %v2843 = vadd.f32 %v2841, %v2842
    %v2844 = vrot.slane %v2843, 1
    %v2845 = vadd.f32 %v2843, %v2844
    %v2846 = vmul.f32 %v2845, 0.001953125
    %v2847 = vadd.f32 %v2846, 1e-05
    %v2848 = vrsqrt.pop %v2847
    %v2849 = vld [vmem:[#allocation9 + $0x1] sm:$0x1]
    %v2850 = vmul.f32 %v2848, %v2849
    %v2851 = vlaneseq
    %v2852 = vshrl.u32 %v2851, 7
    %v2853 = vsub.s32 0, %v2852
    %v2854 = vrot.slane %v2850, %v2853
    %v2855 = vmul.f32 %v2649, %v2854
    %v2856 = vmul.f32 %v2650, %v2854
    %v2857 = vmul.f32 %v2651, %v2854
    %v2858 = vmul.f32 %v2652, %v2854
    %v2859 = vmul.f32 %v2653, %v2854
    %v2860 = vmul.f32 %v2654, %v2854
    %v2861 = vmul.f32 %v2655, %v2854
    %v2862 = vmul.f32 %v2656, %v2854
    %v2863 = vmul.f32 %v2657, %v2854
    %v2864 = vmul.f32 %v2658, %v2854
    %v2865 = vmul.f32 %v2659, %v2854
    %v2866 = vmul.f32 %v2660, %v2854
    %v2867 = vmul.f32 %v2661, %v2854
    %v2868 = vmul.f32 %v2662, %v2854
    %v2869 = vmul.f32 %v2663, %v2854
    %v2870 = vmul.f32 %v2664, %v2854
    %v2871 = vmul.f32 %v2665, %v2854
    %v2872 = vmul.f32 %v2666, %v2854
    %v2873 = vmul.f32 %v2667, %v2854
    %v2874 = vmul.f32 %v2668, %v2854
    %v2875 = vmul.f32 %v2669, %v2854
    %v2876 = vmul.f32 %v2670, %v2854
    %v2877 = vmul.f32 %v2671, %v2854
    %v2878 = vmul.f32 %v2672, %v2854
    %v2879 = vmul.f32 %v2673, %v2854
    %v2880 = vmul.f32 %v2674, %v2854
    %v2881 = vmul.f32 %v2675, %v2854
    %v2882 = vmul.f32 %v2676, %v2854
    %v2883 = vmul.f32 %v2677, %v2854
    %v2884 = vmul.f32 %v2678, %v2854
    %v2885 = vmul.f32 %v2679, %v2854
    %v2886 = vmul.f32 %v2680, %v2854
    %v2887 = vmul.f32 %v2681, %v2854
    %v2888 = vmul.f32 %v2682, %v2854
    %v2889 = vmul.f32 %v2683, %v2854
    %v2890 = vmul.f32 %v2684, %v2854
    %v2891 = vmul.f32 %v2685, %v2854
    %v2892 = vmul.f32 %v2686, %v2854
    %v2893 = vmul.f32 %v2687, %v2854
    %v2894 = vmul.f32 %v2688, %v2854
    %v2895 = vmul.f32 %v2689, %v2854
    %v2896 = vmul.f32 %v2690, %v2854
    %v2897 = vmul.f32 %v2691, %v2854
    %v2898 = vmul.f32 %v2692, %v2854
    %v2899 = vmul.f32 %v2693, %v2854
    %v2900 = vmul.f32 %v2694, %v2854
    %v2901 = vmul.f32 %v2695, %v2854
    %v2902 = vmul.f32 %v2696, %v2854
    %v2903 = vmul.f32 %v2697, %v2854
    %v2904 = vmul.f32 %v2698, %v2854
    %v2905 = vmul.f32 %v2699, %v2854
    %v2906 = vmul.f32 %v2700, %v2854
    %v2907 = vmul.f32 %v2701, %v2854
    %v2908 = vmul.f32 %v2702, %v2854
    %v2909 = vmul.f32 %v2703, %v2854
    %v2910 = vmul.f32 %v2704, %v2854
    %v2911 = vmul.f32 %v2705, %v2854
    %v2912 = vmul.f32 %v2706, %v2854
    %v2913 = vmul.f32 %v2707, %v2854
    %v2914 = vmul.f32 %v2708, %v2854
    %v2915 = vmul.f32 %v2709, %v2854
    %v2916 = vmul.f32 %v2710, %v2854
    %v2917 = vmul.f32 %v2711, %v2854
    %v2918 = vmul.f32 %v2712, %v2854
    %v2919 = vld [vmem:[#allocation9 + $0x2] sm:$0x1]
    %v2920 = vlaneseq
    %v2921 = vshrl.u32 %v2920, 7
    %v2922 = vsub.s32 0, %v2921
    %v2923 = vrot.slane %v2919, %v2922
    %v2924 = vadd.f32 %v2855, %v2923
    %v2925 = vadd.f32 %v2856, %v2923
    %v2926 = vadd.f32 %v2857, %v2923
    %v2927 = vadd.f32 %v2858, %v2923
    %v2928 = vadd.f32 %v2859, %v2923
    %v2929 = vadd.f32 %v2860, %v2923
    %v2930 = vadd.f32 %v2861, %v2923
    %v2931 = vadd.f32 %v2862, %v2923
    %v2932 = vadd.f32 %v2863, %v2923
    %v2933 = vadd.f32 %v2864, %v2923
    %v2934 = vadd.f32 %v2865, %v2923
    %v2935 = vadd.f32 %v2866, %v2923
    %v2936 = vadd.f32 %v2867, %v2923
    %v2937 = vadd.f32 %v2868, %v2923
    %v2938 = vadd.f32 %v2869, %v2923
    %v2939 = vadd.f32 %v2870, %v2923
    %v2940 = vadd.f32 %v2871, %v2923
    %v2941 = vadd.f32 %v2872, %v2923
    %v2942 = vadd.f32 %v2873, %v2923
    %v2943 = vadd.f32 %v2874, %v2923
    %v2944 = vadd.f32 %v2875, %v2923
    %v2945 = vadd.f32 %v2876, %v2923
    %v2946 = vadd.f32 %v2877, %v2923
    %v2947 = vadd.f32 %v2878, %v2923
    %v2948 = vadd.f32 %v2879, %v2923
    %v2949 = vadd.f32 %v2880, %v2923
    %v2950 = vadd.f32 %v2881, %v2923
    %v2951 = vadd.f32 %v2882, %v2923
    %v2952 = vadd.f32 %v2883, %v2923
    %v2953 = vadd.f32 %v2884, %v2923
    %v2954 = vadd.f32 %v2885, %v2923
    %v2955 = vadd.f32 %v2886, %v2923
    %v2956 = vadd.f32 %v2887, %v2923
    %v2957 = vadd.f32 %v2888, %v2923
    %v2958 = vadd.f32 %v2889, %v2923
    %v2959 = vadd.f32 %v2890, %v2923
    %v2960 = vadd.f32 %v2891, %v2923
    %v2961 = vadd.f32 %v2892, %v2923
    %v2962 = vadd.f32 %v2893, %v2923
    %v2963 = vadd.f32 %v2894, %v2923
    %v2964 = vadd.f32 %v2895, %v2923
    %v2965 = vadd.f32 %v2896, %v2923
    %v2966 = vadd.f32 %v2897, %v2923
    %v2967 = vadd.f32 %v2898, %v2923
    %v2968 = vadd.f32 %v2899, %v2923
    %v2969 = vadd.f32 %v2900, %v2923
    %v2970 = vadd.f32 %v2901, %v2923
    %v2971 = vadd.f32 %v2902, %v2923
    %v2972 = vadd.f32 %v2903, %v2923
    %v2973 = vadd.f32 %v2904, %v2923
    %v2974 = vadd.f32 %v2905, %v2923
    %v2975 = vadd.f32 %v2906, %v2923
    %v2976 = vadd.f32 %v2907, %v2923
    %v2977 = vadd.f32 %v2908, %v2923
    %v2978 = vadd.f32 %v2909, %v2923
    %v2979 = vadd.f32 %v2910, %v2923
    %v2980 = vadd.f32 %v2911, %v2923
    %v2981 = vadd.f32 %v2912, %v2923
    %v2982 = vadd.f32 %v2913, %v2923
    %v2983 = vadd.f32 %v2914, %v2923
    %v2984 = vadd.f32 %v2915, %v2923
    %v2985 = vadd.f32 %v2916, %v2923
    %v2986 = vadd.f32 %v2917, %v2923
    %v2987 = vadd.f32 %v2918, %v2923
    %v2988 = vmax.f32 %v2924, 0.0
    %v2989 = vmax.f32 %v2925, 0.0
    %v2990 = vmax.f32 %v2926, 0.0
    %v2991 = vmax.f32 %v2927, 0.0
    %v2992 = vmax.f32 %v2928, 0.0
    %v2993 = vmax.f32 %v2929, 0.0
    %v2994 = vmax.f32 %v2930, 0.0
    %v2995 = vmax.f32 %v2931, 0.0
    %v2996 = vmax.f32 %v2932, 0.0
    %v2997 = vmax.f32 %v2933, 0.0
    %v2998 = vmax.f32 %v2934, 0.0
    %v2999 = vmax.f32 %v2935, 0.0
    %v3000 = vmax.f32 %v2936, 0.0
    %v3001 = vmax.f32 %v2937, 0.0
    %v3002 = vmax.f32 %v2938, 0.0
    %v3003 = vmax.f32 %v2939, 0.0
    %v3004 = vmax.f32 %v2940, 0.0
    %v3005 = vmax.f32 %v2941, 0.0
    %v3006 = vmax.f32 %v2942, 0.0
    %v3007 = vmax.f32 %v2943, 0.0
    %v3008 = vmax.f32 %v2944, 0.0
    %v3009 = vmax.f32 %v2945, 0.0
    %v3010 = vmax.f32 %v2946, 0.0
    %v3011 = vmax.f32 %v2947, 0.0
    %v3012 = vmax.f32 %v2948, 0.0
    %v3013 = vmax.f32 %v2949, 0.0
    %v3014 = vmax.f32 %v2950, 0.0
    %v3015 = vmax.f32 %v2951, 0.0
    %v3016 = vmax.f32 %v2952, 0.0
    %v3017 = vmax.f32 %v2953, 0.0
    %v3018 = vmax.f32 %v2954, 0.0
    %v3019 = vmax.f32 %v2955, 0.0
    %v3020 = vmax.f32 %v2956, 0.0
    %v3021 = vmax.f32 %v2957, 0.0
    %v3022 = vmax.f32 %v2958, 0.0
    %v3023 = vmax.f32 %v2959, 0.0
    %v3024 = vmax.f32 %v2960, 0.0
    %v3025 = vmax.f32 %v2961, 0.0
    %v3026 = vmax.f32 %v2962, 0.0
    %v3027 = vmax.f32 %v2963, 0.0
    %v3028 = vmax.f32 %v2964, 0.0
    %v3029 = vmax.f32 %v2965, 0.0
    %v3030 = vmax.f32 %v2966, 0.0
    %v3031 = vmax.f32 %v2967, 0.0
    %v3032 = vmax.f32 %v2968, 0.0
    %v3033 = vmax.f32 %v2969, 0.0
    %v3034 = vmax.f32 %v2970, 0.0
    %v3035 = vmax.f32 %v2971, 0.0
    %v3036 = vmax.f32 %v2972, 0.0
    %v3037 = vmax.f32 %v2973, 0.0
    %v3038 = vmax.f32 %v2974, 0.0
    %v3039 = vmax.f32 %v2975, 0.0
    %v3040 = vmax.f32 %v2976, 0.0
    %v3041 = vmax.f32 %v2977, 0.0
    %v3042 = vmax.f32 %v2978, 0.0
    %v3043 = vmax.f32 %v2979, 0.0
    %v3044 = vmax.f32 %v2980, 0.0
    %v3045 = vmax.f32 %v2981, 0.0
    %v3046 = vmax.f32 %v2982, 0.0
    %v3047 = vmax.f32 %v2983, 0.0
    %v3048 = vmax.f32 %v2984, 0.0
    %v3049 = vmax.f32 %v2985, 0.0
    %v3050 = vmax.f32 %v2986, 0.0
    %v3051 = vmax.f32 %v2987, 0.0
    %3052 = vst [vmem:[#allocation2] sm:$0xff] 0.0
    %3053 = vst [vmem:[#allocation2 + $0x8] sm:$0xff] 0.0
    %3054 = vst [vmem:[#allocation2 + $0x10] sm:$0xff] 0.0
    %3055 = vst [vmem:[#allocation2 + $0x1b0] sm:$0xff] 0.0
    %3056 = vst [vmem:[#allocation2 + $0x1b8] sm:$0xff] 0.0
    %3057 = vst [vmem:[#allocation2 + $0x1c0] sm:$0xff] 0.0
    %s3058 = scalar_lea.vmem [#allocation2], 408
    %3059 = vst [vmem:[%s3058] sm:$0xff] 0.0
    %3060 = vst [vmem:[%s3058 + $0x8] sm:$0xff] 0.0
    %3061 = vst [vmem:[%s3058 + $0x10] sm:$0xff] 0.0
    %3062 = vst [vmem:[%s3058 + $0x1b0] sm:$0xff] 0.0
    %3063 = vst [vmem:[%s3058 + $0x1b8] sm:$0xff] 0.0
    %3064 = vst [vmem:[%s3058 + $0x1c0] sm:$0xff] 0.0
    %s3065 = scalar_lea.vmem [#allocation2], 24
    %3066 = vst [vmem:[%s3065] sm:$0x1] 0.0
    %3067 = vst [vmem:[%s3065 + $0x18] sm:$0x1] 0.0
    %3068 = vst [vmem:[%s3065 + $0x30] sm:$0x1] 0.0
    %3069 = vst [vmem:[%s3065 + $0x48] sm:$0x1] 0.0
    %3070 = vst [vmem:[%s3065 + $0x60] sm:$0x1] 0.0
    %3071 = vst [vmem:[%s3065 + $0x78] sm:$0x1] 0.0
    %3072 = vst [vmem:[%s3065 + $0x90] sm:$0x1] 0.0
    %3073 = vst [vmem:[%s3065 + $0xa8] sm:$0x1] 0.0
    %3074 = vst [vmem:[%s3065 + $0xc0] sm:$0x1] 0.0
    %3075 = vst [vmem:[%s3065 + $0xd8] sm:$0x1] 0.0
    %3076 = vst [vmem:[%s3065 + $0xf0] sm:$0x1] 0.0
    %3077 = vst [vmem:[%s3065 + $0x108] sm:$0x1] 0.0
    %3078 = vst [vmem:[%s3065 + $0x120] sm:$0x1] 0.0
    %3079 = vst [vmem:[%s3065 + $0x138] sm:$0x1] 0.0
    %3080 = vst [vmem:[%s3065 + $0x150] sm:$0x1] 0.0
    %3081 = vst [vmem:[%s3065 + $0x168] sm:$0x1] 0.0
    %3082 = vst [vmem:[%s3065 + $0x1b0] sm:$0x1] 0.0
    %3083 = vst [vmem:[%s3065 + $0x1c8] sm:$0x1] 0.0
    %3084 = vst [vmem:[%s3065 + $0x1e0] sm:$0x1] 0.0
    %3085 = vst [vmem:[%s3065 + $0x1f8] sm:$0x1] 0.0
    %3086 = vst [vmem:[%s3065 + $0x210] sm:$0x1] 0.0
    %3087 = vst [vmem:[%s3065 + $0x228] sm:$0x1] 0.0
    %3088 = vst [vmem:[%s3065 + $0x240] sm:$0x1] 0.0
    %3089 = vst [vmem:[%s3065 + $0x258] sm:$0x1] 0.0
    %3090 = vst [vmem:[%s3065 + $0x270] sm:$0x1] 0.0
    %3091 = vst [vmem:[%s3065 + $0x288] sm:$0x1] 0.0
    %3092 = vst [vmem:[%s3065 + $0x2a0] sm:$0x1] 0.0
    %3093 = vst [vmem:[%s3065 + $0x2b8] sm:$0x1] 0.0
    %3094 = vst [vmem:[%s3065 + $0x2d0] sm:$0x1] 0.0
    %3095 = vst [vmem:[%s3065 + $0x2e8] sm:$0x1] 0.0
    %3096 = vst [vmem:[%s3065 + $0x300] sm:$0x1] 0.0
    %3097 = vst [vmem:[%s3065 + $0x318] sm:$0x1] 0.0
    %3098 = vst [vmem:[%s3065 + $0x11] sm:$0x1] 0.0
    %3099 = vst [vmem:[%s3065 + $0x29] sm:$0x1] 0.0
    %3100 = vst [vmem:[%s3065 + $0x41] sm:$0x1] 0.0
    %3101 = vst [vmem:[%s3065 + $0x59] sm:$0x1] 0.0
    %3102 = vst [vmem:[%s3065 + $0x71] sm:$0x1] 0.0
    %3103 = vst [vmem:[%s3065 + $0x89] sm:$0x1] 0.0
    %3104 = vst [vmem:[%s3065 + $0xa1] sm:$0x1] 0.0
    %3105 = vst [vmem:[%s3065 + $0xb9] sm:$0x1] 0.0
    %3106 = vst [vmem:[%s3065 + $0xd1] sm:$0x1] 0.0
    %3107 = vst [vmem:[%s3065 + $0xe9] sm:$0x1] 0.0
    %3108 = vst [vmem:[%s3065 + $0x101] sm:$0x1] 0.0
    %3109 = vst [vmem:[%s3065 + $0x119] sm:$0x1] 0.0
    %3110 = vst [vmem:[%s3065 + $0x131] sm:$0x1] 0.0
    %3111 = vst [vmem:[%s3065 + $0x149] sm:$0x1] 0.0
    %3112 = vst [vmem:[%s3065 + $0x161] sm:$0x1] 0.0
    %3113 = vst [vmem:[%s3065 + $0x179] sm:$0x1] 0.0
    %3114 = vst [vmem:[%s3065 + $0x1c1] sm:$0x1] 0.0
    %3115 = vst [vmem:[%s3065 + $0x1d9] sm:$0x1] 0.0
    %3116 = vst [vmem:[%s3065 + $0x1f1] sm:$0x1] 0.0
    %3117 = vst [vmem:[%s3065 + $0x209] sm:$0x1] 0.0
    %3118 = vst [vmem:[%s3065 + $0x221] sm:$0x1] 0.0
    %3119 = vst [vmem:[%s3065 + $0x239] sm:$0x1] 0.0
    %3120 = vst [vmem:[%s3065 + $0x251] sm:$0x1] 0.0
    %3121 = vst [vmem:[%s3065 + $0x269] sm:$0x1] 0.0
    %3122 = vst [vmem:[%s3065 + $0x281] sm:$0x1] 0.0
    %3123 = vst [vmem:[%s3065 + $0x299] sm:$0x1] 0.0
    %3124 = vst [vmem:[%s3065 + $0x2b1] sm:$0x1] 0.0
    %3125 = vst [vmem:[%s3065 + $0x2c9] sm:$0x1] 0.0
    %3126 = vst [vmem:[%s3065 + $0x2e1] sm:$0x1] 0.0
    %3127 = vst [vmem:[%s3065 + $0x2f9] sm:$0x1] 0.0
    %3128 = vst [vmem:[%s3065 + $0x311] sm:$0x1] 0.0
    %3129 = vst [vmem:[%s3065 + $0x329] sm:$0x1] 0.0
    %3130 = vst [vmem:[%s3065 + $0x1] sm:$0xff] %v2988
    %3131 = vst [vmem:[%s3065 + $0x9] sm:$0xff] %v2989
    %3132 = vst [vmem:[%s3065 + $0x19] sm:$0xff] %v2990
    %3133 = vst [vmem:[%s3065 + $0x21] sm:$0xff] %v2991
    %3134 = vst [vmem:[%s3065 + $0x31] sm:$0xff] %v2992
    %3135 = vst [vmem:[%s3065 + $0x39] sm:$0xff] %v2993
    %3136 = vst [vmem:[%s3065 + $0x49] sm:$0xff] %v2994
    %3137 = vst [vmem:[%s3065 + $0x51] sm:$0xff] %v2995
    %3138 = vst [vmem:[%s3065 + $0x61] sm:$0xff] %v2996
    %3139 = vst [vmem:[%s3065 + $0x69] sm:$0xff] %v2997
    %3140 = vst [vmem:[%s3065 + $0x79] sm:$0xff] %v2998
    %3141 = vst [vmem:[%s3065 + $0x81] sm:$0xff] %v2999
    %3142 = vst [vmem:[%s3065 + $0x91] sm:$0xff] %v3000
    %3143 = vst [vmem:[%s3065 + $0x99] sm:$0xff] %v3001
    %3144 = vst [vmem:[%s3065 + $0xa9] sm:$0xff] %v3002
    %3145 = vst [vmem:[%s3065 + $0xb1] sm:$0xff] %v3003
    %3146 = vst [vmem:[%s3065 + $0xc1] sm:$0xff] %v3004
    %3147 = vst [vmem:[%s3065 + $0xc9] sm:$0xff] %v3005
    %3148 = vst [vmem:[%s3065 + $0xd9] sm:$0xff] %v3006
    %3149 = vst [vmem:[%s3065 + $0xe1] sm:$0xff] %v3007
    %3150 = vst [vmem:[%s3065 + $0xf1] sm:$0xff] %v3008
    %3151 = vst [vmem:[%s3065 + $0xf9] sm:$0xff] %v3009
    %3152 = vst [vmem:[%s3065 + $0x109] sm:$0xff] %v3010
    %3153 = vst [vmem:[%s3065 + $0x111] sm:$0xff] %v3011
    %3154 = vst [vmem:[%s3065 + $0x121] sm:$0xff] %v3012
    %3155 = vst [vmem:[%s3065 + $0x129] sm:$0xff] %v3013
    %3156 = vst [vmem:[%s3065 + $0x139] sm:$0xff] %v3014
    %3157 = vst [vmem:[%s3065 + $0x141] sm:$0xff] %v3015
    %3158 = vst [vmem:[%s3065 + $0x151] sm:$0xff] %v3016
    %3159 = vst [vmem:[%s3065 + $0x159] sm:$0xff] %v3017
    %3160 = vst [vmem:[%s3065 + $0x169] sm:$0xff] %v3018
    %3161 = vst [vmem:[%s3065 + $0x171] sm:$0xff] %v3019
    %3162 = vst [vmem:[%s3065 + $0x1b1] sm:$0xff] %v3020
    %3163 = vst [vmem:[%s3065 + $0x1b9] sm:$0xff] %v3021
    %3164 = vst [vmem:[%s3065 + $0x1c9] sm:$0xff] %v3022
    %3165 = vst [vmem:[%s3065 + $0x1d1] sm:$0xff] %v3023
    %3166 = vst [vmem:[%s3065 + $0x1e1] sm:$0xff] %v3024
    %3167 = vst [vmem:[%s3065 + $0x1e9] sm:$0xff] %v3025
    %3168 = vst [vmem:[%s3065 + $0x1f9] sm:$0xff] %v3026
    %3169 = vst [vmem:[%s3065 + $0x201] sm:$0xff] %v3027
    %3170 = vst [vmem:[%s3065 + $0x211] sm:$0xff] %v3028
    %3171 = vst [vmem:[%s3065 + $0x219] sm:$0xff] %v3029
    %3172 = vst [vmem:[%s3065 + $0x229] sm:$0xff] %v3030
    %3173 = vst [vmem:[%s3065 + $0x231] sm:$0xff] %v3031
    %3174 = vst [vmem:[%s3065 + $0x241] sm:$0xff] %v3032
    %3175 = vst [vmem:[%s3065 + $0x249] sm:$0xff] %v3033
    %3176 = vst [vmem:[%s3065 + $0x259] sm:$0xff] %v3034
    %3177 = vst [vmem:[%s3065 + $0x261] sm:$0xff] %v3035
    %3178 = vst [vmem:[%s3065 + $0x271] sm:$0xff] %v3036
    %3179 = vst [vmem:[%s3065 + $0x279] sm:$0xff] %v3037
    %3180 = vst [vmem:[%s3065 + $0x289] sm:$0xff] %v3038
    %3181 = vst [vmem:[%s3065 + $0x291] sm:$0xff] %v3039
    %3182 = vst [vmem:[%s3065 + $0x2a1] sm:$0xff] %v3040
    %3183 = vst [vmem:[%s3065 + $0x2a9] sm:$0xff] %v3041
    %3184 = vst [vmem:[%s3065 + $0x2b9] sm:$0xff] %v3042
    %3185 = vst [vmem:[%s3065 + $0x2c1] sm:$0xff] %v3043
    %3186 = vst [vmem:[%s3065 + $0x2d1] sm:$0xff] %v3044
    %3187 = vst [vmem:[%s3065 + $0x2d9] sm:$0xff] %v3045
    %3188 = vst [vmem:[%s3065 + $0x2e9] sm:$0xff] %v3046
    %3189 = vst [vmem:[%s3065 + $0x2f1] sm:$0xff] %v3047
    %3190 = vst [vmem:[%s3065 + $0x301] sm:$0xff] %v3048
    %3191 = vst [vmem:[%s3065 + $0x309] sm:$0xff] %v3049
    %3192 = vst [vmem:[%s3065 + $0x319] sm:$0xff] %v3050
    %3193 = vst [vmem:[%s3065 + $0x321] sm:$0xff] %v3051
    %v3194 = vld [vmem:[#allocation2] sm:$0xff]
    %v3195 = vld [vmem:[#allocation2 + $0x8] sm:$0xff]
    %v3196 = vld [vmem:[#allocation2 + $0x18] sm:$0xff]
    %v3197 = vld [vmem:[#allocation2 + $0x20] sm:$0xff]
    %v3198 = vld [vmem:[#allocation2 + $0x30] sm:$0xff]
    %v3199 = vld [vmem:[#allocation2 + $0x38] sm:$0xff]
    %v3200 = vld [vmem:[#allocation2 + $0x48] sm:$0xff]
    %v3201 = vld [vmem:[#allocation2 + $0x50] sm:$0xff]
    %v3202 = vld [vmem:[#allocation2 + $0x60] sm:$0xff]
    %v3203 = vld [vmem:[#allocation2 + $0x68] sm:$0xff]
    %v3204 = vld [vmem:[#allocation2 + $0x78] sm:$0xff]
    %v3205 = vld [vmem:[#allocation2 + $0x80] sm:$0xff]
    %v3206 = vld [vmem:[#allocation2 + $0x90] sm:$0xff]
    %v3207 = vld [vmem:[#allocation2 + $0x98] sm:$0xff]
    %v3208 = vld [vmem:[#allocation2 + $0xa8] sm:$0xff]
    %v3209 = vld [vmem:[#allocation2 + $0xb0] sm:$0xff]
    %v3210 = vld [vmem:[#allocation2 + $0xc0] sm:$0xff]
    %v3211 = vld [vmem:[#allocation2 + $0xc8] sm:$0xff]
    %v3212 = vld [vmem:[#allocation2 + $0xd8] sm:$0xff]
    %v3213 = vld [vmem:[#allocation2 + $0xe0] sm:$0xff]
    %v3214 = vld [vmem:[#allocation2 + $0xf0] sm:$0xff]
    %v3215 = vld [vmem:[#allocation2 + $0xf8] sm:$0xff]
    %v3216 = vld [vmem:[#allocation2 + $0x108] sm:$0xff]
    %v3217 = vld [vmem:[#allocation2 + $0x110] sm:$0xff]
    %v3218 = vld [vmem:[#allocation2 + $0x120] sm:$0xff]
    %v3219 = vld [vmem:[#allocation2 + $0x128] sm:$0xff]
    %v3220 = vld [vmem:[#allocation2 + $0x138] sm:$0xff]
    %v3221 = vld [vmem:[#allocation2 + $0x140] sm:$0xff]
    %v3222 = vld [vmem:[#allocation2 + $0x150] sm:$0xff]
    %v3223 = vld [vmem:[#allocation2 + $0x158] sm:$0xff]
    %v3224 = vld [vmem:[#allocation2 + $0x168] sm:$0xff]
    %v3225 = vld [vmem:[#allocation2 + $0x170] sm:$0xff]
    %v3226 = vld [vmem:[#allocation2 + $0x1b0] sm:$0xff]
    %v3227 = vld [vmem:[#allocation2 + $0x1b8] sm:$0xff]
    %v3228 = vld [vmem:[#allocation2 + $0x1c8] sm:$0xff]
    %v3229 = vld [vmem:[#allocation2 + $0x1d0] sm:$0xff]
    %v3230 = vld [vmem:[#allocation2 + $0x1e0] sm:$0xff]
    %v3231 = vld [vmem:[#allocation2 + $0x1e8] sm:$0xff]
    %v3232 = vld [vmem:[#allocation2 + $0x1f8] sm:$0xff]
    %v3233 = vld [vmem:[#allocation2 + $0x200] sm:$0xff]
    %v3234 = vld [vmem:[#allocation2 + $0x210] sm:$0xff]
    %v3235 = vld [vmem:[#allocation2 + $0x218] sm:$0xff]
    %v3236 = vld [vmem:[#allocation2 + $0x228] sm:$0xff]
    %v3237 = vld [vmem:[#allocation2 + $0x230] sm:$0xff]
    %v3238 = vld [vmem:[#allocation2 + $0x240] sm:$0xff]
    %v3239 = vld [vmem:[#allocation2 + $0x248] sm:$0xff]
    %v3240 = vld [vmem:[#allocation2 + $0x258] sm:$0xff]
    %v3241 = vld [vmem:[#allocation2 + $0x260] sm:$0xff]
    %v3242 = vld [vmem:[#allocation2 + $0x270] sm:$0xff]
    %v3243 = vld [vmem:[#allocation2 + $0x278] sm:$0xff]
    %v3244 = vld [vmem:[#allocation2 + $0x288] sm:$0xff]
    %v3245 = vld [vmem:[#allocation2 + $0x290] sm:$0xff]
    %v3246 = vld [vmem:[#allocation2 + $0x2a0] sm:$0xff]
    %v3247 = vld [vmem:[#allocation2 + $0x2a8] sm:$0xff]
    %v3248 = vld [vmem:[#allocation2 + $0x2b8] sm:$0xff]
    %v3249 = vld [vmem:[#allocation2 + $0x2c0] sm:$0xff]
    %v3250 = vld [vmem:[#allocation2 + $0x2d0] sm:$0xff]
    %v3251 = vld [vmem:[#allocation2 + $0x2d8] sm:$0xff]
    %v3252 = vld [vmem:[#allocation2 + $0x2e8] sm:$0xff]
    %v3253 = vld [vmem:[#allocation2 + $0x2f0] sm:$0xff]
    %v3254 = vld [vmem:[#allocation2 + $0x300] sm:$0xff]
    %v3255 = vld [vmem:[#allocation2 + $0x308] sm:$0xff]
    %v3256 = vld [vmem:[#allocation2 + $0x318] sm:$0xff]
    %v3257 = vld [vmem:[#allocation2 + $0x320] sm:$0xff]
    %v3258 = vld [vmem:[#allocation2 + $0x1] sm:$0xff]
    %v3259 = vld [vmem:[#allocation2 + $0x9] sm:$0xff]
    %v3260 = vld [vmem:[#allocation2 + $0x19] sm:$0xff]
    %v3261 = vld [vmem:[#allocation2 + $0x21] sm:$0xff]
    %v3262 = vld [vmem:[#allocation2 + $0x31] sm:$0xff]
    %v3263 = vld [vmem:[#allocation2 + $0x39] sm:$0xff]
    %v3264 = vld [vmem:[#allocation2 + $0x49] sm:$0xff]
    %v3265 = vld [vmem:[#allocation2 + $0x51] sm:$0xff]
    %v3266 = vld [vmem:[#allocation2 + $0x61] sm:$0xff]
    %v3267 = vld [vmem:[#allocation2 + $0x69] sm:$0xff]
    %v3268 = vld [vmem:[#allocation2 + $0x79] sm:$0xff]
    %v3269 = vld [vmem:[#allocation2 + $0x81] sm:$0xff]
    %v3270 = vld [vmem:[#allocation2 + $0x91] sm:$0xff]
    %v3271 = vld [vmem:[#allocation2 + $0x99] sm:$0xff]
    %v3272 = vld [vmem:[#allocation2 + $0xa9] sm:$0xff]
    %v3273 = vld [vmem:[#allocation2 + $0xb1] sm:$0xff]
    %v3274 = vld [vmem:[#allocation2 + $0xc1] sm:$0xff]
    %v3275 = vld [vmem:[#allocation2 + $0xc9] sm:$0xff]
    %v3276 = vld [vmem:[#allocation2 + $0xd9] sm:$0xff]
    %v3277 = vld [vmem:[#allocation2 + $0xe1] sm:$0xff]
    %v3278 = vld [vmem:[#allocation2 + $0xf1] sm:$0xff]
    %v3279 = vld [vmem:[#allocation2 + $0xf9] sm:$0xff]
    %v3280 = vld [vmem:[#allocation2 + $0x109] sm:$0xff]
    %v3281 = vld [vmem:[#allocation2 + $0x111] sm:$0xff]
    %v3282 = vld [vmem:[#allocation2 + $0x121] sm:$0xff]
    %v3283 = vld [vmem:[#allocation2 + $0x129] sm:$0xff]
    %v3284 = vld [vmem:[#allocation2 + $0x139] sm:$0xff]
    %v3285 = vld [vmem:[#allocation2 + $0x141] sm:$0xff]
    %v3286 = vld [vmem:[#allocation2 + $0x151] sm:$0xff]
    %v3287 = vld [vmem:[#allocation2 + $0x159] sm:$0xff]
    %v3288 = vld [vmem:[#allocation2 + $0x169] sm:$0xff]
    %v3289 = vld [vmem:[#allocation2 + $0x171] sm:$0xff]
    %v3290 = vld [vmem:[#allocation2 + $0x1b1] sm:$0xff]
    %v3291 = vld [vmem:[#allocation2 + $0x1b9] sm:$0xff]
    %v3292 = vld [vmem:[#allocation2 + $0x1c9] sm:$0xff]
    %v3293 = vld [vmem:[#allocation2 + $0x1d1] sm:$0xff]
    %v3294 = vld [vmem:[#allocation2 + $0x1e1] sm:$0xff]
    %v3295 = vld [vmem:[#allocation2 + $0x1e9] sm:$0xff]
    %v3296 = vld [vmem:[#allocation2 + $0x1f9] sm:$0xff]
    %v3297 = vld [vmem:[#allocation2 + $0x201] sm:$0xff]
    %v3298 = vld [vmem:[#allocation2 + $0x211] sm:$0xff]
    %v3299 = vld [vmem:[#allocation2 + $0x219] sm:$0xff]
    %v3300 = vld [vmem:[#allocation2 + $0x229] sm:$0xff]
    %v3301 = vld [vmem:[#allocation2 + $0x231] sm:$0xff]
    %v3302 = vld [vmem:[#allocation2 + $0x241] sm:$0xff]
    %v3303 = vld [vmem:[#allocation2 + $0x249] sm:$0xff]
    %v3304 = vld [vmem:[#allocation2 + $0x259] sm:$0xff]
    %v3305 = vld [vmem:[#allocation2 + $0x261] sm:$0xff]
    %v3306 = vld [vmem:[#allocation2 + $0x271] sm:$0xff]
    %v3307 = vld [vmem:[#allocation2 + $0x279] sm:$0xff]
    %v3308 = vld [vmem:[#allocation2 + $0x289] sm:$0xff]
    %v3309 = vld [vmem:[#allocation2 + $0x291] sm:$0xff]
    %v3310 = vld [vmem:[#allocation2 + $0x2a1] sm:$0xff]
    %v3311 = vld [vmem:[#allocation2 + $0x2a9] sm:$0xff]
    %v3312 = vld [vmem:[#allocation2 + $0x2b9] sm:$0xff]
    %v3313 = vld [vmem:[#allocation2 + $0x2c1] sm:$0xff]
    %v3314 = vld [vmem:[#allocation2 + $0x2d1] sm:$0xff]
    %v3315 = vld [vmem:[#allocation2 + $0x2d9] sm:$0xff]
    %v3316 = vld [vmem:[#allocation2 + $0x2e9] sm:$0xff]
    %v3317 = vld [vmem:[#allocation2 + $0x2f1] sm:$0xff]
    %v3318 = vld [vmem:[#allocation2 + $0x301] sm:$0xff]
    %v3319 = vld [vmem:[#allocation2 + $0x309] sm:$0xff]
    %v3320 = vld [vmem:[#allocation2 + $0x319] sm:$0xff]
    %v3321 = vld [vmem:[#allocation2 + $0x321] sm:$0xff]
    %3322 = vrot.lane.b32.xlu0 %v3258, 4
    %v3323 = vpop.permute.xlu0 %3322
    %3324 = vrot.lane.b32.xlu0 %v3259, 4
    %v3325 = vpop.permute.xlu0 %3324
    %3326 = vrot.lane.b32.xlu0 %v3260, 4
    %v3327 = vpop.permute.xlu0 %3326
    %3328 = vrot.lane.b32.xlu0 %v3261, 4
    %v3329 = vpop.permute.xlu0 %3328
    %3330 = vrot.lane.b32.xlu0 %v3262, 4
    %v3331 = vpop.permute.xlu0 %3330
    %3332 = vrot.lane.b32.xlu0 %v3263, 4
    %v3333 = vpop.permute.xlu0 %3332
    %3334 = vrot.lane.b32.xlu0 %v3264, 4
    %v3335 = vpop.permute.xlu0 %3334
    %3336 = vrot.lane.b32.xlu0 %v3265, 4
    %v3337 = vpop.permute.xlu0 %3336
    %3338 = vrot.lane.b32.xlu0 %v3266, 4
    %v3339 = vpop.permute.xlu0 %3338
    %3340 = vrot.lane.b32.xlu0 %v3267, 4
    %v3341 = vpop.permute.xlu0 %3340
    %3342 = vrot.lane.b32.xlu0 %v3268, 4
    %v3343 = vpop.permute.xlu0 %3342
    %3344 = vrot.lane.b32.xlu0 %v3269, 4
    %v3345 = vpop.permute.xlu0 %3344
    %3346 = vrot.lane.b32.xlu0 %v3270, 4
    %v3347 = vpop.permute.xlu0 %3346
    %3348 = vrot.lane.b32.xlu0 %v3271, 4
    %v3349 = vpop.permute.xlu0 %3348
    %3350 = vrot.lane.b32.xlu0 %v3272, 4
    %v3351 = vpop.permute.xlu0 %3350
    %3352 = vrot.lane.b32.xlu0 %v3273, 4
    %v3353 = vpop.permute.xlu0 %3352
    %3354 = vrot.lane.b32.xlu0 %v3274, 4
    %v3355 = vpop.permute.xlu0 %3354
    %3356 = vrot.lane.b32.xlu0 %v3275, 4
    %v3357 = vpop.permute.xlu0 %3356
    %3358 = vrot.lane.b32.xlu0 %v3276, 4
    %v3359 = vpop.permute.xlu0 %3358
    %3360 = vrot.lane.b32.xlu0 %v3277, 4
    %v3361 = vpop.permute.xlu0 %3360
    %3362 = vrot.lane.b32.xlu0 %v3278, 4
    %v3363 = vpop.permute.xlu0 %3362
    %3364 = vrot.lane.b32.xlu0 %v3279, 4
    %v3365 = vpop.permute.xlu0 %3364
    %3366 = vrot.lane.b32.xlu0 %v3280, 4
    %v3367 = vpop.permute.xlu0 %3366
    %3368 = vrot.lane.b32.xlu0 %v3281, 4
    %v3369 = vpop.permute.xlu0 %3368
    %3370 = vrot.lane.b32.xlu0 %v3282, 4
    %v3371 = vpop.permute.xlu0 %3370
    %3372 = vrot.lane.b32.xlu0 %v3283, 4
    %v3373 = vpop.permute.xlu0 %3372
    %3374 = vrot.lane.b32.xlu0 %v3284, 4
    %v3375 = vpop.permute.xlu0 %3374
    %3376 = vrot.lane.b32.xlu0 %v3285, 4
    %v3377 = vpop.permute.xlu0 %3376
    %3378 = vrot.lane.b32.xlu0 %v3286, 4
    %v3379 = vpop.permute.xlu0 %3378
    %3380 = vrot.lane.b32.xlu0 %v3287, 4
    %v3381 = vpop.permute.xlu0 %3380
    %3382 = vrot.lane.b32.xlu0 %v3288, 4
    %v3383 = vpop.permute.xlu0 %3382
    %3384 = vrot.lane.b32.xlu0 %v3289, 4
    %v3385 = vpop.permute.xlu0 %3384
    %3386 = vrot.lane.b32.xlu0 %v3290, 4
    %v3387 = vpop.permute.xlu0 %3386
    %3388 = vrot.lane.b32.xlu0 %v3291, 4
    %v3389 = vpop.permute.xlu0 %3388
    %3390 = vrot.lane.b32.xlu0 %v3292, 4
    %v3391 = vpop.permute.xlu0 %3390
    %3392 = vrot.lane.b32.xlu0 %v3293, 4
    %v3393 = vpop.permute.xlu0 %3392
    %3394 = vrot.lane.b32.xlu0 %v3294, 4
    %v3395 = vpop.permute.xlu0 %3394
    %3396 = vrot.lane.b32.xlu0 %v3295, 4
    %v3397 = vpop.permute.xlu0 %3396
    %3398 = vrot.lane.b32.xlu0 %v3296, 4
    %v3399 = vpop.permute.xlu0 %3398
    %3400 = vrot.lane.b32.xlu0 %v3297, 4
    %v3401 = vpop.permute.xlu0 %3400
    %3402 = vrot.lane.b32.xlu0 %v3298, 4
    %v3403 = vpop.permute.xlu0 %3402
    %3404 = vrot.lane.b32.xlu0 %v3299, 4
    %v3405 = vpop.permute.xlu0 %3404
    %3406 = vrot.lane.b32.xlu0 %v3300, 4
    %v3407 = vpop.permute.xlu0 %3406
    %3408 = vrot.lane.b32.xlu0 %v3301, 4
    %v3409 = vpop.permute.xlu0 %3408
    %3410 = vrot.lane.b32.xlu0 %v3302, 4
    %v3411 = vpop.permute.xlu0 %3410
    %3412 = vrot.lane.b32.xlu0 %v3303, 4
    %v3413 = vpop.permute.xlu0 %3412
    %3414 = vrot.lane.b32.xlu0 %v3304, 4
    %v3415 = vpop.permute.xlu0 %3414
    %3416 = vrot.lane.b32.xlu0 %v3305, 4
    %v3417 = vpop.permute.xlu0 %3416
    %3418 = vrot.lane.b32.xlu0 %v3306, 4
    %v3419 = vpop.permute.xlu0 %3418
    %3420 = vrot.lane.b32.xlu0 %v3307, 4
    %v3421 = vpop.permute.xlu0 %3420
    %3422 = vrot.lane.b32.xlu0 %v3308, 4
    %v3423 = vpop.permute.xlu0 %3422
    %3424 = vrot.lane.b32.xlu0 %v3309, 4
    %v3425 = vpop.permute.xlu0 %3424
    %3426 = vrot.lane.b32.xlu0 %v3310, 4
    %v3427 = vpop.permute.xlu0 %3426
    %3428 = vrot.lane.b32.xlu0 %v3311, 4
    %v3429 = vpop.permute.xlu0 %3428
    %3430 = vrot.lane.b32.xlu0 %v3312, 4
    %v3431 = vpop.permute.xlu0 %3430
    %3432 = vrot.lane.b32.xlu0 %v3313, 4
    %v3433 = vpop.permute.xlu0 %3432
    %3434 = vrot.lane.b32.xlu0 %v3314, 4
    %v3435 = vpop.permute.xlu0 %3434
    %3436 = vrot.lane.b32.xlu0 %v3315, 4
    %v3437 = vpop.permute.xlu0 %3436
    %3438 = vrot.lane.b32.xlu0 %v3316, 4
    %v3439 = vpop.permute.xlu0 %3438
    %3440 = vrot.lane.b32.xlu0 %v3317, 4
    %v3441 = vpop.permute.xlu0 %3440
    %3442 = vrot.lane.b32.xlu0 %v3318, 4
    %v3443 = vpop.permute.xlu0 %3442
    %3444 = vrot.lane.b32.xlu0 %v3319, 4
    %v3445 = vpop.permute.xlu0 %3444
    %3446 = vrot.lane.b32.xlu0 %v3320, 4
    %v3447 = vpop.permute.xlu0 %3446
    %3448 = vrot.lane.b32.xlu0 %v3321, 4
    %v3449 = vpop.permute.xlu0 %3448
    %v3450 = vadd.f32 %v3194, %v3323
    %v3451 = vadd.f32 %v3195, %v3325
    %v3452 = vadd.f32 %v3196, %v3327
    %v3453 = vadd.f32 %v3197, %v3329
    %v3454 = vadd.f32 %v3198, %v3331
    %v3455 = vadd.f32 %v3199, %v3333
    %v3456 = vadd.f32 %v3200, %v3335
    %v3457 = vadd.f32 %v3201, %v3337
    %v3458 = vadd.f32 %v3202, %v3339
    %v3459 = vadd.f32 %v3203, %v3341
    %v3460 = vadd.f32 %v3204, %v3343
    %v3461 = vadd.f32 %v3205, %v3345
    %v3462 = vadd.f32 %v3206, %v3347
    %v3463 = vadd.f32 %v3207, %v3349
    %v3464 = vadd.f32 %v3208, %v3351
    %v3465 = vadd.f32 %v3209, %v3353
    %v3466 = vadd.f32 %v3210, %v3355
    %v3467 = vadd.f32 %v3211, %v3357
    %v3468 = vadd.f32 %v3212, %v3359
    %v3469 = vadd.f32 %v3213, %v3361
    %v3470 = vadd.f32 %v3214, %v3363
    %v3471 = vadd.f32 %v3215, %v3365
    %v3472 = vadd.f32 %v3216, %v3367
    %v3473 = vadd.f32 %v3217, %v3369
    %v3474 = vadd.f32 %v3218, %v3371
    %v3475 = vadd.f32 %v3219, %v3373
    %v3476 = vadd.f32 %v3220, %v3375
    %v3477 = vadd.f32 %v3221, %v3377
    %v3478 = vadd.f32 %v3222, %v3379
    %v3479 = vadd.f32 %v3223, %v3381
    %v3480 = vadd.f32 %v3224, %v3383
    %v3481 = vadd.f32 %v3225, %v3385
    %v3482 = vadd.f32 %v3226, %v3387
    %v3483 = vadd.f32 %v3227, %v3389
    %v3484 = vadd.f32 %v3228, %v3391
    %v3485 = vadd.f32 %v3229, %v3393
    %v3486 = vadd.f32 %v3230, %v3395
    %v3487 = vadd.f32 %v3231, %v3397
    %v3488 = vadd.f32 %v3232, %v3399
    %v3489 = vadd.f32 %v3233, %v3401
    %v3490 = vadd.f32 %v3234, %v3403
    %v3491 = vadd.f32 %v3235, %v3405
    %v3492 = vadd.f32 %v3236, %v3407
    %v3493 = vadd.f32 %v3237, %v3409
    %v3494 = vadd.f32 %v3238, %v3411
    %v3495 = vadd.f32 %v3239, %v3413
    %v3496 = vadd.f32 %v3240, %v3415
    %v3497 = vadd.f32 %v3241, %v3417
    %v3498 = vadd.f32 %v3242, %v3419
    %v3499 = vadd.f32 %v3243, %v3421
    %v3500 = vadd.f32 %v3244, %v3423
    %v3501 = vadd.f32 %v3245, %v3425
    %v3502 = vadd.f32 %v3246, %v3427
    %v3503 = vadd.f32 %v3247, %v3429
    %v3504 = vadd.f32 %v3248, %v3431
    %v3505 = vadd.f32 %v3249, %v3433
    %v3506 = vadd.f32 %v3250, %v3435
    %v3507 = vadd.f32 %v3251, %v3437
    %v3508 = vadd.f32 %v3252, %v3439
    %v3509 = vadd.f32 %v3253, %v3441
    %v3510 = vadd.f32 %v3254, %v3443
    %v3511 = vadd.f32 %v3255, %v3445
    %v3512 = vadd.f32 %v3256, %v3447
    %v3513 = vadd.f32 %v3257, %v3449
    %v3514 = vld [vmem:[#allocation2 + $0x2] sm:$0xff]
    %v3515 = vld [vmem:[#allocation2 + $0xa] sm:$0xff]
    %v3516 = vld [vmem:[#allocation2 + $0x1a] sm:$0xff]
    %v3517 = vld [vmem:[#allocation2 + $0x22] sm:$0xff]
    %v3518 = vld [vmem:[#allocation2 + $0x32] sm:$0xff]
    %v3519 = vld [vmem:[#allocation2 + $0x3a] sm:$0xff]
    %v3520 = vld [vmem:[#allocation2 + $0x4a] sm:$0xff]
    %v3521 = vld [vmem:[#allocation2 + $0x52] sm:$0xff]
    %v3522 = vld [vmem:[#allocation2 + $0x62] sm:$0xff]
    %v3523 = vld [vmem:[#allocation2 + $0x6a] sm:$0xff]
    %v3524 = vld [vmem:[#allocation2 + $0x7a] sm:$0xff]
    %v3525 = vld [vmem:[#allocation2 + $0x82] sm:$0xff]
    %v3526 = vld [vmem:[#allocation2 + $0x92] sm:$0xff]
    %v3527 = vld [vmem:[#allocation2 + $0x9a] sm:$0xff]
    %v3528 = vld [vmem:[#allocation2 + $0xaa] sm:$0xff]
    %v3529 = vld [vmem:[#allocation2 + $0xb2] sm:$0xff]
    %v3530 = vld [vmem:[#allocation2 + $0xc2] sm:$0xff]
    %v3531 = vld [vmem:[#allocation2 + $0xca] sm:$0xff]
    %v3532 = vld [vmem:[#allocation2 + $0xda] sm:$0xff]
    %v3533 = vld [vmem:[#allocation2 + $0xe2] sm:$0xff]
    %v3534 = vld [vmem:[#allocation2 + $0xf2] sm:$0xff]
    %v3535 = vld [vmem:[#allocation2 + $0xfa] sm:$0xff]
    %v3536 = vld [vmem:[#allocation2 + $0x10a] sm:$0xff]
    %v3537 = vld [vmem:[#allocation2 + $0x112] sm:$0xff]
    %v3538 = vld [vmem:[#allocation2 + $0x122] sm:$0xff]
    %v3539 = vld [vmem:[#allocation2 + $0x12a] sm:$0xff]
    %v3540 = vld [vmem:[#allocation2 + $0x13a] sm:$0xff]
    %v3541 = vld [vmem:[#allocation2 + $0x142] sm:$0xff]
    %v3542 = vld [vmem:[#allocation2 + $0x152] sm:$0xff]
    %v3543 = vld [vmem:[#allocation2 + $0x15a] sm:$0xff]
    %v3544 = vld [vmem:[#allocation2 + $0x16a] sm:$0xff]
    %v3545 = vld [vmem:[#allocation2 + $0x172] sm:$0xff]
    %v3546 = vld [vmem:[#allocation2 + $0x1b2] sm:$0xff]
    %v3547 = vld [vmem:[#allocation2 + $0x1ba] sm:$0xff]
    %v3548 = vld [vmem:[#allocation2 + $0x1ca] sm:$0xff]
    %v3549 = vld [vmem:[#allocation2 + $0x1d2] sm:$0xff]
    %v3550 = vld [vmem:[#allocation2 + $0x1e2] sm:$0xff]
    %v3551 = vld [vmem:[#allocation2 + $0x1ea] sm:$0xff]
    %v3552 = vld [vmem:[#allocation2 + $0x1fa] sm:$0xff]
    %v3553 = vld [vmem:[#allocation2 + $0x202] sm:$0xff]
    %v3554 = vld [vmem:[#allocation2 + $0x212] sm:$0xff]
    %v3555 = vld [vmem:[#allocation2 + $0x21a] sm:$0xff]
    %v3556 = vld [vmem:[#allocation2 + $0x22a] sm:$0xff]
    %v3557 = vld [vmem:[#allocation2 + $0x232] sm:$0xff]
    %v3558 = vld [vmem:[#allocation2 + $0x242] sm:$0xff]
    %v3559 = vld [vmem:[#allocation2 + $0x24a] sm:$0xff]
    %v3560 = vld [vmem:[#allocation2 + $0x25a] sm:$0xff]
    %v3561 = vld [vmem:[#allocation2 + $0x262] sm:$0xff]
    %v3562 = vld [vmem:[#allocation2 + $0x272] sm:$0xff]
    %v3563 = vld [vmem:[#allocation2 + $0x27a] sm:$0xff]
    %v3564 = vld [vmem:[#allocation2 + $0x28a] sm:$0xff]
    %v3565 = vld [vmem:[#allocation2 + $0x292] sm:$0xff]
    %v3566 = vld [vmem:[#allocation2 + $0x2a2] sm:$0xff]
    %v3567 = vld [vmem:[#allocation2 + $0x2aa] sm:$0xff]
    %v3568 = vld [vmem:[#allocation2 + $0x2ba] sm:$0xff]
    %v3569 = vld [vmem:[#allocation2 + $0x2c2] sm:$0xff]
    %v3570 = vld [vmem:[#allocation2 + $0x2d2] sm:$0xff]
    %v3571 = vld [vmem:[#allocation2 + $0x2da] sm:$0xff]
    %v3572 = vld [vmem:[#allocation2 + $0x2ea] sm:$0xff]
    %v3573 = vld [vmem:[#allocation2 + $0x2f2] sm:$0xff]
    %v3574 = vld [vmem:[#allocation2 + $0x302] sm:$0xff]
    %v3575 = vld [vmem:[#allocation2 + $0x30a] sm:$0xff]
    %v3576 = vld [vmem:[#allocation2 + $0x31a] sm:$0xff]
    %v3577 = vld [vmem:[#allocation2 + $0x322] sm:$0xff]
    %3578 = vrot.lane.b32.xlu0 %v3514, 8
    %v3579 = vpop.permute.xlu0 %3578
    %3580 = vrot.lane.b32.xlu0 %v3515, 8
    %v3581 = vpop.permute.xlu0 %3580
    %3582 = vrot.lane.b32.xlu0 %v3516, 8
    %v3583 = vpop.permute.xlu0 %3582
    %3584 = vrot.lane.b32.xlu0 %v3517, 8
    %v3585 = vpop.permute.xlu0 %3584
    %3586 = vrot.lane.b32.xlu0 %v3518, 8
    %v3587 = vpop.permute.xlu0 %3586
    %3588 = vrot.lane.b32.xlu0 %v3519, 8
    %v3589 = vpop.permute.xlu0 %3588
    %3590 = vrot.lane.b32.xlu0 %v3520, 8
    %v3591 = vpop.permute.xlu0 %3590
    %3592 = vrot.lane.b32.xlu0 %v3521, 8
    %v3593 = vpop.permute.xlu0 %3592
    %3594 = vrot.lane.b32.xlu0 %v3522, 8
    %v3595 = vpop.permute.xlu0 %3594
    %3596 = vrot.lane.b32.xlu0 %v3523, 8
    %v3597 = vpop.permute.xlu0 %3596
    %3598 = vrot.lane.b32.xlu0 %v3524, 8
    %v3599 = vpop.permute.xlu0 %3598
    %3600 = vrot.lane.b32.xlu0 %v3525, 8
    %v3601 = vpop.permute.xlu0 %3600
    %3602 = vrot.lane.b32.xlu0 %v3526, 8
    %v3603 = vpop.permute.xlu0 %3602
    %3604 = vrot.lane.b32.xlu0 %v3527, 8
    %v3605 = vpop.permute.xlu0 %3604
    %3606 = vrot.lane.b32.xlu0 %v3528, 8
    %v3607 = vpop.permute.xlu0 %3606
    %3608 = vrot.lane.b32.xlu0 %v3529, 8
    %v3609 = vpop.permute.xlu0 %3608
    %3610 = vrot.lane.b32.xlu0 %v3530, 8
    %v3611 = vpop.permute.xlu0 %3610
    %3612 = vrot.lane.b32.xlu0 %v3531, 8
    %v3613 = vpop.permute.xlu0 %3612
    %3614 = vrot.lane.b32.xlu0 %v3532, 8
    %v3615 = vpop.permute.xlu0 %3614
    %3616 = vrot.lane.b32.xlu0 %v3533, 8
    %v3617 = vpop.permute.xlu0 %3616
    %3618 = vrot.lane.b32.xlu0 %v3534, 8
    %v3619 = vpop.permute.xlu0 %3618
    %3620 = vrot.lane.b32.xlu0 %v3535, 8
    %v3621 = vpop.permute.xlu0 %3620
    %3622 = vrot.lane.b32.xlu0 %v3536, 8
    %v3623 = vpop.permute.xlu0 %3622
    %3624 = vrot.lane.b32.xlu0 %v3537, 8
    %v3625 = vpop.permute.xlu0 %3624
    %3626 = vrot.lane.b32.xlu0 %v3538, 8
    %v3627 = vpop.permute.xlu0 %3626
    %3628 = vrot.lane.b32.xlu0 %v3539, 8
    %v3629 = vpop.permute.xlu0 %3628
    %3630 = vrot.lane.b32.xlu0 %v3540, 8
    %v3631 = vpop.permute.xlu0 %3630
    %3632 = vrot.lane.b32.xlu0 %v3541, 8
    %v3633 = vpop.permute.xlu0 %3632
    %3634 = vrot.lane.b32.xlu0 %v3542, 8
    %v3635 = vpop.permute.xlu0 %3634
    %3636 = vrot.lane.b32.xlu0 %v3543, 8
    %v3637 = vpop.permute.xlu0 %3636
    %3638 = vrot.lane.b32.xlu0 %v3544, 8
    %v3639 = vpop.permute.xlu0 %3638
    %3640 = vrot.lane.b32.xlu0 %v3545, 8
    %v3641 = vpop.permute.xlu0 %3640
    %3642 = vrot.lane.b32.xlu0 %v3546, 8
    %v3643 = vpop.permute.xlu0 %3642
    %3644 = vrot.lane.b32.xlu0 %v3547, 8
    %v3645 = vpop.permute.xlu0 %3644
    %3646 = vrot.lane.b32.xlu0 %v3548, 8
    %v3647 = vpop.permute.xlu0 %3646
    %3648 = vrot.lane.b32.xlu0 %v3549, 8
    %v3649 = vpop.permute.xlu0 %3648
    %3650 = vrot.lane.b32.xlu0 %v3550, 8
    %v3651 = vpop.permute.xlu0 %3650
    %3652 = vrot.lane.b32.xlu0 %v3551, 8
    %v3653 = vpop.permute.xlu0 %3652
    %3654 = vrot.lane.b32.xlu0 %v3552, 8
    %v3655 = vpop.permute.xlu0 %3654
    %3656 = vrot.lane.b32.xlu0 %v3553, 8
    %v3657 = vpop.permute.xlu0 %3656
    %3658 = vrot.lane.b32.xlu0 %v3554, 8
    %v3659 = vpop.permute.xlu0 %3658
    %3660 = vrot.lane.b32.xlu0 %v3555, 8
    %v3661 = vpop.permute.xlu0 %3660
    %3662 = vrot.lane.b32.xlu0 %v3556, 8
    %v3663 = vpop.permute.xlu0 %3662
    %3664 = vrot.lane.b32.xlu0 %v3557, 8
    %v3665 = vpop.permute.xlu0 %3664
    %3666 = vrot.lane.b32.xlu0 %v3558, 8
    %v3667 = vpop.permute.xlu0 %3666
    %3668 = vrot.lane.b32.xlu0 %v3559, 8
    %v3669 = vpop.permute.xlu0 %3668
    %3670 = vrot.lane.b32.xlu0 %v3560, 8
    %v3671 = vpop.permute.xlu0 %3670
    %3672 = vrot.lane.b32.xlu0 %v3561, 8
    %v3673 = vpop.permute.xlu0 %3672
    %3674 = vrot.lane.b32.xlu0 %v3562, 8
    %v3675 = vpop.permute.xlu0 %3674
    %3676 = vrot.lane.b32.xlu0 %v3563, 8
    %v3677 = vpop.permute.xlu0 %3676
    %3678 = vrot.lane.b32.xlu0 %v3564, 8
    %v3679 = vpop.permute.xlu0 %3678
    %3680 = vrot.lane.b32.xlu0 %v3565, 8
    %v3681 = vpop.permute.xlu0 %3680
    %3682 = vrot.lane.b32.xlu0 %v3566, 8
    %v3683 = vpop.permute.xlu0 %3682
    %3684 = vrot.lane.b32.xlu0 %v3567, 8
    %v3685 = vpop.permute.xlu0 %3684
    %3686 = vrot.lane.b32.xlu0 %v3568, 8
    %v3687 = vpop.permute.xlu0 %3686
    %3688 = vrot.lane.b32.xlu0 %v3569, 8
    %v3689 = vpop.permute.xlu0 %3688
    %3690 = vrot.lane.b32.xlu0 %v3570, 8
    %v3691 = vpop.permute.xlu0 %3690
    %3692 = vrot.lane.b32.xlu0 %v3571, 8
    %v3693 = vpop.permute.xlu0 %3692
    %3694 = vrot.lane.b32.xlu0 %v3572, 8
    %v3695 = vpop.permute.xlu0 %3694
    %3696 = vrot.lane.b32.xlu0 %v3573, 8
    %v3697 = vpop.permute.xlu0 %3696
    %3698 = vrot.lane.b32.xlu0 %v3574, 8
    %v3699 = vpop.permute.xlu0 %3698
    %3700 = vrot.lane.b32.xlu0 %v3575, 8
    %v3701 = vpop.permute.xlu0 %3700
    %3702 = vrot.lane.b32.xlu0 %v3576, 8
    %v3703 = vpop.permute.xlu0 %3702
    %3704 = vrot.lane.b32.xlu0 %v3577, 8
    %v3705 = vpop.permute.xlu0 %3704
    %v3706 = vadd.f32 %v3450, %v3579
    %v3707 = vadd.f32 %v3451, %v3581
    %v3708 = vadd.f32 %v3452, %v3583
    %v3709 = vadd.f32 %v3453, %v3585
    %v3710 = vadd.f32 %v3454, %v3587
    %v3711 = vadd.f32 %v3455, %v3589
    %v3712 = vadd.f32 %v3456, %v3591
    %v3713 = vadd.f32 %v3457, %v3593
    %v3714 = vadd.f32 %v3458, %v3595
    %v3715 = vadd.f32 %v3459, %v3597
    %v3716 = vadd.f32 %v3460, %v3599
    %v3717 = vadd.f32 %v3461, %v3601
    %v3718 = vadd.f32 %v3462, %v3603
    %v3719 = vadd.f32 %v3463, %v3605
    %v3720 = vadd.f32 %v3464, %v3607
    %v3721 = vadd.f32 %v3465, %v3609
    %v3722 = vadd.f32 %v3466, %v3611
    %v3723 = vadd.f32 %v3467, %v3613
    %v3724 = vadd.f32 %v3468, %v3615
    %v3725 = vadd.f32 %v3469, %v3617
    %v3726 = vadd.f32 %v3470, %v3619
    %v3727 = vadd.f32 %v3471, %v3621
    %v3728 = vadd.f32 %v3472, %v3623
    %v3729 = vadd.f32 %v3473, %v3625
    %v3730 = vadd.f32 %v3474, %v3627
    %v3731 = vadd.f32 %v3475, %v3629
    %v3732 = vadd.f32 %v3476, %v3631
    %v3733 = vadd.f32 %v3477, %v3633
    %v3734 = vadd.f32 %v3478, %v3635
    %v3735 = vadd.f32 %v3479, %v3637
    %v3736 = vadd.f32 %v3480, %v3639
    %v3737 = vadd.f32 %v3481, %v3641
    %v3738 = vadd.f32 %v3482, %v3643
    %v3739 = vadd.f32 %v3483, %v3645
    %v3740 = vadd.f32 %v3484, %v3647
    %v3741 = vadd.f32 %v3485, %v3649
    %v3742 = vadd.f32 %v3486, %v3651
    %v3743 = vadd.f32 %v3487, %v3653
    %v3744 = vadd.f32 %v3488, %v3655
    %v3745 = vadd.f32 %v3489, %v3657
    %v3746 = vadd.f32 %v3490, %v3659
    %v3747 = vadd.f32 %v3491, %v3661
    %v3748 = vadd.f32 %v3492, %v3663
    %v3749 = vadd.f32 %v3493, %v3665
    %v3750 = vadd.f32 %v3494, %v3667
    %v3751 = vadd.f32 %v3495, %v3669
    %v3752 = vadd.f32 %v3496, %v3671
    %v3753 = vadd.f32 %v3497, %v3673
    %v3754 = vadd.f32 %v3498, %v3675
    %v3755 = vadd.f32 %v3499, %v3677
    %v3756 = vadd.f32 %v3500, %v3679
    %v3757 = vadd.f32 %v3501, %v3681
    %v3758 = vadd.f32 %v3502, %v3683
    %v3759 = vadd.f32 %v3503, %v3685
    %v3760 = vadd.f32 %v3504, %v3687
    %v3761 = vadd.f32 %v3505, %v3689
    %v3762 = vadd.f32 %v3506, %v3691
    %v3763 = vadd.f32 %v3507, %v3693
    %v3764 = vadd.f32 %v3508, %v3695
    %v3765 = vadd.f32 %v3509, %v3697
    %v3766 = vadd.f32 %v3510, %v3699
    %v3767 = vadd.f32 %v3511, %v3701
    %v3768 = vadd.f32 %v3512, %v3703
    %v3769 = vadd.f32 %v3513, %v3705
    %v3770 = vld [vmem:[%s3065] sm:$0xff]
    %v3771 = vld [vmem:[%s3065 + $0x8] sm:$0xff]
    %v3772 = vld [vmem:[%s3065 + $0x18] sm:$0xff]
    %v3773 = vld [vmem:[%s3065 + $0x20] sm:$0xff]
    %v3774 = vld [vmem:[%s3065 + $0x30] sm:$0xff]
    %v3775 = vld [vmem:[%s3065 + $0x38] sm:$0xff]
    %v3776 = vld [vmem:[%s3065 + $0x48] sm:$0xff]
    %v3777 = vld [vmem:[%s3065 + $0x50] sm:$0xff]
    %v3778 = vld [vmem:[%s3065 + $0x60] sm:$0xff]
    %v3779 = vld [vmem:[%s3065 + $0x68] sm:$0xff]
    %v3780 = vld [vmem:[%s3065 + $0x78] sm:$0xff]
    %v3781 = vld [vmem:[%s3065 + $0x80] sm:$0xff]
    %v3782 = vld [vmem:[%s3065 + $0x90] sm:$0xff]
    %v3783 = vld [vmem:[%s3065 + $0x98] sm:$0xff]
    %v3784 = vld [vmem:[%s3065 + $0xa8] sm:$0xff]
    %v3785 = vld [vmem:[%s3065 + $0xb0] sm:$0xff]
    %v3786 = vld [vmem:[%s3065 + $0xc0] sm:$0xff]
    %v3787 = vld [vmem:[%s3065 + $0xc8] sm:$0xff]
    %v3788 = vld [vmem:[%s3065 + $0xd8] sm:$0xff]
    %v3789 = vld [vmem:[%s3065 + $0xe0] sm:$0xff]
    %v3790 = vld [vmem:[%s3065 + $0xf0] sm:$0xff]
    %v3791 = vld [vmem:[%s3065 + $0xf8] sm:$0xff]
    %v3792 = vld [vmem:[%s3065 + $0x108] sm:$0xff]
    %v3793 = vld [vmem:[%s3065 + $0x110] sm:$0xff]
    %v3794 = vld [vmem:[%s3065 + $0x120] sm:$0xff]
    %v3795 = vld [vmem:[%s3065 + $0x128] sm:$0xff]
    %v3796 = vld [vmem:[%s3065 + $0x138] sm:$0xff]
    %v3797 = vld [vmem:[%s3065 + $0x140] sm:$0xff]
    %v3798 = vld [vmem:[%s3065 + $0x150] sm:$0xff]
    %v3799 = vld [vmem:[%s3065 + $0x158] sm:$0xff]
    %v3800 = vld [vmem:[%s3065 + $0x168] sm:$0xff]
    %v3801 = vld [vmem:[%s3065 + $0x170] sm:$0xff]
    %v3802 = vld [vmem:[%s3065 + $0x1b0] sm:$0xff]
    %v3803 = vld [vmem:[%s3065 + $0x1b8] sm:$0xff]
    %v3804 = vld [vmem:[%s3065 + $0x1c8] sm:$0xff]
    %v3805 = vld [vmem:[%s3065 + $0x1d0] sm:$0xff]
    %v3806 = vld [vmem:[%s3065 + $0x1e0] sm:$0xff]
    %v3807 = vld [vmem:[%s3065 + $0x1e8] sm:$0xff]
    %v3808 = vld [vmem:[%s3065 + $0x1f8] sm:$0xff]
    %v3809 = vld [vmem:[%s3065 + $0x200] sm:$0xff]
    %v3810 = vld [vmem:[%s3065 + $0x210] sm:$0xff]
    %v3811 = vld [vmem:[%s3065 + $0x218] sm:$0xff]
    %v3812 = vld [vmem:[%s3065 + $0x228] sm:$0xff]
    %v3813 = vld [vmem:[%s3065 + $0x230] sm:$0xff]
    %v3814 = vld [vmem:[%s3065 + $0x240] sm:$0xff]
    %v3815 = vld [vmem:[%s3065 + $0x248] sm:$0xff]
    %v3816 = vld [vmem:[%s3065 + $0x258] sm:$0xff]
    %v3817 = vld [vmem:[%s3065 + $0x260] sm:$0xff]
    %v3818 = vld [vmem:[%s3065 + $0x270] sm:$0xff]
    %v3819 = vld [vmem:[%s3065 + $0x278] sm:$0xff]
    %v3820 = vld [vmem:[%s3065 + $0x288] sm:$0xff]
    %v3821 = vld [vmem:[%s3065 + $0x290] sm:$0xff]
    %v3822 = vld [vmem:[%s3065 + $0x2a0] sm:$0xff]
    %v3823 = vld [vmem:[%s3065 + $0x2a8] sm:$0xff]
    %v3824 = vld [vmem:[%s3065 + $0x2b8] sm:$0xff]
    %v3825 = vld [vmem:[%s3065 + $0x2c0] sm:$0xff]
    %v3826 = vld [vmem:[%s3065 + $0x2d0] sm:$0xff]
    %v3827 = vld [vmem:[%s3065 + $0x2d8] sm:$0xff]
    %v3828 = vld [vmem:[%s3065 + $0x2e8] sm:$0xff]
    %v3829 = vld [vmem:[%s3065 + $0x2f0] sm:$0xff]
    %v3830 = vld [vmem:[%s3065 + $0x300] sm:$0xff]
    %v3831 = vld [vmem:[%s3065 + $0x308] sm:$0xff]
    %v3832 = vld [vmem:[%s3065 + $0x318] sm:$0xff]
    %v3833 = vld [vmem:[%s3065 + $0x320] sm:$0xff]
    %3834 = vrot.lane.b32.xlu0 %v3770, 12
    %v3835 = vpop.permute.xlu0 %3834
    %3836 = vrot.lane.b32.xlu0 %v3771, 12
    %v3837 = vpop.permute.xlu0 %3836
    %3838 = vrot.lane.b32.xlu0 %v3772, 12
    %v3839 = vpop.permute.xlu0 %3838
    %3840 = vrot.lane.b32.xlu0 %v3773, 12
    %v3841 = vpop.permute.xlu0 %3840
    %3842 = vrot.lane.b32.xlu0 %v3774, 12
    %v3843 = vpop.permute.xlu0 %3842
    %3844 = vrot.lane.b32.xlu0 %v3775, 12
    %v3845 = vpop.permute.xlu0 %3844
    %3846 = vrot.lane.b32.xlu0 %v3776, 12
    %v3847 = vpop.permute.xlu0 %3846
    %3848 = vrot.lane.b32.xlu0 %v3777, 12
    %v3849 = vpop.permute.xlu0 %3848
    %3850 = vrot.lane.b32.xlu0 %v3778, 12
    %v3851 = vpop.permute.xlu0 %3850
    %3852 = vrot.lane.b32.xlu0 %v3779, 12
    %v3853 = vpop.permute.xlu0 %3852
    %3854 = vrot.lane.b32.xlu0 %v3780, 12
    %v3855 = vpop.permute.xlu0 %3854
    %3856 = vrot.lane.b32.xlu0 %v3781, 12
    %v3857 = vpop.permute.xlu0 %3856
    %3858 = vrot.lane.b32.xlu0 %v3782, 12
    %v3859 = vpop.permute.xlu0 %3858
    %3860 = vrot.lane.b32.xlu0 %v3783, 12
    %v3861 = vpop.permute.xlu0 %3860
    %3862 = vrot.lane.b32.xlu0 %v3784, 12
    %v3863 = vpop.permute.xlu0 %3862
    %3864 = vrot.lane.b32.xlu0 %v3785, 12
    %v3865 = vpop.permute.xlu0 %3864
    %3866 = vrot.lane.b32.xlu0 %v3786, 12
    %v3867 = vpop.permute.xlu0 %3866
    %3868 = vrot.lane.b32.xlu0 %v3787, 12
    %v3869 = vpop.permute.xlu0 %3868
    %3870 = vrot.lane.b32.xlu0 %v3788, 12
    %v3871 = vpop.permute.xlu0 %3870
    %3872 = vrot.lane.b32.xlu0 %v3789, 12
    %v3873 = vpop.permute.xlu0 %3872
    %3874 = vrot.lane.b32.xlu0 %v3790, 12
    %v3875 = vpop.permute.xlu0 %3874
    %3876 = vrot.lane.b32.xlu0 %v3791, 12
    %v3877 = vpop.permute.xlu0 %3876
    %3878 = vrot.lane.b32.xlu0 %v3792, 12
    %v3879 = vpop.permute.xlu0 %3878
    %3880 = vrot.lane.b32.xlu0 %v3793, 12
    %v3881 = vpop.permute.xlu0 %3880
    %3882 = vrot.lane.b32.xlu0 %v3794, 12
    %v3883 = vpop.permute.xlu0 %3882
    %3884 = vrot.lane.b32.xlu0 %v3795, 12
    %v3885 = vpop.permute.xlu0 %3884
    %3886 = vrot.lane.b32.xlu0 %v3796, 12
    %v3887 = vpop.permute.xlu0 %3886
    %3888 = vrot.lane.b32.xlu0 %v3797, 12
    %v3889 = vpop.permute.xlu0 %3888
    %3890 = vrot.lane.b32.xlu0 %v3798, 12
    %v3891 = vpop.permute.xlu0 %3890
    %3892 = vrot.lane.b32.xlu0 %v3799, 12
    %v3893 = vpop.permute.xlu0 %3892
    %3894 = vrot.lane.b32.xlu0 %v3800, 12
    %v3895 = vpop.permute.xlu0 %3894
    %3896 = vrot.lane.b32.xlu0 %v3801, 12
    %v3897 = vpop.permute.xlu0 %3896
    %3898 = vrot.lane.b32.xlu0 %v3802, 12
    %v3899 = vpop.permute.xlu0 %3898
    %3900 = vrot.lane.b32.xlu0 %v3803, 12
    %v3901 = vpop.permute.xlu0 %3900
    %3902 = vrot.lane.b32.xlu0 %v3804, 12
    %v3903 = vpop.permute.xlu0 %3902
    %3904 = vrot.lane.b32.xlu0 %v3805, 12
    %v3905 = vpop.permute.xlu0 %3904
    %3906 = vrot.lane.b32.xlu0 %v3806, 12
    %v3907 = vpop.permute.xlu0 %3906
    %3908 = vrot.lane.b32.xlu0 %v3807, 12
    %v3909 = vpop.permute.xlu0 %3908
    %3910 = vrot.lane.b32.xlu0 %v3808, 12
    %v3911 = vpop.permute.xlu0 %3910
    %3912 = vrot.lane.b32.xlu0 %v3809, 12
    %v3913 = vpop.permute.xlu0 %3912
    %3914 = vrot.lane.b32.xlu0 %v3810, 12
    %v3915 = vpop.permute.xlu0 %3914
    %3916 = vrot.lane.b32.xlu0 %v3811, 12
    %v3917 = vpop.permute.xlu0 %3916
    %3918 = vrot.lane.b32.xlu0 %v3812, 12
    %v3919 = vpop.permute.xlu0 %3918
    %3920 = vrot.lane.b32.xlu0 %v3813, 12
    %v3921 = vpop.permute.xlu0 %3920
    %3922 = vrot.lane.b32.xlu0 %v3814, 12
    %v3923 = vpop.permute.xlu0 %3922
    %3924 = vrot.lane.b32.xlu0 %v3815, 12
    %v3925 = vpop.permute.xlu0 %3924
    %3926 = vrot.lane.b32.xlu0 %v3816, 12
    %v3927 = vpop.permute.xlu0 %3926
    %3928 = vrot.lane.b32.xlu0 %v3817, 12
    %v3929 = vpop.permute.xlu0 %3928
    %3930 = vrot.lane.b32.xlu0 %v3818, 12
    %v3931 = vpop.permute.xlu0 %3930
    %3932 = vrot.lane.b32.xlu0 %v3819, 12
    %v3933 = vpop.permute.xlu0 %3932
    %3934 = vrot.lane.b32.xlu0 %v3820, 12
    %v3935 = vpop.permute.xlu0 %3934
    %3936 = vrot.lane.b32.xlu0 %v3821, 12
    %v3937 = vpop.permute.xlu0 %3936
    %3938 = vrot.lane.b32.xlu0 %v3822, 12
    %v3939 = vpop.permute.xlu0 %3938
    %3940 = vrot.lane.b32.xlu0 %v3823, 12
    %v3941 = vpop.permute.xlu0 %3940
    %3942 = vrot.lane.b32.xlu0 %v3824, 12
    %v3943 = vpop.permute.xlu0 %3942
    %3944 = vrot.lane.b32.xlu0 %v3825, 12
    %v3945 = vpop.permute.xlu0 %3944
    %3946 = vrot.lane.b32.xlu0 %v3826, 12
    %v3947 = vpop.permute.xlu0 %3946
    %3948 = vrot.lane.b32.xlu0 %v3827, 12
    %v3949 = vpop.permute.xlu0 %3948
    %3950 = vrot.lane.b32.xlu0 %v3828, 12
    %v3951 = vpop.permute.xlu0 %3950
    %3952 = vrot.lane.b32.xlu0 %v3829, 12
    %v3953 = vpop.permute.xlu0 %3952
    %3954 = vrot.lane.b32.xlu0 %v3830, 12
    %v3955 = vpop.permute.xlu0 %3954
    %3956 = vrot.lane.b32.xlu0 %v3831, 12
    %v3957 = vpop.permute.xlu0 %3956
    %3958 = vrot.lane.b32.xlu0 %v3832, 12
    %v3959 = vpop.permute.xlu0 %3958
    %3960 = vrot.lane.b32.xlu0 %v3833, 12
    %v3961 = vpop.permute.xlu0 %3960
    %v3962 = vadd.f32 %v3706, %v3835
    %v3963 = vadd.f32 %v3707, %v3837
    %v3964 = vadd.f32 %v3708, %v3839
    %v3965 = vadd.f32 %v3709, %v3841
    %v3966 = vadd.f32 %v3710, %v3843
    %v3967 = vadd.f32 %v3711, %v3845
    %v3968 = vadd.f32 %v3712, %v3847
    %v3969 = vadd.f32 %v3713, %v3849
    %v3970 = vadd.f32 %v3714, %v3851
    %v3971 = vadd.f32 %v3715, %v3853
    %v3972 = vadd.f32 %v3716, %v3855
    %v3973 = vadd.f32 %v3717, %v3857
    %v3974 = vadd.f32 %v3718, %v3859
    %v3975 = vadd.f32 %v3719, %v3861
    %v3976 = vadd.f32 %v3720, %v3863
    %v3977 = vadd.f32 %v3721, %v3865
    %v3978 = vadd.f32 %v3722, %v3867
    %v3979 = vadd.f32 %v3723, %v3869
    %v3980 = vadd.f32 %v3724, %v3871
    %v3981 = vadd.f32 %v3725, %v3873
    %v3982 = vadd.f32 %v3726, %v3875
    %v3983 = vadd.f32 %v3727, %v3877
    %v3984 = vadd.f32 %v3728, %v3879
    %v3985 = vadd.f32 %v3729, %v3881
    %v3986 = vadd.f32 %v3730, %v3883
    %v3987 = vadd.f32 %v3731, %v3885
    %v3988 = vadd.f32 %v3732, %v3887
    %v3989 = vadd.f32 %v3733, %v3889
    %v3990 = vadd.f32 %v3734, %v3891
    %v3991 = vadd.f32 %v3735, %v3893
    %v3992 = vadd.f32 %v3736, %v3895
    %v3993 = vadd.f32 %v3737, %v3897
    %v3994 = vadd.f32 %v3738, %v3899
    %v3995 = vadd.f32 %v3739, %v3901
    %v3996 = vadd.f32 %v3740, %v3903
    %v3997 = vadd.f32 %v3741, %v3905
    %v3998 = vadd.f32 %v3742, %v3907
    %v3999 = vadd.f32 %v3743, %v3909
    %v4000 = vadd.f32 %v3744, %v3911
    %v4001 = vadd.f32 %v3745, %v3913
    %v4002 = vadd.f32 %v3746, %v3915
    %v4003 = vadd.f32 %v3747, %v3917
    %v4004 = vadd.f32 %v3748, %v3919
    %v4005 = vadd.f32 %v3749, %v3921
    %v4006 = vadd.f32 %v3750, %v3923
    %v4007 = vadd.f32 %v3751, %v3925
    %v4008 = vadd.f32 %v3752, %v3927
    %v4009 = vadd.f32 %v3753, %v3929
    %v4010 = vadd.f32 %v3754, %v3931
    %v4011 = vadd.f32 %v3755, %v3933
    %v4012 = vadd.f32 %v3756, %v3935
    %v4013 = vadd.f32 %v3757, %v3937
    %v4014 = vadd.f32 %v3758, %v3939
    %v4015 = vadd.f32 %v3759, %v3941
    %v4016 = vadd.f32 %v3760, %v3943
    %v4017 = vadd.f32 %v3761, %v3945
    %v4018 = vadd.f32 %v3762, %v3947
    %v4019 = vadd.f32 %v3763, %v3949
    %v4020 = vadd.f32 %v3764, %v3951
    %v4021 = vadd.f32 %v3765, %v3953
    %v4022 = vadd.f32 %v3766, %v3955
    %v4023 = vadd.f32 %v3767, %v3957
    %v4024 = vadd.f32 %v3768, %v3959
    %v4025 = vadd.f32 %v3769, %v3961
    %v4026 = vld [vmem:[%s3065 + $0x1] sm:$0xff]
    %v4027 = vld [vmem:[%s3065 + $0x9] sm:$0xff]
    %v4028 = vld [vmem:[%s3065 + $0x19] sm:$0xff]
    %v4029 = vld [vmem:[%s3065 + $0x21] sm:$0xff]
    %v4030 = vld [vmem:[%s3065 + $0x31] sm:$0xff]
    %v4031 = vld [vmem:[%s3065 + $0x39] sm:$0xff]
    %v4032 = vld [vmem:[%s3065 + $0x49] sm:$0xff]
    %v4033 = vld [vmem:[%s3065 + $0x51] sm:$0xff]
    %v4034 = vld [vmem:[%s3065 + $0x61] sm:$0xff]
    %v4035 = vld [vmem:[%s3065 + $0x69] sm:$0xff]
    %v4036 = vld [vmem:[%s3065 + $0x79] sm:$0xff]
    %v4037 = vld [vmem:[%s3065 + $0x81] sm:$0xff]
    %v4038 = vld [vmem:[%s3065 + $0x91] sm:$0xff]
    %v4039 = vld [vmem:[%s3065 + $0x99] sm:$0xff]
    %v4040 = vld [vmem:[%s3065 + $0xa9] sm:$0xff]
    %v4041 = vld [vmem:[%s3065 + $0xb1] sm:$0xff]
    %v4042 = vld [vmem:[%s3065 + $0xc1] sm:$0xff]
    %v4043 = vld [vmem:[%s3065 + $0xc9] sm:$0xff]
    %v4044 = vld [vmem:[%s3065 + $0xd9] sm:$0xff]
    %v4045 = vld [vmem:[%s3065 + $0xe1] sm:$0xff]
    %v4046 = vld [vmem:[%s3065 + $0xf1] sm:$0xff]
    %v4047 = vld [vmem:[%s3065 + $0xf9] sm:$0xff]
    %v4048 = vld [vmem:[%s3065 + $0x109] sm:$0xff]
    %v4049 = vld [vmem:[%s3065 + $0x111] sm:$0xff]
    %v4050 = vld [vmem:[%s3065 + $0x121] sm:$0xff]
    %v4051 = vld [vmem:[%s3065 + $0x129] sm:$0xff]
    %v4052 = vld [vmem:[%s3065 + $0x139] sm:$0xff]
    %v4053 = vld [vmem:[%s3065 + $0x141] sm:$0xff]
    %v4054 = vld [vmem:[%s3065 + $0x151] sm:$0xff]
    %v4055 = vld [vmem:[%s3065 + $0x159] sm:$0xff]
    %v4056 = vld [vmem:[%s3065 + $0x169] sm:$0xff]
    %v4057 = vld [vmem:[%s3065 + $0x171] sm:$0xff]
    %v4058 = vld [vmem:[%s3065 + $0x1b1] sm:$0xff]
    %v4059 = vld [vmem:[%s3065 + $0x1b9] sm:$0xff]
    %v4060 = vld [vmem:[%s3065 + $0x1c9] sm:$0xff]
    %v4061 = vld [vmem:[%s3065 + $0x1d1] sm:$0xff]
    %v4062 = vld [vmem:[%s3065 + $0x1e1] sm:$0xff]
    %v4063 = vld [vmem:[%s3065 + $0x1e9] sm:$0xff]
    %v4064 = vld [vmem:[%s3065 + $0x1f9] sm:$0xff]
    %v4065 = vld [vmem:[%s3065 + $0x201] sm:$0xff]
    %v4066 = vld [vmem:[%s3065 + $0x211] sm:$0xff]
    %v4067 = vld [vmem:[%s3065 + $0x219] sm:$0xff]
    %v4068 = vld [vmem:[%s3065 + $0x229] sm:$0xff]
    %v4069 = vld [vmem:[%s3065 + $0x231] sm:$0xff]
    %v4070 = vld [vmem:[%s3065 + $0x241] sm:$0xff]
    %v4071 = vld [vmem:[%s3065 + $0x249] sm:$0xff]
    %v4072 = vld [vmem:[%s3065 + $0x259] sm:$0xff]
    %v4073 = vld [vmem:[%s3065 + $0x261] sm:$0xff]
    %v4074 = vld [vmem:[%s3065 + $0x271] sm:$0xff]
    %v4075 = vld [vmem:[%s3065 + $0x279] sm:$0xff]
    %v4076 = vld [vmem:[%s3065 + $0x289] sm:$0xff]
    %v4077 = vld [vmem:[%s3065 + $0x291] sm:$0xff]
    %v4078 = vld [vmem:[%s3065 + $0x2a1] sm:$0xff]
    %v4079 = vld [vmem:[%s3065 + $0x2a9] sm:$0xff]
    %v4080 = vld [vmem:[%s3065 + $0x2b9] sm:$0xff]
    %v4081 = vld [vmem:[%s3065 + $0x2c1] sm:$0xff]
    %v4082 = vld [vmem:[%s3065 + $0x2d1] sm:$0xff]
    %v4083 = vld [vmem:[%s3065 + $0x2d9] sm:$0xff]
    %v4084 = vld [vmem:[%s3065 + $0x2e9] sm:$0xff]
    %v4085 = vld [vmem:[%s3065 + $0x2f1] sm:$0xff]
    %v4086 = vld [vmem:[%s3065 + $0x301] sm:$0xff]
    %v4087 = vld [vmem:[%s3065 + $0x309] sm:$0xff]
    %v4088 = vld [vmem:[%s3065 + $0x319] sm:$0xff]
    %v4089 = vld [vmem:[%s3065 + $0x321] sm:$0xff]
    %4090 = vrot.lane.b32.xlu0 %v4026, 16
    %v4091 = vpop.permute.xlu0 %4090
    %4092 = vrot.lane.b32.xlu0 %v4027, 16
    %v4093 = vpop.permute.xlu0 %4092
    %4094 = vrot.lane.b32.xlu0 %v4028, 16
    %v4095 = vpop.permute.xlu0 %4094
    %4096 = vrot.lane.b32.xlu0 %v4029, 16
    %v4097 = vpop.permute.xlu0 %4096
    %4098 = vrot.lane.b32.xlu0 %v4030, 16
    %v4099 = vpop.permute.xlu0 %4098
    %4100 = vrot.lane.b32.xlu0 %v4031, 16
    %v4101 = vpop.permute.xlu0 %4100
    %4102 = vrot.lane.b32.xlu0 %v4032, 16
    %v4103 = vpop.permute.xlu0 %4102
    %4104 = vrot.lane.b32.xlu0 %v4033, 16
    %v4105 = vpop.permute.xlu0 %4104
    %4106 = vrot.lane.b32.xlu0 %v4034, 16
    %v4107 = vpop.permute.xlu0 %4106
    %4108 = vrot.lane.b32.xlu0 %v4035, 16
    %v4109 = vpop.permute.xlu0 %4108
    %4110 = vrot.lane.b32.xlu0 %v4036, 16
    %v4111 = vpop.permute.xlu0 %4110
    %4112 = vrot.lane.b32.xlu0 %v4037, 16
    %v4113 = vpop.permute.xlu0 %4112
    %4114 = vrot.lane.b32.xlu0 %v4038, 16
    %v4115 = vpop.permute.xlu0 %4114
    %4116 = vrot.lane.b32.xlu0 %v4039, 16
    %v4117 = vpop.permute.xlu0 %4116
    %4118 = vrot.lane.b32.xlu0 %v4040, 16
    %v4119 = vpop.permute.xlu0 %4118
    %4120 = vrot.lane.b32.xlu0 %v4041, 16
    %v4121 = vpop.permute.xlu0 %4120
    %4122 = vrot.lane.b32.xlu0 %v4042, 16
    %v4123 = vpop.permute.xlu0 %4122
    %4124 = vrot.lane.b32.xlu0 %v4043, 16
    %v4125 = vpop.permute.xlu0 %4124
    %4126 = vrot.lane.b32.xlu0 %v4044, 16
    %v4127 = vpop.permute.xlu0 %4126
    %4128 = vrot.lane.b32.xlu0 %v4045, 16
    %v4129 = vpop.permute.xlu0 %4128
    %4130 = vrot.lane.b32.xlu0 %v4046, 16
    %v4131 = vpop.permute.xlu0 %4130
    %4132 = vrot.lane.b32.xlu0 %v4047, 16
    %v4133 = vpop.permute.xlu0 %4132
    %4134 = vrot.lane.b32.xlu0 %v4048, 16
    %v4135 = vpop.permute.xlu0 %4134
    %4136 = vrot.lane.b32.xlu0 %v4049, 16
    %v4137 = vpop.permute.xlu0 %4136
    %4138 = vrot.lane.b32.xlu0 %v4050, 16
    %v4139 = vpop.permute.xlu0 %4138
    %4140 = vrot.lane.b32.xlu0 %v4051, 16
    %v4141 = vpop.permute.xlu0 %4140
    %4142 = vrot.lane.b32.xlu0 %v4052, 16
    %v4143 = vpop.permute.xlu0 %4142
    %4144 = vrot.lane.b32.xlu0 %v4053, 16
    %v4145 = vpop.permute.xlu0 %4144
    %4146 = vrot.lane.b32.xlu0 %v4054, 16
    %v4147 = vpop.permute.xlu0 %4146
    %4148 = vrot.lane.b32.xlu0 %v4055, 16
    %v4149 = vpop.permute.xlu0 %4148
    %4150 = vrot.lane.b32.xlu0 %v4056, 16
    %v4151 = vpop.permute.xlu0 %4150
    %4152 = vrot.lane.b32.xlu0 %v4057, 16
    %v4153 = vpop.permute.xlu0 %4152
    %4154 = vrot.lane.b32.xlu0 %v4058, 16
    %v4155 = vpop.permute.xlu0 %4154
    %4156 = vrot.lane.b32.xlu0 %v4059, 16
    %v4157 = vpop.permute.xlu0 %4156
    %4158 = vrot.lane.b32.xlu0 %v4060, 16
    %v4159 = vpop.permute.xlu0 %4158
    %4160 = vrot.lane.b32.xlu0 %v4061, 16
    %v4161 = vpop.permute.xlu0 %4160
    %4162 = vrot.lane.b32.xlu0 %v4062, 16
    %v4163 = vpop.permute.xlu0 %4162
    %4164 = vrot.lane.b32.xlu0 %v4063, 16
    %v4165 = vpop.permute.xlu0 %4164
    %4166 = vrot.lane.b32.xlu0 %v4064, 16
    %v4167 = vpop.permute.xlu0 %4166
    %4168 = vrot.lane.b32.xlu0 %v4065, 16
    %v4169 = vpop.permute.xlu0 %4168
    %4170 = vrot.lane.b32.xlu0 %v4066, 16
    %v4171 = vpop.permute.xlu0 %4170
    %4172 = vrot.lane.b32.xlu0 %v4067, 16
    %v4173 = vpop.permute.xlu0 %4172
    %4174 = vrot.lane.b32.xlu0 %v4068, 16
    %v4175 = vpop.permute.xlu0 %4174
    %4176 = vrot.lane.b32.xlu0 %v4069, 16
    %v4177 = vpop.permute.xlu0 %4176
    %4178 = vrot.lane.b32.xlu0 %v4070, 16
    %v4179 = vpop.permute.xlu0 %4178
    %4180 = vrot.lane.b32.xlu0 %v4071, 16
    %v4181 = vpop.permute.xlu0 %4180
    %4182 = vrot.lane.b32.xlu0 %v4072, 16
    %v4183 = vpop.permute.xlu0 %4182
    %4184 = vrot.lane.b32.xlu0 %v4073, 16
    %v4185 = vpop.permute.xlu0 %4184
    %4186 = vrot.lane.b32.xlu0 %v4074, 16
    %v4187 = vpop.permute.xlu0 %4186
    %4188 = vrot.lane.b32.xlu0 %v4075, 16
    %v4189 = vpop.permute.xlu0 %4188
    %4190 = vrot.lane.b32.xlu0 %v4076, 16
    %v4191 = vpop.permute.xlu0 %4190
    %4192 = vrot.lane.b32.xlu0 %v4077, 16
    %v4193 = vpop.permute.xlu0 %4192
    %4194 = vrot.lane.b32.xlu0 %v4078, 16
    %v4195 = vpop.permute.xlu0 %4194
    %4196 = vrot.lane.b32.xlu0 %v4079, 16
    %v4197 = vpop.permute.xlu0 %4196
    %4198 = vrot.lane.b32.xlu0 %v4080, 16
    %v4199 = vpop.permute.xlu0 %4198
    %4200 = vrot.lane.b32.xlu0 %v4081, 16
    %v4201 = vpop.permute.xlu0 %4200
    %4202 = vrot.lane.b32.xlu0 %v4082, 16
    %v4203 = vpop.permute.xlu0 %4202
    %4204 = vrot.lane.b32.xlu0 %v4083, 16
    %v4205 = vpop.permute.xlu0 %4204
    %4206 = vrot.lane.b32.xlu0 %v4084, 16
    %v4207 = vpop.permute.xlu0 %4206
    %4208 = vrot.lane.b32.xlu0 %v4085, 16
    %v4209 = vpop.permute.xlu0 %4208
    %4210 = vrot.lane.b32.xlu0 %v4086, 16
    %v4211 = vpop.permute.xlu0 %4210
    %4212 = vrot.lane.b32.xlu0 %v4087, 16
    %v4213 = vpop.permute.xlu0 %4212
    %4214 = vrot.lane.b32.xlu0 %v4088, 16
    %v4215 = vpop.permute.xlu0 %4214
    %4216 = vrot.lane.b32.xlu0 %v4089, 16
    %v4217 = vpop.permute.xlu0 %4216
    %v4218 = vadd.f32 %v3962, %v4091
    %v4219 = vadd.f32 %v3963, %v4093
    %v4220 = vadd.f32 %v3964, %v4095
    %v4221 = vadd.f32 %v3965, %v4097
    %v4222 = vadd.f32 %v3966, %v4099
    %v4223 = vadd.f32 %v3967, %v4101
    %v4224 = vadd.f32 %v3968, %v4103
    %v4225 = vadd.f32 %v3969, %v4105
    %v4226 = vadd.f32 %v3970, %v4107
    %v4227 = vadd.f32 %v3971, %v4109
    %v4228 = vadd.f32 %v3972, %v4111
    %v4229 = vadd.f32 %v3973, %v4113
    %v4230 = vadd.f32 %v3974, %v4115
    %v4231 = vadd.f32 %v3975, %v4117
    %v4232 = vadd.f32 %v3976, %v4119
    %v4233 = vadd.f32 %v3977, %v4121
    %v4234 = vadd.f32 %v3978, %v4123
    %v4235 = vadd.f32 %v3979, %v4125
    %v4236 = vadd.f32 %v3980, %v4127
    %v4237 = vadd.f32 %v3981, %v4129
    %v4238 = vadd.f32 %v3982, %v4131
    %v4239 = vadd.f32 %v3983, %v4133
    %v4240 = vadd.f32 %v3984, %v4135
    %v4241 = vadd.f32 %v3985, %v4137
    %v4242 = vadd.f32 %v3986, %v4139
    %v4243 = vadd.f32 %v3987, %v4141
    %v4244 = vadd.f32 %v3988, %v4143
    %v4245 = vadd.f32 %v3989, %v4145
    %v4246 = vadd.f32 %v3990, %v4147
    %v4247 = vadd.f32 %v3991, %v4149
    %v4248 = vadd.f32 %v3992, %v4151
    %v4249 = vadd.f32 %v3993, %v4153
    %v4250 = vadd.f32 %v3994, %v4155
    %v4251 = vadd.f32 %v3995, %v4157
    %v4252 = vadd.f32 %v3996, %v4159
    %v4253 = vadd.f32 %v3997, %v4161
    %v4254 = vadd.f32 %v3998, %v4163
    %v4255 = vadd.f32 %v3999, %v4165
    %v4256 = vadd.f32 %v4000, %v4167
    %v4257 = vadd.f32 %v4001, %v4169
    %v4258 = vadd.f32 %v4002, %v4171
    %v4259 = vadd.f32 %v4003, %v4173
    %v4260 = vadd.f32 %v4004, %v4175
    %v4261 = vadd.f32 %v4005, %v4177
    %v4262 = vadd.f32 %v4006, %v4179
    %v4263 = vadd.f32 %v4007, %v4181
    %v4264 = vadd.f32 %v4008, %v4183
    %v4265 = vadd.f32 %v4009, %v4185
    %v4266 = vadd.f32 %v4010, %v4187
    %v4267 = vadd.f32 %v4011, %v4189
    %v4268 = vadd.f32 %v4012, %v4191
    %v4269 = vadd.f32 %v4013, %v4193
    %v4270 = vadd.f32 %v4014, %v4195
    %v4271 = vadd.f32 %v4015, %v4197
    %v4272 = vadd.f32 %v4016, %v4199
    %v4273 = vadd.f32 %v4017, %v4201
    %v4274 = vadd.f32 %v4018, %v4203
    %v4275 = vadd.f32 %v4019, %v4205
    %v4276 = vadd.f32 %v4020, %v4207
    %v4277 = vadd.f32 %v4021, %v4209
    %v4278 = vadd.f32 %v4022, %v4211
    %v4279 = vadd.f32 %v4023, %v4213
    %v4280 = vadd.f32 %v4024, %v4215
    %v4281 = vadd.f32 %v4025, %v4217
    %v4282 = vld [vmem:[%s3065 + $0x2] sm:$0xff]
    %v4283 = vld [vmem:[%s3065 + $0xa] sm:$0xff]
    %v4284 = vld [vmem:[%s3065 + $0x1a] sm:$0xff]
    %v4285 = vld [vmem:[%s3065 + $0x22] sm:$0xff]
    %v4286 = vld [vmem:[%s3065 + $0x32] sm:$0xff]
    %v4287 = vld [vmem:[%s3065 + $0x3a] sm:$0xff]
    %v4288 = vld [vmem:[%s3065 + $0x4a] sm:$0xff]
    %v4289 = vld [vmem:[%s3065 + $0x52] sm:$0xff]
    %v4290 = vld [vmem:[%s3065 + $0x62] sm:$0xff]
    %v4291 = vld [vmem:[%s3065 + $0x6a] sm:$0xff]
    %v4292 = vld [vmem:[%s3065 + $0x7a] sm:$0xff]
    %v4293 = vld [vmem:[%s3065 + $0x82] sm:$0xff]
    %v4294 = vld [vmem:[%s3065 + $0x92] sm:$0xff]
    %v4295 = vld [vmem:[%s3065 + $0x9a] sm:$0xff]
    %v4296 = vld [vmem:[%s3065 + $0xaa] sm:$0xff]
    %v4297 = vld [vmem:[%s3065 + $0xb2] sm:$0xff]
    %v4298 = vld [vmem:[%s3065 + $0xc2] sm:$0xff]
    %v4299 = vld [vmem:[%s3065 + $0xca] sm:$0xff]
    %v4300 = vld [vmem:[%s3065 + $0xda] sm:$0xff]
    %v4301 = vld [vmem:[%s3065 + $0xe2] sm:$0xff]
    %v4302 = vld [vmem:[%s3065 + $0xf2] sm:$0xff]
    %v4303 = vld [vmem:[%s3065 + $0xfa] sm:$0xff]
    %v4304 = vld [vmem:[%s3065 + $0x10a] sm:$0xff]
    %v4305 = vld [vmem:[%s3065 + $0x112] sm:$0xff]
    %v4306 = vld [vmem:[%s3065 + $0x122] sm:$0xff]
    %v4307 = vld [vmem:[%s3065 + $0x12a] sm:$0xff]
    %v4308 = vld [vmem:[%s3065 + $0x13a] sm:$0xff]
    %v4309 = vld [vmem:[%s3065 + $0x142] sm:$0xff]
    %v4310 = vld [vmem:[%s3065 + $0x152] sm:$0xff]
    %v4311 = vld [vmem:[%s3065 + $0x15a] sm:$0xff]
    %v4312 = vld [vmem:[%s3065 + $0x16a] sm:$0xff]
    %v4313 = vld [vmem:[%s3065 + $0x172] sm:$0xff]
    %v4314 = vld [vmem:[%s3065 + $0x1b2] sm:$0xff]
    %v4315 = vld [vmem:[%s3065 + $0x1ba] sm:$0xff]
    %v4316 = vld [vmem:[%s3065 + $0x1ca] sm:$0xff]
    %v4317 = vld [vmem:[%s3065 + $0x1d2] sm:$0xff]
    %v4318 = vld [vmem:[%s3065 + $0x1e2] sm:$0xff]
    %v4319 = vld [vmem:[%s3065 + $0x1ea] sm:$0xff]
    %v4320 = vld [vmem:[%s3065 + $0x1fa] sm:$0xff]
    %v4321 = vld [vmem:[%s3065 + $0x202] sm:$0xff]
    %v4322 = vld [vmem:[%s3065 + $0x212] sm:$0xff]
    %v4323 = vld [vmem:[%s3065 + $0x21a] sm:$0xff]
    %v4324 = vld [vmem:[%s3065 + $0x22a] sm:$0xff]
    %v4325 = vld [vmem:[%s3065 + $0x232] sm:$0xff]
    %v4326 = vld [vmem:[%s3065 + $0x242] sm:$0xff]
    %v4327 = vld [vmem:[%s3065 + $0x24a] sm:$0xff]
    %v4328 = vld [vmem:[%s3065 + $0x25a] sm:$0xff]
    %v4329 = vld [vmem:[%s3065 + $0x262] sm:$0xff]
    %v4330 = vld [vmem:[%s3065 + $0x272] sm:$0xff]
    %v4331 = vld [vmem:[%s3065 + $0x27a] sm:$0xff]
    %v4332 = vld [vmem:[%s3065 + $0x28a] sm:$0xff]
    %v4333 = vld [vmem:[%s3065 + $0x292] sm:$0xff]
    %v4334 = vld [vmem:[%s3065 + $0x2a2] sm:$0xff]
    %v4335 = vld [vmem:[%s3065 + $0x2aa] sm:$0xff]
    %v4336 = vld [vmem:[%s3065 + $0x2ba] sm:$0xff]
    %v4337 = vld [vmem:[%s3065 + $0x2c2] sm:$0xff]
    %v4338 = vld [vmem:[%s3065 + $0x2d2] sm:$0xff]
    %v4339 = vld [vmem:[%s3065 + $0x2da] sm:$0xff]
    %v4340 = vld [vmem:[%s3065 + $0x2ea] sm:$0xff]
    %v4341 = vld [vmem:[%s3065 + $0x2f2] sm:$0xff]
    %v4342 = vld [vmem:[%s3065 + $0x302] sm:$0xff]
    %v4343 = vld [vmem:[%s3065 + $0x30a] sm:$0xff]
    %v4344 = vld [vmem:[%s3065 + $0x31a] sm:$0xff]
    %v4345 = vld [vmem:[%s3065 + $0x322] sm:$0xff]
    %4346 = vrot.lane.b32.xlu0 %v4282, 20
    %v4347 = vpop.permute.xlu0 %4346
    %4348 = vrot.lane.b32.xlu0 %v4283, 20
    %v4349 = vpop.permute.xlu0 %4348
    %4350 = vrot.lane.b32.xlu0 %v4284, 20
    %v4351 = vpop.permute.xlu0 %4350
    %4352 = vrot.lane.b32.xlu0 %v4285, 20
    %v4353 = vpop.permute.xlu0 %4352
    %4354 = vrot.lane.b32.xlu0 %v4286, 20
    %v4355 = vpop.permute.xlu0 %4354
    %4356 = vrot.lane.b32.xlu0 %v4287, 20
    %v4357 = vpop.permute.xlu0 %4356
    %4358 = vrot.lane.b32.xlu0 %v4288, 20
    %v4359 = vpop.permute.xlu0 %4358
    %4360 = vrot.lane.b32.xlu0 %v4289, 20
    %v4361 = vpop.permute.xlu0 %4360
    %4362 = vrot.lane.b32.xlu0 %v4290, 20
    %v4363 = vpop.permute.xlu0 %4362
    %4364 = vrot.lane.b32.xlu0 %v4291, 20
    %v4365 = vpop.permute.xlu0 %4364
    %4366 = vrot.lane.b32.xlu0 %v4292, 20
    %v4367 = vpop.permute.xlu0 %4366
    %4368 = vrot.lane.b32.xlu0 %v4293, 20
    %v4369 = vpop.permute.xlu0 %4368
    %4370 = vrot.lane.b32.xlu0 %v4294, 20
    %v4371 = vpop.permute.xlu0 %4370
    %4372 = vrot.lane.b32.xlu0 %v4295, 20
    %v4373 = vpop.permute.xlu0 %4372
    %4374 = vrot.lane.b32.xlu0 %v4296, 20
    %v4375 = vpop.permute.xlu0 %4374
    %4376 = vrot.lane.b32.xlu0 %v4297, 20
    %v4377 = vpop.permute.xlu0 %4376
    %4378 = vrot.lane.b32.xlu0 %v4298, 20
    %v4379 = vpop.permute.xlu0 %4378
    %4380 = vrot.lane.b32.xlu0 %v4299, 20
    %v4381 = vpop.permute.xlu0 %4380
    %4382 = vrot.lane.b32.xlu0 %v4300, 20
    %v4383 = vpop.permute.xlu0 %4382
    %4384 = vrot.lane.b32.xlu0 %v4301, 20
    %v4385 = vpop.permute.xlu0 %4384
    %4386 = vrot.lane.b32.xlu0 %v4302, 20
    %v4387 = vpop.permute.xlu0 %4386
    %4388 = vrot.lane.b32.xlu0 %v4303, 20
    %v4389 = vpop.permute.xlu0 %4388
    %4390 = vrot.lane.b32.xlu0 %v4304, 20
    %v4391 = vpop.permute.xlu0 %4390
    %4392 = vrot.lane.b32.xlu0 %v4305, 20
    %v4393 = vpop.permute.xlu0 %4392
    %4394 = vrot.lane.b32.xlu0 %v4306, 20
    %v4395 = vpop.permute.xlu0 %4394
    %4396 = vrot.lane.b32.xlu0 %v4307, 20
    %v4397 = vpop.permute.xlu0 %4396
    %4398 = vrot.lane.b32.xlu0 %v4308, 20
    %v4399 = vpop.permute.xlu0 %4398
    %4400 = vrot.lane.b32.xlu0 %v4309, 20
    %v4401 = vpop.permute.xlu0 %4400
    %4402 = vrot.lane.b32.xlu0 %v4310, 20
    %v4403 = vpop.permute.xlu0 %4402
    %4404 = vrot.lane.b32.xlu0 %v4311, 20
    %v4405 = vpop.permute.xlu0 %4404
    %4406 = vrot.lane.b32.xlu0 %v4312, 20
    %v4407 = vpop.permute.xlu0 %4406
    %4408 = vrot.lane.b32.xlu0 %v4313, 20
    %v4409 = vpop.permute.xlu0 %4408
    %4410 = vrot.lane.b32.xlu0 %v4314, 20
    %v4411 = vpop.permute.xlu0 %4410
    %4412 = vrot.lane.b32.xlu0 %v4315, 20
    %v4413 = vpop.permute.xlu0 %4412
    %4414 = vrot.lane.b32.xlu0 %v4316, 20
    %v4415 = vpop.permute.xlu0 %4414
    %4416 = vrot.lane.b32.xlu0 %v4317, 20
    %v4417 = vpop.permute.xlu0 %4416
    %4418 = vrot.lane.b32.xlu0 %v4318, 20
    %v4419 = vpop.permute.xlu0 %4418
    %4420 = vrot.lane.b32.xlu0 %v4319, 20
    %v4421 = vpop.permute.xlu0 %4420
    %4422 = vrot.lane.b32.xlu0 %v4320, 20
    %v4423 = vpop.permute.xlu0 %4422
    %4424 = vrot.lane.b32.xlu0 %v4321, 20
    %v4425 = vpop.permute.xlu0 %4424
    %4426 = vrot.lane.b32.xlu0 %v4322, 20
    %v4427 = vpop.permute.xlu0 %4426
    %4428 = vrot.lane.b32.xlu0 %v4323, 20
    %v4429 = vpop.permute.xlu0 %4428
    %4430 = vrot.lane.b32.xlu0 %v4324, 20
    %v4431 = vpop.permute.xlu0 %4430
    %4432 = vrot.lane.b32.xlu0 %v4325, 20
    %v4433 = vpop.permute.xlu0 %4432
    %4434 = vrot.lane.b32.xlu0 %v4326, 20
    %v4435 = vpop.permute.xlu0 %4434
    %4436 = vrot.lane.b32.xlu0 %v4327, 20
    %v4437 = vpop.permute.xlu0 %4436
    %4438 = vrot.lane.b32.xlu0 %v4328, 20
    %v4439 = vpop.permute.xlu0 %4438
    %4440 = vrot.lane.b32.xlu0 %v4329, 20
    %v4441 = vpop.permute.xlu0 %4440
    %4442 = vrot.lane.b32.xlu0 %v4330, 20
    %v4443 = vpop.permute.xlu0 %4442
    %4444 = vrot.lane.b32.xlu0 %v4331, 20
    %v4445 = vpop.permute.xlu0 %4444
    %4446 = vrot.lane.b32.xlu0 %v4332, 20
    %v4447 = vpop.permute.xlu0 %4446
    %4448 = vrot.lane.b32.xlu0 %v4333, 20
    %v4449 = vpop.permute.xlu0 %4448
    %4450 = vrot.lane.b32.xlu0 %v4334, 20
    %v4451 = vpop.permute.xlu0 %4450
    %4452 = vrot.lane.b32.xlu0 %v4335, 20
    %v4453 = vpop.permute.xlu0 %4452
    %4454 = vrot.lane.b32.xlu0 %v4336, 20
    %v4455 = vpop.permute.xlu0 %4454
    %4456 = vrot.lane.b32.xlu0 %v4337, 20
    %v4457 = vpop.permute.xlu0 %4456
    %4458 = vrot.lane.b32.xlu0 %v4338, 20
    %v4459 = vpop.permute.xlu0 %4458
    %4460 = vrot.lane.b32.xlu0 %v4339, 20
    %v4461 = vpop.permute.xlu0 %4460
    %4462 = vrot.lane.b32.xlu0 %v4340, 20
    %v4463 = vpop.permute.xlu0 %4462
    %4464 = vrot.lane.b32.xlu0 %v4341, 20
    %v4465 = vpop.permute.xlu0 %4464
    %4466 = vrot.lane.b32.xlu0 %v4342, 20
    %v4467 = vpop.permute.xlu0 %4466
    %4468 = vrot.lane.b32.xlu0 %v4343, 20
    %v4469 = vpop.permute.xlu0 %4468
    %4470 = vrot.lane.b32.xlu0 %v4344, 20
    %v4471 = vpop.permute.xlu0 %4470
    %4472 = vrot.lane.b32.xlu0 %v4345, 20
    %v4473 = vpop.permute.xlu0 %4472
    %v4474 = vadd.f32 %v4218, %v4347
    %v4475 = vadd.f32 %v4219, %v4349
    %v4476 = vadd.f32 %v4220, %v4351
    %v4477 = vadd.f32 %v4221, %v4353
    %v4478 = vadd.f32 %v4222, %v4355
    %v4479 = vadd.f32 %v4223, %v4357
    %v4480 = vadd.f32 %v4224, %v4359
    %v4481 = vadd.f32 %v4225, %v4361
    %v4482 = vadd.f32 %v4226, %v4363
    %v4483 = vadd.f32 %v4227, %v4365
    %v4484 = vadd.f32 %v4228, %v4367
    %v4485 = vadd.f32 %v4229, %v4369
    %v4486 = vadd.f32 %v4230, %v4371
    %v4487 = vadd.f32 %v4231, %v4373
    %v4488 = vadd.f32 %v4232, %v4375
    %v4489 = vadd.f32 %v4233, %v4377
    %v4490 = vadd.f32 %v4234, %v4379
    %v4491 = vadd.f32 %v4235, %v4381
    %v4492 = vadd.f32 %v4236, %v4383
    %v4493 = vadd.f32 %v4237, %v4385
    %v4494 = vadd.f32 %v4238, %v4387
    %v4495 = vadd.f32 %v4239, %v4389
    %v4496 = vadd.f32 %v4240, %v4391
    %v4497 = vadd.f32 %v4241, %v4393
    %v4498 = vadd.f32 %v4242, %v4395
    %v4499 = vadd.f32 %v4243, %v4397
    %v4500 = vadd.f32 %v4244, %v4399
    %v4501 = vadd.f32 %v4245, %v4401
    %v4502 = vadd.f32 %v4246, %v4403
    %v4503 = vadd.f32 %v4247, %v4405
    %v4504 = vadd.f32 %v4248, %v4407
    %v4505 = vadd.f32 %v4249, %v4409
    %v4506 = vadd.f32 %v4250, %v4411
    %v4507 = vadd.f32 %v4251, %v4413
    %v4508 = vadd.f32 %v4252, %v4415
    %v4509 = vadd.f32 %v4253, %v4417
    %v4510 = vadd.f32 %v4254, %v4419
    %v4511 = vadd.f32 %v4255, %v4421
    %v4512 = vadd.f32 %v4256, %v4423
    %v4513 = vadd.f32 %v4257, %v4425
    %v4514 = vadd.f32 %v4258, %v4427
    %v4515 = vadd.f32 %v4259, %v4429
    %v4516 = vadd.f32 %v4260, %v4431
    %v4517 = vadd.f32 %v4261, %v4433
    %v4518 = vadd.f32 %v4262, %v4435
    %v4519 = vadd.f32 %v4263, %v4437
    %v4520 = vadd.f32 %v4264, %v4439
    %v4521 = vadd.f32 %v4265, %v4441
    %v4522 = vadd.f32 %v4266, %v4443
    %v4523 = vadd.f32 %v4267, %v4445
    %v4524 = vadd.f32 %v4268, %v4447
    %v4525 = vadd.f32 %v4269, %v4449
    %v4526 = vadd.f32 %v4270, %v4451
    %v4527 = vadd.f32 %v4271, %v4453
    %v4528 = vadd.f32 %v4272, %v4455
    %v4529 = vadd.f32 %v4273, %v4457
    %v4530 = vadd.f32 %v4274, %v4459
    %v4531 = vadd.f32 %v4275, %v4461
    %v4532 = vadd.f32 %v4276, %v4463
    %v4533 = vadd.f32 %v4277, %v4465
    %v4534 = vadd.f32 %v4278, %v4467
    %v4535 = vadd.f32 %v4279, %v4469
    %v4536 = vadd.f32 %v4280, %v4471
    %v4537 = vadd.f32 %v4281, %v4473
    %s4538 = scalar_lea.vmem [#allocation2], 48
    %v4539 = vld [vmem:[%s4538] sm:$0xff]
    %v4540 = vld [vmem:[%s4538 + $0x8] sm:$0xff]
    %v4541 = vld [vmem:[%s4538 + $0x18] sm:$0xff]
    %v4542 = vld [vmem:[%s4538 + $0x20] sm:$0xff]
    %v4543 = vld [vmem:[%s4538 + $0x30] sm:$0xff]
    %v4544 = vld [vmem:[%s4538 + $0x38] sm:$0xff]
    %v4545 = vld [vmem:[%s4538 + $0x48] sm:$0xff]
    %v4546 = vld [vmem:[%s4538 + $0x50] sm:$0xff]
    %v4547 = vld [vmem:[%s4538 + $0x60] sm:$0xff]
    %v4548 = vld [vmem:[%s4538 + $0x68] sm:$0xff]
    %v4549 = vld [vmem:[%s4538 + $0x78] sm:$0xff]
    %v4550 = vld [vmem:[%s4538 + $0x80] sm:$0xff]
    %v4551 = vld [vmem:[%s4538 + $0x90] sm:$0xff]
    %v4552 = vld [vmem:[%s4538 + $0x98] sm:$0xff]
    %v4553 = vld [vmem:[%s4538 + $0xa8] sm:$0xff]
    %v4554 = vld [vmem:[%s4538 + $0xb0] sm:$0xff]
    %v4555 = vld [vmem:[%s4538 + $0xc0] sm:$0xff]
    %v4556 = vld [vmem:[%s4538 + $0xc8] sm:$0xff]
    %v4557 = vld [vmem:[%s4538 + $0xd8] sm:$0xff]
    %v4558 = vld [vmem:[%s4538 + $0xe0] sm:$0xff]
    %v4559 = vld [vmem:[%s4538 + $0xf0] sm:$0xff]
    %v4560 = vld [vmem:[%s4538 + $0xf8] sm:$0xff]
    %v4561 = vld [vmem:[%s4538 + $0x108] sm:$0xff]
    %v4562 = vld [vmem:[%s4538 + $0x110] sm:$0xff]
    %v4563 = vld [vmem:[%s4538 + $0x120] sm:$0xff]
    %v4564 = vld [vmem:[%s4538 + $0x128] sm:$0xff]
    %v4565 = vld [vmem:[%s4538 + $0x138] sm:$0xff]
    %v4566 = vld [vmem:[%s4538 + $0x140] sm:$0xff]
    %v4567 = vld [vmem:[%s4538 + $0x150] sm:$0xff]
    %v4568 = vld [vmem:[%s4538 + $0x158] sm:$0xff]
    %v4569 = vld [vmem:[%s4538 + $0x168] sm:$0xff]
    %v4570 = vld [vmem:[%s4538 + $0x170] sm:$0xff]
    %v4571 = vld [vmem:[%s4538 + $0x1b0] sm:$0xff]
    %v4572 = vld [vmem:[%s4538 + $0x1b8] sm:$0xff]
    %v4573 = vld [vmem:[%s4538 + $0x1c8] sm:$0xff]
    %v4574 = vld [vmem:[%s4538 + $0x1d0] sm:$0xff]
    %v4575 = vld [vmem:[%s4538 + $0x1e0] sm:$0xff]
    %v4576 = vld [vmem:[%s4538 + $0x1e8] sm:$0xff]
    %v4577 = vld [vmem:[%s4538 + $0x1f8] sm:$0xff]
    %v4578 = vld [vmem:[%s4538 + $0x200] sm:$0xff]
    %v4579 = vld [vmem:[%s4538 + $0x210] sm:$0xff]
    %v4580 = vld [vmem:[%s4538 + $0x218] sm:$0xff]
    %v4581 = vld [vmem:[%s4538 + $0x228] sm:$0xff]
    %v4582 = vld [vmem:[%s4538 + $0x230] sm:$0xff]
    %v4583 = vld [vmem:[%s4538 + $0x240] sm:$0xff]
    %v4584 = vld [vmem:[%s4538 + $0x248] sm:$0xff]
    %v4585 = vld [vmem:[%s4538 + $0x258] sm:$0xff]
    %v4586 = vld [vmem:[%s4538 + $0x260] sm:$0xff]
    %v4587 = vld [vmem:[%s4538 + $0x270] sm:$0xff]
    %v4588 = vld [vmem:[%s4538 + $0x278] sm:$0xff]
    %v4589 = vld [vmem:[%s4538 + $0x288] sm:$0xff]
    %v4590 = vld [vmem:[%s4538 + $0x290] sm:$0xff]
    %v4591 = vld [vmem:[%s4538 + $0x2a0] sm:$0xff]
    %v4592 = vld [vmem:[%s4538 + $0x2a8] sm:$0xff]
    %v4593 = vld [vmem:[%s4538 + $0x2b8] sm:$0xff]
    %v4594 = vld [vmem:[%s4538 + $0x2c0] sm:$0xff]
    %v4595 = vld [vmem:[%s4538 + $0x2d0] sm:$0xff]
    %v4596 = vld [vmem:[%s4538 + $0x2d8] sm:$0xff]
    %v4597 = vld [vmem:[%s4538 + $0x2e8] sm:$0xff]
    %v4598 = vld [vmem:[%s4538 + $0x2f0] sm:$0xff]
    %v4599 = vld [vmem:[%s4538 + $0x300] sm:$0xff]
    %v4600 = vld [vmem:[%s4538 + $0x308] sm:$0xff]
    %v4601 = vld [vmem:[%s4538 + $0x318] sm:$0xff]
    %v4602 = vld [vmem:[%s4538 + $0x320] sm:$0xff]
    %4603 = vrot.lane.b32.xlu0 %v4539, 24
    %v4604 = vpop.permute.xlu0 %4603
    %4605 = vrot.lane.b32.xlu0 %v4540, 24
    %v4606 = vpop.permute.xlu0 %4605
    %4607 = vrot.lane.b32.xlu0 %v4541, 24
    %v4608 = vpop.permute.xlu0 %4607
    %4609 = vrot.lane.b32.xlu0 %v4542, 24
    %v4610 = vpop.permute.xlu0 %4609
    %4611 = vrot.lane.b32.xlu0 %v4543, 24
    %v4612 = vpop.permute.xlu0 %4611
    %4613 = vrot.lane.b32.xlu0 %v4544, 24
    %v4614 = vpop.permute.xlu0 %4613
    %4615 = vrot.lane.b32.xlu0 %v4545, 24
    %v4616 = vpop.permute.xlu0 %4615
    %4617 = vrot.lane.b32.xlu0 %v4546, 24
    %v4618 = vpop.permute.xlu0 %4617
    %4619 = vrot.lane.b32.xlu0 %v4547, 24
    %v4620 = vpop.permute.xlu0 %4619
    %4621 = vrot.lane.b32.xlu0 %v4548, 24
    %v4622 = vpop.permute.xlu0 %4621
    %4623 = vrot.lane.b32.xlu0 %v4549, 24
    %v4624 = vpop.permute.xlu0 %4623
    %4625 = vrot.lane.b32.xlu0 %v4550, 24
    %v4626 = vpop.permute.xlu0 %4625
    %4627 = vrot.lane.b32.xlu0 %v4551, 24
    %v4628 = vpop.permute.xlu0 %4627
    %4629 = vrot.lane.b32.xlu0 %v4552, 24
    %v4630 = vpop.permute.xlu0 %4629
    %4631 = vrot.lane.b32.xlu0 %v4553, 24
    %v4632 = vpop.permute.xlu0 %4631
    %4633 = vrot.lane.b32.xlu0 %v4554, 24
    %v4634 = vpop.permute.xlu0 %4633
    %4635 = vrot.lane.b32.xlu0 %v4555, 24
    %v4636 = vpop.permute.xlu0 %4635
    %4637 = vrot.lane.b32.xlu0 %v4556, 24
    %v4638 = vpop.permute.xlu0 %4637
    %4639 = vrot.lane.b32.xlu0 %v4557, 24
    %v4640 = vpop.permute.xlu0 %4639
    %4641 = vrot.lane.b32.xlu0 %v4558, 24
    %v4642 = vpop.permute.xlu0 %4641
    %4643 = vrot.lane.b32.xlu0 %v4559, 24
    %v4644 = vpop.permute.xlu0 %4643
    %4645 = vrot.lane.b32.xlu0 %v4560, 24
    %v4646 = vpop.permute.xlu0 %4645
    %4647 = vrot.lane.b32.xlu0 %v4561, 24
    %v4648 = vpop.permute.xlu0 %4647
    %4649 = vrot.lane.b32.xlu0 %v4562, 24
    %v4650 = vpop.permute.xlu0 %4649
    %4651 = vrot.lane.b32.xlu0 %v4563, 24
    %v4652 = vpop.permute.xlu0 %4651
    %4653 = vrot.lane.b32.xlu0 %v4564, 24
    %v4654 = vpop.permute.xlu0 %4653
    %4655 = vrot.lane.b32.xlu0 %v4565, 24
    %v4656 = vpop.permute.xlu0 %4655
    %4657 = vrot.lane.b32.xlu0 %v4566, 24
    %v4658 = vpop.permute.xlu0 %4657
    %4659 = vrot.lane.b32.xlu0 %v4567, 24
    %v4660 = vpop.permute.xlu0 %4659
    %4661 = vrot.lane.b32.xlu0 %v4568, 24
    %v4662 = vpop.permute.xlu0 %4661
    %4663 = vrot.lane.b32.xlu0 %v4569, 24
    %v4664 = vpop.permute.xlu0 %4663
    %4665 = vrot.lane.b32.xlu0 %v4570, 24
    %v4666 = vpop.permute.xlu0 %4665
    %4667 = vrot.lane.b32.xlu0 %v4571, 24
    %v4668 = vpop.permute.xlu0 %4667
    %4669 = vrot.lane.b32.xlu0 %v4572, 24
    %v4670 = vpop.permute.xlu0 %4669
    %4671 = vrot.lane.b32.xlu0 %v4573, 24
    %v4672 = vpop.permute.xlu0 %4671
    %4673 = vrot.lane.b32.xlu0 %v4574, 24
    %v4674 = vpop.permute.xlu0 %4673
    %4675 = vrot.lane.b32.xlu0 %v4575, 24
    %v4676 = vpop.permute.xlu0 %4675
    %4677 = vrot.lane.b32.xlu0 %v4576, 24
    %v4678 = vpop.permute.xlu0 %4677
    %4679 = vrot.lane.b32.xlu0 %v4577, 24
    %v4680 = vpop.permute.xlu0 %4679
    %4681 = vrot.lane.b32.xlu0 %v4578, 24
    %v4682 = vpop.permute.xlu0 %4681
    %4683 = vrot.lane.b32.xlu0 %v4579, 24
    %v4684 = vpop.permute.xlu0 %4683
    %4685 = vrot.lane.b32.xlu0 %v4580, 24
    %v4686 = vpop.permute.xlu0 %4685
    %4687 = vrot.lane.b32.xlu0 %v4581, 24
    %v4688 = vpop.permute.xlu0 %4687
    %4689 = vrot.lane.b32.xlu0 %v4582, 24
    %v4690 = vpop.permute.xlu0 %4689
    %4691 = vrot.lane.b32.xlu0 %v4583, 24
    %v4692 = vpop.permute.xlu0 %4691
    %4693 = vrot.lane.b32.xlu0 %v4584, 24
    %v4694 = vpop.permute.xlu0 %4693
    %4695 = vrot.lane.b32.xlu0 %v4585, 24
    %v4696 = vpop.permute.xlu0 %4695
    %4697 = vrot.lane.b32.xlu0 %v4586, 24
    %v4698 = vpop.permute.xlu0 %4697
    %4699 = vrot.lane.b32.xlu0 %v4587, 24
    %v4700 = vpop.permute.xlu0 %4699
    %4701 = vrot.lane.b32.xlu0 %v4588, 24
    %v4702 = vpop.permute.xlu0 %4701
    %4703 = vrot.lane.b32.xlu0 %v4589, 24
    %v4704 = vpop.permute.xlu0 %4703
    %4705 = vrot.lane.b32.xlu0 %v4590, 24
    %v4706 = vpop.permute.xlu0 %4705
    %4707 = vrot.lane.b32.xlu0 %v4591, 24
    %v4708 = vpop.permute.xlu0 %4707
    %4709 = vrot.lane.b32.xlu0 %v4592, 24
    %v4710 = vpop.permute.xlu0 %4709
    %4711 = vrot.lane.b32.xlu0 %v4593, 24
    %v4712 = vpop.permute.xlu0 %4711
    %4713 = vrot.lane.b32.xlu0 %v4594, 24
    %v4714 = vpop.permute.xlu0 %4713
    %4715 = vrot.lane.b32.xlu0 %v4595, 24
    %v4716 = vpop.permute.xlu0 %4715
    %4717 = vrot.lane.b32.xlu0 %v4596, 24
    %v4718 = vpop.permute.xlu0 %4717
    %4719 = vrot.lane.b32.xlu0 %v4597, 24
    %v4720 = vpop.permute.xlu0 %4719
    %4721 = vrot.lane.b32.xlu0 %v4598, 24
    %v4722 = vpop.permute.xlu0 %4721
    %4723 = vrot.lane.b32.xlu0 %v4599, 24
    %v4724 = vpop.permute.xlu0 %4723
    %4725 = vrot.lane.b32.xlu0 %v4600, 24
    %v4726 = vpop.permute.xlu0 %4725
    %4727 = vrot.lane.b32.xlu0 %v4601, 24
    %v4728 = vpop.permute.xlu0 %4727
    %4729 = vrot.lane.b32.xlu0 %v4602, 24
    %v4730 = vpop.permute.xlu0 %4729
    %v4731 = vadd.f32 %v4474, %v4604
    %v4732 = vadd.f32 %v4475, %v4606
    %v4733 = vadd.f32 %v4476, %v4608
    %v4734 = vadd.f32 %v4477, %v4610
    %v4735 = vadd.f32 %v4478, %v4612
    %v4736 = vadd.f32 %v4479, %v4614
    %v4737 = vadd.f32 %v4480, %v4616
    %v4738 = vadd.f32 %v4481, %v4618
    %v4739 = vadd.f32 %v4482, %v4620
    %v4740 = vadd.f32 %v4483, %v4622
    %v4741 = vadd.f32 %v4484, %v4624
    %v4742 = vadd.f32 %v4485, %v4626
    %v4743 = vadd.f32 %v4486, %v4628
    %v4744 = vadd.f32 %v4487, %v4630
    %v4745 = vadd.f32 %v4488, %v4632
    %v4746 = vadd.f32 %v4489, %v4634
    %v4747 = vadd.f32 %v4490, %v4636
    %v4748 = vadd.f32 %v4491, %v4638
    %v4749 = vadd.f32 %v4492, %v4640
    %v4750 = vadd.f32 %v4493, %v4642
    %v4751 = vadd.f32 %v4494, %v4644
    %v4752 = vadd.f32 %v4495, %v4646
    %v4753 = vadd.f32 %v4496, %v4648
    %v4754 = vadd.f32 %v4497, %v4650
    %v4755 = vadd.f32 %v4498, %v4652
    %v4756 = vadd.f32 %v4499, %v4654
    %v4757 = vadd.f32 %v4500, %v4656
    %v4758 = vadd.f32 %v4501, %v4658
    %v4759 = vadd.f32 %v4502, %v4660
    %v4760 = vadd.f32 %v4503, %v4662
    %v4761 = vadd.f32 %v4504, %v4664
    %v4762 = vadd.f32 %v4505, %v4666
    %v4763 = vadd.f32 %v4506, %v4668
    %v4764 = vadd.f32 %v4507, %v4670
    %v4765 = vadd.f32 %v4508, %v4672
    %v4766 = vadd.f32 %v4509, %v4674
    %v4767 = vadd.f32 %v4510, %v4676
    %v4768 = vadd.f32 %v4511, %v4678
    %v4769 = vadd.f32 %v4512, %v4680
    %v4770 = vadd.f32 %v4513, %v4682
    %v4771 = vadd.f32 %v4514, %v4684
    %v4772 = vadd.f32 %v4515, %v4686
    %v4773 = vadd.f32 %v4516, %v4688
    %v4774 = vadd.f32 %v4517, %v4690
    %v4775 = vadd.f32 %v4518, %v4692
    %v4776 = vadd.f32 %v4519, %v4694
    %v4777 = vadd.f32 %v4520, %v4696
    %v4778 = vadd.f32 %v4521, %v4698
    %v4779 = vadd.f32 %v4522, %v4700
    %v4780 = vadd.f32 %v4523, %v4702
    %v4781 = vadd.f32 %v4524, %v4704
    %v4782 = vadd.f32 %v4525, %v4706
    %v4783 = vadd.f32 %v4526, %v4708
    %v4784 = vadd.f32 %v4527, %v4710
    %v4785 = vadd.f32 %v4528, %v4712
    %v4786 = vadd.f32 %v4529, %v4714
    %v4787 = vadd.f32 %v4530, %v4716
    %v4788 = vadd.f32 %v4531, %v4718
    %v4789 = vadd.f32 %v4532, %v4720
    %v4790 = vadd.f32 %v4533, %v4722
    %v4791 = vadd.f32 %v4534, %v4724
    %v4792 = vadd.f32 %v4535, %v4726
    %v4793 = vadd.f32 %v4536, %v4728
    %v4794 = vadd.f32 %v4537, %v4730
    %v4795 = vld [vmem:[%s4538 + $0x1] sm:$0xff]
    %v4796 = vld [vmem:[%s4538 + $0x9] sm:$0xff]
    %v4797 = vld [vmem:[%s4538 + $0x19] sm:$0xff]
    %v4798 = vld [vmem:[%s4538 + $0x21] sm:$0xff]
    %v4799 = vld [vmem:[%s4538 + $0x31] sm:$0xff]
    %v4800 = vld [vmem:[%s4538 + $0x39] sm:$0xff]
    %v4801 = vld [vmem:[%s4538 + $0x49] sm:$0xff]
    %v4802 = vld [vmem:[%s4538 + $0x51] sm:$0xff]
    %v4803 = vld [vmem:[%s4538 + $0x61] sm:$0xff]
    %v4804 = vld [vmem:[%s4538 + $0x69] sm:$0xff]
    %v4805 = vld [vmem:[%s4538 + $0x79] sm:$0xff]
    %v4806 = vld [vmem:[%s4538 + $0x81] sm:$0xff]
    %v4807 = vld [vmem:[%s4538 + $0x91] sm:$0xff]
    %v4808 = vld [vmem:[%s4538 + $0x99] sm:$0xff]
    %v4809 = vld [vmem:[%s4538 + $0xa9] sm:$0xff]
    %v4810 = vld [vmem:[%s4538 + $0xb1] sm:$0xff]
    %v4811 = vld [vmem:[%s4538 + $0xc1] sm:$0xff]
    %v4812 = vld [vmem:[%s4538 + $0xc9] sm:$0xff]
    %v4813 = vld [vmem:[%s4538 + $0xd9] sm:$0xff]
    %v4814 = vld [vmem:[%s4538 + $0xe1] sm:$0xff]
    %v4815 = vld [vmem:[%s4538 + $0xf1] sm:$0xff]
    %v4816 = vld [vmem:[%s4538 + $0xf9] sm:$0xff]
    %v4817 = vld [vmem:[%s4538 + $0x109] sm:$0xff]
    %v4818 = vld [vmem:[%s4538 + $0x111] sm:$0xff]
    %v4819 = vld [vmem:[%s4538 + $0x121] sm:$0xff]
    %v4820 = vld [vmem:[%s4538 + $0x129] sm:$0xff]
    %v4821 = vld [vmem:[%s4538 + $0x139] sm:$0xff]
    %v4822 = vld [vmem:[%s4538 + $0x141] sm:$0xff]
    %v4823 = vld [vmem:[%s4538 + $0x151] sm:$0xff]
    %v4824 = vld [vmem:[%s4538 + $0x159] sm:$0xff]
    %v4825 = vld [vmem:[%s4538 + $0x169] sm:$0xff]
    %v4826 = vld [vmem:[%s4538 + $0x171] sm:$0xff]
    %v4827 = vld [vmem:[%s4538 + $0x1b1] sm:$0xff]
    %v4828 = vld [vmem:[%s4538 + $0x1b9] sm:$0xff]
    %v4829 = vld [vmem:[%s4538 + $0x1c9] sm:$0xff]
    %v4830 = vld [vmem:[%s4538 + $0x1d1] sm:$0xff]
    %v4831 = vld [vmem:[%s4538 + $0x1e1] sm:$0xff]
    %v4832 = vld [vmem:[%s4538 + $0x1e9] sm:$0xff]
    %v4833 = vld [vmem:[%s4538 + $0x1f9] sm:$0xff]
    %v4834 = vld [vmem:[%s4538 + $0x201] sm:$0xff]
    %v4835 = vld [vmem:[%s4538 + $0x211] sm:$0xff]
    %v4836 = vld [vmem:[%s4538 + $0x219] sm:$0xff]
    %v4837 = vld [vmem:[%s4538 + $0x229] sm:$0xff]
    %v4838 = vld [vmem:[%s4538 + $0x231] sm:$0xff]
    %v4839 = vld [vmem:[%s4538 + $0x241] sm:$0xff]
    %v4840 = vld [vmem:[%s4538 + $0x249] sm:$0xff]
    %v4841 = vld [vmem:[%s4538 + $0x259] sm:$0xff]
    %v4842 = vld [vmem:[%s4538 + $0x261] sm:$0xff]
    %v4843 = vld [vmem:[%s4538 + $0x271] sm:$0xff]
    %v4844 = vld [vmem:[%s4538 + $0x279] sm:$0xff]
    %v4845 = vld [vmem:[%s4538 + $0x289] sm:$0xff]
    %v4846 = vld [vmem:[%s4538 + $0x291] sm:$0xff]
    %v4847 = vld [vmem:[%s4538 + $0x2a1] sm:$0xff]
    %v4848 = vld [vmem:[%s4538 + $0x2a9] sm:$0xff]
    %v4849 = vld [vmem:[%s4538 + $0x2b9] sm:$0xff]
    %v4850 = vld [vmem:[%s4538 + $0x2c1] sm:$0xff]
    %v4851 = vld [vmem:[%s4538 + $0x2d1] sm:$0xff]
    %v4852 = vld [vmem:[%s4538 + $0x2d9] sm:$0xff]
    %v4853 = vld [vmem:[%s4538 + $0x2e9] sm:$0xff]
    %v4854 = vld [vmem:[%s4538 + $0x2f1] sm:$0xff]
    %v4855 = vld [vmem:[%s4538 + $0x301] sm:$0xff]
    %v4856 = vld [vmem:[%s4538 + $0x309] sm:$0xff]
    %v4857 = vld [vmem:[%s4538 + $0x319] sm:$0xff]
    %v4858 = vld [vmem:[%s4538 + $0x321] sm:$0xff]
    %4859 = vrot.lane.b32.xlu0 %v4795, 28
    %v4860 = vpop.permute.xlu0 %4859
    %4861 = vrot.lane.b32.xlu0 %v4796, 28
    %v4862 = vpop.permute.xlu0 %4861
    %4863 = vrot.lane.b32.xlu0 %v4797, 28
    %v4864 = vpop.permute.xlu0 %4863
    %4865 = vrot.lane.b32.xlu0 %v4798, 28
    %v4866 = vpop.permute.xlu0 %4865
    %4867 = vrot.lane.b32.xlu0 %v4799, 28
    %v4868 = vpop.permute.xlu0 %4867
    %4869 = vrot.lane.b32.xlu0 %v4800, 28
    %v4870 = vpop.permute.xlu0 %4869
    %4871 = vrot.lane.b32.xlu0 %v4801, 28
    %v4872 = vpop.permute.xlu0 %4871
    %4873 = vrot.lane.b32.xlu0 %v4802, 28
    %v4874 = vpop.permute.xlu0 %4873
    %4875 = vrot.lane.b32.xlu0 %v4803, 28
    %v4876 = vpop.permute.xlu0 %4875
    %4877 = vrot.lane.b32.xlu0 %v4804, 28
    %v4878 = vpop.permute.xlu0 %4877
    %4879 = vrot.lane.b32.xlu0 %v4805, 28
    %v4880 = vpop.permute.xlu0 %4879
    %4881 = vrot.lane.b32.xlu0 %v4806, 28
    %v4882 = vpop.permute.xlu0 %4881
    %4883 = vrot.lane.b32.xlu0 %v4807, 28
    %v4884 = vpop.permute.xlu0 %4883
    %4885 = vrot.lane.b32.xlu0 %v4808, 28
    %v4886 = vpop.permute.xlu0 %4885
    %4887 = vrot.lane.b32.xlu0 %v4809, 28
    %v4888 = vpop.permute.xlu0 %4887
    %4889 = vrot.lane.b32.xlu0 %v4810, 28
    %v4890 = vpop.permute.xlu0 %4889
    %4891 = vrot.lane.b32.xlu0 %v4811, 28
    %v4892 = vpop.permute.xlu0 %4891
    %4893 = vrot.lane.b32.xlu0 %v4812, 28
    %v4894 = vpop.permute.xlu0 %4893
    %4895 = vrot.lane.b32.xlu0 %v4813, 28
    %v4896 = vpop.permute.xlu0 %4895
    %4897 = vrot.lane.b32.xlu0 %v4814, 28
    %v4898 = vpop.permute.xlu0 %4897
    %4899 = vrot.lane.b32.xlu0 %v4815, 28
    %v4900 = vpop.permute.xlu0 %4899
    %4901 = vrot.lane.b32.xlu0 %v4816, 28
    %v4902 = vpop.permute.xlu0 %4901
    %4903 = vrot.lane.b32.xlu0 %v4817, 28
    %v4904 = vpop.permute.xlu0 %4903
    %4905 = vrot.lane.b32.xlu0 %v4818, 28
    %v4906 = vpop.permute.xlu0 %4905
    %4907 = vrot.lane.b32.xlu0 %v4819, 28
    %v4908 = vpop.permute.xlu0 %4907
    %4909 = vrot.lane.b32.xlu0 %v4820, 28
    %v4910 = vpop.permute.xlu0 %4909
    %4911 = vrot.lane.b32.xlu0 %v4821, 28
    %v4912 = vpop.permute.xlu0 %4911
    %4913 = vrot.lane.b32.xlu0 %v4822, 28
    %v4914 = vpop.permute.xlu0 %4913
    %4915 = vrot.lane.b32.xlu0 %v4823, 28
    %v4916 = vpop.permute.xlu0 %4915
    %4917 = vrot.lane.b32.xlu0 %v4824, 28
    %v4918 = vpop.permute.xlu0 %4917
    %4919 = vrot.lane.b32.xlu0 %v4825, 28
    %v4920 = vpop.permute.xlu0 %4919
    %4921 = vrot.lane.b32.xlu0 %v4826, 28
    %v4922 = vpop.permute.xlu0 %4921
    %4923 = vrot.lane.b32.xlu0 %v4827, 28
    %v4924 = vpop.permute.xlu0 %4923
    %4925 = vrot.lane.b32.xlu0 %v4828, 28
    %v4926 = vpop.permute.xlu0 %4925
    %4927 = vrot.lane.b32.xlu0 %v4829, 28
    %v4928 = vpop.permute.xlu0 %4927
    %4929 = vrot.lane.b32.xlu0 %v4830, 28
    %v4930 = vpop.permute.xlu0 %4929
    %4931 = vrot.lane.b32.xlu0 %v4831, 28
    %v4932 = vpop.permute.xlu0 %4931
    %4933 = vrot.lane.b32.xlu0 %v4832, 28
    %v4934 = vpop.permute.xlu0 %4933
    %4935 = vrot.lane.b32.xlu0 %v4833, 28
    %v4936 = vpop.permute.xlu0 %4935
    %4937 = vrot.lane.b32.xlu0 %v4834, 28
    %v4938 = vpop.permute.xlu0 %4937
    %4939 = vrot.lane.b32.xlu0 %v4835, 28
    %v4940 = vpop.permute.xlu0 %4939
    %4941 = vrot.lane.b32.xlu0 %v4836, 28
    %v4942 = vpop.permute.xlu0 %4941
    %4943 = vrot.lane.b32.xlu0 %v4837, 28
    %v4944 = vpop.permute.xlu0 %4943
    %4945 = vrot.lane.b32.xlu0 %v4838, 28
    %v4946 = vpop.permute.xlu0 %4945
    %4947 = vrot.lane.b32.xlu0 %v4839, 28
    %v4948 = vpop.permute.xlu0 %4947
    %4949 = vrot.lane.b32.xlu0 %v4840, 28
    %v4950 = vpop.permute.xlu0 %4949
    %4951 = vrot.lane.b32.xlu0 %v4841, 28
    %v4952 = vpop.permute.xlu0 %4951
    %4953 = vrot.lane.b32.xlu0 %v4842, 28
    %v4954 = vpop.permute.xlu0 %4953
    %4955 = vrot.lane.b32.xlu0 %v4843, 28
    %v4956 = vpop.permute.xlu0 %4955
    %4957 = vrot.lane.b32.xlu0 %v4844, 28
    %v4958 = vpop.permute.xlu0 %4957
    %4959 = vrot.lane.b32.xlu0 %v4845, 28
    %v4960 = vpop.permute.xlu0 %4959
    %4961 = vrot.lane.b32.xlu0 %v4846, 28
    %v4962 = vpop.permute.xlu0 %4961
    %4963 = vrot.lane.b32.xlu0 %v4847, 28
    %v4964 = vpop.permute.xlu0 %4963
    %4965 = vrot.lane.b32.xlu0 %v4848, 28
    %v4966 = vpop.permute.xlu0 %4965
    %4967 = vrot.lane.b32.xlu0 %v4849, 28
    %v4968 = vpop.permute.xlu0 %4967
    %4969 = vrot.lane.b32.xlu0 %v4850, 28
    %v4970 = vpop.permute.xlu0 %4969
    %4971 = vrot.lane.b32.xlu0 %v4851, 28
    %v4972 = vpop.permute.xlu0 %4971
    %4973 = vrot.lane.b32.xlu0 %v4852, 28
    %v4974 = vpop.permute.xlu0 %4973
    %4975 = vrot.lane.b32.xlu0 %v4853, 28
    %v4976 = vpop.permute.xlu0 %4975
    %4977 = vrot.lane.b32.xlu0 %v4854, 28
    %v4978 = vpop.permute.xlu0 %4977
    %4979 = vrot.lane.b32.xlu0 %v4855, 28
    %v4980 = vpop.permute.xlu0 %4979
    %4981 = vrot.lane.b32.xlu0 %v4856, 28
    %v4982 = vpop.permute.xlu0 %4981
    %4983 = vrot.lane.b32.xlu0 %v4857, 28
    %v4984 = vpop.permute.xlu0 %4983
    %4985 = vrot.lane.b32.xlu0 %v4858, 28
    %v4986 = vpop.permute.xlu0 %4985
    %v4987 = vadd.f32 %v4731, %v4860
    %v4988 = vadd.f32 %v4732, %v4862
    %v4989 = vadd.f32 %v4733, %v4864
    %v4990 = vadd.f32 %v4734, %v4866
    %v4991 = vadd.f32 %v4735, %v4868
    %v4992 = vadd.f32 %v4736, %v4870
    %v4993 = vadd.f32 %v4737, %v4872
    %v4994 = vadd.f32 %v4738, %v4874
    %v4995 = vadd.f32 %v4739, %v4876
    %v4996 = vadd.f32 %v4740, %v4878
    %v4997 = vadd.f32 %v4741, %v4880
    %v4998 = vadd.f32 %v4742, %v4882
    %v4999 = vadd.f32 %v4743, %v4884
    %v5000 = vadd.f32 %v4744, %v4886
    %v5001 = vadd.f32 %v4745, %v4888
    %v5002 = vadd.f32 %v4746, %v4890
    %v5003 = vadd.f32 %v4747, %v4892
    %v5004 = vadd.f32 %v4748, %v4894
    %v5005 = vadd.f32 %v4749, %v4896
    %v5006 = vadd.f32 %v4750, %v4898
    %v5007 = vadd.f32 %v4751, %v4900
    %v5008 = vadd.f32 %v4752, %v4902
    %v5009 = vadd.f32 %v4753, %v4904
    %v5010 = vadd.f32 %v4754, %v4906
    %v5011 = vadd.f32 %v4755, %v4908
    %v5012 = vadd.f32 %v4756, %v4910
    %v5013 = vadd.f32 %v4757, %v4912
    %v5014 = vadd.f32 %v4758, %v4914
    %v5015 = vadd.f32 %v4759, %v4916
    %v5016 = vadd.f32 %v4760, %v4918
    %v5017 = vadd.f32 %v4761, %v4920
    %v5018 = vadd.f32 %v4762, %v4922
    %v5019 = vadd.f32 %v4763, %v4924
    %v5020 = vadd.f32 %v4764, %v4926
    %v5021 = vadd.f32 %v4765, %v4928
    %v5022 = vadd.f32 %v4766, %v4930
    %v5023 = vadd.f32 %v4767, %v4932
    %v5024 = vadd.f32 %v4768, %v4934
    %v5025 = vadd.f32 %v4769, %v4936
    %v5026 = vadd.f32 %v4770, %v4938
    %v5027 = vadd.f32 %v4771, %v4940
    %v5028 = vadd.f32 %v4772, %v4942
    %v5029 = vadd.f32 %v4773, %v4944
    %v5030 = vadd.f32 %v4774, %v4946
    %v5031 = vadd.f32 %v4775, %v4948
    %v5032 = vadd.f32 %v4776, %v4950
    %v5033 = vadd.f32 %v4777, %v4952
    %v5034 = vadd.f32 %v4778, %v4954
    %v5035 = vadd.f32 %v4779, %v4956
    %v5036 = vadd.f32 %v4780, %v4958
    %v5037 = vadd.f32 %v4781, %v4960
    %v5038 = vadd.f32 %v4782, %v4962
    %v5039 = vadd.f32 %v4783, %v4964
    %v5040 = vadd.f32 %v4784, %v4966
    %v5041 = vadd.f32 %v4785, %v4968
    %v5042 = vadd.f32 %v4786, %v4970
    %v5043 = vadd.f32 %v4787, %v4972
    %v5044 = vadd.f32 %v4788, %v4974
    %v5045 = vadd.f32 %v4789, %v4976
    %v5046 = vadd.f32 %v4790, %v4978
    %v5047 = vadd.f32 %v4791, %v4980
    %v5048 = vadd.f32 %v4792, %v4982
    %v5049 = vadd.f32 %v4793, %v4984
    %v5050 = vadd.f32 %v4794, %v4986
    %v5051 = vld [vmem:[%s4538 + $0x2] sm:$0xff]
    %v5052 = vld [vmem:[%s4538 + $0xa] sm:$0xff]
    %v5053 = vld [vmem:[%s4538 + $0x1a] sm:$0xff]
    %v5054 = vld [vmem:[%s4538 + $0x22] sm:$0xff]
    %v5055 = vld [vmem:[%s4538 + $0x32] sm:$0xff]
    %v5056 = vld [vmem:[%s4538 + $0x3a] sm:$0xff]
    %v5057 = vld [vmem:[%s4538 + $0x4a] sm:$0xff]
    %v5058 = vld [vmem:[%s4538 + $0x52] sm:$0xff]
    %v5059 = vld [vmem:[%s4538 + $0x62] sm:$0xff]
    %v5060 = vld [vmem:[%s4538 + $0x6a] sm:$0xff]
    %v5061 = vld [vmem:[%s4538 + $0x7a] sm:$0xff]
    %v5062 = vld [vmem:[%s4538 + $0x82] sm:$0xff]
    %v5063 = vld [vmem:[%s4538 + $0x92] sm:$0xff]
    %v5064 = vld [vmem:[%s4538 + $0x9a] sm:$0xff]
    %v5065 = vld [vmem:[%s4538 + $0xaa] sm:$0xff]
    %v5066 = vld [vmem:[%s4538 + $0xb2] sm:$0xff]
    %v5067 = vld [vmem:[%s4538 + $0xc2] sm:$0xff]
    %v5068 = vld [vmem:[%s4538 + $0xca] sm:$0xff]
    %v5069 = vld [vmem:[%s4538 + $0xda] sm:$0xff]
    %v5070 = vld [vmem:[%s4538 + $0xe2] sm:$0xff]
    %v5071 = vld [vmem:[%s4538 + $0xf2] sm:$0xff]
    %v5072 = vld [vmem:[%s4538 + $0xfa] sm:$0xff]
    %v5073 = vld [vmem:[%s4538 + $0x10a] sm:$0xff]
    %v5074 = vld [vmem:[%s4538 + $0x112] sm:$0xff]
    %v5075 = vld [vmem:[%s4538 + $0x122] sm:$0xff]
    %v5076 = vld [vmem:[%s4538 + $0x12a] sm:$0xff]
    %v5077 = vld [vmem:[%s4538 + $0x13a] sm:$0xff]
    %v5078 = vld [vmem:[%s4538 + $0x142] sm:$0xff]
    %v5079 = vld [vmem:[%s4538 + $0x152] sm:$0xff]
    %v5080 = vld [vmem:[%s4538 + $0x15a] sm:$0xff]
    %v5081 = vld [vmem:[%s4538 + $0x16a] sm:$0xff]
    %v5082 = vld [vmem:[%s4538 + $0x172] sm:$0xff]
    %v5083 = vld [vmem:[%s4538 + $0x1b2] sm:$0xff]
    %v5084 = vld [vmem:[%s4538 + $0x1ba] sm:$0xff]
    %v5085 = vld [vmem:[%s4538 + $0x1ca] sm:$0xff]
    %v5086 = vld [vmem:[%s4538 + $0x1d2] sm:$0xff]
    %v5087 = vld [vmem:[%s4538 + $0x1e2] sm:$0xff]
    %v5088 = vld [vmem:[%s4538 + $0x1ea] sm:$0xff]
    %v5089 = vld [vmem:[%s4538 + $0x1fa] sm:$0xff]
    %v5090 = vld [vmem:[%s4538 + $0x202] sm:$0xff]
    %v5091 = vld [vmem:[%s4538 + $0x212] sm:$0xff]
    %v5092 = vld [vmem:[%s4538 + $0x21a] sm:$0xff]
    %v5093 = vld [vmem:[%s4538 + $0x22a] sm:$0xff]
    %v5094 = vld [vmem:[%s4538 + $0x232] sm:$0xff]
    %v5095 = vld [vmem:[%s4538 + $0x242] sm:$0xff]
    %v5096 = vld [vmem:[%s4538 + $0x24a] sm:$0xff]
    %v5097 = vld [vmem:[%s4538 + $0x25a] sm:$0xff]
    %v5098 = vld [vmem:[%s4538 + $0x262] sm:$0xff]
    %v5099 = vld [vmem:[%s4538 + $0x272] sm:$0xff]
    %v5100 = vld [vmem:[%s4538 + $0x27a] sm:$0xff]
    %v5101 = vld [vmem:[%s4538 + $0x28a] sm:$0xff]
    %v5102 = vld [vmem:[%s4538 + $0x292] sm:$0xff]
    %v5103 = vld [vmem:[%s4538 + $0x2a2] sm:$0xff]
    %v5104 = vld [vmem:[%s4538 + $0x2aa] sm:$0xff]
    %v5105 = vld [vmem:[%s4538 + $0x2ba] sm:$0xff]
    %v5106 = vld [vmem:[%s4538 + $0x2c2] sm:$0xff]
    %v5107 = vld [vmem:[%s4538 + $0x2d2] sm:$0xff]
    %v5108 = vld [vmem:[%s4538 + $0x2da] sm:$0xff]
    %v5109 = vld [vmem:[%s4538 + $0x2ea] sm:$0xff]
    %v5110 = vld [vmem:[%s4538 + $0x2f2] sm:$0xff]
    %v5111 = vld [vmem:[%s4538 + $0x302] sm:$0xff]
    %v5112 = vld [vmem:[%s4538 + $0x30a] sm:$0xff]
    %v5113 = vld [vmem:[%s4538 + $0x31a] sm:$0xff]
    %v5114 = vld [vmem:[%s4538 + $0x322] sm:$0xff]
    %5115 = vrot.lane.b32.xlu0 %v5051, 32
    %v5116 = vpop.permute.xlu0 %5115
    %5117 = vrot.lane.b32.xlu0 %v5052, 32
    %v5118 = vpop.permute.xlu0 %5117
    %5119 = vrot.lane.b32.xlu0 %v5053, 32
    %v5120 = vpop.permute.xlu0 %5119
    %5121 = vrot.lane.b32.xlu0 %v5054, 32
    %v5122 = vpop.permute.xlu0 %5121
    %5123 = vrot.lane.b32.xlu0 %v5055, 32
    %v5124 = vpop.permute.xlu0 %5123
    %5125 = vrot.lane.b32.xlu0 %v5056, 32
    %v5126 = vpop.permute.xlu0 %5125
    %5127 = vrot.lane.b32.xlu0 %v5057, 32
    %v5128 = vpop.permute.xlu0 %5127
    %5129 = vrot.lane.b32.xlu0 %v5058, 32
    %v5130 = vpop.permute.xlu0 %5129
    %5131 = vrot.lane.b32.xlu0 %v5059, 32
    %v5132 = vpop.permute.xlu0 %5131
    %5133 = vrot.lane.b32.xlu0 %v5060, 32
    %v5134 = vpop.permute.xlu0 %5133
    %5135 = vrot.lane.b32.xlu0 %v5061, 32
    %v5136 = vpop.permute.xlu0 %5135
    %5137 = vrot.lane.b32.xlu0 %v5062, 32
    %v5138 = vpop.permute.xlu0 %5137
    %5139 = vrot.lane.b32.xlu0 %v5063, 32
    %v5140 = vpop.permute.xlu0 %5139
    %5141 = vrot.lane.b32.xlu0 %v5064, 32
    %v5142 = vpop.permute.xlu0 %5141
    %5143 = vrot.lane.b32.xlu0 %v5065, 32
    %v5144 = vpop.permute.xlu0 %5143
    %5145 = vrot.lane.b32.xlu0 %v5066, 32
    %v5146 = vpop.permute.xlu0 %5145
    %5147 = vrot.lane.b32.xlu0 %v5067, 32
    %v5148 = vpop.permute.xlu0 %5147
    %5149 = vrot.lane.b32.xlu0 %v5068, 32
    %v5150 = vpop.permute.xlu0 %5149
    %5151 = vrot.lane.b32.xlu0 %v5069, 32
    %v5152 = vpop.permute.xlu0 %5151
    %5153 = vrot.lane.b32.xlu0 %v5070, 32
    %v5154 = vpop.permute.xlu0 %5153
    %5155 = vrot.lane.b32.xlu0 %v5071, 32
    %v5156 = vpop.permute.xlu0 %5155
    %5157 = vrot.lane.b32.xlu0 %v5072, 32
    %v5158 = vpop.permute.xlu0 %5157
    %5159 = vrot.lane.b32.xlu0 %v5073, 32
    %v5160 = vpop.permute.xlu0 %5159
    %5161 = vrot.lane.b32.xlu0 %v5074, 32
    %v5162 = vpop.permute.xlu0 %5161
    %5163 = vrot.lane.b32.xlu0 %v5075, 32
    %v5164 = vpop.permute.xlu0 %5163
    %5165 = vrot.lane.b32.xlu0 %v5076, 32
    %v5166 = vpop.permute.xlu0 %5165
    %5167 = vrot.lane.b32.xlu0 %v5077, 32
    %v5168 = vpop.permute.xlu0 %5167
    %5169 = vrot.lane.b32.xlu0 %v5078, 32
    %v5170 = vpop.permute.xlu0 %5169
    %5171 = vrot.lane.b32.xlu0 %v5079, 32
    %v5172 = vpop.permute.xlu0 %5171
    %5173 = vrot.lane.b32.xlu0 %v5080, 32
    %v5174 = vpop.permute.xlu0 %5173
    %5175 = vrot.lane.b32.xlu0 %v5081, 32
    %v5176 = vpop.permute.xlu0 %5175
    %5177 = vrot.lane.b32.xlu0 %v5082, 32
    %v5178 = vpop.permute.xlu0 %5177
    %5179 = vrot.lane.b32.xlu0 %v5083, 32
    %v5180 = vpop.permute.xlu0 %5179
    %5181 = vrot.lane.b32.xlu0 %v5084, 32
    %v5182 = vpop.permute.xlu0 %5181
    %5183 = vrot.lane.b32.xlu0 %v5085, 32
    %v5184 = vpop.permute.xlu0 %5183
    %5185 = vrot.lane.b32.xlu0 %v5086, 32
    %v5186 = vpop.permute.xlu0 %5185
    %5187 = vrot.lane.b32.xlu0 %v5087, 32
    %v5188 = vpop.permute.xlu0 %5187
    %5189 = vrot.lane.b32.xlu0 %v5088, 32
    %v5190 = vpop.permute.xlu0 %5189
    %5191 = vrot.lane.b32.xlu0 %v5089, 32
    %v5192 = vpop.permute.xlu0 %5191
    %5193 = vrot.lane.b32.xlu0 %v5090, 32
    %v5194 = vpop.permute.xlu0 %5193
    %5195 = vrot.lane.b32.xlu0 %v5091, 32
    %v5196 = vpop.permute.xlu0 %5195
    %5197 = vrot.lane.b32.xlu0 %v5092, 32
    %v5198 = vpop.permute.xlu0 %5197
    %5199 = vrot.lane.b32.xlu0 %v5093, 32
    %v5200 = vpop.permute.xlu0 %5199
    %5201 = vrot.lane.b32.xlu0 %v5094, 32
    %v5202 = vpop.permute.xlu0 %5201
    %5203 = vrot.lane.b32.xlu0 %v5095, 32
    %v5204 = vpop.permute.xlu0 %5203
    %5205 = vrot.lane.b32.xlu0 %v5096, 32
    %v5206 = vpop.permute.xlu0 %5205
    %5207 = vrot.lane.b32.xlu0 %v5097, 32
    %v5208 = vpop.permute.xlu0 %5207
    %5209 = vrot.lane.b32.xlu0 %v5098, 32
    %v5210 = vpop.permute.xlu0 %5209
    %5211 = vrot.lane.b32.xlu0 %v5099, 32
    %v5212 = vpop.permute.xlu0 %5211
    %5213 = vrot.lane.b32.xlu0 %v5100, 32
    %v5214 = vpop.permute.xlu0 %5213
    %5215 = vrot.lane.b32.xlu0 %v5101, 32
    %v5216 = vpop.permute.xlu0 %5215
    %5217 = vrot.lane.b32.xlu0 %v5102, 32
    %v5218 = vpop.permute.xlu0 %5217
    %5219 = vrot.lane.b32.xlu0 %v5103, 32
    %v5220 = vpop.permute.xlu0 %5219
    %5221 = vrot.lane.b32.xlu0 %v5104, 32
    %v5222 = vpop.permute.xlu0 %5221
    %5223 = vrot.lane.b32.xlu0 %v5105, 32
    %v5224 = vpop.permute.xlu0 %5223
    %5225 = vrot.lane.b32.xlu0 %v5106, 32
    %v5226 = vpop.permute.xlu0 %5225
    %5227 = vrot.lane.b32.xlu0 %v5107, 32
    %v5228 = vpop.permute.xlu0 %5227
    %5229 = vrot.lane.b32.xlu0 %v5108, 32
    %v5230 = vpop.permute.xlu0 %5229
    %5231 = vrot.lane.b32.xlu0 %v5109, 32
    %v5232 = vpop.permute.xlu0 %5231
    %5233 = vrot.lane.b32.xlu0 %v5110, 32
    %v5234 = vpop.permute.xlu0 %5233
    %5235 = vrot.lane.b32.xlu0 %v5111, 32
    %v5236 = vpop.permute.xlu0 %5235
    %5237 = vrot.lane.b32.xlu0 %v5112, 32
    %v5238 = vpop.permute.xlu0 %5237
    %5239 = vrot.lane.b32.xlu0 %v5113, 32
    %v5240 = vpop.permute.xlu0 %5239
    %5241 = vrot.lane.b32.xlu0 %v5114, 32
    %v5242 = vpop.permute.xlu0 %5241
    %v5243 = vadd.f32 %v4987, %v5116
    %v5244 = vadd.f32 %v4988, %v5118
    %v5245 = vadd.f32 %v4989, %v5120
    %v5246 = vadd.f32 %v4990, %v5122
    %v5247 = vadd.f32 %v4991, %v5124
    %v5248 = vadd.f32 %v4992, %v5126
    %v5249 = vadd.f32 %v4993, %v5128
    %v5250 = vadd.f32 %v4994, %v5130
    %v5251 = vadd.f32 %v4995, %v5132
    %v5252 = vadd.f32 %v4996, %v5134
    %v5253 = vadd.f32 %v4997, %v5136
    %v5254 = vadd.f32 %v4998, %v5138
    %v5255 = vadd.f32 %v4999, %v5140
    %v5256 = vadd.f32 %v5000, %v5142
    %v5257 = vadd.f32 %v5001, %v5144
    %v5258 = vadd.f32 %v5002, %v5146
    %v5259 = vadd.f32 %v5003, %v5148
    %v5260 = vadd.f32 %v5004, %v5150
    %v5261 = vadd.f32 %v5005, %v5152
    %v5262 = vadd.f32 %v5006, %v5154
    %v5263 = vadd.f32 %v5007, %v5156
    %v5264 = vadd.f32 %v5008, %v5158
    %v5265 = vadd.f32 %v5009, %v5160
    %v5266 = vadd.f32 %v5010, %v5162
    %v5267 = vadd.f32 %v5011, %v5164
    %v5268 = vadd.f32 %v5012, %v5166
    %v5269 = vadd.f32 %v5013, %v5168
    %v5270 = vadd.f32 %v5014, %v5170
    %v5271 = vadd.f32 %v5015, %v5172
    %v5272 = vadd.f32 %v5016, %v5174
    %v5273 = vadd.f32 %v5017, %v5176
    %v5274 = vadd.f32 %v5018, %v5178
    %v5275 = vadd.f32 %v5019, %v5180
    %v5276 = vadd.f32 %v5020, %v5182
    %v5277 = vadd.f32 %v5021, %v5184
    %v5278 = vadd.f32 %v5022, %v5186
    %v5279 = vadd.f32 %v5023, %v5188
    %v5280 = vadd.f32 %v5024, %v5190
    %v5281 = vadd.f32 %v5025, %v5192
    %v5282 = vadd.f32 %v5026, %v5194
    %v5283 = vadd.f32 %v5027, %v5196
    %v5284 = vadd.f32 %v5028, %v5198
    %v5285 = vadd.f32 %v5029, %v5200
    %v5286 = vadd.f32 %v5030, %v5202
    %v5287 = vadd.f32 %v5031, %v5204
    %v5288 = vadd.f32 %v5032, %v5206
    %v5289 = vadd.f32 %v5033, %v5208
    %v5290 = vadd.f32 %v5034, %v5210
    %v5291 = vadd.f32 %v5035, %v5212
    %v5292 = vadd.f32 %v5036, %v5214
    %v5293 = vadd.f32 %v5037, %v5216
    %v5294 = vadd.f32 %v5038, %v5218
    %v5295 = vadd.f32 %v5039, %v5220
    %v5296 = vadd.f32 %v5040, %v5222
    %v5297 = vadd.f32 %v5041, %v5224
    %v5298 = vadd.f32 %v5042, %v5226
    %v5299 = vadd.f32 %v5043, %v5228
    %v5300 = vadd.f32 %v5044, %v5230
    %v5301 = vadd.f32 %v5045, %v5232
    %v5302 = vadd.f32 %v5046, %v5234
    %v5303 = vadd.f32 %v5047, %v5236
    %v5304 = vadd.f32 %v5048, %v5238
    %v5305 = vadd.f32 %v5049, %v5240
    %v5306 = vadd.f32 %v5050, %v5242
    %v5307 = vpack.c.bf16 %v5244, %v5243
    %v5308 = vpack.c.bf16 %v5246, %v5245
    %v5309 = vpack.c.bf16 %v5248, %v5247
    %v5310 = vpack.c.bf16 %v5250, %v5249
    %v5311 = vpack.c.bf16 %v5252, %v5251
    %v5312 = vpack.c.bf16 %v5254, %v5253
    %v5313 = vpack.c.bf16 %v5256, %v5255
    %v5314 = vpack.c.bf16 %v5258, %v5257
    %v5315 = vpack.c.bf16 %v5260, %v5259
    %v5316 = vpack.c.bf16 %v5262, %v5261
    %v5317 = vpack.c.bf16 %v5264, %v5263
    %v5318 = vpack.c.bf16 %v5266, %v5265
    %v5319 = vpack.c.bf16 %v5268, %v5267
    %v5320 = vpack.c.bf16 %v5270, %v5269
    %v5321 = vpack.c.bf16 %v5272, %v5271
    %v5322 = vpack.c.bf16 %v5274, %v5273
    %v5323 = vpack.c.bf16 %v5276, %v5275
    %v5324 = vpack.c.bf16 %v5278, %v5277
    %v5325 = vpack.c.bf16 %v5280, %v5279
    %v5326 = vpack.c.bf16 %v5282, %v5281
    %v5327 = vpack.c.bf16 %v5284, %v5283
    %v5328 = vpack.c.bf16 %v5286, %v5285
    %v5329 = vpack.c.bf16 %v5288, %v5287
    %v5330 = vpack.c.bf16 %v5290, %v5289
    %v5331 = vpack.c.bf16 %v5292, %v5291
    %v5332 = vpack.c.bf16 %v5294, %v5293
    %v5333 = vpack.c.bf16 %v5296, %v5295
    %v5334 = vpack.c.bf16 %v5298, %v5297
    %v5335 = vpack.c.bf16 %v5300, %v5299
    %v5336 = vpack.c.bf16 %v5302, %v5301
    %v5337 = vpack.c.bf16 %v5304, %v5303
    %v5338 = vpack.c.bf16 %v5306, %v5305
    %v5339 = vld [vmem:[#allocation10] sm:$0xf]
    %v5340 = vld [vmem:[#allocation10 + $0x4] sm:$0xf]
    %v5341 = vld [vmem:[#allocation10 + $0x8] sm:$0xf]
    %v5342 = vld [vmem:[#allocation10 + $0xc] sm:$0xf]
    %v5343 = vld [vmem:[#allocation10 + $0x10] sm:$0xf]
    %v5344 = vld [vmem:[#allocation10 + $0x14] sm:$0xf]
    %v5345 = vld [vmem:[#allocation10 + $0x18] sm:$0xf]
    %v5346 = vld [vmem:[#allocation10 + $0x1c] sm:$0xf]
    %v5347 = vld [vmem:[#allocation10 + $0x20] sm:$0xf]
    %v5348 = vld [vmem:[#allocation10 + $0x24] sm:$0xf]
    %v5349 = vld [vmem:[#allocation10 + $0x28] sm:$0xf]
    %v5350 = vld [vmem:[#allocation10 + $0x2c] sm:$0xf]
    %v5351 = vld [vmem:[#allocation10 + $0x30] sm:$0xf]
    %v5352 = vld [vmem:[#allocation10 + $0x34] sm:$0xf]
    %v5353 = vld [vmem:[#allocation10 + $0x38] sm:$0xf]
    %v5354 = vld [vmem:[#allocation10 + $0x3c] sm:$0xf]
    %v5355 = vld [vmem:[%s4] sm:$0x1]
    %v5356 = vlaneseq
    %v5357 = vshrl.u32 %v5356, 7
    %v5358 = vsub.s32 0, %v5357
    %v5359 = vrot.slane %v5355, %v5358
    %v5376 = vunpack.c.l.b16 %v5339
    %v5377 = vunpack.c.l.b16 %v5340
    %v5378 = vunpack.c.l.b16 %v5341
    %v5379 = vunpack.c.l.b16 %v5342
    %v5380 = vunpack.c.l.b16 %v5343
    %v5381 = vunpack.c.l.b16 %v5344
    %v5382 = vunpack.c.l.b16 %v5345
    %v5383 = vunpack.c.l.b16 %v5346
    %v5384 = vunpack.c.l.b16 %v5347
    %v5385 = vunpack.c.l.b16 %v5348
    %v5386 = vunpack.c.l.b16 %v5349
    %v5387 = vunpack.c.l.b16 %v5350
    %v5388 = vunpack.c.l.b16 %v5351
    %v5389 = vunpack.c.l.b16 %v5352
    %v5390 = vunpack.c.l.b16 %v5353
    %v5391 = vunpack.c.l.b16 %v5354
    %v5392 = vpack.c.b16 %v5377, %v5376
    %v5393 = vpack.c.b16 %v5379, %v5378
    %v5394 = vpack.c.b16 %v5381, %v5380
    %v5395 = vpack.c.b16 %v5383, %v5382
    %v5396 = vpack.c.b16 %v5385, %v5384
    %v5397 = vpack.c.b16 %v5387, %v5386
    %v5398 = vpack.c.b16 %v5389, %v5388
    %v5399 = vpack.c.b16 %v5391, %v5390
    %5408 = vmatprep.subr.bf16.mxu0 0
    %5409 = vmatpush1.bf16.msra.mxu0 %v5399
    %5410 = vmatprep.subr.bf16.mxu0 0
    %5411 = vmatpush1.bf16.msra.mxu0 %v5398
    %5412 = vmatprep.subr.bf16.mxu0 0
    %5413 = vmatpush1.bf16.msra.mxu0 %v5397
    %5414 = vmatprep.subr.bf16.mxu0 0
    %5415 = vmatpush1.bf16.msra.mxu0 %v5396
    %5416 = vmatprep.subr.bf16.mxu0 0
    %5417 = vmatpush1.bf16.msra.mxu0 %v5395
    %5418 = vmatprep.subr.bf16.mxu0 0
    %5419 = vmatpush1.bf16.msra.mxu0 %v5394
    %5420 = vmatprep.subr.bf16.mxu0 0
    %5421 = vmatpush1.bf16.msra.mxu0 %v5393
    %5422 = vmatprep.subr.bf16.mxu0 0
    %5423 = vmatpush1.bf16.msra.mxu0 %v5392
    %5424 = vmatprep.subr.bf16.mxu0 0
    %5425 = vmatpush2.bf16.msra.mxu0 0
    %5426 = vmatprep.subr.bf16.mxu0 0
    %5427 = vmatpush2.bf16.msra.mxu0 0
    %5428 = vmatprep.subr.bf16.mxu0 0
    %5429 = vmatpush2.bf16.msra.mxu0 0
    %5430 = vmatprep.subr.bf16.mxu0 0
    %5431 = vmatpush2.bf16.msra.mxu0 0
    %5432 = vmatprep.subr.bf16.mxu0 0
    %5433 = vmatpush2.bf16.msra.mxu0 0
    %5434 = vmatprep.subr.bf16.mxu0 0
    %5435 = vmatpush2.bf16.msra.mxu0 0
    %5436 = vmatprep.subr.bf16.mxu0 0
    %5437 = vmatpush2.bf16.msra.mxu0 0
    %5438 = vmatprep.subr.bf16.mxu0 0
    %5439 = vmatpush2.bf16.msra.mxu0 0
    %5440 = vmatprep.mubr.bf16.mxu0 0
    %5441 = vmatmul.mubr.bf16.gmra.mxu0 %v5307
    %v5442 = vpop.f32.mrf.mxu0
    %v5443 = vadd.f32 %v5359, %v5442
    %v5444 = vpop.f32.mrf.mxu0
    %v5445 = vpop.f32.mrf.mxu0
    %v5446 = vadd.f32 %v5359, %v5445
    %v5447 = vpop.f32.mrf.mxu0
    %5448 = vmatprep.mubr.bf16.mxu0 0
    %5449 = vmatmul.mubr.bf16.gmra.mxu0 %v5308
    %v5450 = vpop.f32.mrf.mxu0
    %v5451 = vadd.f32 %v5359, %v5450
    %v5452 = vpop.f32.mrf.mxu0
    %v5453 = vpop.f32.mrf.mxu0
    %v5454 = vadd.f32 %v5359, %v5453
    %v5455 = vpop.f32.mrf.mxu0
    %5456 = vmatprep.mubr.bf16.mxu0 0
    %5457 = vmatmul.mubr.bf16.gmra.mxu0 %v5309
    %v5458 = vpop.f32.mrf.mxu0
    %v5459 = vadd.f32 %v5359, %v5458
    %v5460 = vpop.f32.mrf.mxu0
    %v5461 = vpop.f32.mrf.mxu0
    %v5462 = vadd.f32 %v5359, %v5461
    %v5463 = vpop.f32.mrf.mxu0
    %5464 = vmatprep.mubr.bf16.mxu0 0
    %5465 = vmatmul.mubr.bf16.gmra.mxu0 %v5310
    %v5466 = vpop.f32.mrf.mxu0
    %v5467 = vadd.f32 %v5359, %v5466
    %v5468 = vpop.f32.mrf.mxu0
    %v5469 = vpop.f32.mrf.mxu0
    %v5470 = vadd.f32 %v5359, %v5469
    %v5471 = vpop.f32.mrf.mxu0
    %5472 = vmatprep.mubr.bf16.mxu0 0
    %5473 = vmatmul.mubr.bf16.gmra.mxu0 %v5311
    %v5474 = vpop.f32.mrf.mxu0
    %v5475 = vadd.f32 %v5359, %v5474
    %v5476 = vpop.f32.mrf.mxu0
    %v5477 = vpop.f32.mrf.mxu0
    %v5478 = vadd.f32 %v5359, %v5477
    %v5479 = vpop.f32.mrf.mxu0
    %5480 = vmatprep.mubr.bf16.mxu0 0
    %5481 = vmatmul.mubr.bf16.gmra.mxu0 %v5312
    %v5482 = vpop.f32.mrf.mxu0
    %v5483 = vadd.f32 %v5359, %v5482
    %v5484 = vpop.f32.mrf.mxu0
    %v5485 = vpop.f32.mrf.mxu0
    %v5486 = vadd.f32 %v5359, %v5485
    %v5487 = vpop.f32.mrf.mxu0
    %5488 = vmatprep.mubr.bf16.mxu0 0
    %5489 = vmatmul.mubr.bf16.gmra.mxu0 %v5313
    %v5490 = vpop.f32.mrf.mxu0
    %v5491 = vadd.f32 %v5359, %v5490
    %v5492 = vpop.f32.mrf.mxu0
    %v5493 = vpop.f32.mrf.mxu0
    %v5494 = vadd.f32 %v5359, %v5493
    %v5495 = vpop.f32.mrf.mxu0
    %5496 = vmatprep.mubr.bf16.mxu0 0
    %5497 = vmatmul.mubr.bf16.gmra.mxu0 %v5314
    %v5498 = vpop.f32.mrf.mxu0
    %v5499 = vadd.f32 %v5359, %v5498
    %v5500 = vpop.f32.mrf.mxu0
    %v5501 = vpop.f32.mrf.mxu0
    %v5502 = vadd.f32 %v5359, %v5501
    %v5503 = vpop.f32.mrf.mxu0
    %5504 = vmatprep.mubr.bf16.mxu0 0
    %5505 = vmatmul.mubr.bf16.gmra.mxu0 %v5315
    %v5506 = vpop.f32.mrf.mxu0
    %v5507 = vadd.f32 %v5359, %v5506
    %v5508 = vpop.f32.mrf.mxu0
    %v5509 = vpop.f32.mrf.mxu0
    %v5510 = vadd.f32 %v5359, %v5509
    %v5511 = vpop.f32.mrf.mxu0
    %5512 = vmatprep.mubr.bf16.mxu0 0
    %5513 = vmatmul.mubr.bf16.gmra.mxu0 %v5316
    %v5514 = vpop.f32.mrf.mxu0
    %v5515 = vadd.f32 %v5359, %v5514
    %v5516 = vpop.f32.mrf.mxu0
    %v5517 = vpop.f32.mrf.mxu0
    %v5518 = vadd.f32 %v5359, %v5517
    %v5519 = vpop.f32.mrf.mxu0
    %5520 = vmatprep.mubr.bf16.mxu0 0
    %5521 = vmatmul.mubr.bf16.gmra.mxu0 %v5317
    %v5522 = vpop.f32.mrf.mxu0
    %v5523 = vadd.f32 %v5359, %v5522
    %v5524 = vpop.f32.mrf.mxu0
    %v5525 = vpop.f32.mrf.mxu0
    %v5526 = vadd.f32 %v5359, %v5525
    %v5527 = vpop.f32.mrf.mxu0
    %5528 = vmatprep.mubr.bf16.mxu0 0
    %5529 = vmatmul.mubr.bf16.gmra.mxu0 %v5318
    %v5530 = vpop.f32.mrf.mxu0
    %v5531 = vadd.f32 %v5359, %v5530
    %v5532 = vpop.f32.mrf.mxu0
    %v5533 = vpop.f32.mrf.mxu0
    %v5534 = vadd.f32 %v5359, %v5533
    %v5535 = vpop.f32.mrf.mxu0
    %5536 = vmatprep.mubr.bf16.mxu0 0
    %5537 = vmatmul.mubr.bf16.gmra.mxu0 %v5319
    %v5538 = vpop.f32.mrf.mxu0
    %v5539 = vadd.f32 %v5359, %v5538
    %v5540 = vpop.f32.mrf.mxu0
    %v5541 = vpop.f32.mrf.mxu0
    %v5542 = vadd.f32 %v5359, %v5541
    %v5543 = vpop.f32.mrf.mxu0
    %5544 = vmatprep.mubr.bf16.mxu0 0
    %5545 = vmatmul.mubr.bf16.gmra.mxu0 %v5320
    %v5546 = vpop.f32.mrf.mxu0
    %v5547 = vadd.f32 %v5359, %v5546
    %v5548 = vpop.f32.mrf.mxu0
    %v5549 = vpop.f32.mrf.mxu0
    %v5550 = vadd.f32 %v5359, %v5549
    %v5551 = vpop.f32.mrf.mxu0
    %5552 = vmatprep.mubr.bf16.mxu0 0
    %5553 = vmatmul.mubr.bf16.gmra.mxu0 %v5321
    %v5554 = vpop.f32.mrf.mxu0
    %v5555 = vadd.f32 %v5359, %v5554
    %v5556 = vpop.f32.mrf.mxu0
    %v5557 = vpop.f32.mrf.mxu0
    %v5558 = vadd.f32 %v5359, %v5557
    %v5559 = vpop.f32.mrf.mxu0
    %5560 = vmatprep.mubr.bf16.mxu0 0
    %5561 = vmatmul.mubr.bf16.gmra.mxu0 %v5322
    %v5562 = vpop.f32.mrf.mxu0
    %v5563 = vadd.f32 %v5359, %v5562
    %v5564 = vpop.f32.mrf.mxu0
    %v5565 = vpop.f32.mrf.mxu0
    %v5566 = vadd.f32 %v5359, %v5565
    %v5567 = vpop.f32.mrf.mxu0
    %5568 = vmatprep.mubr.bf16.mxu0 0
    %5569 = vmatmul.mubr.bf16.gmra.mxu0 %v5323
    %v5570 = vpop.f32.mrf.mxu0
    %v5571 = vadd.f32 %v5359, %v5570
    %v5572 = vpop.f32.mrf.mxu0
    %v5573 = vpop.f32.mrf.mxu0
    %v5574 = vadd.f32 %v5359, %v5573
    %v5575 = vpop.f32.mrf.mxu0
    %5576 = vmatprep.mubr.bf16.mxu0 0
    %5577 = vmatmul.mubr.bf16.gmra.mxu0 %v5324
    %v5578 = vpop.f32.mrf.mxu0
    %v5579 = vadd.f32 %v5359, %v5578
    %v5580 = vpop.f32.mrf.mxu0
    %v5581 = vpop.f32.mrf.mxu0
    %v5582 = vadd.f32 %v5359, %v5581
    %v5583 = vpop.f32.mrf.mxu0
    %5584 = vmatprep.mubr.bf16.mxu0 0
    %5585 = vmatmul.mubr.bf16.gmra.mxu0 %v5325
    %v5586 = vpop.f32.mrf.mxu0
    %v5587 = vadd.f32 %v5359, %v5586
    %v5588 = vpop.f32.mrf.mxu0
    %v5589 = vpop.f32.mrf.mxu0
    %v5590 = vadd.f32 %v5359, %v5589
    %v5591 = vpop.f32.mrf.mxu0
    %5592 = vmatprep.mubr.bf16.mxu0 0
    %5593 = vmatmul.mubr.bf16.gmra.mxu0 %v5326
    %v5594 = vpop.f32.mrf.mxu0
    %v5595 = vadd.f32 %v5359, %v5594
    %v5596 = vpop.f32.mrf.mxu0
    %v5597 = vpop.f32.mrf.mxu0
    %v5598 = vadd.f32 %v5359, %v5597
    %v5599 = vpop.f32.mrf.mxu0
    %5600 = vmatprep.mubr.bf16.mxu0 0
    %5601 = vmatmul.mubr.bf16.gmra.mxu0 %v5327
    %v5602 = vpop.f32.mrf.mxu0
    %v5603 = vadd.f32 %v5359, %v5602
    %v5604 = vpop.f32.mrf.mxu0
    %v5605 = vpop.f32.mrf.mxu0
    %v5606 = vadd.f32 %v5359, %v5605
    %v5607 = vpop.f32.mrf.mxu0
    %5608 = vmatprep.mubr.bf16.mxu0 0
    %5609 = vmatmul.mubr.bf16.gmra.mxu0 %v5328
    %v5610 = vpop.f32.mrf.mxu0
    %v5611 = vadd.f32 %v5359, %v5610
    %v5612 = vpop.f32.mrf.mxu0
    %v5613 = vpop.f32.mrf.mxu0
    %v5614 = vadd.f32 %v5359, %v5613
    %v5615 = vpop.f32.mrf.mxu0
    %5616 = vmatprep.mubr.bf16.mxu0 0
    %5617 = vmatmul.mubr.bf16.gmra.mxu0 %v5329
    %v5618 = vpop.f32.mrf.mxu0
    %v5619 = vadd.f32 %v5359, %v5618
    %v5620 = vpop.f32.mrf.mxu0
    %v5621 = vpop.f32.mrf.mxu0
    %v5622 = vadd.f32 %v5359, %v5621
    %v5623 = vpop.f32.mrf.mxu0
    %5624 = vmatprep.mubr.bf16.mxu0 0
    %5625 = vmatmul.mubr.bf16.gmra.mxu0 %v5330
    %v5626 = vpop.f32.mrf.mxu0
    %v5627 = vadd.f32 %v5359, %v5626
    %v5628 = vpop.f32.mrf.mxu0
    %v5629 = vpop.f32.mrf.mxu0
    %v5630 = vadd.f32 %v5359, %v5629
    %v5631 = vpop.f32.mrf.mxu0
    %5632 = vmatprep.mubr.bf16.mxu0 0
    %5633 = vmatmul.mubr.bf16.gmra.mxu0 %v5331
    %v5634 = vpop.f32.mrf.mxu0
    %v5635 = vadd.f32 %v5359, %v5634
    %v5636 = vpop.f32.mrf.mxu0
    %v5637 = vpop.f32.mrf.mxu0
    %v5638 = vadd.f32 %v5359, %v5637
    %v5639 = vpop.f32.mrf.mxu0
    %5640 = vmatprep.mubr.bf16.mxu0 0
    %5641 = vmatmul.mubr.bf16.gmra.mxu0 %v5332
    %v5642 = vpop.f32.mrf.mxu0
    %v5643 = vadd.f32 %v5359, %v5642
    %v5644 = vpop.f32.mrf.mxu0
    %v5645 = vpop.f32.mrf.mxu0
    %v5646 = vadd.f32 %v5359, %v5645
    %v5647 = vpop.f32.mrf.mxu0
    %5648 = vmatprep.mubr.bf16.mxu0 0
    %5649 = vmatmul.mubr.bf16.gmra.mxu0 %v5333
    %v5650 = vpop.f32.mrf.mxu0
    %v5651 = vadd.f32 %v5359, %v5650
    %v5652 = vpop.f32.mrf.mxu0
    %v5653 = vpop.f32.mrf.mxu0
    %v5654 = vadd.f32 %v5359, %v5653
    %v5655 = vpop.f32.mrf.mxu0
    %5656 = vmatprep.mubr.bf16.mxu0 0
    %5657 = vmatmul.mubr.bf16.gmra.mxu0 %v5334
    %v5658 = vpop.f32.mrf.mxu0
    %v5659 = vadd.f32 %v5359, %v5658
    %v5660 = vpop.f32.mrf.mxu0
    %v5661 = vpop.f32.mrf.mxu0
    %v5662 = vadd.f32 %v5359, %v5661
    %v5663 = vpop.f32.mrf.mxu0
    %5664 = vmatprep.mubr.bf16.mxu0 0
    %5665 = vmatmul.mubr.bf16.gmra.mxu0 %v5335
    %v5666 = vpop.f32.mrf.mxu0
    %v5667 = vadd.f32 %v5359, %v5666
    %v5668 = vpop.f32.mrf.mxu0
    %v5669 = vpop.f32.mrf.mxu0
    %v5670 = vadd.f32 %v5359, %v5669
    %v5671 = vpop.f32.mrf.mxu0
    %5672 = vmatprep.mubr.bf16.mxu0 0
    %5673 = vmatmul.mubr.bf16.gmra.mxu0 %v5336
    %v5674 = vpop.f32.mrf.mxu0
    %v5675 = vadd.f32 %v5359, %v5674
    %v5676 = vpop.f32.mrf.mxu0
    %v5677 = vpop.f32.mrf.mxu0
    %v5678 = vadd.f32 %v5359, %v5677
    %v5679 = vpop.f32.mrf.mxu0
    %5680 = vmatprep.mubr.bf16.mxu0 0
    %5681 = vmatmul.mubr.bf16.gmra.mxu0 %v5337
    %v5682 = vpop.f32.mrf.mxu0
    %v5683 = vadd.f32 %v5359, %v5682
    %v5684 = vpop.f32.mrf.mxu0
    %v5685 = vpop.f32.mrf.mxu0
    %v5686 = vadd.f32 %v5359, %v5685
    %v5687 = vpop.f32.mrf.mxu0
    %5688 = vmatprep.mubr.bf16.mxu0 0
    %5689 = vmatmul.mubr.bf16.gmra.mxu0 %v5338
    %v5690 = vpop.f32.mrf.mxu0
    %v5691 = vadd.f32 %v5359, %v5690
    %v5692 = vpop.f32.mrf.mxu0
    %v5693 = vpop.f32.mrf.mxu0
    %v5694 = vadd.f32 %v5359, %v5693
    %v5695 = vpop.f32.mrf.mxu0
    %5696 = vdwg.mxu0
    %v5697 = vadd.f32 %v5443, %v5446
    %v5698 = vadd.f32 %v5697, %v5451
    %v5699 = vadd.f32 %v5698, %v5454
    %v5700 = vadd.f32 %v5699, %v5459
    %v5701 = vadd.f32 %v5700, %v5462
    %v5702 = vadd.f32 %v5701, %v5467
    %v5703 = vadd.f32 %v5702, %v5470
    %v5704 = vadd.f32 %v5703, %v5475
    %v5705 = vadd.f32 %v5704, %v5478
    %v5706 = vadd.f32 %v5705, %v5483
    %v5707 = vadd.f32 %v5706, %v5486
    %v5708 = vadd.f32 %v5707, %v5491
    %v5709 = vadd.f32 %v5708, %v5494
    %v5710 = vadd.f32 %v5709, %v5499
    %v5711 = vadd.f32 %v5710, %v5502
    %v5712 = vadd.f32 %v5711, %v5507
    %v5713 = vadd.f32 %v5712, %v5510
    %v5714 = vadd.f32 %v5713, %v5515
    %v5715 = vadd.f32 %v5714, %v5518
    %v5716 = vadd.f32 %v5715, %v5523
    %v5717 = vadd.f32 %v5716, %v5526
    %v5718 = vadd.f32 %v5717, %v5531
    %v5719 = vadd.f32 %v5718, %v5534
    %v5720 = vadd.f32 %v5719, %v5539
    %v5721 = vadd.f32 %v5720, %v5542
    %v5722 = vadd.f32 %v5721, %v5547
    %v5723 = vadd.f32 %v5722, %v5550
    %v5724 = vadd.f32 %v5723, %v5555
    %v5725 = vadd.f32 %v5724, %v5558
    %v5726 = vadd.f32 %v5725, %v5563
    %v5727 = vadd.f32 %v5726, %v5566
    %v5728 = vadd.f32 %v5727, %v5571
    %v5729 = vadd.f32 %v5728, %v5574
    %v5730 = vadd.f32 %v5729, %v5579
    %v5731 = vadd.f32 %v5730, %v5582
    %v5732 = vadd.f32 %v5731, %v5587
    %v5733 = vadd.f32 %v5732, %v5590
    %v5734 = vadd.f32 %v5733, %v5595
    %v5735 = vadd.f32 %v5734, %v5598
    %v5736 = vadd.f32 %v5735, %v5603
    %v5737 = vadd.f32 %v5736, %v5606
    %v5738 = vadd.f32 %v5737, %v5611
    %v5739 = vadd.f32 %v5738, %v5614
    %v5740 = vadd.f32 %v5739, %v5619
    %v5741 = vadd.f32 %v5740, %v5622
    %v5742 = vadd.f32 %v5741, %v5627
    %v5743 = vadd.f32 %v5742, %v5630
    %v5744 = vadd.f32 %v5743, %v5635
    %v5745 = vadd.f32 %v5744, %v5638
    %v5746 = vadd.f32 %v5745, %v5643
    %v5747 = vadd.f32 %v5746, %v5646
    %v5748 = vadd.f32 %v5747, %v5651
    %v5749 = vadd.f32 %v5748, %v5654
    %v5750 = vadd.f32 %v5749, %v5659
    %v5751 = vadd.f32 %v5750, %v5662
    %v5752 = vadd.f32 %v5751, %v5667
    %v5753 = vadd.f32 %v5752, %v5670
    %v5754 = vadd.f32 %v5753, %v5675
    %v5755 = vadd.f32 %v5754, %v5678
    %v5756 = vadd.f32 %v5755, %v5683
    %v5757 = vadd.f32 %v5756, %v5686
    %v5758 = vadd.f32 %v5757, %v5691
    %v5759 = vadd.f32 %v5758, %v5694
    %v5760 = vrot.slane %v5759, 4
    %v5761 = vadd.f32 %v5759, %v5760
    %v5762 = vrot.slane %v5761, 2
    %v5763 = vadd.f32 %v5761, %v5762
    %v5764 = vrot.slane %v5763, 1
    %v5765 = vadd.f32 %v5763, %v5764
    %v5766 = vmul.f32 %v5765, 0.001953125
    %v5767 = vsub.f32 %v5443, %v5766
    %v5768 = vsub.f32 %v5446, %v5766
    %v5769 = vsub.f32 %v5451, %v5766
    %v5770 = vsub.f32 %v5454, %v5766
    %v5771 = vsub.f32 %v5459, %v5766
    %v5772 = vsub.f32 %v5462, %v5766
    %v5773 = vsub.f32 %v5467, %v5766
    %v5774 = vsub.f32 %v5470, %v5766
    %v5775 = vsub.f32 %v5475, %v5766
    %v5776 = vsub.f32 %v5478, %v5766
    %v5777 = vsub.f32 %v5483, %v5766
    %v5778 = vsub.f32 %v5486, %v5766
    %v5779 = vsub.f32 %v5491, %v5766
    %v5780 = vsub.f32 %v5494, %v5766
    %v5781 = vsub.f32 %v5499, %v5766
    %v5782 = vsub.f32 %v5502, %v5766
    %v5783 = vsub.f32 %v5507, %v5766
    %v5784 = vsub.f32 %v5510, %v5766
    %v5785 = vsub.f32 %v5515, %v5766
    %v5786 = vsub.f32 %v5518, %v5766
    %v5787 = vsub.f32 %v5523, %v5766
    %v5788 = vsub.f32 %v5526, %v5766
    %v5789 = vsub.f32 %v5531, %v5766
    %v5790 = vsub.f32 %v5534, %v5766
    %v5791 = vsub.f32 %v5539, %v5766
    %v5792 = vsub.f32 %v5542, %v5766
    %v5793 = vsub.f32 %v5547, %v5766
    %v5794 = vsub.f32 %v5550, %v5766
    %v5795 = vsub.f32 %v5555, %v5766
    %v5796 = vsub.f32 %v5558, %v5766
    %v5797 = vsub.f32 %v5563, %v5766
    %v5798 = vsub.f32 %v5566, %v5766
    %v5799 = vsub.f32 %v5571, %v5766
    %v5800 = vsub.f32 %v5574, %v5766
    %v5801 = vsub.f32 %v5579, %v5766
    %v5802 = vsub.f32 %v5582, %v5766
    %v5803 = vsub.f32 %v5587, %v5766
    %v5804 = vsub.f32 %v5590, %v5766
    %v5805 = vsub.f32 %v5595, %v5766
    %v5806 = vsub.f32 %v5598, %v5766
    %v5807 = vsub.f32 %v5603, %v5766
    %v5808 = vsub.f32 %v5606, %v5766
    %v5809 = vsub.f32 %v5611, %v5766
    %v5810 = vsub.f32 %v5614, %v5766
    %v5811 = vsub.f32 %v5619, %v5766
    %v5812 = vsub.f32 %v5622, %v5766
    %v5813 = vsub.f32 %v5627, %v5766
    %v5814 = vsub.f32 %v5630, %v5766
    %v5815 = vsub.f32 %v5635, %v5766
    %v5816 = vsub.f32 %v5638, %v5766
    %v5817 = vsub.f32 %v5643, %v5766
    %v5818 = vsub.f32 %v5646, %v5766
    %v5819 = vsub.f32 %v5651, %v5766
    %v5820 = vsub.f32 %v5654, %v5766
    %v5821 = vsub.f32 %v5659, %v5766
    %v5822 = vsub.f32 %v5662, %v5766
    %v5823 = vsub.f32 %v5667, %v5766
    %v5824 = vsub.f32 %v5670, %v5766
    %v5825 = vsub.f32 %v5675, %v5766
    %v5826 = vsub.f32 %v5678, %v5766
    %v5827 = vsub.f32 %v5683, %v5766
    %v5828 = vsub.f32 %v5686, %v5766
    %v5829 = vsub.f32 %v5691, %v5766
    %v5830 = vsub.f32 %v5694, %v5766
    %v5831 = vmul.f32 %v5767, %v5767
    %v5832 = vmul.f32 %v5768, %v5768
    %v5833 = vmul.f32 %v5769, %v5769
    %v5834 = vmul.f32 %v5770, %v5770
    %v5835 = vmul.f32 %v5771, %v5771
    %v5836 = vmul.f32 %v5772, %v5772
    %v5837 = vmul.f32 %v5773, %v5773
    %v5838 = vmul.f32 %v5774, %v5774
    %v5839 = vmul.f32 %v5775, %v5775
    %v5840 = vmul.f32 %v5776, %v5776
    %v5841 = vmul.f32 %v5777, %v5777
    %v5842 = vmul.f32 %v5778, %v5778
    %v5843 = vmul.f32 %v5779, %v5779
    %v5844 = vmul.f32 %v5780, %v5780
    %v5845 = vmul.f32 %v5781, %v5781
    %v5846 = vmul.f32 %v5782, %v5782
    %v5847 = vmul.f32 %v5783, %v5783
    %v5848 = vmul.f32 %v5784, %v5784
    %v5849 = vmul.f32 %v5785, %v5785
    %v5850 = vmul.f32 %v5786, %v5786
    %v5851 = vmul.f32 %v5787, %v5787
    %v5852 = vmul.f32 %v5788, %v5788
    %v5853 = vmul.f32 %v5789, %v5789
    %v5854 = vmul.f32 %v5790, %v5790
    %v5855 = vmul.f32 %v5791, %v5791
    %v5856 = vmul.f32 %v5792, %v5792
    %v5857 = vmul.f32 %v5793, %v5793
    %v5858 = vmul.f32 %v5794, %v5794
    %v5859 = vmul.f32 %v5795, %v5795
    %v5860 = vmul.f32 %v5796, %v5796
    %v5861 = vmul.f32 %v5797, %v5797
    %v5862 = vmul.f32 %v5798, %v5798
    %v5863 = vmul.f32 %v5799, %v5799
    %v5864 = vmul.f32 %v5800, %v5800
    %v5865 = vmul.f32 %v5801, %v5801
    %v5866 = vmul.f32 %v5802, %v5802
    %v5867 = vmul.f32 %v5803, %v5803
    %v5868 = vmul.f32 %v5804, %v5804
    %v5869 = vmul.f32 %v5805, %v5805
    %v5870 = vmul.f32 %v5806, %v5806
    %v5871 = vmul.f32 %v5807, %v5807
    %v5872 = vmul.f32 %v5808, %v5808
    %v5873 = vmul.f32 %v5809, %v5809
    %v5874 = vmul.f32 %v5810, %v5810
    %v5875 = vmul.f32 %v5811, %v5811
    %v5876 = vmul.f32 %v5812, %v5812
    %v5877 = vmul.f32 %v5813, %v5813
    %v5878 = vmul.f32 %v5814, %v5814
    %v5879 = vmul.f32 %v5815, %v5815
    %v5880 = vmul.f32 %v5816, %v5816
    %v5881 = vmul.f32 %v5817, %v5817
    %v5882 = vmul.f32 %v5818, %v5818
    %v5883 = vmul.f32 %v5819, %v5819
    %v5884 = vmul.f32 %v5820, %v5820
    %v5885 = vmul.f32 %v5821, %v5821
    %v5886 = vmul.f32 %v5822, %v5822
    %v5887 = vmul.f32 %v5823, %v5823
    %v5888 = vmul.f32 %v5824, %v5824
    %v5889 = vmul.f32 %v5825, %v5825
    %v5890 = vmul.f32 %v5826, %v5826
    %v5891 = vmul.f32 %v5827, %v5827
    %v5892 = vmul.f32 %v5828, %v5828
    %v5893 = vmul.f32 %v5829, %v5829
    %v5894 = vmul.f32 %v5830, %v5830
    %v5895 = vadd.f32 %v5831, %v5832
    %v5896 = vadd.f32 %v5895, %v5833
    %v5897 = vadd.f32 %v5896, %v5834
    %v5898 = vadd.f32 %v5897, %v5835
    %v5899 = vadd.f32 %v5898, %v5836
    %v5900 = vadd.f32 %v5899, %v5837
    %v5901 = vadd.f32 %v5900, %v5838
    %v5902 = vadd.f32 %v5901, %v5839
    %v5903 = vadd.f32 %v5902, %v5840
    %v5904 = vadd.f32 %v5903, %v5841
    %v5905 = vadd.f32 %v5904, %v5842
    %v5906 = vadd.f32 %v5905, %v5843
    %v5907 = vadd.f32 %v5906, %v5844
    %v5908 = vadd.f32 %v5907, %v5845
    %v5909 = vadd.f32 %v5908, %v5846
    %v5910 = vadd.f32 %v5909, %v5847
    %v5911 = vadd.f32 %v5910, %v5848
    %v5912 = vadd.f32 %v5911, %v5849
    %v5913 = vadd.f32 %v5912, %v5850
    %v5914 = vadd.f32 %v5913, %v5851
    %v5915 = vadd.f32 %v5914, %v5852
    %v5916 = vadd.f32 %v5915, %v5853
    %v5917 = vadd.f32 %v5916, %v5854
    %v5918 = vadd.f32 %v5917, %v5855
    %v5919 = vadd.f32 %v5918, %v5856
    %v5920 = vadd.f32 %v5919, %v5857
    %v5921 = vadd.f32 %v5920, %v5858
    %v5922 = vadd.f32 %v5921, %v5859
    %v5923 = vadd.f32 %v5922, %v5860
    %v5924 = vadd.f32 %v5923, %v5861
    %v5925 = vadd.f32 %v5924, %v5862
    %v5926 = vadd.f32 %v5925, %v5863
    %v5927 = vadd.f32 %v5926, %v5864
    %v5928 = vadd.f32 %v5927, %v5865
    %v5929 = vadd.f32 %v5928, %v5866
    %v5930 = vadd.f32 %v5929, %v5867
    %v5931 = vadd.f32 %v5930, %v5868
    %v5932 = vadd.f32 %v5931, %v5869
    %v5933 = vadd.f32 %v5932, %v5870
    %v5934 = vadd.f32 %v5933, %v5871
    %v5935 = vadd.f32 %v5934, %v5872
    %v5936 = vadd.f32 %v5935, %v5873
    %v5937 = vadd.f32 %v5936, %v5874
    %v5938 = vadd.f32 %v5937, %v5875
    %v5939 = vadd.f32 %v5938, %v5876
    %v5940 = vadd.f32 %v5939, %v5877
    %v5941 = vadd.f32 %v5940, %v5878
    %v5942 = vadd.f32 %v5941, %v5879
    %v5943 = vadd.f32 %v5942, %v5880
    %v5944 = vadd.f32 %v5943, %v5881
    %v5945 = vadd.f32 %v5944, %v5882
    %v5946 = vadd.f32 %v5945, %v5883
    %v5947 = vadd.f32 %v5946, %v5884
    %v5948 = vadd.f32 %v5947, %v5885
    %v5949 = vadd.f32 %v5948, %v5886
    %v5950 = vadd.f32 %v5949, %v5887
    %v5951 = vadd.f32 %v5950, %v5888
    %v5952 = vadd.f32 %v5951, %v5889
    %v5953 = vadd.f32 %v5952, %v5890
    %v5954 = vadd.f32 %v5953, %v5891
    %v5955 = vadd.f32 %v5954, %v5892
    %v5956 = vadd.f32 %v5955, %v5893
    %v5957 = vadd.f32 %v5956, %v5894
    %v5958 = vrot.slane %v5957, 4
    %v5959 = vadd.f32 %v5957, %v5958
    %v5960 = vrot.slane %v5959, 2
    %v5961 = vadd.f32 %v5959, %v5960
    %v5962 = vrot.slane %v5961, 1
    %v5963 = vadd.f32 %v5961, %v5962
    %v5964 = vmul.f32 %v5963, 0.001953125
    %v5965 = vadd.f32 %v5964, 1e-05
    %v5966 = vrsqrt.pop %v5965
    %v5967 = vld [vmem:[%s4 + $0x1] sm:$0x1]
    %v5968 = vmul.f32 %v5966, %v5967
    %v5969 = vlaneseq
    %v5970 = vshrl.u32 %v5969, 7
    %v5971 = vsub.s32 0, %v5970
    %v5972 = vrot.slane %v5968, %v5971
    %v5973 = vmul.f32 %v5767, %v5972
    %v5974 = vmul.f32 %v5768, %v5972
    %v5975 = vmul.f32 %v5769, %v5972
    %v5976 = vmul.f32 %v5770, %v5972
    %v5977 = vmul.f32 %v5771, %v5972
    %v5978 = vmul.f32 %v5772, %v5972
    %v5979 = vmul.f32 %v5773, %v5972
    %v5980 = vmul.f32 %v5774, %v5972
    %v5981 = vmul.f32 %v5775, %v5972
    %v5982 = vmul.f32 %v5776, %v5972
    %v5983 = vmul.f32 %v5777, %v5972
    %v5984 = vmul.f32 %v5778, %v5972
    %v5985 = vmul.f32 %v5779, %v5972
    %v5986 = vmul.f32 %v5780, %v5972
    %v5987 = vmul.f32 %v5781, %v5972
    %v5988 = vmul.f32 %v5782, %v5972
    %v5989 = vmul.f32 %v5783, %v5972
    %v5990 = vmul.f32 %v5784, %v5972
    %v5991 = vmul.f32 %v5785, %v5972
    %v5992 = vmul.f32 %v5786, %v5972
    %v5993 = vmul.f32 %v5787, %v5972
    %v5994 = vmul.f32 %v5788, %v5972
    %v5995 = vmul.f32 %v5789, %v5972
    %v5996 = vmul.f32 %v5790, %v5972
    %v5997 = vmul.f32 %v5791, %v5972
    %v5998 = vmul.f32 %v5792, %v5972
    %v5999 = vmul.f32 %v5793, %v5972
    %v6000 = vmul.f32 %v5794, %v5972
    %v6001 = vmul.f32 %v5795, %v5972
    %v6002 = vmul.f32 %v5796, %v5972
    %v6003 = vmul.f32 %v5797, %v5972
    %v6004 = vmul.f32 %v5798, %v5972
    %v6005 = vmul.f32 %v5799, %v5972
    %v6006 = vmul.f32 %v5800, %v5972
    %v6007 = vmul.f32 %v5801, %v5972
    %v6008 = vmul.f32 %v5802, %v5972
    %v6009 = vmul.f32 %v5803, %v5972
    %v6010 = vmul.f32 %v5804, %v5972
    %v6011 = vmul.f32 %v5805, %v5972
    %v6012 = vmul.f32 %v5806, %v5972
    %v6013 = vmul.f32 %v5807, %v5972
    %v6014 = vmul.f32 %v5808, %v5972
    %v6015 = vmul.f32 %v5809, %v5972
    %v6016 = vmul.f32 %v5810, %v5972
    %v6017 = vmul.f32 %v5811, %v5972
    %v6018 = vmul.f32 %v5812, %v5972
    %v6019 = vmul.f32 %v5813, %v5972
    %v6020 = vmul.f32 %v5814, %v5972
    %v6021 = vmul.f32 %v5815, %v5972
    %v6022 = vmul.f32 %v5816, %v5972
    %v6023 = vmul.f32 %v5817, %v5972
    %v6024 = vmul.f32 %v5818, %v5972
    %v6025 = vmul.f32 %v5819, %v5972
    %v6026 = vmul.f32 %v5820, %v5972
    %v6027 = vmul.f32 %v5821, %v5972
    %v6028 = vmul.f32 %v5822, %v5972
    %v6029 = vmul.f32 %v5823, %v5972
    %v6030 = vmul.f32 %v5824, %v5972
    %v6031 = vmul.f32 %v5825, %v5972
    %v6032 = vmul.f32 %v5826, %v5972
    %v6033 = vmul.f32 %v5827, %v5972
    %v6034 = vmul.f32 %v5828, %v5972
    %v6035 = vmul.f32 %v5829, %v5972
    %v6036 = vmul.f32 %v5830, %v5972
    %v6037 = vld [vmem:[%s4 + $0x2] sm:$0x1]
    %v6038 = vlaneseq
    %v6039 = vshrl.u32 %v6038, 7
    %v6040 = vsub.s32 0, %v6039
    %v6041 = vrot.slane %v6037, %v6040
    %v6042 = vadd.f32 %v5973, %v6041
    %v6043 = vadd.f32 %v5974, %v6041
    %v6044 = vadd.f32 %v5975, %v6041
    %v6045 = vadd.f32 %v5976, %v6041
    %v6046 = vadd.f32 %v5977, %v6041
    %v6047 = vadd.f32 %v5978, %v6041
    %v6048 = vadd.f32 %v5979, %v6041
    %v6049 = vadd.f32 %v5980, %v6041
    %v6050 = vadd.f32 %v5981, %v6041
    %v6051 = vadd.f32 %v5982, %v6041
    %v6052 = vadd.f32 %v5983, %v6041
    %v6053 = vadd.f32 %v5984, %v6041
    %v6054 = vadd.f32 %v5985, %v6041
    %v6055 = vadd.f32 %v5986, %v6041
    %v6056 = vadd.f32 %v5987, %v6041
    %v6057 = vadd.f32 %v5988, %v6041
    %v6058 = vadd.f32 %v5989, %v6041
    %v6059 = vadd.f32 %v5990, %v6041
    %v6060 = vadd.f32 %v5991, %v6041
    %v6061 = vadd.f32 %v5992, %v6041
    %v6062 = vadd.f32 %v5993, %v6041
    %v6063 = vadd.f32 %v5994, %v6041
    %v6064 = vadd.f32 %v5995, %v6041
    %v6065 = vadd.f32 %v5996, %v6041
    %v6066 = vadd.f32 %v5997, %v6041
    %v6067 = vadd.f32 %v5998, %v6041
    %v6068 = vadd.f32 %v5999, %v6041
    %v6069 = vadd.f32 %v6000, %v6041
    %v6070 = vadd.f32 %v6001, %v6041
    %v6071 = vadd.f32 %v6002, %v6041
    %v6072 = vadd.f32 %v6003, %v6041
    %v6073 = vadd.f32 %v6004, %v6041
    %v6074 = vadd.f32 %v6005, %v6041
    %v6075 = vadd.f32 %v6006, %v6041
    %v6076 = vadd.f32 %v6007, %v6041
    %v6077 = vadd.f32 %v6008, %v6041
    %v6078 = vadd.f32 %v6009, %v6041
    %v6079 = vadd.f32 %v6010, %v6041
    %v6080 = vadd.f32 %v6011, %v6041
    %v6081 = vadd.f32 %v6012, %v6041
    %v6082 = vadd.f32 %v6013, %v6041
    %v6083 = vadd.f32 %v6014, %v6041
    %v6084 = vadd.f32 %v6015, %v6041
    %v6085 = vadd.f32 %v6016, %v6041
    %v6086 = vadd.f32 %v6017, %v6041
    %v6087 = vadd.f32 %v6018, %v6041
    %v6088 = vadd.f32 %v6019, %v6041
    %v6089 = vadd.f32 %v6020, %v6041
    %v6090 = vadd.f32 %v6021, %v6041
    %v6091 = vadd.f32 %v6022, %v6041
    %v6092 = vadd.f32 %v6023, %v6041
    %v6093 = vadd.f32 %v6024, %v6041
    %v6094 = vadd.f32 %v6025, %v6041
    %v6095 = vadd.f32 %v6026, %v6041
    %v6096 = vadd.f32 %v6027, %v6041
    %v6097 = vadd.f32 %v6028, %v6041
    %v6098 = vadd.f32 %v6029, %v6041
    %v6099 = vadd.f32 %v6030, %v6041
    %v6100 = vadd.f32 %v6031, %v6041
    %v6101 = vadd.f32 %v6032, %v6041
    %v6102 = vadd.f32 %v6033, %v6041
    %v6103 = vadd.f32 %v6034, %v6041
    %v6104 = vadd.f32 %v6035, %v6041
    %v6105 = vadd.f32 %v6036, %v6041
    %v6106 = vmax.f32 %v6042, 0.0
    %v6107 = vmax.f32 %v6043, 0.0
    %v6108 = vmax.f32 %v6044, 0.0
    %v6109 = vmax.f32 %v6045, 0.0
    %v6110 = vmax.f32 %v6046, 0.0
    %v6111 = vmax.f32 %v6047, 0.0
    %v6112 = vmax.f32 %v6048, 0.0
    %v6113 = vmax.f32 %v6049, 0.0
    %v6114 = vmax.f32 %v6050, 0.0
    %v6115 = vmax.f32 %v6051, 0.0
    %v6116 = vmax.f32 %v6052, 0.0
    %v6117 = vmax.f32 %v6053, 0.0
    %v6118 = vmax.f32 %v6054, 0.0
    %v6119 = vmax.f32 %v6055, 0.0
    %v6120 = vmax.f32 %v6056, 0.0
    %v6121 = vmax.f32 %v6057, 0.0
    %v6122 = vmax.f32 %v6058, 0.0
    %v6123 = vmax.f32 %v6059, 0.0
    %v6124 = vmax.f32 %v6060, 0.0
    %v6125 = vmax.f32 %v6061, 0.0
    %v6126 = vmax.f32 %v6062, 0.0
    %v6127 = vmax.f32 %v6063, 0.0
    %v6128 = vmax.f32 %v6064, 0.0
    %v6129 = vmax.f32 %v6065, 0.0
    %v6130 = vmax.f32 %v6066, 0.0
    %v6131 = vmax.f32 %v6067, 0.0
    %v6132 = vmax.f32 %v6068, 0.0
    %v6133 = vmax.f32 %v6069, 0.0
    %v6134 = vmax.f32 %v6070, 0.0
    %v6135 = vmax.f32 %v6071, 0.0
    %v6136 = vmax.f32 %v6072, 0.0
    %v6137 = vmax.f32 %v6073, 0.0
    %v6138 = vmax.f32 %v6074, 0.0
    %v6139 = vmax.f32 %v6075, 0.0
    %v6140 = vmax.f32 %v6076, 0.0
    %v6141 = vmax.f32 %v6077, 0.0
    %v6142 = vmax.f32 %v6078, 0.0
    %v6143 = vmax.f32 %v6079, 0.0
    %v6144 = vmax.f32 %v6080, 0.0
    %v6145 = vmax.f32 %v6081, 0.0
    %v6146 = vmax.f32 %v6082, 0.0
    %v6147 = vmax.f32 %v6083, 0.0
    %v6148 = vmax.f32 %v6084, 0.0
    %v6149 = vmax.f32 %v6085, 0.0
    %v6150 = vmax.f32 %v6086, 0.0
    %v6151 = vmax.f32 %v6087, 0.0
    %v6152 = vmax.f32 %v6088, 0.0
    %v6153 = vmax.f32 %v6089, 0.0
    %v6154 = vmax.f32 %v6090, 0.0
    %v6155 = vmax.f32 %v6091, 0.0
    %v6156 = vmax.f32 %v6092, 0.0
    %v6157 = vmax.f32 %v6093, 0.0
    %v6158 = vmax.f32 %v6094, 0.0
    %v6159 = vmax.f32 %v6095, 0.0
    %v6160 = vmax.f32 %v6096, 0.0
    %v6161 = vmax.f32 %v6097, 0.0
    %v6162 = vmax.f32 %v6098, 0.0
    %v6163 = vmax.f32 %v6099, 0.0
    %v6164 = vmax.f32 %v6100, 0.0
    %v6165 = vmax.f32 %v6101, 0.0
    %v6166 = vmax.f32 %v6102, 0.0
    %v6167 = vmax.f32 %v6103, 0.0
    %v6168 = vmax.f32 %v6104, 0.0
    %v6169 = vmax.f32 %v6105, 0.0
    %v6170 = vmax.f32 %v6106, %v6108
    %v6171 = vmax.f32 %v6107, %v6109
    %v6172 = vmax.f32 %v6110, %v6112
    %v6173 = vmax.f32 %v6111, %v6113
    %v6174 = vmax.f32 %v6114, %v6116
    %v6175 = vmax.f32 %v6115, %v6117
    %v6176 = vmax.f32 %v6118, %v6120
    %v6177 = vmax.f32 %v6119, %v6121
    %v6178 = vmax.f32 %v6122, %v6124
    %v6179 = vmax.f32 %v6123, %v6125
    %v6180 = vmax.f32 %v6126, %v6128
    %v6181 = vmax.f32 %v6127, %v6129
    %v6182 = vmax.f32 %v6130, %v6132
    %v6183 = vmax.f32 %v6131, %v6133
    %v6184 = vmax.f32 %v6134, %v6136
    %v6185 = vmax.f32 %v6135, %v6137
    %v6186 = vmax.f32 %v6138, %v6140
    %v6187 = vmax.f32 %v6139, %v6141
    %v6188 = vmax.f32 %v6142, %v6144
    %v6189 = vmax.f32 %v6143, %v6145
    %v6190 = vmax.f32 %v6146, %v6148
    %v6191 = vmax.f32 %v6147, %v6149
    %v6192 = vmax.f32 %v6150, %v6152
    %v6193 = vmax.f32 %v6151, %v6153
    %v6194 = vmax.f32 %v6154, %v6156
    %v6195 = vmax.f32 %v6155, %v6157
    %v6196 = vmax.f32 %v6158, %v6160
    %v6197 = vmax.f32 %v6159, %v6161
    %v6198 = vmax.f32 %v6162, %v6164
    %v6199 = vmax.f32 %v6163, %v6165
    %v6200 = vmax.f32 %v6166, %v6168
    %v6201 = vmax.f32 %v6167, %v6169
    %6202 = vst [vmem:[#allocation3] sm:$0xff] %v6170
    %6203 = vst [vmem:[#allocation3 + $0x8] sm:$0xff] %v6171
    %6204 = vst [vmem:[#allocation3 + $0x10] sm:$0xff] %v6172
    %6205 = vst [vmem:[#allocation3 + $0x18] sm:$0xff] %v6173
    %6206 = vst [vmem:[#allocation3 + $0x20] sm:$0xff] %v6174
    %6207 = vst [vmem:[#allocation3 + $0x28] sm:$0xff] %v6175
    %6208 = vst [vmem:[#allocation3 + $0x30] sm:$0xff] %v6176
    %6209 = vst [vmem:[#allocation3 + $0x38] sm:$0xff] %v6177
    %6210 = vst [vmem:[#allocation3 + $0x40] sm:$0xff] %v6178
    %6211 = vst [vmem:[#allocation3 + $0x48] sm:$0xff] %v6179
    %6212 = vst [vmem:[#allocation3 + $0x50] sm:$0xff] %v6180
    %6213 = vst [vmem:[#allocation3 + $0x58] sm:$0xff] %v6181
    %6214 = vst [vmem:[#allocation3 + $0x60] sm:$0xff] %v6182
    %6215 = vst [vmem:[#allocation3 + $0x68] sm:$0xff] %v6183
    %6216 = vst [vmem:[#allocation3 + $0x70] sm:$0xff] %v6184
    %6217 = vst [vmem:[#allocation3 + $0x78] sm:$0xff] %v6185
    %6218 = vst [vmem:[#allocation3 + $0x80] sm:$0xff] %v6186
    %6219 = vst [vmem:[#allocation3 + $0x88] sm:$0xff] %v6187
    %6220 = vst [vmem:[#allocation3 + $0x90] sm:$0xff] %v6188
    %6221 = vst [vmem:[#allocation3 + $0x98] sm:$0xff] %v6189
    %6222 = vst [vmem:[#allocation3 + $0xa0] sm:$0xff] %v6190
    %6223 = vst [vmem:[#allocation3 + $0xa8] sm:$0xff] %v6191
    %6224 = vst [vmem:[#allocation3 + $0xb0] sm:$0xff] %v6192
    %6225 = vst [vmem:[#allocation3 + $0xb8] sm:$0xff] %v6193
    %6226 = vst [vmem:[#allocation3 + $0xc0] sm:$0xff] %v6194
    %6227 = vst [vmem:[#allocation3 + $0xc8] sm:$0xff] %v6195
    %6228 = vst [vmem:[#allocation3 + $0xd0] sm:$0xff] %v6196
    %6229 = vst [vmem:[#allocation3 + $0xd8] sm:$0xff] %v6197
    %6230 = vst [vmem:[#allocation3 + $0xe0] sm:$0xff] %v6198
    %6231 = vst [vmem:[#allocation3 + $0xe8] sm:$0xff] %v6199
    %6232 = vst [vmem:[#allocation3 + $0xf0] sm:$0xff] %v6200
    %6233 = vst [vmem:[#allocation3 + $0xf8] sm:$0xff] %v6201
    %v6234 = vld [vmem:[#allocation3] ss:$2 sm:$0xff]
    %s6235 = scalar_lea.vmem [#allocation3], 16
    %v6236 = vld [vmem:[%s6235] ss:$2 sm:$0xff]
    %s6237 = scalar_lea.vmem [#allocation3], 32
    %v6238 = vld [vmem:[%s6237] ss:$2 sm:$0xff]
    %s6239 = scalar_lea.vmem [#allocation3], 48
    %v6240 = vld [vmem:[%s6239] ss:$2 sm:$0xff]
    %s6241 = scalar_lea.vmem [#allocation3], 64
    %v6242 = vld [vmem:[%s6241] ss:$2 sm:$0xff]
    %s6243 = scalar_lea.vmem [#allocation3], 80
    %v6244 = vld [vmem:[%s6243] ss:$2 sm:$0xff]
    %s6245 = scalar_lea.vmem [#allocation3], 96
    %v6246 = vld [vmem:[%s6245] ss:$2 sm:$0xff]
    %s6247 = scalar_lea.vmem [#allocation3], 112
    %v6248 = vld [vmem:[%s6247] ss:$2 sm:$0xff]
    %s6249 = scalar_lea.vmem [#allocation3], 128
    %v6250 = vld [vmem:[%s6249] ss:$2 sm:$0xff]
    %s6251 = scalar_lea.vmem [#allocation3], 144
    %v6252 = vld [vmem:[%s6251] ss:$2 sm:$0xff]
    %s6253 = scalar_lea.vmem [#allocation3], 160
    %v6254 = vld [vmem:[%s6253] ss:$2 sm:$0xff]
    %s6255 = scalar_lea.vmem [#allocation3], 176
    %v6256 = vld [vmem:[%s6255] ss:$2 sm:$0xff]
    %s6257 = scalar_lea.vmem [#allocation3], 192
    %v6258 = vld [vmem:[%s6257] ss:$2 sm:$0xff]
    %s6259 = scalar_lea.vmem [#allocation3], 208
    %v6260 = vld [vmem:[%s6259] ss:$2 sm:$0xff]
    %s6261 = scalar_lea.vmem [#allocation3], 224
    %v6262 = vld [vmem:[%s6261] ss:$2 sm:$0xff]
    %s6263 = scalar_lea.vmem [#allocation3], 240
    %v6264 = vld [vmem:[%s6263] ss:$2 sm:$0xff]
    %s6265 = scalar_lea.vmem [#allocation3], 1
    %v6266 = vld [vmem:[%s6265] ss:$2 sm:$0xff]
    %s6267 = scalar_lea.vmem [#allocation3], 17
    %v6268 = vld [vmem:[%s6267] ss:$2 sm:$0xff]
    %s6269 = scalar_lea.vmem [#allocation3], 33
    %v6270 = vld [vmem:[%s6269] ss:$2 sm:$0xff]
    %s6271 = scalar_lea.vmem [#allocation3], 49
    %v6272 = vld [vmem:[%s6271] ss:$2 sm:$0xff]
    %s6273 = scalar_lea.vmem [#allocation3], 65
    %v6274 = vld [vmem:[%s6273] ss:$2 sm:$0xff]
    %s6275 = scalar_lea.vmem [#allocation3], 81
    %v6276 = vld [vmem:[%s6275] ss:$2 sm:$0xff]
    %s6277 = scalar_lea.vmem [#allocation3], 97
    %v6278 = vld [vmem:[%s6277] ss:$2 sm:$0xff]
    %s6279 = scalar_lea.vmem [#allocation3], 113
    %v6280 = vld [vmem:[%s6279] ss:$2 sm:$0xff]
    %s6281 = scalar_lea.vmem [#allocation3], 129
    %v6282 = vld [vmem:[%s6281] ss:$2 sm:$0xff]
    %s6283 = scalar_lea.vmem [#allocation3], 145
    %v6284 = vld [vmem:[%s6283] ss:$2 sm:$0xff]
    %s6285 = scalar_lea.vmem [#allocation3], 161
    %v6286 = vld [vmem:[%s6285] ss:$2 sm:$0xff]
    %s6287 = scalar_lea.vmem [#allocation3], 177
    %v6288 = vld [vmem:[%s6287] ss:$2 sm:$0xff]
    %s6289 = scalar_lea.vmem [#allocation3], 193
    %v6290 = vld [vmem:[%s6289] ss:$2 sm:$0xff]
    %s6291 = scalar_lea.vmem [#allocation3], 209
    %v6292 = vld [vmem:[%s6291] ss:$2 sm:$0xff]
    %s6293 = scalar_lea.vmem [#allocation3], 225
    %v6294 = vld [vmem:[%s6293] ss:$2 sm:$0xff]
    %s6295 = scalar_lea.vmem [#allocation3], 241
    %v6296 = vld [vmem:[%s6295] ss:$2 sm:$0xff]
    %v6297 = vmax.f32 %v6234, %v6266
    %v6298 = vmax.f32 %v6236, %v6268
    %v6299 = vmax.f32 %v6238, %v6270
    %v6300 = vmax.f32 %v6240, %v6272
    %v6301 = vmax.f32 %v6242, %v6274
    %v6302 = vmax.f32 %v6244, %v6276
    %v6303 = vmax.f32 %v6246, %v6278
    %v6304 = vmax.f32 %v6248, %v6280
    %v6305 = vmax.f32 %v6250, %v6282
    %v6306 = vmax.f32 %v6252, %v6284
    %v6307 = vmax.f32 %v6254, %v6286
    %v6308 = vmax.f32 %v6256, %v6288
    %v6309 = vmax.f32 %v6258, %v6290
    %v6310 = vmax.f32 %v6260, %v6292
    %v6311 = vmax.f32 %v6262, %v6294
    %v6312 = vmax.f32 %v6264, %v6296
    %6313 = vst [vmem:[#allocation12] sm:$0xff] %v6297
    %6314 = vst [vmem:[#allocation12 + $0x8] sm:$0xff] %v6298
    %6315 = vst [vmem:[#allocation12 + $0x10] sm:$0xff] %v6299
    %6316 = vst [vmem:[#allocation12 + $0x18] sm:$0xff] %v6300
    %6317 = vst [vmem:[#allocation12 + $0x20] sm:$0xff] %v6301
    %6318 = vst [vmem:[#allocation12 + $0x28] sm:$0xff] %v6302
    %6319 = vst [vmem:[#allocation12 + $0x30] sm:$0xff] %v6303
    %6320 = vst [vmem:[#allocation12 + $0x38] sm:$0xff] %v6304
    %6321 = vst [vmem:[#allocation12 + $0x40] sm:$0xff] %v6305
    %6322 = vst [vmem:[#allocation12 + $0x48] sm:$0xff] %v6306
    %6323 = vst [vmem:[#allocation12 + $0x50] sm:$0xff] %v6307
    %6324 = vst [vmem:[#allocation12 + $0x58] sm:$0xff] %v6308
    %6325 = vst [vmem:[#allocation12 + $0x60] sm:$0xff] %v6309
    %6326 = vst [vmem:[#allocation12 + $0x68] sm:$0xff] %v6310
    %6327 = vst [vmem:[#allocation12 + $0x70] sm:$0xff] %v6311
    %6328 = vst [vmem:[#allocation12 + $0x78] sm:$0xff] %v6312
    // Predicated region
    $region38: #{tpu_custom_call.1} parent=1 // pred_check
      _
    $region39: #{tpu_custom_call.1} parent=1 // pred_check_branch
      %6330 = sbr.rel (0) target = $region41
    $region40: #{tpu_custom_call.1} parent=1 // pred_region
      %s6332 = ssub.s32 2048, 2048
      %6333 = vsyncadd [#allocation6], %s6332
      %s6334 = sshll.u32 [#allocation12], 4
      %s6335 = int_to_ptr.vmem [resolvable:$true] %s6334
      %6340 = dma.vmem_to_hbm [thread:$0]  %s6335, 2048, %s5, [#allocation6], 128, 128, 8
    $region41: #{tpu_custom_call.1} parent=1 // pred_fallthru
      _
    // Predicated region
    $region42: #{tpu_custom_call.1} parent=1 // pred_check
      _
    $region43: #{tpu_custom_call.1} parent=1 // pred_check_branch
      %6342 = sbr.rel (0) target = $region45
    $region44: #{tpu_custom_call.1} parent=1 // pred_region
      %6343 = dma.done [#allocation6], 2048
    $region45: #{tpu_custom_call.1} parent=1 // pred_fallthru
      _
    %6344 = vsyncpa [#allocation5], 1
    %6345 = vsyncpa [#allocation8], 1
    %6346 = vsyncpa [#allocation11], 1
    %6347 = vsyncpa [#allocation6], 1

</llo_original>
